<compile_context>
chip_gen: v7x
topology: tpu7x:2x2x1
jax: 0.10.0
libtpu: 0.0.40
codegen_flags: <defaults>
</compile_context>

<pallas_src>
import functools

import jax
import jax.numpy as jnp
from jax.experimental import pallas as pl
from jax.experimental.pallas import tpu as pltpu

BN_EPS = 1e-5


def _round_up(x, m):
    return (x + m - 1) // m * m


# ----------------------------- Pallas kernel --------------------------------

def _conv_gemm_kernel(p_ref, w_ref, s_ref, b_ref, o_ref, acc_ref, *, leaky):
    """One (tm, tn) output tile; K is the last ("arbitrary") grid axis."""

    @pl.when(pl.program_id(2) == 0)
    def _():
        acc_ref[...] = jnp.zeros_like(acc_ref)

    # bf16 x bf16 -> f32 accumulation on the MXU.
    acc_ref[...] += jnp.dot(p_ref[...], w_ref[...],
                            preferred_element_type=jnp.float32)

    @pl.when(pl.program_id(2) == pl.num_programs(2) - 1)
    def _():
        y = acc_ref[...] * s_ref[...] + b_ref[...]
        if leaky:
            y = jnp.where(y >= 0.0, y, 0.2 * y)          # LeakyReLU(0.2)
        o_ref[...] = y


def conv_gemm(patches, weight_kn, scale, shift, *, leaky):
    """Fused GEMM + per-channel affine + optional LeakyReLU on TPU.

    patches: (M, K) f32, weight_kn: (K, N) f32, scale/shift: (N,) f32.
    Returns (M, N) f32.
    """
    M, K = patches.shape
    K2, N = weight_kn.shape
    assert K == K2

    # bf16 MXU inputs; accumulation stays f32 inside the kernel.
    p16 = patches.astype(jnp.bfloat16)
    w16 = weight_kn.astype(jnp.bfloat16)
    s = scale[None, :].astype(jnp.float32)
    b = shift[None, :].astype(jnp.float32)

    # Keep the output lane-dense (tn = 128).  Only the small weight / scale /
    # shift are padded when N is not a multiple of 128; the large patches
    # matrix is never copied or padded (partial M blocks handled by the grid).
    Np = _round_up(N, 128)
    if Np != N:
        w16 = jnp.zeros((K, Np), jnp.bfloat16).at[:, :N].set(w16)
        s = jnp.zeros((1, Np), jnp.float32).at[:, :N].set(s)
        b = jnp.zeros((1, Np), jnp.float32).at[:, :N].set(b)

    tm = min(128, _round_up(M, 16))      # don't over-pad the tiny-M late layers
    tn = 128                             # v5e-safe epilogue; >=2 N steps for N>=256
    tk = 1024 if (K > 1024 and K % 1024 == 0) else K
    assert K % tk == 0                   # out-of-bounds K would corrupt the sum

    grid = (pl.cdiv(M, tm), Np // tn, K // tk)

    out = pl.pallas_call(
        functools.partial(_conv_gemm_kernel, leaky=leaky),
        out_shape=jax.ShapeDtypeStruct((M, Np), jnp.float32),
        grid_spec=pltpu.PrefetchScalarGridSpec(
            num_scalar_prefetch=0,
            grid=grid,
            in_specs=[
                pl.BlockSpec((tm, tk), lambda i, j, k: (i, k)),   # patches
                pl.BlockSpec((tk, tn), lambda i, j, k: (k, j)),   # weights
                pl.BlockSpec((1, tn), lambda i, j, k: (0, j)),    # scale
                pl.BlockSpec((1, tn), lambda i, j, k: (0, j)),    # shift
            ],
            out_specs=pl.BlockSpec((tm, tn), lambda i, j, k: (i, j)),
            scratch_shapes=[pltpu.VMEM((tm, tn), jnp.float32)],
        ),
        compiler_params=pltpu.CompilerParams(
            dimension_semantics=("parallel", "parallel", "arbitrary"),
        ),
    )(p16, w16, s, b)

    return out[:, :N] if Np != N else out


# ------------------------------- JAX glue ------------------------------------

def im2col_nhwc(x, k, stride, pad):
    """x: (B, H, W, C) -> (B*Ho*Wo, k*k*C), K flattening order = (kh, kw, cin)."""
    B, H, W, C = x.shape
    xp = jnp.pad(x, ((0, 0), (pad, pad), (pad, pad), (0, 0)))
    Ho = (H + 2 * pad - k) // stride + 1
    Wo = (W + 2 * pad - k) // stride + 1
    cols = []
    for kh in range(k):
        for kw in range(k):
            cols.append(xp[:, kh:kh + stride * Ho:stride,
                            kw:kw + stride * Wo:stride, :])     # (B,Ho,Wo,C)
    p = jnp.stack(cols, axis=3)                                 # (B,Ho,Wo,k*k,C)
    return p.reshape(B * Ho * Wo, k * k * C), Ho, Wo


def conv_layer(x_nhwc, weight, scale, shift, *, stride, pad, leaky):
    """weight: (Cout, Cin, k, k) (PyTorch OIHW).  Input/output are NHWC."""
    # TODO(synk): im2col is still materialized by XLA; fusing patch extraction
    # (or the whole 5-layer net) into the kernel would remove the remaining
    # k^2 activation read amplification.
    Cout, Cin, k, _ = weight.shape
    B = x_nhwc.shape[0]
    patches, Ho, Wo = im2col_nhwc(x_nhwc, k, stride, pad)
    w_kn = weight.transpose(2, 3, 1, 0).reshape(k * k * Cin, Cout)  # (kh,kw,cin) order
    y = conv_gemm(patches, w_kn, scale, shift, leaky=leaky)
    return y.reshape(B, Ho, Wo, Cout)


def init_params(key, filters=64, init_scale=0.02):
    """Mirrors PatchGAN.__init__ + init_weights(scale=0.02)."""
    ch = filters
    w_shapes = [
        (ch, 6, 4, 4),           # enc_conv0 (bias)
        (ch * 2, ch, 4, 4),      # enc_conv1 (BN)
        (ch * 4, ch * 2, 4, 4),  # enc_conv2 (BN)
        (ch * 8, ch * 4, 4, 4),  # enc_conv3 (BN)
        (1, ch * 8, 4, 4),       # enc_conv4 (bias)
    ]
    keys = jax.random.split(key, len(w_shapes))
    params = {
        "w": [init_scale * jax.random.normal(k, s, jnp.float32)
              for k, s in zip(keys, w_shapes)],
        "bias0": jnp.zeros((ch,), jnp.float32),
        "bias4": jnp.zeros((1,), jnp.float32),
    }
    for i, c in [(1, ch * 2), (2, ch * 4), (3, ch * 8)]:
        params[f"bn{i}"] = dict(
            gamma=jnp.ones((c,), jnp.float32), beta=jnp.zeros((c,), jnp.float32),
            mean=jnp.zeros((c,), jnp.float32), var=jnp.ones((c,), jnp.float32))
    return params


def patchgan_forward(params, x_nchw):
    # TODO(synk): BatchNorm is inference-mode (running stats), not training-mode
    # batch statistics.
    w = params["w"]
    ch0 = w[0].shape[0]
    x = jnp.transpose(x_nchw, (0, 2, 3, 1))          # NCHW -> NHWC once

    e = conv_layer(x, w[0], jnp.ones((ch0,), jnp.float32), params["bias0"],
                   stride=2, pad=1, leaky=True)
    strides = {1: 2, 2: 2, 3: 1}
    for i in (1, 2, 3):
        bn = params[f"bn{i}"]
        s = bn["gamma"] / jnp.sqrt(bn["var"] + BN_EPS)
        b = bn["beta"] - bn["mean"] * s
        e = conv_layer(e, w[i], s, b, stride=strides[i], pad=1, leaky=True)
    e = conv_layer(e, w[4], jnp.ones((1,), jnp.float32), params["bias4"],
                   stride=1, pad=1, leaky=False)
    return jnp.transpose(e, (0, 3, 1, 2))            # back to NCHW (PyTorch layout)


# ---------------------------- pure-JAX reference -----------------------------

def _ref_conv(x, w, stride, pad):
    return jax.lax.conv_general_dilated(
        x, w, window_strides=(stride, stride), padding=[(pad, pad), (pad, pad)],
        dimension_numbers=("NCHW", "OIHW", "NCHW"))


def patchgan_reference(params, x):
    w = params["w"]
    lrelu = lambda t: jnp.where(t >= 0.0, t, 0.2 * t)
    e = lrelu(_ref_conv(x, w[0], 2, 1) + params["bias0"][None, :, None, None])
    strides = {1: 2, 2: 2, 3: 1}
    for i in (1, 2, 3):
        bn = params[f"bn{i}"]
        s = bn["gamma"] / jnp.sqrt(bn["var"] + BN_EPS)
        b = bn["beta"] - bn["mean"] * s
        e = lrelu(_ref_conv(e, w[i], strides[i], 1)
                  * s[None, :, None, None] + b[None, :, None, None])
    e = _ref_conv(e, w[4], 1, 1) + params["bias4"][None, :, None, None]
    return e


# ------------------------------------ main -----------------------------------

if __name__ == "__main__":
    key = jax.random.PRNGKey(0)
    k_params, k_x = jax.random.split(key)

    params = init_params(k_params, filters=64)
    # PatchGAN takes a 6-channel input (concat of two RGB images).
    x = jax.random.normal(k_x, (2, 6, 32, 32), jnp.float32)

    fwd = jax.jit(patchgan_forward)
    out = jax.block_until_ready(fwd(params, x))

    ref = jax.block_until_ready(jax.jit(patchgan_reference)(params, x))
    assert out.shape == ref.shape == (2, 1, 2, 2), out.shape

    # bf16 MXU inputs (with f32 accumulation) -> compare against the f32
    # reference with a bf16-level relative tolerance.
    err = float(jnp.max(jnp.abs(out - ref)))
    ref_mag = float(jnp.max(jnp.abs(ref)))
    assert err <= 0.1 * ref_mag + 1e-3, (err, ref_mag)

    print("KERNEL_OK")
</pallas_src>

<mosaic_0001>
module attributes {stable_mosaic.version = 11 : i64} {
  func.func @_conv_gemm_kernel(%arg0: i32, %arg1: i32, %arg2: i32, %arg3: memref<128x96xbf16, #tpu.memory_space<vmem>>, %arg4: memref<96x128xbf16, #tpu.memory_space<vmem>>, %arg5: memref<1x128xf32, #tpu.memory_space<vmem>>, %arg6: memref<1x128xf32, #tpu.memory_space<vmem>>, %arg7: memref<128x128xf32, #tpu.memory_space<vmem>>, %arg8: memref<128x128xf32, #tpu.memory_space<vmem>>) attributes {dimension_semantics = [#tpu.dimension_semantics<parallel>, #tpu.dimension_semantics<parallel>, #tpu.dimension_semantics<arbitrary>], iteration_bounds = array<i64: 4, 1, 1>, scalar_prefetch = 0 : i64, scratch_operands = 1 : i64, tpu.core_type = #tpu.core_type<tc>, window_params = [{transform_indices = @transform_0, window_bounds = array<i64: 128, 96>}, {transform_indices = @transform_1, window_bounds = array<i64: 96, 128>}, {transform_indices = @transform_2, window_bounds = array<i64: 1, 128>}, {transform_indices = @transform_3, window_bounds = array<i64: 1, 128>}, {transform_indices = @transform_4, window_bounds = array<i64: 128, 128>}]} {
    %c0_i32 = arith.constant 0 : i32
    %0 = arith.cmpi eq, %arg2, %c0_i32 : i32
    %1 = arith.extui %0 : i1 to i32
    %c0_i32_0 = arith.constant 0 : i32
    %2 = arith.cmpi ne, %1, %c0_i32_0 : i32
    scf.if %2 {
      %cst_10 = arith.constant 0.000000e+00 : f32
      %12 = vector.broadcast %cst_10 : f32 to vector<128x128xf32>
      %c0_11 = arith.constant 0 : index
      %c0_12 = arith.constant 0 : index
      %13 = vector.load %arg8[%c0_11, %c0_12] : memref<128x128xf32, #tpu.memory_space<vmem>>, vector<128x128xf32>
      tpu.vector_store %arg8[%c0_11, %c0_12], %12 {strides = array<i32>} : memref<128x128xf32, #tpu.memory_space<vmem>>, vector<128x128xf32>,
    } else {
    }
    %c0 = arith.constant 0 : index
    %c0_1 = arith.constant 0 : index
    %3 = vector.load %arg8[%c0, %c0_1] : memref<128x128xf32, #tpu.memory_space<vmem>>, vector<128x128xf32>
    %c0_2 = arith.constant 0 : index
    %c0_3 = arith.constant 0 : index
    %4 = vector.load %arg3[%c0_2, %c0_3] : memref<128x96xbf16, #tpu.memory_space<vmem>>, vector<128x96xbf16>
    %c0_4 = arith.constant 0 : index
    %c0_5 = arith.constant 0 : index
    %5 = vector.load %arg4[%c0_4, %c0_5] : memref<96x128xbf16, #tpu.memory_space<vmem>>, vector<96x128xbf16>
    %cst = arith.constant dense<0.000000e+00> : vector<128x128xf32>
    %6 = tpu.matmul %4, %5, %cst {dimension_numbers = #tpu.dot_dimension_numbers<[1], [0], [0], [1], [0, 0, 1, 1], [], []>} : vector<128x96xbf16>, vector<96x128xbf16>, vector<128x128xf32> -> vector<128x128xf32>
    %7 = arith.addf %3, %6 : vector<128x128xf32>
    %c0_6 = arith.constant 0 : index
    %c0_7 = arith.constant 0 : index
    %8 = vector.load %arg8[%c0_6, %c0_7] : memref<128x128xf32, #tpu.memory_space<vmem>>, vector<128x128xf32>
    tpu.vector_store %arg8[%c0_6, %c0_7], %7 {strides = array<i32>} : memref<128x128xf32, #tpu.memory_space<vmem>>, vector<128x128xf32>,
    %c0_i32_8 = arith.constant 0 : i32
    %9 = arith.cmpi eq, %arg2, %c0_i32_8 : i32
    %10 = arith.extui %9 : i1 to i32
    %c0_i32_9 = arith.constant 0 : i32
    %11 = arith.cmpi ne, %10, %c0_i32_9 : i32
    scf.if %11 {
      %c0_10 = arith.constant 0 : index
      %c0_11 = arith.constant 0 : index
      %12 = vector.load %arg8[%c0_10, %c0_11] : memref<128x128xf32, #tpu.memory_space<vmem>>, vector<128x128xf32>
      %c0_12 = arith.constant 0 : index
      %c0_13 = arith.constant 0 : index
      %13 = vector.load %arg5[%c0_12, %c0_13] : memref<1x128xf32, #tpu.memory_space<vmem>>, vector<1x128xf32>
      %14 = vector.broadcast %13 : vector<1x128xf32> to vector<128x128xf32>
      %15 = arith.mulf %12, %14 : vector<128x128xf32>
      %c0_14 = arith.constant 0 : index
      %c0_15 = arith.constant 0 : index
      %16 = vector.load %arg6[%c0_14, %c0_15] : memref<1x128xf32, #tpu.memory_space<vmem>>, vector<1x128xf32>
      %17 = vector.broadcast %16 : vector<1x128xf32> to vector<128x128xf32>
      %18 = arith.addf %15, %17 : vector<128x128xf32>
      %cst_16 = arith.constant 0.000000e+00 : f32
      %19 = vector.broadcast %cst_16 : f32 to vector<128x128xf32>
      %20 = arith.cmpf oge, %18, %19 : vector<128x128xf32>
      %cst_17 = arith.constant 2.000000e-01 : f32
      %21 = vector.broadcast %cst_17 : f32 to vector<128x128xf32>
      %22 = arith.mulf %21, %18 : vector<128x128xf32>
      %23 = arith.select %20, %18, %22 : vector<128x128xi1>, vector<128x128xf32>
      %c0_18 = arith.constant 0 : index
      %c0_19 = arith.constant 0 : index
      %24 = vector.load %arg7[%c0_18, %c0_19] : memref<128x128xf32, #tpu.memory_space<vmem>>, vector<128x128xf32>
      tpu.vector_store %arg7[%c0_18, %c0_19], %23 {strides = array<i32>} : memref<128x128xf32, #tpu.memory_space<vmem>>, vector<128x128xf32>,
    } else {
    }
    return
  }
  func.func @transform_0(%arg0: i32, %arg1: i32, %arg2: i32) -> (i32, i32) {
    %c0_i32 = arith.constant 0 : i32
    return %arg0, %arg2 : i32, i32
  }
  func.func @transform_1(%arg0: i32, %arg1: i32, %arg2: i32) -> (i32, i32) {
    %c0_i32 = arith.constant 0 : i32
    return %arg2, %arg1 : i32, i32
  }
  func.func @transform_2(%arg0: i32, %arg1: i32, %arg2: i32) -> (i32, i32) {
    %c0_i32 = arith.constant 0 : i32
    %c0_i32_0 = arith.constant 0 : i32
    return %c0_i32, %arg1 : i32, i32
  }
  func.func @transform_3(%arg0: i32, %arg1: i32, %arg2: i32) -> (i32, i32) {
    %c0_i32 = arith.constant 0 : i32
    %c0_i32_0 = arith.constant 0 : i32
    return %c0_i32, %arg1 : i32, i32
  }
  func.func @transform_4(%arg0: i32, %arg1: i32, %arg2: i32) -> (i32, i32) {
    %c0_i32 = arith.constant 0 : i32
    return %arg0, %arg1 : i32, i32
  }
}

module attributes {stable_mosaic.version = 11 : i64} {
  func.func @_conv_gemm_kernel(%arg0: i32, %arg1: i32, %arg2: i32, %arg3: memref<128x1024xbf16, #tpu.memory_space<vmem>>, %arg4: memref<1024x128xbf16, #tpu.memory_space<vmem>>, %arg5: memref<1x128xf32, #tpu.memory_space<vmem>>, %arg6: memref<1x128xf32, #tpu.memory_space<vmem>>, %arg7: memref<128x128xf32, #tpu.memory_space<vmem>>, %arg8: memref<128x128xf32, #tpu.memory_space<vmem>>) attributes {dimension_semantics = [#tpu.dimension_semantics<parallel>, #tpu.dimension_semantics<parallel>, #tpu.dimension_semantics<arbitrary>], iteration_bounds = array<i64: 1, 1, 1>, scalar_prefetch = 0 : i64, scratch_operands = 1 : i64, tpu.core_type = #tpu.core_type<tc>, window_params = [{transform_indices = @transform_0, window_bounds = array<i64: 128, 1024>}, {transform_indices = @transform_1, window_bounds = array<i64: 1024, 128>}, {transform_indices = @transform_2, window_bounds = array<i64: 1, 128>}, {transform_indices = @transform_3, window_bounds = array<i64: 1, 128>}, {transform_indices = @transform_4, window_bounds = array<i64: 128, 128>}]} {
    %c0_i32 = arith.constant 0 : i32
    %0 = arith.cmpi eq, %arg2, %c0_i32 : i32
    %1 = arith.extui %0 : i1 to i32
    %c0_i32_0 = arith.constant 0 : i32
    %2 = arith.cmpi ne, %1, %c0_i32_0 : i32
    scf.if %2 {
      %cst_10 = arith.constant 0.000000e+00 : f32
      %12 = vector.broadcast %cst_10 : f32 to vector<128x128xf32>
      %c0_11 = arith.constant 0 : index
      %c0_12 = arith.constant 0 : index
      %13 = vector.load %arg8[%c0_11, %c0_12] : memref<128x128xf32, #tpu.memory_space<vmem>>, vector<128x128xf32>
      tpu.vector_store %arg8[%c0_11, %c0_12], %12 {strides = array<i32>} : memref<128x128xf32, #tpu.memory_space<vmem>>, vector<128x128xf32>,
    } else {
    }
    %c0 = arith.constant 0 : index
    %c0_1 = arith.constant 0 : index
    %3 = vector.load %arg8[%c0, %c0_1] : memref<128x128xf32, #tpu.memory_space<vmem>>, vector<128x128xf32>
    %c0_2 = arith.constant 0 : index
    %c0_3 = arith.constant 0 : index
    %4 = vector.load %arg3[%c0_2, %c0_3] : memref<128x1024xbf16, #tpu.memory_space<vmem>>, vector<128x1024xbf16>
    %c0_4 = arith.constant 0 : index
    %c0_5 = arith.constant 0 : index
    %5 = vector.load %arg4[%c0_4, %c0_5] : memref<1024x128xbf16, #tpu.memory_space<vmem>>, vector<1024x128xbf16>
    %cst = arith.constant dense<0.000000e+00> : vector<128x128xf32>
    %6 = tpu.matmul %4, %5, %cst {dimension_numbers = #tpu.dot_dimension_numbers<[1], [0], [0], [1], [0, 0, 1, 1], [], []>} : vector<128x1024xbf16>, vector<1024x128xbf16>, vector<128x128xf32> -> vector<128x128xf32>
    %7 = arith.addf %3, %6 : vector<128x128xf32>
    %c0_6 = arith.constant 0 : index
    %c0_7 = arith.constant 0 : index
    %8 = vector.load %arg8[%c0_6, %c0_7] : memref<128x128xf32, #tpu.memory_space<vmem>>, vector<128x128xf32>
    tpu.vector_store %arg8[%c0_6, %c0_7], %7 {strides = array<i32>} : memref<128x128xf32, #tpu.memory_space<vmem>>, vector<128x128xf32>,
    %c0_i32_8 = arith.constant 0 : i32
    %9 = arith.cmpi eq, %arg2, %c0_i32_8 : i32
    %10 = arith.extui %9 : i1 to i32
    %c0_i32_9 = arith.constant 0 : i32
    %11 = arith.cmpi ne, %10, %c0_i32_9 : i32
    scf.if %11 {
      %c0_10 = arith.constant 0 : index
      %c0_11 = arith.constant 0 : index
      %12 = vector.load %arg8[%c0_10, %c0_11] : memref<128x128xf32, #tpu.memory_space<vmem>>, vector<128x128xf32>
      %c0_12 = arith.constant 0 : index
      %c0_13 = arith.constant 0 : index
      %13 = vector.load %arg5[%c0_12, %c0_13] : memref<1x128xf32, #tpu.memory_space<vmem>>, vector<1x128xf32>
      %14 = vector.broadcast %13 : vector<1x128xf32> to vector<128x128xf32>
      %15 = arith.mulf %12, %14 : vector<128x128xf32>
      %c0_14 = arith.constant 0 : index
      %c0_15 = arith.constant 0 : index
      %16 = vector.load %arg6[%c0_14, %c0_15] : memref<1x128xf32, #tpu.memory_space<vmem>>, vector<1x128xf32>
      %17 = vector.broadcast %16 : vector<1x128xf32> to vector<128x128xf32>
      %18 = arith.addf %15, %17 : vector<128x128xf32>
      %cst_16 = arith.constant 0.000000e+00 : f32
      %19 = vector.broadcast %cst_16 : f32 to vector<128x128xf32>
      %20 = arith.cmpf oge, %18, %19 : vector<128x128xf32>
      %cst_17 = arith.constant 2.000000e-01 : f32
      %21 = vector.broadcast %cst_17 : f32 to vector<128x128xf32>
      %22 = arith.mulf %21, %18 : vector<128x128xf32>
      %23 = arith.select %20, %18, %22 : vector<128x128xi1>, vector<128x128xf32>
      %c0_18 = arith.constant 0 : index
      %c0_19 = arith.constant 0 : index
      %24 = vector.load %arg7[%c0_18, %c0_19] : memref<128x128xf32, #tpu.memory_space<vmem>>, vector<128x128xf32>
      tpu.vector_store %arg7[%c0_18, %c0_19], %23 {strides = array<i32>} : memref<128x128xf32, #tpu.memory_space<vmem>>, vector<128x128xf32>,
    } else {
    }
    return
  }
  func.func @transform_0(%arg0: i32, %arg1: i32, %arg2: i32) -> (i32, i32) {
    %c0_i32 = arith.constant 0 : i32
    return %arg0, %arg2 : i32, i32
  }
  func.func @transform_1(%arg0: i32, %arg1: i32, %arg2: i32) -> (i32, i32) {
    %c0_i32 = arith.constant 0 : i32
    return %arg2, %arg1 : i32, i32
  }
  func.func @transform_2(%arg0: i32, %arg1: i32, %arg2: i32) -> (i32, i32) {
    %c0_i32 = arith.constant 0 : i32
    %c0_i32_0 = arith.constant 0 : i32
    return %c0_i32, %arg1 : i32, i32
  }
  func.func @transform_3(%arg0: i32, %arg1: i32, %arg2: i32) -> (i32, i32) {
    %c0_i32 = arith.constant 0 : i32
    %c0_i32_0 = arith.constant 0 : i32
    return %c0_i32, %arg1 : i32, i32
  }
  func.func @transform_4(%arg0: i32, %arg1: i32, %arg2: i32) -> (i32, i32) {
    %c0_i32 = arith.constant 0 : i32
    return %arg0, %arg1 : i32, i32
  }
}

module attributes {stable_mosaic.version = 11 : i64} {
  func.func @_conv_gemm_kernel(%arg0: i32, %arg1: i32, %arg2: i32, %arg3: memref<32x1024xbf16, #tpu.memory_space<vmem>>, %arg4: memref<1024x128xbf16, #tpu.memory_space<vmem>>, %arg5: memref<1x128xf32, #tpu.memory_space<vmem>>, %arg6: memref<1x128xf32, #tpu.memory_space<vmem>>, %arg7: memref<32x128xf32, #tpu.memory_space<vmem>>, %arg8: memref<32x128xf32, #tpu.memory_space<vmem>>) attributes {dimension_semantics = [#tpu.dimension_semantics<parallel>, #tpu.dimension_semantics<parallel>, #tpu.dimension_semantics<arbitrary>], iteration_bounds = array<i64: 1, 2, 2>, scalar_prefetch = 0 : i64, scratch_operands = 1 : i64, tpu.core_type = #tpu.core_type<tc>, window_params = [{transform_indices = @transform_0, window_bounds = array<i64: 32, 1024>}, {transform_indices = @transform_1, window_bounds = array<i64: 1024, 128>}, {transform_indices = @transform_2, window_bounds = array<i64: 1, 128>}, {transform_indices = @transform_3, window_bounds = array<i64: 1, 128>}, {transform_indices = @transform_4, window_bounds = array<i64: 32, 128>}]} {
    %c0_i32 = arith.constant 0 : i32
    %0 = arith.cmpi eq, %arg2, %c0_i32 : i32
    %1 = arith.extui %0 : i1 to i32
    %c0_i32_0 = arith.constant 0 : i32
    %2 = arith.cmpi ne, %1, %c0_i32_0 : i32
    scf.if %2 {
      %cst_9 = arith.constant 0.000000e+00 : f32
      %12 = vector.broadcast %cst_9 : f32 to vector<32x128xf32>
      %c0_10 = arith.constant 0 : index
      %c0_11 = arith.constant 0 : index
      %13 = vector.load %arg8[%c0_10, %c0_11] : memref<32x128xf32, #tpu.memory_space<vmem>>, vector<32x128xf32>
      tpu.vector_store %arg8[%c0_10, %c0_11], %12 {strides = array<i32>} : memref<32x128xf32, #tpu.memory_space<vmem>>, vector<32x128xf32>,
    } else {
    }
    %c0 = arith.constant 0 : index
    %c0_1 = arith.constant 0 : index
    %3 = vector.load %arg8[%c0, %c0_1] : memref<32x128xf32, #tpu.memory_space<vmem>>, vector<32x128xf32>
    %c0_2 = arith.constant 0 : index
    %c0_3 = arith.constant 0 : index
    %4 = vector.load %arg3[%c0_2, %c0_3] : memref<32x1024xbf16, #tpu.memory_space<vmem>>, vector<32x1024xbf16>
    %c0_4 = arith.constant 0 : index
    %c0_5 = arith.constant 0 : index
    %5 = vector.load %arg4[%c0_4, %c0_5] : memref<1024x128xbf16, #tpu.memory_space<vmem>>, vector<1024x128xbf16>
    %cst = arith.constant dense<0.000000e+00> : vector<32x128xf32>
    %6 = tpu.matmul %4, %5, %cst {dimension_numbers = #tpu.dot_dimension_numbers<[1], [0], [0], [1], [0, 0, 1, 1], [], []>} : vector<32x1024xbf16>, vector<1024x128xbf16>, vector<32x128xf32> -> vector<32x128xf32>
    %7 = arith.addf %3, %6 : vector<32x128xf32>
    %c0_6 = arith.constant 0 : index
    %c0_7 = arith.constant 0 : index
    %8 = vector.load %arg8[%c0_6, %c0_7] : memref<32x128xf32, #tpu.memory_space<vmem>>, vector<32x128xf32>
    tpu.vector_store %arg8[%c0_6, %c0_7], %7 {strides = array<i32>} : memref<32x128xf32, #tpu.memory_space<vmem>>, vector<32x128xf32>,
    %c1_i32 = arith.constant 1 : i32
    %9 = arith.cmpi eq, %arg2, %c1_i32 : i32
    %10 = arith.extui %9 : i1 to i32
    %c0_i32_8 = arith.constant 0 : i32
    %11 = arith.cmpi ne, %10, %c0_i32_8 : i32
    scf.if %11 {
      %c0_9 = arith.constant 0 : index
      %c0_10 = arith.constant 0 : index
      %12 = vector.load %arg8[%c0_9, %c0_10] : memref<32x128xf32, #tpu.memory_space<vmem>>, vector<32x128xf32>
      %c0_11 = arith.constant 0 : index
      %c0_12 = arith.constant 0 : index
      %13 = vector.load %arg5[%c0_11, %c0_12] : memref<1x128xf32, #tpu.memory_space<vmem>>, vector<1x128xf32>
      %14 = vector.broadcast %13 : vector<1x128xf32> to vector<32x128xf32>
      %15 = arith.mulf %12, %14 : vector<32x128xf32>
      %c0_13 = arith.constant 0 : index
      %c0_14 = arith.constant 0 : index
      %16 = vector.load %arg6[%c0_13, %c0_14] : memref<1x128xf32, #tpu.memory_space<vmem>>, vector<1x128xf32>
      %17 = vector.broadcast %16 : vector<1x128xf32> to vector<32x128xf32>
      %18 = arith.addf %15, %17 : vector<32x128xf32>
      %cst_15 = arith.constant 0.000000e+00 : f32
      %19 = vector.broadcast %cst_15 : f32 to vector<32x128xf32>
      %20 = arith.cmpf oge, %18, %19 : vector<32x128xf32>
      %cst_16 = arith.constant 2.000000e-01 : f32
      %21 = vector.broadcast %cst_16 : f32 to vector<32x128xf32>
      %22 = arith.mulf %21, %18 : vector<32x128xf32>
      %23 = arith.select %20, %18, %22 : vector<32x128xi1>, vector<32x128xf32>
      %c0_17 = arith.constant 0 : index
      %c0_18 = arith.constant 0 : index
      %24 = vector.load %arg7[%c0_17, %c0_18] : memref<32x128xf32, #tpu.memory_space<vmem>>, vector<32x128xf32>
      tpu.vector_store %arg7[%c0_17, %c0_18], %23 {strides = array<i32>} : memref<32x128xf32, #tpu.memory_space<vmem>>, vector<32x128xf32>,
    } else {
    }
    return
  }
  func.func @transform_0(%arg0: i32, %arg1: i32, %arg2: i32) -> (i32, i32) {
    %c0_i32 = arith.constant 0 : i32
    return %arg0, %arg2 : i32, i32
  }
  func.func @transform_1(%arg0: i32, %arg1: i32, %arg2: i32) -> (i32, i32) {
    %c0_i32 = arith.constant 0 : i32
    return %arg2, %arg1 : i32, i32
  }
  func.func @transform_2(%arg0: i32, %arg1: i32, %arg2: i32) -> (i32, i32) {
    %c0_i32 = arith.constant 0 : i32
    %c0_i32_0 = arith.constant 0 : i32
    return %c0_i32, %arg1 : i32, i32
  }
  func.func @transform_3(%arg0: i32, %arg1: i32, %arg2: i32) -> (i32, i32) {
    %c0_i32 = arith.constant 0 : i32
    %c0_i32_0 = arith.constant 0 : i32
    return %c0_i32, %arg1 : i32, i32
  }
  func.func @transform_4(%arg0: i32, %arg1: i32, %arg2: i32) -> (i32, i32) {
    %c0_i32 = arith.constant 0 : i32
    return %arg0, %arg1 : i32, i32
  }
}

module attributes {stable_mosaic.version = 11 : i64} {
  func.func @_conv_gemm_kernel(%arg0: i32, %arg1: i32, %arg2: i32, %arg3: memref<32x1024xbf16, #tpu.memory_space<vmem>>, %arg4: memref<1024x128xbf16, #tpu.memory_space<vmem>>, %arg5: memref<1x128xf32, #tpu.memory_space<vmem>>, %arg6: memref<1x128xf32, #tpu.memory_space<vmem>>, %arg7: memref<32x128xf32, #tpu.memory_space<vmem>>, %arg8: memref<32x128xf32, #tpu.memory_space<vmem>>) attributes {dimension_semantics = [#tpu.dimension_semantics<parallel>, #tpu.dimension_semantics<parallel>, #tpu.dimension_semantics<arbitrary>], iteration_bounds = array<i64: 1, 4, 4>, scalar_prefetch = 0 : i64, scratch_operands = 1 : i64, tpu.core_type = #tpu.core_type<tc>, window_params = [{transform_indices = @transform_0, window_bounds = array<i64: 32, 1024>}, {transform_indices = @transform_1, window_bounds = array<i64: 1024, 128>}, {transform_indices = @transform_2, window_bounds = array<i64: 1, 128>}, {transform_indices = @transform_3, window_bounds = array<i64: 1, 128>}, {transform_indices = @transform_4, window_bounds = array<i64: 32, 128>}]} {
    %c0_i32 = arith.constant 0 : i32
    %0 = arith.cmpi eq, %arg2, %c0_i32 : i32
    %1 = arith.extui %0 : i1 to i32
    %c0_i32_0 = arith.constant 0 : i32
    %2 = arith.cmpi ne, %1, %c0_i32_0 : i32
    scf.if %2 {
      %cst_9 = arith.constant 0.000000e+00 : f32
      %12 = vector.broadcast %cst_9 : f32 to vector<32x128xf32>
      %c0_10 = arith.constant 0 : index
      %c0_11 = arith.constant 0 : index
      %13 = vector.load %arg8[%c0_10, %c0_11] : memref<32x128xf32, #tpu.memory_space<vmem>>, vector<32x128xf32>
      tpu.vector_store %arg8[%c0_10, %c0_11], %12 {strides = array<i32>} : memref<32x128xf32, #tpu.memory_space<vmem>>, vector<32x128xf32>,
    } else {
    }
    %c0 = arith.constant 0 : index
    %c0_1 = arith.constant 0 : index
    %3 = vector.load %arg8[%c0, %c0_1] : memref<32x128xf32, #tpu.memory_space<vmem>>, vector<32x128xf32>
    %c0_2 = arith.constant 0 : index
    %c0_3 = arith.constant 0 : index
    %4 = vector.load %arg3[%c0_2, %c0_3] : memref<32x1024xbf16, #tpu.memory_space<vmem>>, vector<32x1024xbf16>
    %c0_4 = arith.constant 0 : index
    %c0_5 = arith.constant 0 : index
    %5 = vector.load %arg4[%c0_4, %c0_5] : memref<1024x128xbf16, #tpu.memory_space<vmem>>, vector<1024x128xbf16>
    %cst = arith.constant dense<0.000000e+00> : vector<32x128xf32>
    %6 = tpu.matmul %4, %5, %cst {dimension_numbers = #tpu.dot_dimension_numbers<[1], [0], [0], [1], [0, 0, 1, 1], [], []>} : vector<32x1024xbf16>, vector<1024x128xbf16>, vector<32x128xf32> -> vector<32x128xf32>
    %7 = arith.addf %3, %6 : vector<32x128xf32>
    %c0_6 = arith.constant 0 : index
    %c0_7 = arith.constant 0 : index
    %8 = vector.load %arg8[%c0_6, %c0_7] : memref<32x128xf32, #tpu.memory_space<vmem>>, vector<32x128xf32>
    tpu.vector_store %arg8[%c0_6, %c0_7], %7 {strides = array<i32>} : memref<32x128xf32, #tpu.memory_space<vmem>>, vector<32x128xf32>,
    %c3_i32 = arith.constant 3 : i32
    %9 = arith.cmpi eq, %arg2, %c3_i32 : i32
    %10 = arith.extui %9 : i1 to i32
    %c0_i32_8 = arith.constant 0 : i32
    %11 = arith.cmpi ne, %10, %c0_i32_8 : i32
    scf.if %11 {
      %c0_9 = arith.constant 0 : index
      %c0_10 = arith.constant 0 : index
      %12 = vector.load %arg8[%c0_9, %c0_10] : memref<32x128xf32, #tpu.memory_space<vmem>>, vector<32x128xf32>
      %c0_11 = arith.constant 0 : index
      %c0_12 = arith.constant 0 : index
      %13 = vector.load %arg5[%c0_11, %c0_12] : memref<1x128xf32, #tpu.memory_space<vmem>>, vector<1x128xf32>
      %14 = vector.broadcast %13 : vector<1x128xf32> to vector<32x128xf32>
      %15 = arith.mulf %12, %14 : vector<32x128xf32>
      %c0_13 = arith.constant 0 : index
      %c0_14 = arith.constant 0 : index
      %16 = vector.load %arg6[%c0_13, %c0_14] : memref<1x128xf32, #tpu.memory_space<vmem>>, vector<1x128xf32>
      %17 = vector.broadcast %16 : vector<1x128xf32> to vector<32x128xf32>
      %18 = arith.addf %15, %17 : vector<32x128xf32>
      %cst_15 = arith.constant 0.000000e+00 : f32
      %19 = vector.broadcast %cst_15 : f32 to vector<32x128xf32>
      %20 = arith.cmpf oge, %18, %19 : vector<32x128xf32>
      %cst_16 = arith.constant 2.000000e-01 : f32
      %21 = vector.broadcast %cst_16 : f32 to vector<32x128xf32>
      %22 = arith.mulf %21, %18 : vector<32x128xf32>
      %23 = arith.select %20, %18, %22 : vector<32x128xi1>, vector<32x128xf32>
      %c0_17 = arith.constant 0 : index
      %c0_18 = arith.constant 0 : index
      %24 = vector.load %arg7[%c0_17, %c0_18] : memref<32x128xf32, #tpu.memory_space<vmem>>, vector<32x128xf32>
      tpu.vector_store %arg7[%c0_17, %c0_18], %23 {strides = array<i32>} : memref<32x128xf32, #tpu.memory_space<vmem>>, vector<32x128xf32>,
    } else {
    }
    return
  }
  func.func @transform_0(%arg0: i32, %arg1: i32, %arg2: i32) -> (i32, i32) {
    %c0_i32 = arith.constant 0 : i32
    return %arg0, %arg2 : i32, i32
  }
  func.func @transform_1(%arg0: i32, %arg1: i32, %arg2: i32) -> (i32, i32) {
    %c0_i32 = arith.constant 0 : i32
    return %arg2, %arg1 : i32, i32
  }
  func.func @transform_2(%arg0: i32, %arg1: i32, %arg2: i32) -> (i32, i32) {
    %c0_i32 = arith.constant 0 : i32
    %c0_i32_0 = arith.constant 0 : i32
    return %c0_i32, %arg1 : i32, i32
  }
  func.func @transform_3(%arg0: i32, %arg1: i32, %arg2: i32) -> (i32, i32) {
    %c0_i32 = arith.constant 0 : i32
    %c0_i32_0 = arith.constant 0 : i32
    return %c0_i32, %arg1 : i32, i32
  }
  func.func @transform_4(%arg0: i32, %arg1: i32, %arg2: i32) -> (i32, i32) {
    %c0_i32 = arith.constant 0 : i32
    return %arg0, %arg1 : i32, i32
  }
}

module attributes {stable_mosaic.version = 11 : i64} {
  func.func @_conv_gemm_kernel(%arg0: i32, %arg1: i32, %arg2: i32, %arg3: memref<16x1024xbf16, #tpu.memory_space<vmem>>, %arg4: memref<1024x128xbf16, #tpu.memory_space<vmem>>, %arg5: memref<1x128xf32, #tpu.memory_space<vmem>>, %arg6: memref<1x128xf32, #tpu.memory_space<vmem>>, %arg7: memref<16x128xf32, #tpu.memory_space<vmem>>, %arg8: memref<16x128xf32, #tpu.memory_space<vmem>>) attributes {dimension_semantics = [#tpu.dimension_semantics<parallel>, #tpu.dimension_semantics<parallel>, #tpu.dimension_semantics<arbitrary>], iteration_bounds = array<i64: 1, 1, 8>, scalar_prefetch = 0 : i64, scratch_operands = 1 : i64, tpu.core_type = #tpu.core_type<tc>, window_params = [{transform_indices = @transform_0, window_bounds = array<i64: 16, 1024>}, {transform_indices = @transform_1, window_bounds = array<i64: 1024, 128>}, {transform_indices = @transform_2, window_bounds = array<i64: 1, 128>}, {transform_indices = @transform_3, window_bounds = array<i64: 1, 128>}, {transform_indices = @transform_4, window_bounds = array<i64: 16, 128>}]} {
    %c0_i32 = arith.constant 0 : i32
    %0 = arith.cmpi eq, %arg2, %c0_i32 : i32
    %1 = arith.extui %0 : i1 to i32
    %c0_i32_0 = arith.constant 0 : i32
    %2 = arith.cmpi ne, %1, %c0_i32_0 : i32
    scf.if %2 {
      %cst_9 = arith.constant 0.000000e+00 : f32
      %12 = vector.broadcast %cst_9 : f32 to vector<16x128xf32>
      %c0_10 = arith.constant 0 : index
      %c0_11 = arith.constant 0 : index
      %13 = vector.load %arg8[%c0_10, %c0_11] : memref<16x128xf32, #tpu.memory_space<vmem>>, vector<16x128xf32>
      tpu.vector_store %arg8[%c0_10, %c0_11], %12 {strides = array<i32>} : memref<16x128xf32, #tpu.memory_space<vmem>>, vector<16x128xf32>,
    } else {
    }
    %c0 = arith.constant 0 : index
    %c0_1 = arith.constant 0 : index
    %3 = vector.load %arg8[%c0, %c0_1] : memref<16x128xf32, #tpu.memory_space<vmem>>, vector<16x128xf32>
    %c0_2 = arith.constant 0 : index
    %c0_3 = arith.constant 0 : index
    %4 = vector.load %arg3[%c0_2, %c0_3] : memref<16x1024xbf16, #tpu.memory_space<vmem>>, vector<16x1024xbf16>
    %c0_4 = arith.constant 0 : index
    %c0_5 = arith.constant 0 : index
    %5 = vector.load %arg4[%c0_4, %c0_5] : memref<1024x128xbf16, #tpu.memory_space<vmem>>, vector<1024x128xbf16>
    %cst = arith.constant dense<0.000000e+00> : vector<16x128xf32>
    %6 = tpu.matmul %4, %5, %cst {dimension_numbers = #tpu.dot_dimension_numbers<[1], [0], [0], [1], [0, 0, 1, 1], [], []>} : vector<16x1024xbf16>, vector<1024x128xbf16>, vector<16x128xf32> -> vector<16x128xf32>
    %7 = arith.addf %3, %6 : vector<16x128xf32>
    %c0_6 = arith.constant 0 : index
    %c0_7 = arith.constant 0 : index
    %8 = vector.load %arg8[%c0_6, %c0_7] : memref<16x128xf32, #tpu.memory_space<vmem>>, vector<16x128xf32>
    tpu.vector_store %arg8[%c0_6, %c0_7], %7 {strides = array<i32>} : memref<16x128xf32, #tpu.memory_space<vmem>>, vector<16x128xf32>,
    %c7_i32 = arith.constant 7 : i32
    %9 = arith.cmpi eq, %arg2, %c7_i32 : i32
    %10 = arith.extui %9 : i1 to i32
    %c0_i32_8 = arith.constant 0 : i32
    %11 = arith.cmpi ne, %10, %c0_i32_8 : i32
    scf.if %11 {
      %c0_9 = arith.constant 0 : index
      %c0_10 = arith.constant 0 : index
      %12 = vector.load %arg8[%c0_9, %c0_10] : memref<16x128xf32, #tpu.memory_space<vmem>>, vector<16x128xf32>
      %c0_11 = arith.constant 0 : index
      %c0_12 = arith.constant 0 : index
      %13 = vector.load %arg5[%c0_11, %c0_12] : memref<1x128xf32, #tpu.memory_space<vmem>>, vector<1x128xf32>
      %14 = vector.broadcast %13 : vector<1x128xf32> to vector<16x128xf32>
      %15 = arith.mulf %12, %14 : vector<16x128xf32>
      %c0_13 = arith.constant 0 : index
      %c0_14 = arith.constant 0 : index
      %16 = vector.load %arg6[%c0_13, %c0_14] : memref<1x128xf32, #tpu.memory_space<vmem>>, vector<1x128xf32>
      %17 = vector.broadcast %16 : vector<1x128xf32> to vector<16x128xf32>
      %18 = arith.addf %15, %17 : vector<16x128xf32>
      %c0_15 = arith.constant 0 : index
      %c0_16 = arith.constant 0 : index
      %19 = vector.load %arg7[%c0_15, %c0_16] : memref<16x128xf32, #tpu.memory_space<vmem>>, vector<16x128xf32>
      tpu.vector_store %arg7[%c0_15, %c0_16], %18 {strides = array<i32>} : memref<16x128xf32, #tpu.memory_space<vmem>>, vector<16x128xf32>,
    } else {
    }
    return
  }
  func.func @transform_0(%arg0: i32, %arg1: i32, %arg2: i32) -> (i32, i32) {
    %c0_i32 = arith.constant 0 : i32
    return %arg0, %arg2 : i32, i32
  }
  func.func @transform_1(%arg0: i32, %arg1: i32, %arg2: i32) -> (i32, i32) {
    %c0_i32 = arith.constant 0 : i32
    return %arg2, %arg1 : i32, i32
  }
  func.func @transform_2(%arg0: i32, %arg1: i32, %arg2: i32) -> (i32, i32) {
    %c0_i32 = arith.constant 0 : i32
    %c0_i32_0 = arith.constant 0 : i32
    return %c0_i32, %arg1 : i32, i32
  }
  func.func @transform_3(%arg0: i32, %arg1: i32, %arg2: i32) -> (i32, i32) {
    %c0_i32 = arith.constant 0 : i32
    %c0_i32_0 = arith.constant 0 : i32
    return %c0_i32, %arg1 : i32, i32
  }
  func.func @transform_4(%arg0: i32, %arg1: i32, %arg2: i32) -> (i32, i32) {
    %c0_i32 = arith.constant 0 : i32
    return %arg0, %arg1 : i32, i32
  }
}

</mosaic_0001>

<llo_original>
// kernel: patchgan_forward.5
$region0: #{patchgan_forward.5}
  #allocation0 [shape = 'u32[]', space=smem, size = 0x4, offset = 0x4, fixed_abs, tag = 'smem constant byte address 0x4 - core index']
  #allocation1 [shape = 'u32[144,128]{1,0:T(1,128)}', space=vmem, size = 0x12000, scoped, tag = 'internal scratch']
  #allocation2 [shape = 'f32[128,128]{1,0:T(8,128)}', space=vmem, size = 0x10000, scoped, tag = 'scratch operand']
  %s0 = inlined_call_operand.vmem [shape: bf16[512,96], index: 0, kind: input, shape index: {}]
  %s1 = inlined_call_operand.vmem [shape: bf16[96,128], index: 1, kind: input, shape index: {}]
  %s2 = inlined_call_operand.vmem [shape: f32[1,128], index: 2, kind: input, shape index: {}]
  %s3 = inlined_call_operand.vmem [shape: f32[1,128], index: 3, kind: input, shape index: {}]
  %s4 = inlined_call_operand.vmem [shape: f32[512,128], index: 4, kind: output, shape index: {}]
  %s5 = sld [smem:[#allocation0]]
  $region57: #{patchgan_forward.5} parent=0
    _
  %s7 = ssub.s32 1, %s5
  %s8 = scalar_select 0, %s7, %s5
  loop: start=0, step=1, limit=6
  $region2: #{patchgan_forward.5} parent=0 // loop_pre_header
    _
  $region3: #{patchgan_forward.5} parent=0 // loop_header
    %s10 = sphi 0, %s14
    %p11 = scmp.ge.s32.totalorder %s10, 6
    %s17 = sphi 0, %s36
    %s18 = sphi 0, %s32
    %s19 = sphi 0, %s28
    %s20 = sphi 0, %s17
    %s21 = sphi 0, %s18
    %s22 = sphi 0, %s19
    %s23 = sphi 0, %s20
    %s24 = sphi 0, %s21
    %s25 = sphi 0, %s22
    %s41 = sphi 0, %s43
    %s44 = sphi 0, %s41
    %s45 = sphi 0, %s44
    %s61 = sphi 0, %s45
    %s69 = sphi 0, %s71
    %s72 = sphi 0, %s69
    %s73 = sphi 0, %s72
    %s89 = sphi 0, %s73
    %s95 = sphi 0, %s97
    %s98 = sphi 0, %s95
    %s99 = sphi 0, %s98
    %s115 = sphi 0, %s99
    %s121 = sphi 0, %s123
    %s124 = sphi 0, %s121
    %s125 = sphi 0, %s124
    %s141 = sphi 0, %s125
    %s149 = sphi 0, %s151
    %s152 = sphi 0, %s149
    %s153 = sphi 0, %s152
    %s169 = sphi 0, %s153
  $region4: #{patchgan_forward.5} parent=0 // loop_header_branch
    %13 = sbr.rel (%p11) target = $region8
  $region5: #{patchgan_forward.5} parent=0 // loop_body
    %s15 = ssub.s32 %s10, 1
    %s16 = ssub.s32 %s10, 2
    %s26 = sadd.s32 1, %s19
    %p27 = scmp.ge.s32.totalorder %s26, 1
    %s28 = scalar_select %p27, 0, %s26
    %s29 = sadd.s32 1, %s18
    %s30 = scalar_select %p27, %s29, %s18
    %p31 = scmp.ge.s32.totalorder %s30, 1
    %s32 = scalar_select %p31, 0, %s30
    %s33 = sadd.s32 1, %s17
    %s34 = scalar_select %p31, %s33, %s17
    %p35 = scmp.ge.s32.totalorder %s34, 4
    %s36 = scalar_select %p35, 0, %s34
    %s37 = ssub.s32 %s17, %s36
    %s38 = ssub.s32 %s19, %s28
    %s39 = sor.u32 %s37, %s38
    %p40 = scmp.eq.s32.totalorder %s39, 0
    %s42 = sadd.s32 %s41, 1
    %s43 = scalar_select %p40, %s41, %s42
    %p46 = pneg %p40
    %p47 = scmp.eq.s32.totalorder %s10, 3
    %p48 = por %p46, %p47
    %p49 = scmp.ne.s32.totalorder %s41, %s44
    %p50 = scmp.eq.s32.totalorder %s10, 0
    %p51 = por %p49, %p50
    %p52 = scmp.ne.s32.totalorder %s41, %s44
    %p53 = scmp.eq.s32.totalorder %s15, 3
    %p54 = por %p52, %p53
    %p55 = scmp.ne.s32.totalorder %s44, %s45
    %p56 = scmp.eq.s32.totalorder %s15, 0
    %p57 = por %p55, %p56
    %p58 = scmp.ne.s32.totalorder %s44, %s45
    %p59 = scmp.eq.s32.totalorder %s16, 3
    %p60 = por %p58, %p59
    %p62 = scmp.ne.s32.totalorder %s45, %s61
    %p63 = scmp.eq.s32.totalorder %s16, 0
    %p64 = por %p62, %p63
    %s65 = ssub.s32 %s19, %s28
    %s66 = ssub.s32 %s18, %s32
    %s67 = sor.u32 %s65, %s66
    %p68 = scmp.eq.s32.totalorder %s67, 0
    %s70 = sadd.s32 %s69, 1
    %s71 = scalar_select %p68, %s69, %s70
    %p74 = pneg %p68
    %p75 = scmp.eq.s32.totalorder %s10, 3
    %p76 = por %p74, %p75
    %p77 = scmp.ne.s32.totalorder %s69, %s72
    %p78 = scmp.eq.s32.totalorder %s10, 0
    %p79 = por %p77, %p78
    %p80 = scmp.ne.s32.totalorder %s69, %s72
    %p81 = scmp.eq.s32.totalorder %s15, 3
    %p82 = por %p80, %p81
    %p83 = scmp.ne.s32.totalorder %s72, %s73
    %p84 = scmp.eq.s32.totalorder %s15, 0
    %p85 = por %p83, %p84
    %p86 = scmp.ne.s32.totalorder %s72, %s73
    %p87 = scmp.eq.s32.totalorder %s16, 3
    %p88 = por %p86, %p87
    %p90 = scmp.ne.s32.totalorder %s73, %s89
    %p91 = scmp.eq.s32.totalorder %s16, 0
    %p92 = por %p90, %p91
    %s93 = ssub.s32 %s18, %s32
    %p94 = scmp.eq.s32.totalorder %s93, 0
    %s96 = sadd.s32 %s95, 1
    %s97 = scalar_select %p94, %s95, %s96
    %p100 = pneg %p94
    %p101 = scmp.eq.s32.totalorder %s10, 3
    %p102 = por %p100, %p101
    %p103 = scmp.ne.s32.totalorder %s95, %s98
    %p104 = scmp.eq.s32.totalorder %s10, 0
    %p105 = por %p103, %p104
    %p106 = scmp.ne.s32.totalorder %s95, %s98
    %p107 = scmp.eq.s32.totalorder %s15, 3
    %p108 = por %p106, %p107
    %p109 = scmp.ne.s32.totalorder %s98, %s99
    %p110 = scmp.eq.s32.totalorder %s15, 0
    %p111 = por %p109, %p110
    %p112 = scmp.ne.s32.totalorder %s98, %s99
    %p113 = scmp.eq.s32.totalorder %s16, 3
    %p114 = por %p112, %p113
    %p116 = scmp.ne.s32.totalorder %s99, %s115
    %p117 = scmp.eq.s32.totalorder %s16, 0
    %p118 = por %p116, %p117
    %s119 = ssub.s32 %s18, %s32
    %p120 = scmp.eq.s32.totalorder %s119, 0
    %s122 = sadd.s32 %s121, 1
    %s123 = scalar_select %p120, %s121, %s122
    %p126 = pneg %p120
    %p127 = scmp.eq.s32.totalorder %s10, 3
    %p128 = por %p126, %p127
    %p129 = scmp.ne.s32.totalorder %s121, %s124
    %p130 = scmp.eq.s32.totalorder %s10, 0
    %p131 = por %p129, %p130
    %p132 = scmp.ne.s32.totalorder %s121, %s124
    %p133 = scmp.eq.s32.totalorder %s15, 3
    %p134 = por %p132, %p133
    %p135 = scmp.ne.s32.totalorder %s124, %s125
    %p136 = scmp.eq.s32.totalorder %s15, 0
    %p137 = por %p135, %p136
    %p138 = scmp.ne.s32.totalorder %s124, %s125
    %p139 = scmp.eq.s32.totalorder %s16, 3
    %p140 = por %p138, %p139
    %p142 = scmp.ne.s32.totalorder %s125, %s141
    %p143 = scmp.eq.s32.totalorder %s16, 0
    %p144 = por %p142, %p143
    %s145 = ssub.s32 %s17, %s36
    %s146 = ssub.s32 %s18, %s32
    %s147 = sor.u32 %s145, %s146
    %p148 = scmp.eq.s32.totalorder %s147, 0
    %s150 = sadd.s32 %s149, 1
    %s151 = scalar_select %p148, %s149, %s150
    %p154 = pneg %p148
    %p155 = scmp.eq.s32.totalorder %s10, 3
    %p156 = por %p154, %p155
    %p157 = scmp.ne.s32.totalorder %s149, %s152
    %p158 = scmp.eq.s32.totalorder %s10, 0
    %p159 = por %p157, %p158
    %p160 = scmp.ne.s32.totalorder %s149, %s152
    %p161 = scmp.eq.s32.totalorder %s15, 3
    %p162 = por %p160, %p161
    %p163 = scmp.ne.s32.totalorder %s152, %s153
    %p164 = scmp.eq.s32.totalorder %s15, 0
    %p165 = por %p163, %p164
    %p166 = scmp.ne.s32.totalorder %s152, %s153
    %p167 = scmp.eq.s32.totalorder %s16, 3
    %p168 = por %p166, %p167
    %p170 = scmp.ne.s32.totalorder %s153, %s169
    %p171 = scmp.eq.s32.totalorder %s16, 0
    %p172 = por %p170, %p171
    %p173 = scmp.le.s32.totalorder 1, %s10
    %p174 = scmp.lt.s32.totalorder %s10, 5
    %p175 = pnand %p173, %p174
    %p176 = pneg %p175
    // Predicated region
    $region9: #{patchgan_forward.5} parent=5 // pred_check
      _
    $region10: #{patchgan_forward.5} parent=5 // pred_check_branch
      %178 = sbr.rel (%p175) target = $region12
    $region11: #{patchgan_forward.5} parent=5 // pred_region
      %s179 = ssub.s32 %s10, 1
      // Predicated region
      $region13: #{patchgan_forward.5} parent=11 // pred_check
        %p180 = pneg %p85
      $region14: #{patchgan_forward.5} parent=11 // pred_check_branch
        %182 = sbr.rel (%p180) target = $region16
      $region15: #{patchgan_forward.5} parent=11 // pred_region
        %s183 = smul.u32 12, %s22
        %p184 = scmp.lt.s32.totalorder %s183, 11
        %s185 = scalar_select %p184, %s183, 11
        %p186 = scmp.lt.s32.totalorder %s21, 0
        %s187 = scalar_select %p186, %s21, 0
        %s188 = sadd.s32 %s187, %s185
        %s189 = smul.addr %s188, 4
        %s190 = scalar_lea.vmem %s1, %s189
        %s191 = smul.u32 12, %s22
      $region16: #{patchgan_forward.5} parent=11 // pred_fallthru
        _
      // Predicated region
      $region17: #{patchgan_forward.5} parent=11 // pred_check
        %p192 = pneg %p111
      $region18: #{patchgan_forward.5} parent=11 // pred_check_branch
        %194 = sbr.rel (%p192) target = $region20
      $region19: #{patchgan_forward.5} parent=11 // pred_region
        %p195 = scmp.lt.s32.totalorder %s21, 0
        %s196 = scalar_select %p195, %s21, 0
        %s197 = scalar_lea.vmem %s2, %s196
      $region20: #{patchgan_forward.5} parent=11 // pred_fallthru
        _
      // Predicated region
      $region21: #{patchgan_forward.5} parent=11 // pred_check
        %p198 = pneg %p137
      $region22: #{patchgan_forward.5} parent=11 // pred_check_branch
        %200 = sbr.rel (%p198) target = $region24
      $region23: #{patchgan_forward.5} parent=11 // pred_region
        %p201 = scmp.lt.s32.totalorder %s21, 0
        %s202 = scalar_select %p201, %s21, 0
        %s203 = scalar_lea.vmem %s3, %s202
      $region24: #{patchgan_forward.5} parent=11 // pred_fallthru
        _
    $region12: #{patchgan_forward.5} parent=5 // pred_fallthru
      _
    %p204 = scmp.lt.s32.totalorder %s10, 4
    // Predicated region
    $region25: #{patchgan_forward.5} parent=5 // pred_check
      %p205 = pneg %p204
    $region26: #{patchgan_forward.5} parent=5 // pred_check_branch
      %207 = sbr.rel (%p205) target = $region28
    $region27: #{patchgan_forward.5} parent=5 // pred_region
      // Predicated region
      $region29: #{patchgan_forward.5} parent=27 // pred_check
        %p208 = pneg %p51
      $region30: #{patchgan_forward.5} parent=27 // pred_check_branch
        %210 = sbr.rel (%p208) target = $region32
      $region31: #{patchgan_forward.5} parent=27 // pred_region
        %s211 = smul.u32 16, %s17
        %p212 = scmp.lt.s32.totalorder %s211, 63
        %s213 = scalar_select %p212, %s211, 63
        %p214 = scmp.lt.s32.totalorder %s19, 0
        %s215 = scalar_select %p214, %s19, 0
        %s216 = sadd.s32 %s215, %s213
        %s217 = smul.addr %s216, 4
        %s218 = scalar_lea.vmem %s0, %s217
        %s219 = smul.u32 16, %s17
      $region32: #{patchgan_forward.5} parent=27 // pred_fallthru
        _
    $region28: #{patchgan_forward.5} parent=5 // pred_fallthru
      _
    %p220 = scmp.le.s32.totalorder 1, %s10
    %p221 = scmp.lt.s32.totalorder %s10, 5
    %p222 = pnand %p220, %p221
    %p223 = pneg %p222
    // Predicated region
    $region33: #{patchgan_forward.5} parent=5 // pred_check
      _
    $region34: #{patchgan_forward.5} parent=5 // pred_check_branch
      %225 = sbr.rel (%p222) target = $region36
    $region35: #{patchgan_forward.5} parent=5 // pred_region
      %s226 = ssub.s32 %s10, 1
      %s227 = smul.u32 16, %s20
      %p228 = scmp.lt.s32.totalorder %s227, 63
      %s229 = scalar_select %p228, %s227, 63
      %p230 = scmp.lt.s32.totalorder %s22, 0
      %s231 = scalar_select %p230, %s22, 0
      %s232 = sadd.s32 %s231, %s229
      %s233 = smul.addr %s232, 4
      %s234 = scalar_lea.vmem %s0, %s233
      %p235 = pneg %p57
      %p236 = pneg %p54
      %s237 = smul.u32 12, %s22
      %p238 = scmp.lt.s32.totalorder %s237, 11
      %s239 = scalar_select %p238, %s237, 11
      %p240 = scmp.lt.s32.totalorder %s21, 0
      %s241 = scalar_select %p240, %s21, 0
      %s242 = sadd.s32 %s241, %s239
      %s243 = smul.addr %s242, 4
      %s244 = scalar_lea.vmem %s1, %s243
      %p245 = pneg %p85
      %p246 = pneg %p82
      %p247 = scmp.lt.s32.totalorder %s21, 0
      %s248 = scalar_select %p247, %s21, 0
      %s249 = scalar_lea.vmem %s2, %s248
      %p250 = pneg %p111
      %p251 = pneg %p108
      %p252 = scmp.lt.s32.totalorder %s21, 0
      %s253 = scalar_select %p252, %s21, 0
      %s254 = scalar_lea.vmem %s3, %s253
      %p255 = pneg %p137
      %p256 = pneg %p134
      %p257 = pneg %p165
      %p258 = pneg %p162
      %s259 = smul.u32 16, %s20
      %p260 = scmp.lt.s32.totalorder %s259, 63
      %s261 = scalar_select %p260, %s259, 63
      %p262 = scmp.lt.s32.totalorder %s21, 0
      %s263 = scalar_select %p262, %s21, 0
      %s264 = sadd.s32 %s263, %s261
      %s265 = smul.addr %s264, 8
      %s266 = scalar_lea.vmem %s4, %s265
      %s267 = smul.u32 16, %s20
      %p268 = scmp.lt.s32.totalorder %s267, 63
      %s269 = scalar_select %p268, %s267, 63
      %p270 = scmp.lt.s32.totalorder %s22, 0
      %s271 = scalar_select %p270, %s22, 0
      %s272 = sadd.s32 %s271, %s269
      %s273 = smul.addr %s272, 4
      %s274 = scalar_lea.vmem %s0, %s273
      %s275 = smul.u32 16, %s20
      %s276 = smul.u32 12, %s22
      %p277 = scmp.lt.s32.totalorder %s276, 11
      %s278 = scalar_select %p277, %s276, 11
      %p279 = scmp.lt.s32.totalorder %s21, 0
      %s280 = scalar_select %p279, %s21, 0
      %s281 = sadd.s32 %s280, %s278
      %s282 = smul.addr %s281, 4
      %s283 = scalar_lea.vmem %s1, %s282
      %s284 = smul.u32 12, %s22
      %p285 = scmp.lt.s32.totalorder %s21, 0
      %s286 = scalar_select %p285, %s21, 0
      %s287 = scalar_lea.vmem %s2, %s286
      %p288 = scmp.lt.s32.totalorder %s21, 0
      %s289 = scalar_select %p288, %s21, 0
      %s290 = scalar_lea.vmem %s3, %s289
      %s291 = smul.u32 16, %s20
      %p292 = scmp.lt.s32.totalorder %s291, 63
      %s293 = scalar_select %p292, %s291, 63
      %p294 = scmp.lt.s32.totalorder %s21, 0
      %s295 = scalar_select %p294, %s21, 0
      %s296 = sadd.s32 %s295, %s293
      %s297 = smul.addr %s296, 8
      %s298 = scalar_lea.vmem %s4, %s297
      %s299 = smul.u32 16, %s20
      %p301 = scmp.eq.s32.totalorder %s22, 0
      // Predicated region
      $region37: #{patchgan_forward.5} parent=35 // pred_check
        %p302 = pneg %p301
      $region38: #{patchgan_forward.5} parent=35 // pred_check_branch
        %304 = sbr.rel (%p302) target = $region40
      $region39: #{patchgan_forward.5} parent=35 // pred_region
        %305 = vst [vmem:[#allocation2] sm:$0xff] 0.0
        %306 = vst [vmem:[#allocation2 + $0x8] sm:$0xff] 0.0
        %307 = vst [vmem:[#allocation2 + $0x10] sm:$0xff] 0.0
        %308 = vst [vmem:[#allocation2 + $0x18] sm:$0xff] 0.0
        %309 = vst [vmem:[#allocation2 + $0x20] sm:$0xff] 0.0
        %310 = vst [vmem:[#allocation2 + $0x28] sm:$0xff] 0.0
        %311 = vst [vmem:[#allocation2 + $0x30] sm:$0xff] 0.0
        %312 = vst [vmem:[#allocation2 + $0x38] sm:$0xff] 0.0
        %313 = vst [vmem:[#allocation2 + $0x40] sm:$0xff] 0.0
        %314 = vst [vmem:[#allocation2 + $0x48] sm:$0xff] 0.0
        %315 = vst [vmem:[#allocation2 + $0x50] sm:$0xff] 0.0
        %316 = vst [vmem:[#allocation2 + $0x58] sm:$0xff] 0.0
        %317 = vst [vmem:[#allocation2 + $0x60] sm:$0xff] 0.0
        %318 = vst [vmem:[#allocation2 + $0x68] sm:$0xff] 0.0
        %319 = vst [vmem:[#allocation2 + $0x70] sm:$0xff] 0.0
        %320 = vst [vmem:[#allocation2 + $0x78] sm:$0xff] 0.0
      $region40: #{patchgan_forward.5} parent=35 // pred_fallthru
        _
      %v321 = vld [vmem:[#allocation2] sm:$0xff]
      %v322 = vld [vmem:[#allocation2 + $0x8] sm:$0xff]
      %v323 = vld [vmem:[#allocation2 + $0x10] sm:$0xff]
      %v324 = vld [vmem:[#allocation2 + $0x18] sm:$0xff]
      %v325 = vld [vmem:[#allocation2 + $0x20] sm:$0xff]
      %v326 = vld [vmem:[#allocation2 + $0x28] sm:$0xff]
      %v327 = vld [vmem:[#allocation2 + $0x30] sm:$0xff]
      %v328 = vld [vmem:[#allocation2 + $0x38] sm:$0xff]
      %v329 = vld [vmem:[#allocation2 + $0x40] sm:$0xff]
      %v330 = vld [vmem:[#allocation2 + $0x48] sm:$0xff]
      %v331 = vld [vmem:[#allocation2 + $0x50] sm:$0xff]
      %v332 = vld [vmem:[#allocation2 + $0x58] sm:$0xff]
      %v333 = vld [vmem:[#allocation2 + $0x60] sm:$0xff]
      %v334 = vld [vmem:[#allocation2 + $0x68] sm:$0xff]
      %v335 = vld [vmem:[#allocation2 + $0x70] sm:$0xff]
      %v336 = vld [vmem:[#allocation2 + $0x78] sm:$0xff]
      %v337 = vld [vmem:[%s274] sm:$0xf]
      %v338 = vld [vmem:[%s274 + $0x4] sm:$0xf]
      %v339 = vld [vmem:[%s274 + $0x8] sm:$0xf]
      %v340 = vld [vmem:[%s274 + $0xc] sm:$0xf]
      %v341 = vld [vmem:[%s274 + $0x10] sm:$0xf]
      %v342 = vld [vmem:[%s274 + $0x14] sm:$0xf]
      %v343 = vld [vmem:[%s274 + $0x18] sm:$0xf]
      %v344 = vld [vmem:[%s274 + $0x1c] sm:$0xf]
      %v345 = vld [vmem:[%s274 + $0x20] sm:$0xf]
      %v346 = vld [vmem:[%s274 + $0x24] sm:$0xf]
      %v347 = vld [vmem:[%s274 + $0x28] sm:$0xf]
      %v348 = vld [vmem:[%s274 + $0x2c] sm:$0xf]
      %v349 = vld [vmem:[%s274 + $0x30] sm:$0xf]
      %v350 = vld [vmem:[%s274 + $0x34] sm:$0xf]
      %v351 = vld [vmem:[%s274 + $0x38] sm:$0xf]
      %v352 = vld [vmem:[%s274 + $0x3c] sm:$0xf]
      %v353 = vld [vmem:[%s283] sm:$0xf]
      %v354 = vld [vmem:[%s283 + $0x4] sm:$0xf]
      %v355 = vld [vmem:[%s283 + $0x8] sm:$0xf]
      %v356 = vld [vmem:[%s283 + $0xc] sm:$0xf]
      %v357 = vld [vmem:[%s283 + $0x10] sm:$0xf]
      %v358 = vld [vmem:[%s283 + $0x14] sm:$0xf]
      %v359 = vld [vmem:[%s283 + $0x18] sm:$0xf]
      %v360 = vld [vmem:[%s283 + $0x1c] sm:$0xf]
      %v361 = vld [vmem:[%s283 + $0x20] sm:$0xf]
      %v362 = vld [vmem:[%s283 + $0x24] sm:$0xf]
      %v363 = vld [vmem:[%s283 + $0x28] sm:$0xf]
      %v364 = vld [vmem:[%s283 + $0x2c] sm:$0xf]
      %v381 = vunpack.c.l.b16 %v337
      %v382 = vunpack.c.l.b16 %v338
      %v383 = vunpack.c.l.b16 %v339
      %v384 = vunpack.c.l.b16 %v340
      %v385 = vunpack.c.l.b16 %v341
      %v386 = vunpack.c.l.b16 %v342
      %v387 = vunpack.c.l.b16 %v343
      %v388 = vunpack.c.l.b16 %v344
      %v389 = vunpack.c.l.b16 %v345
      %v390 = vunpack.c.l.b16 %v346
      %v391 = vunpack.c.l.b16 %v347
      %v392 = vunpack.c.l.b16 %v348
      %v393 = vunpack.c.l.b16 %v349
      %v394 = vunpack.c.l.b16 %v350
      %v395 = vunpack.c.l.b16 %v351
      %v396 = vunpack.c.l.b16 %v352
      %v397 = vpack.c.b16 %v382, %v381
      %v398 = vpack.c.b16 %v384, %v383
      %v399 = vpack.c.b16 %v386, %v385
      %v400 = vpack.c.b16 %v388, %v387
      %v401 = vpack.c.b16 %v390, %v389
      %v402 = vpack.c.b16 %v392, %v391
      %v403 = vpack.c.b16 %v394, %v393
      %v404 = vpack.c.b16 %v396, %v395
      %v417 = vunpack.c.l.b16 %v353
      %v418 = vunpack.c.l.b16 %v354
      %v419 = vunpack.c.l.b16 %v355
      %v420 = vunpack.c.l.b16 %v356
      %v421 = vunpack.c.l.b16 %v357
      %v422 = vunpack.c.l.b16 %v358
      %v423 = vunpack.c.l.b16 %v359
      %v424 = vunpack.c.l.b16 %v360
      %v425 = vunpack.c.l.b16 %v361
      %v426 = vunpack.c.l.b16 %v362
      %v427 = vunpack.c.l.b16 %v363
      %v428 = vunpack.c.l.b16 %v364
      %v429 = vpack.c.b16 %v418, %v417
      %v430 = vpack.c.b16 %v420, %v419
      %v431 = vpack.c.b16 %v422, %v421
      %v432 = vpack.c.b16 %v424, %v423
      %v433 = vpack.c.b16 %v426, %v425
      %v434 = vpack.c.b16 %v428, %v427
      %vm441 = vcmask 785408
      %v443 = vsel %vm441, %v397, 0
      %v446 = vsel %vm441, %v398, 0
      %v449 = vsel %vm441, %v399, 0
      %v452 = vsel %vm441, %v400, 0
      %v455 = vsel %vm441, %v401, 0
      %v458 = vsel %vm441, %v402, 0
      %v461 = vsel %vm441, %v403, 0
      %v464 = vsel %vm441, %v404, 0
      %466 = vmatprep.subr.bf16.mxu0 0
      %467 = vmatpush1.bf16.msra.mxu0 %v429
      %468 = vmatprep.subr.bf16.mxu0 0
      %469 = vmatpush1.bf16.msra.mxu0 %v430
      %470 = vmatprep.subr.bf16.mxu0 0
      %471 = vmatpush1.bf16.msra.mxu0 %v431
      %472 = vmatprep.subr.bf16.mxu0 0
      %473 = vmatpush1.bf16.msra.mxu0 %v432
      %474 = vmatprep.subr.bf16.mxu0 0
      %475 = vmatpush1.bf16.msra.mxu0 %v433
      %476 = vmatprep.subr.bf16.mxu0 0
      %477 = vmatpush1.bf16.msra.mxu0 %v434
      %478 = vmatprep.subr.bf16.mxu0 0
      %479 = vmatpush1.bf16.msra.mxu0 0
      %480 = vmatprep.subr.bf16.mxu0 0
      %481 = vmatpush1.bf16.msra.mxu0 0
      %482 = vmatprep.subr.bf16.mxu0 0
      %483 = vmatpush1.bf16.msra.mxu0 0
      %484 = vmatprep.subr.bf16.mxu0 0
      %485 = vmatpush1.bf16.msra.mxu0 0
      %486 = vmatprep.subr.bf16.mxu0 0
      %487 = vmatpush1.bf16.msra.mxu0 0
      %488 = vmatprep.subr.bf16.mxu0 0
      %489 = vmatpush1.bf16.msra.mxu0 0
      %490 = vmatprep.subr.bf16.mxu0 0
      %491 = vmatpush1.bf16.msra.mxu0 0
      %492 = vmatprep.subr.bf16.mxu0 0
      %493 = vmatpush1.bf16.msra.mxu0 0
      %494 = vmatprep.subr.bf16.mxu0 0
      %495 = vmatpush1.bf16.msra.mxu0 0
      %496 = vmatprep.subr.bf16.mxu0 0
      %497 = vmatpush1.bf16.msra.mxu0 0
      %498 = vmatprep.mubr.bf16.mxu0 0
      %499 = vmatmul.mubr.bf16.gmra.mrb[0].mxu0 %v443
      %v500 = vpop.f32.mrb[0].mxu0
      %v501 = vadd.f32 0.0, %v500
      %v502 = vpop.f32.mrb[0].mxu0
      %v503 = vpop.f32.mrb[0].mxu0
      %v504 = vadd.f32 0.0, %v503
      %v505 = vpop.f32.mrb[0].mxu0
      %506 = vmatprep.mubr.bf16.mxu0 0
      %507 = vmatmul.mubr.bf16.gmra.mrb[0].mxu0 %v446
      %v508 = vpop.f32.mrb[0].mxu0
      %v509 = vadd.f32 0.0, %v508
      %v510 = vpop.f32.mrb[0].mxu0
      %v511 = vpop.f32.mrb[0].mxu0
      %v512 = vadd.f32 0.0, %v511
      %v513 = vpop.f32.mrb[0].mxu0
      %514 = vmatprep.mubr.bf16.mxu0 0
      %515 = vmatmul.mubr.bf16.gmra.mrb[0].mxu0 %v449
      %v516 = vpop.f32.mrb[0].mxu0
      %v517 = vadd.f32 0.0, %v516
      %v518 = vpop.f32.mrb[0].mxu0
      %v519 = vpop.f32.mrb[0].mxu0
      %v520 = vadd.f32 0.0, %v519
      %v521 = vpop.f32.mrb[0].mxu0
      %522 = vmatprep.mubr.bf16.mxu0 0
      %523 = vmatmul.mubr.bf16.gmra.mrb[0].mxu0 %v452
      %v524 = vpop.f32.mrb[0].mxu0
      %v525 = vadd.f32 0.0, %v524
      %v526 = vpop.f32.mrb[0].mxu0
      %v527 = vpop.f32.mrb[0].mxu0
      %v528 = vadd.f32 0.0, %v527
      %v529 = vpop.f32.mrb[0].mxu0
      %530 = vmatprep.mubr.bf16.mxu0 0
      %531 = vmatmul.mubr.bf16.gmra.mrb[0].mxu0 %v455
      %v532 = vpop.f32.mrb[0].mxu0
      %v533 = vadd.f32 0.0, %v532
      %v534 = vpop.f32.mrb[0].mxu0
      %v535 = vpop.f32.mrb[0].mxu0
      %v536 = vadd.f32 0.0, %v535
      %v537 = vpop.f32.mrb[0].mxu0
      %538 = vmatprep.mubr.bf16.mxu0 0
      %539 = vmatmul.mubr.bf16.gmra.mrb[0].mxu0 %v458
      %v540 = vpop.f32.mrb[0].mxu0
      %v541 = vadd.f32 0.0, %v540
      %v542 = vpop.f32.mrb[0].mxu0
      %v543 = vpop.f32.mrb[0].mxu0
      %v544 = vadd.f32 0.0, %v543
      %v545 = vpop.f32.mrb[0].mxu0
      %546 = vmatprep.mubr.bf16.mxu0 0
      %547 = vmatmul.mubr.bf16.gmra.mrb[0].mxu0 %v461
      %v548 = vpop.f32.mrb[0].mxu0
      %v549 = vadd.f32 0.0, %v548
      %v550 = vpop.f32.mrb[0].mxu0
      %v551 = vpop.f32.mrb[0].mxu0
      %v552 = vadd.f32 0.0, %v551
      %v553 = vpop.f32.mrb[0].mxu0
      %554 = vmatprep.mubr.bf16.mxu0 0
      %555 = vmatmul.mubr.bf16.gmra.mrb[0].mxu0 %v464
      %v556 = vpop.f32.mrb[0].mxu0
      %v557 = vadd.f32 0.0, %v556
      %v558 = vpop.f32.mrb[0].mxu0
      %v559 = vpop.f32.mrb[0].mxu0
      %v560 = vadd.f32 0.0, %v559
      %v561 = vpop.f32.mrb[0].mxu0
      %562 = vdwg.mxu0
      %v563 = vadd.f32 %v321, %v501
      %v564 = vadd.f32 %v322, %v504
      %v565 = vadd.f32 %v323, %v509
      %v566 = vadd.f32 %v324, %v512
      %v567 = vadd.f32 %v325, %v517
      %v568 = vadd.f32 %v326, %v520
      %v569 = vadd.f32 %v327, %v525
      %v570 = vadd.f32 %v328, %v528
      %v571 = vadd.f32 %v329, %v533
      %v572 = vadd.f32 %v330, %v536
      %v573 = vadd.f32 %v331, %v541
      %v574 = vadd.f32 %v332, %v544
      %v575 = vadd.f32 %v333, %v549
      %v576 = vadd.f32 %v334, %v552
      %v577 = vadd.f32 %v335, %v557
      %v578 = vadd.f32 %v336, %v560
      %579 = vst [vmem:[#allocation2] sm:$0xff] %v563
      %580 = vst [vmem:[#allocation2 + $0x8] sm:$0xff] %v564
      %581 = vst [vmem:[#allocation2 + $0x10] sm:$0xff] %v565
      %582 = vst [vmem:[#allocation2 + $0x18] sm:$0xff] %v566
      %583 = vst [vmem:[#allocation2 + $0x20] sm:$0xff] %v567
      %584 = vst [vmem:[#allocation2 + $0x28] sm:$0xff] %v568
      %585 = vst [vmem:[#allocation2 + $0x30] sm:$0xff] %v569
      %586 = vst [vmem:[#allocation2 + $0x38] sm:$0xff] %v570
      %587 = vst [vmem:[#allocation2 + $0x40] sm:$0xff] %v571
      %588 = vst [vmem:[#allocation2 + $0x48] sm:$0xff] %v572
      %589 = vst [vmem:[#allocation2 + $0x50] sm:$0xff] %v573
      %590 = vst [vmem:[#allocation2 + $0x58] sm:$0xff] %v574
      %591 = vst [vmem:[#allocation2 + $0x60] sm:$0xff] %v575
      %592 = vst [vmem:[#allocation2 + $0x68] sm:$0xff] %v576
      %593 = vst [vmem:[#allocation2 + $0x70] sm:$0xff] %v577
      %594 = vst [vmem:[#allocation2 + $0x78] sm:$0xff] %v578
      // Predicated region
      $region41: #{patchgan_forward.5} parent=35 // pred_check
        %p595 = pneg %p301
      $region42: #{patchgan_forward.5} parent=35 // pred_check_branch
        %597 = sbr.rel (%p595) target = $region44
      $region43: #{patchgan_forward.5} parent=35 // pred_region
        %v598 = vld [vmem:[#allocation2] sm:$0xff]
        %v599 = vld [vmem:[#allocation2 + $0x8] sm:$0xff]
        %v600 = vld [vmem:[#allocation2 + $0x10] sm:$0xff]
        %v601 = vld [vmem:[#allocation2 + $0x18] sm:$0xff]
        %v602 = vld [vmem:[#allocation2 + $0x20] sm:$0xff]
        %v603 = vld [vmem:[#allocation2 + $0x28] sm:$0xff]
        %v604 = vld [vmem:[#allocation2 + $0x30] sm:$0xff]
        %v605 = vld [vmem:[#allocation2 + $0x38] sm:$0xff]
        %v606 = vld [vmem:[#allocation2 + $0x40] sm:$0xff]
        %v607 = vld [vmem:[#allocation2 + $0x48] sm:$0xff]
        %v608 = vld [vmem:[#allocation2 + $0x50] sm:$0xff]
        %v609 = vld [vmem:[#allocation2 + $0x58] sm:$0xff]
        %v610 = vld [vmem:[#allocation2 + $0x60] sm:$0xff]
        %v611 = vld [vmem:[#allocation2 + $0x68] sm:$0xff]
        %v612 = vld [vmem:[#allocation2 + $0x70] sm:$0xff]
        %v613 = vld [vmem:[#allocation2 + $0x78] sm:$0xff]
        %v614 = vld [vmem:[%s287] sm:$0x1]
        %v616 = vlaneseq
        %v617 = vshrl.u32 %v616, 7
        %v618 = vsub.s32 0, %v617
        %v619 = vrot.slane %v614, %v618
        %v621 = vmul.f32 %v598, %v619
        %v622 = vmul.f32 %v599, %v619
        %v623 = vmul.f32 %v600, %v619
        %v624 = vmul.f32 %v601, %v619
        %v625 = vmul.f32 %v602, %v619
        %v626 = vmul.f32 %v603, %v619
        %v627 = vmul.f32 %v604, %v619
        %v628 = vmul.f32 %v605, %v619
        %v629 = vmul.f32 %v606, %v619
        %v630 = vmul.f32 %v607, %v619
        %v631 = vmul.f32 %v608, %v619
        %v632 = vmul.f32 %v609, %v619
        %v633 = vmul.f32 %v610, %v619
        %v634 = vmul.f32 %v611, %v619
        %v635 = vmul.f32 %v612, %v619
        %v636 = vmul.f32 %v613, %v619
        %v637 = vld [vmem:[%s290] sm:$0x1]
        %v639 = vlaneseq
        %v640 = vshrl.u32 %v639, 7
        %v641 = vsub.s32 0, %v640
        %v642 = vrot.slane %v637, %v641
        %v644 = vadd.f32 %v621, %v642
        %v645 = vadd.f32 %v622, %v642
        %v646 = vadd.f32 %v623, %v642
        %v647 = vadd.f32 %v624, %v642
        %v648 = vadd.f32 %v625, %v642
        %v649 = vadd.f32 %v626, %v642
        %v650 = vadd.f32 %v627, %v642
        %v651 = vadd.f32 %v628, %v642
        %v652 = vadd.f32 %v629, %v642
        %v653 = vadd.f32 %v630, %v642
        %v654 = vadd.f32 %v631, %v642
        %v655 = vadd.f32 %v632, %v642
        %v656 = vadd.f32 %v633, %v642
        %v657 = vadd.f32 %v634, %v642
        %v658 = vadd.f32 %v635, %v642
        %v659 = vadd.f32 %v636, %v642
        %vm660 = vcmp.ge.f32.partialorder %v644, 0.0
        %vm661 = vcmp.ge.f32.partialorder %v645, 0.0
        %vm662 = vcmp.ge.f32.partialorder %v646, 0.0
        %vm663 = vcmp.ge.f32.partialorder %v647, 0.0
        %vm664 = vcmp.ge.f32.partialorder %v648, 0.0
        %vm665 = vcmp.ge.f32.partialorder %v649, 0.0
        %vm666 = vcmp.ge.f32.partialorder %v650, 0.0
        %vm667 = vcmp.ge.f32.partialorder %v651, 0.0
        %vm668 = vcmp.ge.f32.partialorder %v652, 0.0
        %vm669 = vcmp.ge.f32.partialorder %v653, 0.0
        %vm670 = vcmp.ge.f32.partialorder %v654, 0.0
        %vm671 = vcmp.ge.f32.partialorder %v655, 0.0
        %vm672 = vcmp.ge.f32.partialorder %v656, 0.0
        %vm673 = vcmp.ge.f32.partialorder %v657, 0.0
        %vm674 = vcmp.ge.f32.partialorder %v658, 0.0
        %vm675 = vcmp.ge.f32.partialorder %v659, 0.0
        %v676 = vmul.f32 %v644, 0.2
        %v677 = vmul.f32 %v645, 0.2
        %v678 = vmul.f32 %v646, 0.2
        %v679 = vmul.f32 %v647, 0.2
        %v680 = vmul.f32 %v648, 0.2
        %v681 = vmul.f32 %v649, 0.2
        %v682 = vmul.f32 %v650, 0.2
        %v683 = vmul.f32 %v651, 0.2
        %v684 = vmul.f32 %v652, 0.2
        %v685 = vmul.f32 %v653, 0.2
        %v686 = vmul.f32 %v654, 0.2
        %v687 = vmul.f32 %v655, 0.2
        %v688 = vmul.f32 %v656, 0.2
        %v689 = vmul.f32 %v657, 0.2
        %v690 = vmul.f32 %v658, 0.2
        %v691 = vmul.f32 %v659, 0.2
        %v692 = vsel %vm660, %v644, %v676
        %v693 = vsel %vm661, %v645, %v677
        %v694 = vsel %vm662, %v646, %v678
        %v695 = vsel %vm663, %v647, %v679
        %v696 = vsel %vm664, %v648, %v680
        %v697 = vsel %vm665, %v649, %v681
        %v698 = vsel %vm666, %v650, %v682
        %v699 = vsel %vm667, %v651, %v683
        %v700 = vsel %vm668, %v652, %v684
        %v701 = vsel %vm669, %v653, %v685
        %v702 = vsel %vm670, %v654, %v686
        %v703 = vsel %vm671, %v655, %v687
        %v704 = vsel %vm672, %v656, %v688
        %v705 = vsel %vm673, %v657, %v689
        %v706 = vsel %vm674, %v658, %v690
        %v707 = vsel %vm675, %v659, %v691
        %708 = vst [vmem:[%s298] sm:$0xff] %v692
        %709 = vst [vmem:[%s298 + $0x8] sm:$0xff] %v693
        %710 = vst [vmem:[%s298 + $0x10] sm:$0xff] %v694
        %711 = vst [vmem:[%s298 + $0x18] sm:$0xff] %v695
        %712 = vst [vmem:[%s298 + $0x20] sm:$0xff] %v696
        %713 = vst [vmem:[%s298 + $0x28] sm:$0xff] %v697
        %714 = vst [vmem:[%s298 + $0x30] sm:$0xff] %v698
        %715 = vst [vmem:[%s298 + $0x38] sm:$0xff] %v699
        %716 = vst [vmem:[%s298 + $0x40] sm:$0xff] %v700
        %717 = vst [vmem:[%s298 + $0x48] sm:$0xff] %v701
        %718 = vst [vmem:[%s298 + $0x50] sm:$0xff] %v702
        %719 = vst [vmem:[%s298 + $0x58] sm:$0xff] %v703
        %720 = vst [vmem:[%s298 + $0x60] sm:$0xff] %v704
        %721 = vst [vmem:[%s298 + $0x68] sm:$0xff] %v705
        %722 = vst [vmem:[%s298 + $0x70] sm:$0xff] %v706
        %723 = vst [vmem:[%s298 + $0x78] sm:$0xff] %v707
      $region44: #{patchgan_forward.5} parent=35 // pred_fallthru
        _
      %s724 = smul.u32 16, %s20
      %p725 = scmp.lt.s32.totalorder %s724, 63
      %s726 = scalar_select %p725, %s724, 63
      %p727 = scmp.lt.s32.totalorder %s21, 0
      %s728 = scalar_select %p727, %s21, 0
      %s729 = sadd.s32 %s728, %s726
      %s730 = smul.addr %s729, 8
      %s731 = scalar_lea.vmem %s4, %s730
      // Predicated region
      $region45: #{patchgan_forward.5} parent=35 // pred_check
        %p732 = pneg %p162
      $region46: #{patchgan_forward.5} parent=35 // pred_check_branch
        %734 = sbr.rel (%p732) target = $region48
      $region47: #{patchgan_forward.5} parent=35 // pred_region
        %s735 = smul.u32 16, %s20
      $region48: #{patchgan_forward.5} parent=35 // pred_fallthru
        _
    $region36: #{patchgan_forward.5} parent=5 // pred_fallthru
      _
    %p736 = scmp.le.s32.totalorder 2, %s10
    // Predicated region
    $region49: #{patchgan_forward.5} parent=5 // pred_check
      %p737 = pneg %p736
    $region50: #{patchgan_forward.5} parent=5 // pred_check_branch
      %739 = sbr.rel (%p737) target = $region52
    $region51: #{patchgan_forward.5} parent=5 // pred_region
      %s740 = ssub.s32 %s10, 2
      // Predicated region
      $region53: #{patchgan_forward.5} parent=51 // pred_check
        %p741 = pneg %p168
      $region54: #{patchgan_forward.5} parent=51 // pred_check_branch
        %743 = sbr.rel (%p741) target = $region56
      $region55: #{patchgan_forward.5} parent=51 // pred_region
        %s744 = smul.u32 16, %s23
        %p745 = scmp.lt.s32.totalorder %s744, 63
        %s746 = scalar_select %p745, %s744, 63
        %p747 = scmp.lt.s32.totalorder %s24, 0
        %s748 = scalar_select %p747, %s24, 0
        %s749 = sadd.s32 %s748, %s746
        %s750 = smul.addr %s749, 8
        %s751 = scalar_lea.vmem %s4, %s750
      $region56: #{patchgan_forward.5} parent=51 // pred_fallthru
        _
    $region52: #{patchgan_forward.5} parent=5 // pred_fallthru
      _
  $region6: #{patchgan_forward.5} parent=0 // loop_footer
    %s14 = sadd.s32 1, %s10
  $region7: #{patchgan_forward.5} parent=0 // loop_footer_branch
    %9 = sbr.rel target = $region3
  $region8: #{patchgan_forward.5} parent=0 // loop_exit
    _

// kernel: patchgan_forward.6
$region0: #{patchgan_forward.6}
  #allocation0 [shape = 'u32[]', space=smem, size = 0x4, offset = 0x4, fixed_abs, tag = 'smem constant byte address 0x4 - core index']
  #allocation1 [shape = 'u32[144,128]{1,0:T(1,128)}', space=vmem, size = 0x12000, scoped, tag = 'internal scratch']
  #allocation2 [shape = 'f32[128,128]{1,0:T(8,128)}', space=vmem, size = 0x10000, scoped, tag = 'scratch operand']
  %s0 = inlined_call_operand.vmem [shape: bf16[128,1024], index: 0, kind: input, shape index: {}]
  %s1 = inlined_call_operand.vmem [shape: bf16[1024,128], index: 1, kind: input, shape index: {}]
  %s2 = inlined_call_operand.vmem [shape: f32[1,128], index: 2, kind: input, shape index: {}]
  %s3 = inlined_call_operand.vmem [shape: f32[1,128], index: 3, kind: input, shape index: {}]
  %s4 = inlined_call_operand.vmem [shape: f32[128,128], index: 4, kind: output, shape index: {}]
  %s5 = sld [smem:[#allocation0]]
  $region34: #{patchgan_forward.6} parent=0
    _
  %s7 = ssub.s32 1, %s5
  %s8 = scalar_select 0, %s7, %s5
  // Predicated region
  $region2: #{patchgan_forward.6} parent=0 // pred_check
    _
  $region3: #{patchgan_forward.6} parent=0 // pred_check_branch
    %10 = sbr.rel (0) target = $region5
  $region4: #{patchgan_forward.6} parent=0 // pred_region
    _
  $region5: #{patchgan_forward.6} parent=0 // pred_fallthru
    _
  // Predicated region
  $region6: #{patchgan_forward.6} parent=0 // pred_check
    _
  $region7: #{patchgan_forward.6} parent=0 // pred_check_branch
    %12 = sbr.rel (0) target = $region9
  $region8: #{patchgan_forward.6} parent=0 // pred_region
    _
  $region9: #{patchgan_forward.6} parent=0 // pred_fallthru
    _
  // Predicated region
  $region10: #{patchgan_forward.6} parent=0 // pred_check
    _
  $region11: #{patchgan_forward.6} parent=0 // pred_check_branch
    %14 = sbr.rel (0) target = $region13
  $region12: #{patchgan_forward.6} parent=0 // pred_region
    _
  $region13: #{patchgan_forward.6} parent=0 // pred_fallthru
    _
  // Predicated region
  $region14: #{patchgan_forward.6} parent=0 // pred_check
    _
  $region15: #{patchgan_forward.6} parent=0 // pred_check_branch
    %16 = sbr.rel (0) target = $region17
  $region16: #{patchgan_forward.6} parent=0 // pred_region
    _
  $region17: #{patchgan_forward.6} parent=0 // pred_fallthru
    _
  %p18 = scmp.eq.s32.totalorder 0, 0
  // Predicated region
  $region18: #{patchgan_forward.6} parent=0 // pred_check
    %p19 = pneg %p18
  $region19: #{patchgan_forward.6} parent=0 // pred_check_branch
    %21 = sbr.rel (%p19) target = $region21
  $region20: #{patchgan_forward.6} parent=0 // pred_region
    %22 = vst [vmem:[#allocation2] sm:$0xff] 0.0
    %23 = vst [vmem:[#allocation2 + $0x8] sm:$0xff] 0.0
    %24 = vst [vmem:[#allocation2 + $0x10] sm:$0xff] 0.0
    %25 = vst [vmem:[#allocation2 + $0x18] sm:$0xff] 0.0
    %26 = vst [vmem:[#allocation2 + $0x20] sm:$0xff] 0.0
    %27 = vst [vmem:[#allocation2 + $0x28] sm:$0xff] 0.0
    %28 = vst [vmem:[#allocation2 + $0x30] sm:$0xff] 0.0
    %29 = vst [vmem:[#allocation2 + $0x38] sm:$0xff] 0.0
    %30 = vst [vmem:[#allocation2 + $0x40] sm:$0xff] 0.0
    %31 = vst [vmem:[#allocation2 + $0x48] sm:$0xff] 0.0
    %32 = vst [vmem:[#allocation2 + $0x50] sm:$0xff] 0.0
    %33 = vst [vmem:[#allocation2 + $0x58] sm:$0xff] 0.0
    %34 = vst [vmem:[#allocation2 + $0x60] sm:$0xff] 0.0
    %35 = vst [vmem:[#allocation2 + $0x68] sm:$0xff] 0.0
    %36 = vst [vmem:[#allocation2 + $0x70] sm:$0xff] 0.0
    %37 = vst [vmem:[#allocation2 + $0x78] sm:$0xff] 0.0
  $region21: #{patchgan_forward.6} parent=0 // pred_fallthru
    _
  %v38 = vld [vmem:[#allocation2] sm:$0xff]
  %v39 = vld [vmem:[#allocation2 + $0x8] sm:$0xff]
  %v40 = vld [vmem:[#allocation2 + $0x10] sm:$0xff]
  %v41 = vld [vmem:[#allocation2 + $0x18] sm:$0xff]
  %v42 = vld [vmem:[#allocation2 + $0x20] sm:$0xff]
  %v43 = vld [vmem:[#allocation2 + $0x28] sm:$0xff]
  %v44 = vld [vmem:[#allocation2 + $0x30] sm:$0xff]
  %v45 = vld [vmem:[#allocation2 + $0x38] sm:$0xff]
  %v46 = vld [vmem:[#allocation2 + $0x40] sm:$0xff]
  %v47 = vld [vmem:[#allocation2 + $0x48] sm:$0xff]
  %v48 = vld [vmem:[#allocation2 + $0x50] sm:$0xff]
  %v49 = vld [vmem:[#allocation2 + $0x58] sm:$0xff]
  %v50 = vld [vmem:[#allocation2 + $0x60] sm:$0xff]
  %v51 = vld [vmem:[#allocation2 + $0x68] sm:$0xff]
  %v52 = vld [vmem:[#allocation2 + $0x70] sm:$0xff]
  %v53 = vld [vmem:[#allocation2 + $0x78] sm:$0xff]
  %v54 = vld [vmem:[%s0] sm:$0xff]
  %v55 = vld [vmem:[%s0 + $0x8] sm:$0xff]
  %v56 = vld [vmem:[%s0 + $0x10] sm:$0xff]
  %v57 = vld [vmem:[%s0 + $0x18] sm:$0xff]
  %v58 = vld [vmem:[%s0 + $0x20] sm:$0xff]
  %v59 = vld [vmem:[%s0 + $0x28] sm:$0xff]
  %v60 = vld [vmem:[%s0 + $0x30] sm:$0xff]
  %v61 = vld [vmem:[%s0 + $0x38] sm:$0xff]
  %v62 = vld [vmem:[%s0 + $0x40] sm:$0xff]
  %v63 = vld [vmem:[%s0 + $0x48] sm:$0xff]
  %v64 = vld [vmem:[%s0 + $0x50] sm:$0xff]
  %v65 = vld [vmem:[%s0 + $0x58] sm:$0xff]
  %v66 = vld [vmem:[%s0 + $0x60] sm:$0xff]
  %v67 = vld [vmem:[%s0 + $0x68] sm:$0xff]
  %v68 = vld [vmem:[%s0 + $0x70] sm:$0xff]
  %v69 = vld [vmem:[%s0 + $0x78] sm:$0xff]
  %v70 = vld [vmem:[%s0 + $0x80] sm:$0xff]
  %v71 = vld [vmem:[%s0 + $0x88] sm:$0xff]
  %v72 = vld [vmem:[%s0 + $0x90] sm:$0xff]
  %v73 = vld [vmem:[%s0 + $0x98] sm:$0xff]
  %v74 = vld [vmem:[%s0 + $0xa0] sm:$0xff]
  %v75 = vld [vmem:[%s0 + $0xa8] sm:$0xff]
  %v76 = vld [vmem:[%s0 + $0xb0] sm:$0xff]
  %v77 = vld [vmem:[%s0 + $0xb8] sm:$0xff]
  %v78 = vld [vmem:[%s0 + $0xc0] sm:$0xff]
  %v79 = vld [vmem:[%s0 + $0xc8] sm:$0xff]
  %v80 = vld [vmem:[%s0 + $0xd0] sm:$0xff]
  %v81 = vld [vmem:[%s0 + $0xd8] sm:$0xff]
  %v82 = vld [vmem:[%s0 + $0xe0] sm:$0xff]
  %v83 = vld [vmem:[%s0 + $0xe8] sm:$0xff]
  %v84 = vld [vmem:[%s0 + $0xf0] sm:$0xff]
  %v85 = vld [vmem:[%s0 + $0xf8] sm:$0xff]
  %v86 = vld [vmem:[%s0 + $0x100] sm:$0xff]
  %v87 = vld [vmem:[%s0 + $0x108] sm:$0xff]
  %v88 = vld [vmem:[%s0 + $0x110] sm:$0xff]
  %v89 = vld [vmem:[%s0 + $0x118] sm:$0xff]
  %v90 = vld [vmem:[%s0 + $0x120] sm:$0xff]
  %v91 = vld [vmem:[%s0 + $0x128] sm:$0xff]
  %v92 = vld [vmem:[%s0 + $0x130] sm:$0xff]
  %v93 = vld [vmem:[%s0 + $0x138] sm:$0xff]
  %v94 = vld [vmem:[%s0 + $0x140] sm:$0xff]
  %v95 = vld [vmem:[%s0 + $0x148] sm:$0xff]
  %v96 = vld [vmem:[%s0 + $0x150] sm:$0xff]
  %v97 = vld [vmem:[%s0 + $0x158] sm:$0xff]
  %v98 = vld [vmem:[%s0 + $0x160] sm:$0xff]
  %v99 = vld [vmem:[%s0 + $0x168] sm:$0xff]
  %v100 = vld [vmem:[%s0 + $0x170] sm:$0xff]
  %v101 = vld [vmem:[%s0 + $0x178] sm:$0xff]
  %v102 = vld [vmem:[%s0 + $0x180] sm:$0xff]
  %v103 = vld [vmem:[%s0 + $0x188] sm:$0xff]
  %v104 = vld [vmem:[%s0 + $0x190] sm:$0xff]
  %v105 = vld [vmem:[%s0 + $0x198] sm:$0xff]
  %v106 = vld [vmem:[%s0 + $0x1a0] sm:$0xff]
  %v107 = vld [vmem:[%s0 + $0x1a8] sm:$0xff]
  %v108 = vld [vmem:[%s0 + $0x1b0] sm:$0xff]
  %v109 = vld [vmem:[%s0 + $0x1b8] sm:$0xff]
  %v110 = vld [vmem:[%s0 + $0x1c0] sm:$0xff]
  %v111 = vld [vmem:[%s0 + $0x1c8] sm:$0xff]
  %v112 = vld [vmem:[%s0 + $0x1d0] sm:$0xff]
  %v113 = vld [vmem:[%s0 + $0x1d8] sm:$0xff]
  %v114 = vld [vmem:[%s0 + $0x1e0] sm:$0xff]
  %v115 = vld [vmem:[%s0 + $0x1e8] sm:$0xff]
  %v116 = vld [vmem:[%s0 + $0x1f0] sm:$0xff]
  %v117 = vld [vmem:[%s0 + $0x1f8] sm:$0xff]
  %v118 = vld [vmem:[%s1] sm:$0xf]
  %v119 = vld [vmem:[%s1 + $0x4] sm:$0xf]
  %v120 = vld [vmem:[%s1 + $0x8] sm:$0xf]
  %v121 = vld [vmem:[%s1 + $0xc] sm:$0xf]
  %v122 = vld [vmem:[%s1 + $0x10] sm:$0xf]
  %v123 = vld [vmem:[%s1 + $0x14] sm:$0xf]
  %v124 = vld [vmem:[%s1 + $0x18] sm:$0xf]
  %v125 = vld [vmem:[%s1 + $0x1c] sm:$0xf]
  %v126 = vld [vmem:[%s1 + $0x20] sm:$0xf]
  %v127 = vld [vmem:[%s1 + $0x24] sm:$0xf]
  %v128 = vld [vmem:[%s1 + $0x28] sm:$0xf]
  %v129 = vld [vmem:[%s1 + $0x2c] sm:$0xf]
  %v130 = vld [vmem:[%s1 + $0x30] sm:$0xf]
  %v131 = vld [vmem:[%s1 + $0x34] sm:$0xf]
  %v132 = vld [vmem:[%s1 + $0x38] sm:$0xf]
  %v133 = vld [vmem:[%s1 + $0x3c] sm:$0xf]
  %v134 = vld [vmem:[%s1 + $0x40] sm:$0xf]
  %v135 = vld [vmem:[%s1 + $0x44] sm:$0xf]
  %v136 = vld [vmem:[%s1 + $0x48] sm:$0xf]
  %v137 = vld [vmem:[%s1 + $0x4c] sm:$0xf]
  %v138 = vld [vmem:[%s1 + $0x50] sm:$0xf]
  %v139 = vld [vmem:[%s1 + $0x54] sm:$0xf]
  %v140 = vld [vmem:[%s1 + $0x58] sm:$0xf]
  %v141 = vld [vmem:[%s1 + $0x5c] sm:$0xf]
  %v142 = vld [vmem:[%s1 + $0x60] sm:$0xf]
  %v143 = vld [vmem:[%s1 + $0x64] sm:$0xf]
  %v144 = vld [vmem:[%s1 + $0x68] sm:$0xf]
  %v145 = vld [vmem:[%s1 + $0x6c] sm:$0xf]
  %v146 = vld [vmem:[%s1 + $0x70] sm:$0xf]
  %v147 = vld [vmem:[%s1 + $0x74] sm:$0xf]
  %v148 = vld [vmem:[%s1 + $0x78] sm:$0xf]
  %v149 = vld [vmem:[%s1 + $0x7c] sm:$0xf]
  %v150 = vld [vmem:[%s1 + $0x80] sm:$0xf]
  %v151 = vld [vmem:[%s1 + $0x84] sm:$0xf]
  %v152 = vld [vmem:[%s1 + $0x88] sm:$0xf]
  %v153 = vld [vmem:[%s1 + $0x8c] sm:$0xf]
  %v154 = vld [vmem:[%s1 + $0x90] sm:$0xf]
  %v155 = vld [vmem:[%s1 + $0x94] sm:$0xf]
  %v156 = vld [vmem:[%s1 + $0x98] sm:$0xf]
  %v157 = vld [vmem:[%s1 + $0x9c] sm:$0xf]
  %v158 = vld [vmem:[%s1 + $0xa0] sm:$0xf]
  %v159 = vld [vmem:[%s1 + $0xa4] sm:$0xf]
  %v160 = vld [vmem:[%s1 + $0xa8] sm:$0xf]
  %v161 = vld [vmem:[%s1 + $0xac] sm:$0xf]
  %v162 = vld [vmem:[%s1 + $0xb0] sm:$0xf]
  %v163 = vld [vmem:[%s1 + $0xb4] sm:$0xf]
  %v164 = vld [vmem:[%s1 + $0xb8] sm:$0xf]
  %v165 = vld [vmem:[%s1 + $0xbc] sm:$0xf]
  %v166 = vld [vmem:[%s1 + $0xc0] sm:$0xf]
  %v167 = vld [vmem:[%s1 + $0xc4] sm:$0xf]
  %v168 = vld [vmem:[%s1 + $0xc8] sm:$0xf]
  %v169 = vld [vmem:[%s1 + $0xcc] sm:$0xf]
  %v170 = vld [vmem:[%s1 + $0xd0] sm:$0xf]
  %v171 = vld [vmem:[%s1 + $0xd4] sm:$0xf]
  %v172 = vld [vmem:[%s1 + $0xd8] sm:$0xf]
  %v173 = vld [vmem:[%s1 + $0xdc] sm:$0xf]
  %v174 = vld [vmem:[%s1 + $0xe0] sm:$0xf]
  %v175 = vld [vmem:[%s1 + $0xe4] sm:$0xf]
  %v176 = vld [vmem:[%s1 + $0xe8] sm:$0xf]
  %v177 = vld [vmem:[%s1 + $0xec] sm:$0xf]
  %v178 = vld [vmem:[%s1 + $0xf0] sm:$0xf]
  %v179 = vld [vmem:[%s1 + $0xf4] sm:$0xf]
  %v180 = vld [vmem:[%s1 + $0xf8] sm:$0xf]
  %v181 = vld [vmem:[%s1 + $0xfc] sm:$0xf]
  %v182 = vld [vmem:[%s1 + $0x100] sm:$0xf]
  %v183 = vld [vmem:[%s1 + $0x104] sm:$0xf]
  %v184 = vld [vmem:[%s1 + $0x108] sm:$0xf]
  %v185 = vld [vmem:[%s1 + $0x10c] sm:$0xf]
  %v186 = vld [vmem:[%s1 + $0x110] sm:$0xf]
  %v187 = vld [vmem:[%s1 + $0x114] sm:$0xf]
  %v188 = vld [vmem:[%s1 + $0x118] sm:$0xf]
  %v189 = vld [vmem:[%s1 + $0x11c] sm:$0xf]
  %v190 = vld [vmem:[%s1 + $0x120] sm:$0xf]
  %v191 = vld [vmem:[%s1 + $0x124] sm:$0xf]
  %v192 = vld [vmem:[%s1 + $0x128] sm:$0xf]
  %v193 = vld [vmem:[%s1 + $0x12c] sm:$0xf]
  %v194 = vld [vmem:[%s1 + $0x130] sm:$0xf]
  %v195 = vld [vmem:[%s1 + $0x134] sm:$0xf]
  %v196 = vld [vmem:[%s1 + $0x138] sm:$0xf]
  %v197 = vld [vmem:[%s1 + $0x13c] sm:$0xf]
  %v198 = vld [vmem:[%s1 + $0x140] sm:$0xf]
  %v199 = vld [vmem:[%s1 + $0x144] sm:$0xf]
  %v200 = vld [vmem:[%s1 + $0x148] sm:$0xf]
  %v201 = vld [vmem:[%s1 + $0x14c] sm:$0xf]
  %v202 = vld [vmem:[%s1 + $0x150] sm:$0xf]
  %v203 = vld [vmem:[%s1 + $0x154] sm:$0xf]
  %v204 = vld [vmem:[%s1 + $0x158] sm:$0xf]
  %v205 = vld [vmem:[%s1 + $0x15c] sm:$0xf]
  %v206 = vld [vmem:[%s1 + $0x160] sm:$0xf]
  %v207 = vld [vmem:[%s1 + $0x164] sm:$0xf]
  %v208 = vld [vmem:[%s1 + $0x168] sm:$0xf]
  %v209 = vld [vmem:[%s1 + $0x16c] sm:$0xf]
  %v210 = vld [vmem:[%s1 + $0x170] sm:$0xf]
  %v211 = vld [vmem:[%s1 + $0x174] sm:$0xf]
  %v212 = vld [vmem:[%s1 + $0x178] sm:$0xf]
  %v213 = vld [vmem:[%s1 + $0x17c] sm:$0xf]
  %v214 = vld [vmem:[%s1 + $0x180] sm:$0xf]
  %v215 = vld [vmem:[%s1 + $0x184] sm:$0xf]
  %v216 = vld [vmem:[%s1 + $0x188] sm:$0xf]
  %v217 = vld [vmem:[%s1 + $0x18c] sm:$0xf]
  %v218 = vld [vmem:[%s1 + $0x190] sm:$0xf]
  %v219 = vld [vmem:[%s1 + $0x194] sm:$0xf]
  %v220 = vld [vmem:[%s1 + $0x198] sm:$0xf]
  %v221 = vld [vmem:[%s1 + $0x19c] sm:$0xf]
  %v222 = vld [vmem:[%s1 + $0x1a0] sm:$0xf]
  %v223 = vld [vmem:[%s1 + $0x1a4] sm:$0xf]
  %v224 = vld [vmem:[%s1 + $0x1a8] sm:$0xf]
  %v225 = vld [vmem:[%s1 + $0x1ac] sm:$0xf]
  %v226 = vld [vmem:[%s1 + $0x1b0] sm:$0xf]
  %v227 = vld [vmem:[%s1 + $0x1b4] sm:$0xf]
  %v228 = vld [vmem:[%s1 + $0x1b8] sm:$0xf]
  %v229 = vld [vmem:[%s1 + $0x1bc] sm:$0xf]
  %v230 = vld [vmem:[%s1 + $0x1c0] sm:$0xf]
  %v231 = vld [vmem:[%s1 + $0x1c4] sm:$0xf]
  %v232 = vld [vmem:[%s1 + $0x1c8] sm:$0xf]
  %v233 = vld [vmem:[%s1 + $0x1cc] sm:$0xf]
  %v234 = vld [vmem:[%s1 + $0x1d0] sm:$0xf]
  %v235 = vld [vmem:[%s1 + $0x1d4] sm:$0xf]
  %v236 = vld [vmem:[%s1 + $0x1d8] sm:$0xf]
  %v237 = vld [vmem:[%s1 + $0x1dc] sm:$0xf]
  %v238 = vld [vmem:[%s1 + $0x1e0] sm:$0xf]
  %v239 = vld [vmem:[%s1 + $0x1e4] sm:$0xf]
  %v240 = vld [vmem:[%s1 + $0x1e8] sm:$0xf]
  %v241 = vld [vmem:[%s1 + $0x1ec] sm:$0xf]
  %v242 = vld [vmem:[%s1 + $0x1f0] sm:$0xf]
  %v243 = vld [vmem:[%s1 + $0x1f4] sm:$0xf]
  %v244 = vld [vmem:[%s1 + $0x1f8] sm:$0xf]
  %v245 = vld [vmem:[%s1 + $0x1fc] sm:$0xf]
  %v310 = vunpack.c.l.b16 %v54
  %v311 = vunpack.c.h.b16 %v54
  %v312 = vunpack.c.l.b16 %v55
  %v313 = vunpack.c.h.b16 %v55
  %v314 = vunpack.c.l.b16 %v56
  %v315 = vunpack.c.h.b16 %v56
  %v316 = vunpack.c.l.b16 %v57
  %v317 = vunpack.c.h.b16 %v57
  %v318 = vunpack.c.l.b16 %v58
  %v319 = vunpack.c.h.b16 %v58
  %v320 = vunpack.c.l.b16 %v59
  %v321 = vunpack.c.h.b16 %v59
  %v322 = vunpack.c.l.b16 %v60
  %v323 = vunpack.c.h.b16 %v60
  %v324 = vunpack.c.l.b16 %v61
  %v325 = vunpack.c.h.b16 %v61
  %v326 = vunpack.c.l.b16 %v62
  %v327 = vunpack.c.h.b16 %v62
  %v328 = vunpack.c.l.b16 %v63
  %v329 = vunpack.c.h.b16 %v63
  %v330 = vunpack.c.l.b16 %v64
  %v331 = vunpack.c.h.b16 %v64
  %v332 = vunpack.c.l.b16 %v65
  %v333 = vunpack.c.h.b16 %v65
  %v334 = vunpack.c.l.b16 %v66
  %v335 = vunpack.c.h.b16 %v66
  %v336 = vunpack.c.l.b16 %v67
  %v337 = vunpack.c.h.b16 %v67
  %v338 = vunpack.c.l.b16 %v68
  %v339 = vunpack.c.h.b16 %v68
  %v340 = vunpack.c.l.b16 %v69
  %v341 = vunpack.c.h.b16 %v69
  %v342 = vunpack.c.l.b16 %v70
  %v343 = vunpack.c.h.b16 %v70
  %v344 = vunpack.c.l.b16 %v71
  %v345 = vunpack.c.h.b16 %v71
  %v346 = vunpack.c.l.b16 %v72
  %v347 = vunpack.c.h.b16 %v72
  %v348 = vunpack.c.l.b16 %v73
  %v349 = vunpack.c.h.b16 %v73
  %v350 = vunpack.c.l.b16 %v74
  %v351 = vunpack.c.h.b16 %v74
  %v352 = vunpack.c.l.b16 %v75
  %v353 = vunpack.c.h.b16 %v75
  %v354 = vunpack.c.l.b16 %v76
  %v355 = vunpack.c.h.b16 %v76
  %v356 = vunpack.c.l.b16 %v77
  %v357 = vunpack.c.h.b16 %v77
  %v358 = vunpack.c.l.b16 %v78
  %v359 = vunpack.c.h.b16 %v78
  %v360 = vunpack.c.l.b16 %v79
  %v361 = vunpack.c.h.b16 %v79
  %v362 = vunpack.c.l.b16 %v80
  %v363 = vunpack.c.h.b16 %v80
  %v364 = vunpack.c.l.b16 %v81
  %v365 = vunpack.c.h.b16 %v81
  %v366 = vunpack.c.l.b16 %v82
  %v367 = vunpack.c.h.b16 %v82
  %v368 = vunpack.c.l.b16 %v83
  %v369 = vunpack.c.h.b16 %v83
  %v370 = vunpack.c.l.b16 %v84
  %v371 = vunpack.c.h.b16 %v84
  %v372 = vunpack.c.l.b16 %v85
  %v373 = vunpack.c.h.b16 %v85
  %v374 = vunpack.c.l.b16 %v86
  %v375 = vunpack.c.h.b16 %v86
  %v376 = vunpack.c.l.b16 %v87
  %v377 = vunpack.c.h.b16 %v87
  %v378 = vunpack.c.l.b16 %v88
  %v379 = vunpack.c.h.b16 %v88
  %v380 = vunpack.c.l.b16 %v89
  %v381 = vunpack.c.h.b16 %v89
  %v382 = vunpack.c.l.b16 %v90
  %v383 = vunpack.c.h.b16 %v90
  %v384 = vunpack.c.l.b16 %v91
  %v385 = vunpack.c.h.b16 %v91
  %v386 = vunpack.c.l.b16 %v92
  %v387 = vunpack.c.h.b16 %v92
  %v388 = vunpack.c.l.b16 %v93
  %v389 = vunpack.c.h.b16 %v93
  %v390 = vunpack.c.l.b16 %v94
  %v391 = vunpack.c.h.b16 %v94
  %v392 = vunpack.c.l.b16 %v95
  %v393 = vunpack.c.h.b16 %v95
  %v394 = vunpack.c.l.b16 %v96
  %v395 = vunpack.c.h.b16 %v96
  %v396 = vunpack.c.l.b16 %v97
  %v397 = vunpack.c.h.b16 %v97
  %v398 = vunpack.c.l.b16 %v98
  %v399 = vunpack.c.h.b16 %v98
  %v400 = vunpack.c.l.b16 %v99
  %v401 = vunpack.c.h.b16 %v99
  %v402 = vunpack.c.l.b16 %v100
  %v403 = vunpack.c.h.b16 %v100
  %v404 = vunpack.c.l.b16 %v101
  %v405 = vunpack.c.h.b16 %v101
  %v406 = vunpack.c.l.b16 %v102
  %v407 = vunpack.c.h.b16 %v102
  %v408 = vunpack.c.l.b16 %v103
  %v409 = vunpack.c.h.b16 %v103
  %v410 = vunpack.c.l.b16 %v104
  %v411 = vunpack.c.h.b16 %v104
  %v412 = vunpack.c.l.b16 %v105
  %v413 = vunpack.c.h.b16 %v105
  %v414 = vunpack.c.l.b16 %v106
  %v415 = vunpack.c.h.b16 %v106
  %v416 = vunpack.c.l.b16 %v107
  %v417 = vunpack.c.h.b16 %v107
  %v418 = vunpack.c.l.b16 %v108
  %v419 = vunpack.c.h.b16 %v108
  %v420 = vunpack.c.l.b16 %v109
  %v421 = vunpack.c.h.b16 %v109
  %v422 = vunpack.c.l.b16 %v110
  %v423 = vunpack.c.h.b16 %v110
  %v424 = vunpack.c.l.b16 %v111
  %v425 = vunpack.c.h.b16 %v111
  %v426 = vunpack.c.l.b16 %v112
  %v427 = vunpack.c.h.b16 %v112
  %v428 = vunpack.c.l.b16 %v113
  %v429 = vunpack.c.h.b16 %v113
  %v430 = vunpack.c.l.b16 %v114
  %v431 = vunpack.c.h.b16 %v114
  %v432 = vunpack.c.l.b16 %v115
  %v433 = vunpack.c.h.b16 %v115
  %v434 = vunpack.c.l.b16 %v116
  %v435 = vunpack.c.h.b16 %v116
  %v436 = vunpack.c.l.b16 %v117
  %v437 = vunpack.c.h.b16 %v117
  %v438 = vpack.c.b16 %v318, %v310
  %v439 = vpack.c.b16 %v319, %v311
  %v440 = vpack.c.b16 %v320, %v312
  %v441 = vpack.c.b16 %v321, %v313
  %v442 = vpack.c.b16 %v322, %v314
  %v443 = vpack.c.b16 %v323, %v315
  %v444 = vpack.c.b16 %v324, %v316
  %v445 = vpack.c.b16 %v325, %v317
  %v446 = vpack.c.b16 %v334, %v326
  %v447 = vpack.c.b16 %v335, %v327
  %v448 = vpack.c.b16 %v336, %v328
  %v449 = vpack.c.b16 %v337, %v329
  %v450 = vpack.c.b16 %v338, %v330
  %v451 = vpack.c.b16 %v339, %v331
  %v452 = vpack.c.b16 %v340, %v332
  %v453 = vpack.c.b16 %v341, %v333
  %v454 = vpack.c.b16 %v350, %v342
  %v455 = vpack.c.b16 %v351, %v343
  %v456 = vpack.c.b16 %v352, %v344
  %v457 = vpack.c.b16 %v353, %v345
  %v458 = vpack.c.b16 %v354, %v346
  %v459 = vpack.c.b16 %v355, %v347
  %v460 = vpack.c.b16 %v356, %v348
  %v461 = vpack.c.b16 %v357, %v349
  %v462 = vpack.c.b16 %v366, %v358
  %v463 = vpack.c.b16 %v367, %v359
  %v464 = vpack.c.b16 %v368, %v360
  %v465 = vpack.c.b16 %v369, %v361
  %v466 = vpack.c.b16 %v370, %v362
  %v467 = vpack.c.b16 %v371, %v363
  %v468 = vpack.c.b16 %v372, %v364
  %v469 = vpack.c.b16 %v373, %v365
  %v470 = vpack.c.b16 %v382, %v374
  %v471 = vpack.c.b16 %v383, %v375
  %v472 = vpack.c.b16 %v384, %v376
  %v473 = vpack.c.b16 %v385, %v377
  %v474 = vpack.c.b16 %v386, %v378
  %v475 = vpack.c.b16 %v387, %v379
  %v476 = vpack.c.b16 %v388, %v380
  %v477 = vpack.c.b16 %v389, %v381
  %v478 = vpack.c.b16 %v398, %v390
  %v479 = vpack.c.b16 %v399, %v391
  %v480 = vpack.c.b16 %v400, %v392
  %v481 = vpack.c.b16 %v401, %v393
  %v482 = vpack.c.b16 %v402, %v394
  %v483 = vpack.c.b16 %v403, %v395
  %v484 = vpack.c.b16 %v404, %v396
  %v485 = vpack.c.b16 %v405, %v397
  %v486 = vpack.c.b16 %v414, %v406
  %v487 = vpack.c.b16 %v415, %v407
  %v488 = vpack.c.b16 %v416, %v408
  %v489 = vpack.c.b16 %v417, %v409
  %v490 = vpack.c.b16 %v418, %v410
  %v491 = vpack.c.b16 %v419, %v411
  %v492 = vpack.c.b16 %v420, %v412
  %v493 = vpack.c.b16 %v421, %v413
  %v494 = vpack.c.b16 %v430, %v422
  %v495 = vpack.c.b16 %v431, %v423
  %v496 = vpack.c.b16 %v432, %v424
  %v497 = vpack.c.b16 %v433, %v425
  %v498 = vpack.c.b16 %v434, %v426
  %v499 = vpack.c.b16 %v435, %v427
  %v500 = vpack.c.b16 %v436, %v428
  %v501 = vpack.c.b16 %v437, %v429
  %v694 = vunpack.c.l.b16 %v118
  %v695 = vunpack.c.l.b16 %v119
  %v696 = vunpack.c.l.b16 %v120
  %v697 = vunpack.c.l.b16 %v121
  %v698 = vunpack.c.l.b16 %v122
  %v699 = vunpack.c.l.b16 %v123
  %v700 = vunpack.c.l.b16 %v124
  %v701 = vunpack.c.l.b16 %v125
  %v702 = vunpack.c.l.b16 %v126
  %v703 = vunpack.c.l.b16 %v127
  %v704 = vunpack.c.l.b16 %v128
  %v705 = vunpack.c.l.b16 %v129
  %v706 = vunpack.c.l.b16 %v130
  %v707 = vunpack.c.l.b16 %v131
  %v708 = vunpack.c.l.b16 %v132
  %v709 = vunpack.c.l.b16 %v133
  %v710 = vunpack.c.l.b16 %v134
  %v711 = vunpack.c.l.b16 %v135
  %v712 = vunpack.c.l.b16 %v136
  %v713 = vunpack.c.l.b16 %v137
  %v714 = vunpack.c.l.b16 %v138
  %v715 = vunpack.c.l.b16 %v139
  %v716 = vunpack.c.l.b16 %v140
  %v717 = vunpack.c.l.b16 %v141
  %v718 = vunpack.c.l.b16 %v142
  %v719 = vunpack.c.l.b16 %v143
  %v720 = vunpack.c.l.b16 %v144
  %v721 = vunpack.c.l.b16 %v145
  %v722 = vunpack.c.l.b16 %v146
  %v723 = vunpack.c.l.b16 %v147
  %v724 = vunpack.c.l.b16 %v148
  %v725 = vunpack.c.l.b16 %v149
  %v726 = vunpack.c.l.b16 %v150
  %v727 = vunpack.c.l.b16 %v151
  %v728 = vunpack.c.l.b16 %v152
  %v729 = vunpack.c.l.b16 %v153
  %v730 = vunpack.c.l.b16 %v154
  %v731 = vunpack.c.l.b16 %v155
  %v732 = vunpack.c.l.b16 %v156
  %v733 = vunpack.c.l.b16 %v157
  %v734 = vunpack.c.l.b16 %v158
  %v735 = vunpack.c.l.b16 %v159
  %v736 = vunpack.c.l.b16 %v160
  %v737 = vunpack.c.l.b16 %v161
  %v738 = vunpack.c.l.b16 %v162
  %v739 = vunpack.c.l.b16 %v163
  %v740 = vunpack.c.l.b16 %v164
  %v741 = vunpack.c.l.b16 %v165
  %v742 = vunpack.c.l.b16 %v166
  %v743 = vunpack.c.l.b16 %v167
  %v744 = vunpack.c.l.b16 %v168
  %v745 = vunpack.c.l.b16 %v169
  %v746 = vunpack.c.l.b16 %v170
  %v747 = vunpack.c.l.b16 %v171
  %v748 = vunpack.c.l.b16 %v172
  %v749 = vunpack.c.l.b16 %v173
  %v750 = vunpack.c.l.b16 %v174
  %v751 = vunpack.c.l.b16 %v175
  %v752 = vunpack.c.l.b16 %v176
  %v753 = vunpack.c.l.b16 %v177
  %v754 = vunpack.c.l.b16 %v178
  %v755 = vunpack.c.l.b16 %v179
  %v756 = vunpack.c.l.b16 %v180
  %v757 = vunpack.c.l.b16 %v181
  %v758 = vunpack.c.l.b16 %v182
  %v759 = vunpack.c.l.b16 %v183
  %v760 = vunpack.c.l.b16 %v184
  %v761 = vunpack.c.l.b16 %v185
  %v762 = vunpack.c.l.b16 %v186
  %v763 = vunpack.c.l.b16 %v187
  %v764 = vunpack.c.l.b16 %v188
  %v765 = vunpack.c.l.b16 %v189
  %v766 = vunpack.c.l.b16 %v190
  %v767 = vunpack.c.l.b16 %v191
  %v768 = vunpack.c.l.b16 %v192
  %v769 = vunpack.c.l.b16 %v193
  %v770 = vunpack.c.l.b16 %v194
  %v771 = vunpack.c.l.b16 %v195
  %v772 = vunpack.c.l.b16 %v196
  %v773 = vunpack.c.l.b16 %v197
  %v774 = vunpack.c.l.b16 %v198
  %v775 = vunpack.c.l.b16 %v199
  %v776 = vunpack.c.l.b16 %v200
  %v777 = vunpack.c.l.b16 %v201
  %v778 = vunpack.c.l.b16 %v202
  %v779 = vunpack.c.l.b16 %v203
  %v780 = vunpack.c.l.b16 %v204
  %v781 = vunpack.c.l.b16 %v205
  %v782 = vunpack.c.l.b16 %v206
  %v783 = vunpack.c.l.b16 %v207
  %v784 = vunpack.c.l.b16 %v208
  %v785 = vunpack.c.l.b16 %v209
  %v786 = vunpack.c.l.b16 %v210
  %v787 = vunpack.c.l.b16 %v211
  %v788 = vunpack.c.l.b16 %v212
  %v789 = vunpack.c.l.b16 %v213
  %v790 = vunpack.c.l.b16 %v214
  %v791 = vunpack.c.l.b16 %v215
  %v792 = vunpack.c.l.b16 %v216
  %v793 = vunpack.c.l.b16 %v217
  %v794 = vunpack.c.l.b16 %v218
  %v795 = vunpack.c.l.b16 %v219
  %v796 = vunpack.c.l.b16 %v220
  %v797 = vunpack.c.l.b16 %v221
  %v798 = vunpack.c.l.b16 %v222
  %v799 = vunpack.c.l.b16 %v223
  %v800 = vunpack.c.l.b16 %v224
  %v801 = vunpack.c.l.b16 %v225
  %v802 = vunpack.c.l.b16 %v226
  %v803 = vunpack.c.l.b16 %v227
  %v804 = vunpack.c.l.b16 %v228
  %v805 = vunpack.c.l.b16 %v229
  %v806 = vunpack.c.l.b16 %v230
  %v807 = vunpack.c.l.b16 %v231
  %v808 = vunpack.c.l.b16 %v232
  %v809 = vunpack.c.l.b16 %v233
  %v810 = vunpack.c.l.b16 %v234
  %v811 = vunpack.c.l.b16 %v235
  %v812 = vunpack.c.l.b16 %v236
  %v813 = vunpack.c.l.b16 %v237
  %v814 = vunpack.c.l.b16 %v238
  %v815 = vunpack.c.l.b16 %v239
  %v816 = vunpack.c.l.b16 %v240
  %v817 = vunpack.c.l.b16 %v241
  %v818 = vunpack.c.l.b16 %v242
  %v819 = vunpack.c.l.b16 %v243
  %v820 = vunpack.c.l.b16 %v244
  %v821 = vunpack.c.l.b16 %v245
  %v822 = vpack.c.b16 %v695, %v694
  %v823 = vpack.c.b16 %v697, %v696
  %v824 = vpack.c.b16 %v699, %v698
  %v825 = vpack.c.b16 %v701, %v700
  %v826 = vpack.c.b16 %v703, %v702
  %v827 = vpack.c.b16 %v705, %v704
  %v828 = vpack.c.b16 %v707, %v706
  %v829 = vpack.c.b16 %v709, %v708
  %v830 = vpack.c.b16 %v711, %v710
  %v831 = vpack.c.b16 %v713, %v712
  %v832 = vpack.c.b16 %v715, %v714
  %v833 = vpack.c.b16 %v717, %v716
  %v834 = vpack.c.b16 %v719, %v718
  %v835 = vpack.c.b16 %v721, %v720
  %v836 = vpack.c.b16 %v723, %v722
  %v837 = vpack.c.b16 %v725, %v724
  %v838 = vpack.c.b16 %v727, %v726
  %v839 = vpack.c.b16 %v729, %v728
  %v840 = vpack.c.b16 %v731, %v730
  %v841 = vpack.c.b16 %v733, %v732
  %v842 = vpack.c.b16 %v735, %v734
  %v843 = vpack.c.b16 %v737, %v736
  %v844 = vpack.c.b16 %v739, %v738
  %v845 = vpack.c.b16 %v741, %v740
  %v846 = vpack.c.b16 %v743, %v742
  %v847 = vpack.c.b16 %v745, %v744
  %v848 = vpack.c.b16 %v747, %v746
  %v849 = vpack.c.b16 %v749, %v748
  %v850 = vpack.c.b16 %v751, %v750
  %v851 = vpack.c.b16 %v753, %v752
  %v852 = vpack.c.b16 %v755, %v754
  %v853 = vpack.c.b16 %v757, %v756
  %v854 = vpack.c.b16 %v759, %v758
  %v855 = vpack.c.b16 %v761, %v760
  %v856 = vpack.c.b16 %v763, %v762
  %v857 = vpack.c.b16 %v765, %v764
  %v858 = vpack.c.b16 %v767, %v766
  %v859 = vpack.c.b16 %v769, %v768
  %v860 = vpack.c.b16 %v771, %v770
  %v861 = vpack.c.b16 %v773, %v772
  %v862 = vpack.c.b16 %v775, %v774
  %v863 = vpack.c.b16 %v777, %v776
  %v864 = vpack.c.b16 %v779, %v778
  %v865 = vpack.c.b16 %v781, %v780
  %v866 = vpack.c.b16 %v783, %v782
  %v867 = vpack.c.b16 %v785, %v784
  %v868 = vpack.c.b16 %v787, %v786
  %v869 = vpack.c.b16 %v789, %v788
  %v870 = vpack.c.b16 %v791, %v790
  %v871 = vpack.c.b16 %v793, %v792
  %v872 = vpack.c.b16 %v795, %v794
  %v873 = vpack.c.b16 %v797, %v796
  %v874 = vpack.c.b16 %v799, %v798
  %v875 = vpack.c.b16 %v801, %v800
  %v876 = vpack.c.b16 %v803, %v802
  %v877 = vpack.c.b16 %v805, %v804
  %v878 = vpack.c.b16 %v807, %v806
  %v879 = vpack.c.b16 %v809, %v808
  %v880 = vpack.c.b16 %v811, %v810
  %v881 = vpack.c.b16 %v813, %v812
  %v882 = vpack.c.b16 %v815, %v814
  %v883 = vpack.c.b16 %v817, %v816
  %v884 = vpack.c.b16 %v819, %v818
  %v885 = vpack.c.b16 %v821, %v820
  %950 = vmatprep.subr.bf16.mxu0 0
  %951 = vmatpush1.bf16.msra.mxu0 %v822
  %952 = vmatprep.subr.bf16.mxu0 0
  %953 = vmatpush1.bf16.msra.mxu0 %v823
  %954 = vmatprep.subr.bf16.mxu0 0
  %955 = vmatpush1.bf16.msra.mxu0 %v824
  %956 = vmatprep.subr.bf16.mxu0 0
  %957 = vmatpush1.bf16.msra.mxu0 %v825
  %958 = vmatprep.subr.bf16.mxu0 0
  %959 = vmatpush1.bf16.msra.mxu0 %v826
  %960 = vmatprep.subr.bf16.mxu0 0
  %961 = vmatpush1.bf16.msra.mxu0 %v827
  %962 = vmatprep.subr.bf16.mxu0 0
  %963 = vmatpush1.bf16.msra.mxu0 %v828
  %964 = vmatprep.subr.bf16.mxu0 0
  %965 = vmatpush1.bf16.msra.mxu0 %v829
  %966 = vmatprep.subr.bf16.mxu0 0
  %967 = vmatpush1.bf16.msra.mxu0 %v830
  %968 = vmatprep.subr.bf16.mxu0 0
  %969 = vmatpush1.bf16.msra.mxu0 %v831
  %970 = vmatprep.subr.bf16.mxu0 0
  %971 = vmatpush1.bf16.msra.mxu0 %v832
  %972 = vmatprep.subr.bf16.mxu0 0
  %973 = vmatpush1.bf16.msra.mxu0 %v833
  %974 = vmatprep.subr.bf16.mxu0 0
  %975 = vmatpush1.bf16.msra.mxu0 %v834
  %976 = vmatprep.subr.bf16.mxu0 0
  %977 = vmatpush1.bf16.msra.mxu0 %v835
  %978 = vmatprep.subr.bf16.mxu0 0
  %979 = vmatpush1.bf16.msra.mxu0 %v836
  %980 = vmatprep.subr.bf16.mxu0 0
  %981 = vmatpush1.bf16.msra.mxu0 %v837
  %982 = vmatprep.mubr.bf16.mxu0 %v439
  %983 = vmatmul.mubr.bf16.gmra.mrb[0].mxu0 %v438
  %v984 = vpop.f32.mrb[0].mxu0
  %v985 = vadd.f32 0.0, %v984
  %v986 = vpop.f32.mrb[0].mxu0
  %v987 = vpop.f32.mrb[0].mxu0
  %v988 = vadd.f32 0.0, %v987
  %v989 = vpop.f32.mrb[0].mxu0
  %990 = vmatprep.mubr.bf16.mxu0 %v447
  %991 = vmatmul.mubr.bf16.gmra.mrb[0].mxu0 %v446
  %v992 = vpop.f32.mrb[0].mxu0
  %v993 = vadd.f32 0.0, %v992
  %v994 = vpop.f32.mrb[0].mxu0
  %v995 = vpop.f32.mrb[0].mxu0
  %v996 = vadd.f32 0.0, %v995
  %v997 = vpop.f32.mrb[0].mxu0
  %998 = vmatprep.mubr.bf16.mxu0 %v455
  %999 = vmatmul.mubr.bf16.gmra.mrb[0].mxu0 %v454
  %v1000 = vpop.f32.mrb[0].mxu0
  %v1001 = vadd.f32 0.0, %v1000
  %v1002 = vpop.f32.mrb[0].mxu0
  %v1003 = vpop.f32.mrb[0].mxu0
  %v1004 = vadd.f32 0.0, %v1003
  %v1005 = vpop.f32.mrb[0].mxu0
  %1006 = vmatprep.mubr.bf16.mxu0 %v463
  %1007 = vmatmul.mubr.bf16.gmra.mrb[0].mxu0 %v462
  %v1008 = vpop.f32.mrb[0].mxu0
  %v1009 = vadd.f32 0.0, %v1008
  %v1010 = vpop.f32.mrb[0].mxu0
  %v1011 = vpop.f32.mrb[0].mxu0
  %v1012 = vadd.f32 0.0, %v1011
  %v1013 = vpop.f32.mrb[0].mxu0
  %1014 = vmatprep.mubr.bf16.mxu0 %v471
  %1015 = vmatmul.mubr.bf16.gmra.mrb[0].mxu0 %v470
  %v1016 = vpop.f32.mrb[0].mxu0
  %v1017 = vadd.f32 0.0, %v1016
  %v1018 = vpop.f32.mrb[0].mxu0
  %v1019 = vpop.f32.mrb[0].mxu0
  %v1020 = vadd.f32 0.0, %v1019
  %v1021 = vpop.f32.mrb[0].mxu0
  %1022 = vmatprep.mubr.bf16.mxu0 %v479
  %1023 = vmatmul.mubr.bf16.gmra.mrb[0].mxu0 %v478
  %v1024 = vpop.f32.mrb[0].mxu0
  %v1025 = vadd.f32 0.0, %v1024
  %v1026 = vpop.f32.mrb[0].mxu0
  %v1027 = vpop.f32.mrb[0].mxu0
  %v1028 = vadd.f32 0.0, %v1027
  %v1029 = vpop.f32.mrb[0].mxu0
  %1030 = vmatprep.mubr.bf16.mxu0 %v487
  %1031 = vmatmul.mubr.bf16.gmra.mrb[0].mxu0 %v486
  %v1032 = vpop.f32.mrb[0].mxu0
  %v1033 = vadd.f32 0.0, %v1032
  %v1034 = vpop.f32.mrb[0].mxu0
  %v1035 = vpop.f32.mrb[0].mxu0
  %v1036 = vadd.f32 0.0, %v1035
  %v1037 = vpop.f32.mrb[0].mxu0
  %1038 = vmatprep.mubr.bf16.mxu0 %v495
  %1039 = vmatmul.mubr.bf16.gmra.mrb[0].mxu0 %v494
  %v1040 = vpop.f32.mrb[0].mxu0
  %v1041 = vadd.f32 0.0, %v1040
  %v1042 = vpop.f32.mrb[0].mxu0
  %v1043 = vpop.f32.mrb[0].mxu0
  %v1044 = vadd.f32 0.0, %v1043
  %v1045 = vpop.f32.mrb[0].mxu0
  %1046 = vdwg.mxu0
  %1047 = vmatprep.subr.bf16.mxu0 0
  %1048 = vmatpush1.bf16.msra.mxu0 %v838
  %1049 = vmatprep.subr.bf16.mxu0 0
  %1050 = vmatpush1.bf16.msra.mxu0 %v839
  %1051 = vmatprep.subr.bf16.mxu0 0
  %1052 = vmatpush1.bf16.msra.mxu0 %v840
  %1053 = vmatprep.subr.bf16.mxu0 0
  %1054 = vmatpush1.bf16.msra.mxu0 %v841
  %1055 = vmatprep.subr.bf16.mxu0 0
  %1056 = vmatpush1.bf16.msra.mxu0 %v842
  %1057 = vmatprep.subr.bf16.mxu0 0
  %1058 = vmatpush1.bf16.msra.mxu0 %v843
  %1059 = vmatprep.subr.bf16.mxu0 0
  %1060 = vmatpush1.bf16.msra.mxu0 %v844
  %1061 = vmatprep.subr.bf16.mxu0 0
  %1062 = vmatpush1.bf16.msra.mxu0 %v845
  %1063 = vmatprep.subr.bf16.mxu0 0
  %1064 = vmatpush1.bf16.msra.mxu0 %v846
  %1065 = vmatprep.subr.bf16.mxu0 0
  %1066 = vmatpush1.bf16.msra.mxu0 %v847
  %1067 = vmatprep.subr.bf16.mxu0 0
  %1068 = vmatpush1.bf16.msra.mxu0 %v848
  %1069 = vmatprep.subr.bf16.mxu0 0
  %1070 = vmatpush1.bf16.msra.mxu0 %v849
  %1071 = vmatprep.subr.bf16.mxu0 0
  %1072 = vmatpush1.bf16.msra.mxu0 %v850
  %1073 = vmatprep.subr.bf16.mxu0 0
  %1074 = vmatpush1.bf16.msra.mxu0 %v851
  %1075 = vmatprep.subr.bf16.mxu0 0
  %1076 = vmatpush1.bf16.msra.mxu0 %v852
  %1077 = vmatprep.subr.bf16.mxu0 0
  %1078 = vmatpush1.bf16.msra.mxu0 %v853
  %1079 = vmatprep.mubr.bf16.mxu0 %v441
  %1080 = vmatmul.mubr.bf16.gmra.mrb[0].mxu0 %v440
  %v1081 = vpop.f32.mrb[0].mxu0
  %v1082 = vadd.f32 %v985, %v1081
  %v1083 = vpop.f32.mrb[0].mxu0
  %v1084 = vpop.f32.mrb[0].mxu0
  %v1085 = vadd.f32 %v988, %v1084
  %v1086 = vpop.f32.mrb[0].mxu0
  %1087 = vmatprep.mubr.bf16.mxu0 %v449
  %1088 = vmatmul.mubr.bf16.gmra.mrb[0].mxu0 %v448
  %v1089 = vpop.f32.mrb[0].mxu0
  %v1090 = vadd.f32 %v993, %v1089
  %v1091 = vpop.f32.mrb[0].mxu0
  %v1092 = vpop.f32.mrb[0].mxu0
  %v1093 = vadd.f32 %v996, %v1092
  %v1094 = vpop.f32.mrb[0].mxu0
  %1095 = vmatprep.mubr.bf16.mxu0 %v457
  %1096 = vmatmul.mubr.bf16.gmra.mrb[0].mxu0 %v456
  %v1097 = vpop.f32.mrb[0].mxu0
  %v1098 = vadd.f32 %v1001, %v1097
  %v1099 = vpop.f32.mrb[0].mxu0
  %v1100 = vpop.f32.mrb[0].mxu0
  %v1101 = vadd.f32 %v1004, %v1100
  %v1102 = vpop.f32.mrb[0].mxu0
  %1103 = vmatprep.mubr.bf16.mxu0 %v465
  %1104 = vmatmul.mubr.bf16.gmra.mrb[0].mxu0 %v464
  %v1105 = vpop.f32.mrb[0].mxu0
  %v1106 = vadd.f32 %v1009, %v1105
  %v1107 = vpop.f32.mrb[0].mxu0
  %v1108 = vpop.f32.mrb[0].mxu0
  %v1109 = vadd.f32 %v1012, %v1108
  %v1110 = vpop.f32.mrb[0].mxu0
  %1111 = vmatprep.mubr.bf16.mxu0 %v473
  %1112 = vmatmul.mubr.bf16.gmra.mrb[0].mxu0 %v472
  %v1113 = vpop.f32.mrb[0].mxu0
  %v1114 = vadd.f32 %v1017, %v1113
  %v1115 = vpop.f32.mrb[0].mxu0
  %v1116 = vpop.f32.mrb[0].mxu0
  %v1117 = vadd.f32 %v1020, %v1116
  %v1118 = vpop.f32.mrb[0].mxu0
  %1119 = vmatprep.mubr.bf16.mxu0 %v481
  %1120 = vmatmul.mubr.bf16.gmra.mrb[0].mxu0 %v480
  %v1121 = vpop.f32.mrb[0].mxu0
  %v1122 = vadd.f32 %v1025, %v1121
  %v1123 = vpop.f32.mrb[0].mxu0
  %v1124 = vpop.f32.mrb[0].mxu0
  %v1125 = vadd.f32 %v1028, %v1124
  %v1126 = vpop.f32.mrb[0].mxu0
  %1127 = vmatprep.mubr.bf16.mxu0 %v489
  %1128 = vmatmul.mubr.bf16.gmra.mrb[0].mxu0 %v488
  %v1129 = vpop.f32.mrb[0].mxu0
  %v1130 = vadd.f32 %v1033, %v1129
  %v1131 = vpop.f32.mrb[0].mxu0
  %v1132 = vpop.f32.mrb[0].mxu0
  %v1133 = vadd.f32 %v1036, %v1132
  %v1134 = vpop.f32.mrb[0].mxu0
  %1135 = vmatprep.mubr.bf16.mxu0 %v497
  %1136 = vmatmul.mubr.bf16.gmra.mrb[0].mxu0 %v496
  %v1137 = vpop.f32.mrb[0].mxu0
  %v1138 = vadd.f32 %v1041, %v1137
  %v1139 = vpop.f32.mrb[0].mxu0
  %v1140 = vpop.f32.mrb[0].mxu0
  %v1141 = vadd.f32 %v1044, %v1140
  %v1142 = vpop.f32.mrb[0].mxu0
  %1143 = vdwg.mxu0
  %1144 = vmatprep.subr.bf16.mxu0 0
  %1145 = vmatpush1.bf16.msra.mxu0 %v854
  %1146 = vmatprep.subr.bf16.mxu0 0
  %1147 = vmatpush1.bf16.msra.mxu0 %v855
  %1148 = vmatprep.subr.bf16.mxu0 0
  %1149 = vmatpush1.bf16.msra.mxu0 %v856
  %1150 = vmatprep.subr.bf16.mxu0 0
  %1151 = vmatpush1.bf16.msra.mxu0 %v857
  %1152 = vmatprep.subr.bf16.mxu0 0
  %1153 = vmatpush1.bf16.msra.mxu0 %v858
  %1154 = vmatprep.subr.bf16.mxu0 0
  %1155 = vmatpush1.bf16.msra.mxu0 %v859
  %1156 = vmatprep.subr.bf16.mxu0 0
  %1157 = vmatpush1.bf16.msra.mxu0 %v860
  %1158 = vmatprep.subr.bf16.mxu0 0
  %1159 = vmatpush1.bf16.msra.mxu0 %v861
  %1160 = vmatprep.subr.bf16.mxu0 0
  %1161 = vmatpush1.bf16.msra.mxu0 %v862
  %1162 = vmatprep.subr.bf16.mxu0 0
  %1163 = vmatpush1.bf16.msra.mxu0 %v863
  %1164 = vmatprep.subr.bf16.mxu0 0
  %1165 = vmatpush1.bf16.msra.mxu0 %v864
  %1166 = vmatprep.subr.bf16.mxu0 0
  %1167 = vmatpush1.bf16.msra.mxu0 %v865
  %1168 = vmatprep.subr.bf16.mxu0 0
  %1169 = vmatpush1.bf16.msra.mxu0 %v866
  %1170 = vmatprep.subr.bf16.mxu0 0
  %1171 = vmatpush1.bf16.msra.mxu0 %v867
  %1172 = vmatprep.subr.bf16.mxu0 0
  %1173 = vmatpush1.bf16.msra.mxu0 %v868
  %1174 = vmatprep.subr.bf16.mxu0 0
  %1175 = vmatpush1.bf16.msra.mxu0 %v869
  %1176 = vmatprep.mubr.bf16.mxu0 %v443
  %1177 = vmatmul.mubr.bf16.gmra.mrb[0].mxu0 %v442
  %v1178 = vpop.f32.mrb[0].mxu0
  %v1179 = vadd.f32 %v1082, %v1178
  %v1180 = vpop.f32.mrb[0].mxu0
  %v1181 = vpop.f32.mrb[0].mxu0
  %v1182 = vadd.f32 %v1085, %v1181
  %v1183 = vpop.f32.mrb[0].mxu0
  %1184 = vmatprep.mubr.bf16.mxu0 %v451
  %1185 = vmatmul.mubr.bf16.gmra.mrb[0].mxu0 %v450
  %v1186 = vpop.f32.mrb[0].mxu0
  %v1187 = vadd.f32 %v1090, %v1186
  %v1188 = vpop.f32.mrb[0].mxu0
  %v1189 = vpop.f32.mrb[0].mxu0
  %v1190 = vadd.f32 %v1093, %v1189
  %v1191 = vpop.f32.mrb[0].mxu0
  %1192 = vmatprep.mubr.bf16.mxu0 %v459
  %1193 = vmatmul.mubr.bf16.gmra.mrb[0].mxu0 %v458
  %v1194 = vpop.f32.mrb[0].mxu0
  %v1195 = vadd.f32 %v1098, %v1194
  %v1196 = vpop.f32.mrb[0].mxu0
  %v1197 = vpop.f32.mrb[0].mxu0
  %v1198 = vadd.f32 %v1101, %v1197
  %v1199 = vpop.f32.mrb[0].mxu0
  %1200 = vmatprep.mubr.bf16.mxu0 %v467
  %1201 = vmatmul.mubr.bf16.gmra.mrb[0].mxu0 %v466
  %v1202 = vpop.f32.mrb[0].mxu0
  %v1203 = vadd.f32 %v1106, %v1202
  %v1204 = vpop.f32.mrb[0].mxu0
  %v1205 = vpop.f32.mrb[0].mxu0
  %v1206 = vadd.f32 %v1109, %v1205
  %v1207 = vpop.f32.mrb[0].mxu0
  %1208 = vmatprep.mubr.bf16.mxu0 %v475
  %1209 = vmatmul.mubr.bf16.gmra.mrb[0].mxu0 %v474
  %v1210 = vpop.f32.mrb[0].mxu0
  %v1211 = vadd.f32 %v1114, %v1210
  %v1212 = vpop.f32.mrb[0].mxu0
  %v1213 = vpop.f32.mrb[0].mxu0
  %v1214 = vadd.f32 %v1117, %v1213
  %v1215 = vpop.f32.mrb[0].mxu0
  %1216 = vmatprep.mubr.bf16.mxu0 %v483
  %1217 = vmatmul.mubr.bf16.gmra.mrb[0].mxu0 %v482
  %v1218 = vpop.f32.mrb[0].mxu0
  %v1219 = vadd.f32 %v1122, %v1218
  %v1220 = vpop.f32.mrb[0].mxu0
  %v1221 = vpop.f32.mrb[0].mxu0
  %v1222 = vadd.f32 %v1125, %v1221
  %v1223 = vpop.f32.mrb[0].mxu0
  %1224 = vmatprep.mubr.bf16.mxu0 %v491
  %1225 = vmatmul.mubr.bf16.gmra.mrb[0].mxu0 %v490
  %v1226 = vpop.f32.mrb[0].mxu0
  %v1227 = vadd.f32 %v1130, %v1226
  %v1228 = vpop.f32.mrb[0].mxu0
  %v1229 = vpop.f32.mrb[0].mxu0
  %v1230 = vadd.f32 %v1133, %v1229
  %v1231 = vpop.f32.mrb[0].mxu0
  %1232 = vmatprep.mubr.bf16.mxu0 %v499
  %1233 = vmatmul.mubr.bf16.gmra.mrb[0].mxu0 %v498
  %v1234 = vpop.f32.mrb[0].mxu0
  %v1235 = vadd.f32 %v1138, %v1234
  %v1236 = vpop.f32.mrb[0].mxu0
  %v1237 = vpop.f32.mrb[0].mxu0
  %v1238 = vadd.f32 %v1141, %v1237
  %v1239 = vpop.f32.mrb[0].mxu0
  %1240 = vdwg.mxu0
  %1241 = vmatprep.subr.bf16.mxu0 0
  %1242 = vmatpush1.bf16.msra.mxu0 %v870
  %1243 = vmatprep.subr.bf16.mxu0 0
  %1244 = vmatpush1.bf16.msra.mxu0 %v871
  %1245 = vmatprep.subr.bf16.mxu0 0
  %1246 = vmatpush1.bf16.msra.mxu0 %v872
  %1247 = vmatprep.subr.bf16.mxu0 0
  %1248 = vmatpush1.bf16.msra.mxu0 %v873
  %1249 = vmatprep.subr.bf16.mxu0 0
  %1250 = vmatpush1.bf16.msra.mxu0 %v874
  %1251 = vmatprep.subr.bf16.mxu0 0
  %1252 = vmatpush1.bf16.msra.mxu0 %v875
  %1253 = vmatprep.subr.bf16.mxu0 0
  %1254 = vmatpush1.bf16.msra.mxu0 %v876
  %1255 = vmatprep.subr.bf16.mxu0 0
  %1256 = vmatpush1.bf16.msra.mxu0 %v877
  %1257 = vmatprep.subr.bf16.mxu0 0
  %1258 = vmatpush1.bf16.msra.mxu0 %v878
  %1259 = vmatprep.subr.bf16.mxu0 0
  %1260 = vmatpush1.bf16.msra.mxu0 %v879
  %1261 = vmatprep.subr.bf16.mxu0 0
  %1262 = vmatpush1.bf16.msra.mxu0 %v880
  %1263 = vmatprep.subr.bf16.mxu0 0
  %1264 = vmatpush1.bf16.msra.mxu0 %v881
  %1265 = vmatprep.subr.bf16.mxu0 0
  %1266 = vmatpush1.bf16.msra.mxu0 %v882
  %1267 = vmatprep.subr.bf16.mxu0 0
  %1268 = vmatpush1.bf16.msra.mxu0 %v883
  %1269 = vmatprep.subr.bf16.mxu0 0
  %1270 = vmatpush1.bf16.msra.mxu0 %v884
  %1271 = vmatprep.subr.bf16.mxu0 0
  %1272 = vmatpush1.bf16.msra.mxu0 %v885
  %1273 = vmatprep.mubr.bf16.mxu0 %v445
  %1274 = vmatmul.mubr.bf16.gmra.mrb[0].mxu0 %v444
  %v1275 = vpop.f32.mrb[0].mxu0
  %v1276 = vadd.f32 %v1179, %v1275
  %v1277 = vpop.f32.mrb[0].mxu0
  %v1278 = vpop.f32.mrb[0].mxu0
  %v1279 = vadd.f32 %v1182, %v1278
  %v1280 = vpop.f32.mrb[0].mxu0
  %1281 = vmatprep.mubr.bf16.mxu0 %v453
  %1282 = vmatmul.mubr.bf16.gmra.mrb[0].mxu0 %v452
  %v1283 = vpop.f32.mrb[0].mxu0
  %v1284 = vadd.f32 %v1187, %v1283
  %v1285 = vpop.f32.mrb[0].mxu0
  %v1286 = vpop.f32.mrb[0].mxu0
  %v1287 = vadd.f32 %v1190, %v1286
  %v1288 = vpop.f32.mrb[0].mxu0
  %1289 = vmatprep.mubr.bf16.mxu0 %v461
  %1290 = vmatmul.mubr.bf16.gmra.mrb[0].mxu0 %v460
  %v1291 = vpop.f32.mrb[0].mxu0
  %v1292 = vadd.f32 %v1195, %v1291
  %v1293 = vpop.f32.mrb[0].mxu0
  %v1294 = vpop.f32.mrb[0].mxu0
  %v1295 = vadd.f32 %v1198, %v1294
  %v1296 = vpop.f32.mrb[0].mxu0
  %1297 = vmatprep.mubr.bf16.mxu0 %v469
  %1298 = vmatmul.mubr.bf16.gmra.mrb[0].mxu0 %v468
  %v1299 = vpop.f32.mrb[0].mxu0
  %v1300 = vadd.f32 %v1203, %v1299
  %v1301 = vpop.f32.mrb[0].mxu0
  %v1302 = vpop.f32.mrb[0].mxu0
  %v1303 = vadd.f32 %v1206, %v1302
  %v1304 = vpop.f32.mrb[0].mxu0
  %1305 = vmatprep.mubr.bf16.mxu0 %v477
  %1306 = vmatmul.mubr.bf16.gmra.mrb[0].mxu0 %v476
  %v1307 = vpop.f32.mrb[0].mxu0
  %v1308 = vadd.f32 %v1211, %v1307
  %v1309 = vpop.f32.mrb[0].mxu0
  %v1310 = vpop.f32.mrb[0].mxu0
  %v1311 = vadd.f32 %v1214, %v1310
  %v1312 = vpop.f32.mrb[0].mxu0
  %1313 = vmatprep.mubr.bf16.mxu0 %v485
  %1314 = vmatmul.mubr.bf16.gmra.mrb[0].mxu0 %v484
  %v1315 = vpop.f32.mrb[0].mxu0
  %v1316 = vadd.f32 %v1219, %v1315
  %v1317 = vpop.f32.mrb[0].mxu0
  %v1318 = vpop.f32.mrb[0].mxu0
  %v1319 = vadd.f32 %v1222, %v1318
  %v1320 = vpop.f32.mrb[0].mxu0
  %1321 = vmatprep.mubr.bf16.mxu0 %v493
  %1322 = vmatmul.mubr.bf16.gmra.mrb[0].mxu0 %v492
  %v1323 = vpop.f32.mrb[0].mxu0
  %v1324 = vadd.f32 %v1227, %v1323
  %v1325 = vpop.f32.mrb[0].mxu0
  %v1326 = vpop.f32.mrb[0].mxu0
  %v1327 = vadd.f32 %v1230, %v1326
  %v1328 = vpop.f32.mrb[0].mxu0
  %1329 = vmatprep.mubr.bf16.mxu0 %v501
  %1330 = vmatmul.mubr.bf16.gmra.mrb[0].mxu0 %v500
  %v1331 = vpop.f32.mrb[0].mxu0
  %v1332 = vadd.f32 %v1235, %v1331
  %v1333 = vpop.f32.mrb[0].mxu0
  %v1334 = vpop.f32.mrb[0].mxu0
  %v1335 = vadd.f32 %v1238, %v1334
  %v1336 = vpop.f32.mrb[0].mxu0
  %1337 = vdwg.mxu0
  %v1338 = vadd.f32 %v38, %v1276
  %v1339 = vadd.f32 %v39, %v1279
  %v1340 = vadd.f32 %v40, %v1284
  %v1341 = vadd.f32 %v41, %v1287
  %v1342 = vadd.f32 %v42, %v1292
  %v1343 = vadd.f32 %v43, %v1295
  %v1344 = vadd.f32 %v44, %v1300
  %v1345 = vadd.f32 %v45, %v1303
  %v1346 = vadd.f32 %v46, %v1308
  %v1347 = vadd.f32 %v47, %v1311
  %v1348 = vadd.f32 %v48, %v1316
  %v1349 = vadd.f32 %v49, %v1319
  %v1350 = vadd.f32 %v50, %v1324
  %v1351 = vadd.f32 %v51, %v1327
  %v1352 = vadd.f32 %v52, %v1332
  %v1353 = vadd.f32 %v53, %v1335
  %1354 = vst [vmem:[#allocation2] sm:$0xff] %v1338
  %1355 = vst [vmem:[#allocation2 + $0x8] sm:$0xff] %v1339
  %1356 = vst [vmem:[#allocation2 + $0x10] sm:$0xff] %v1340
  %1357 = vst [vmem:[#allocation2 + $0x18] sm:$0xff] %v1341
  %1358 = vst [vmem:[#allocation2 + $0x20] sm:$0xff] %v1342
  %1359 = vst [vmem:[#allocation2 + $0x28] sm:$0xff] %v1343
  %1360 = vst [vmem:[#allocation2 + $0x30] sm:$0xff] %v1344
  %1361 = vst [vmem:[#allocation2 + $0x38] sm:$0xff] %v1345
  %1362 = vst [vmem:[#allocation2 + $0x40] sm:$0xff] %v1346
  %1363 = vst [vmem:[#allocation2 + $0x48] sm:$0xff] %v1347
  %1364 = vst [vmem:[#allocation2 + $0x50] sm:$0xff] %v1348
  %1365 = vst [vmem:[#allocation2 + $0x58] sm:$0xff] %v1349
  %1366 = vst [vmem:[#allocation2 + $0x60] sm:$0xff] %v1350
  %1367 = vst [vmem:[#allocation2 + $0x68] sm:$0xff] %v1351
  %1368 = vst [vmem:[#allocation2 + $0x70] sm:$0xff] %v1352
  %1369 = vst [vmem:[#allocation2 + $0x78] sm:$0xff] %v1353
  // Predicated region
  $region22: #{patchgan_forward.6} parent=0 // pred_check
    %p1370 = pneg %p18
  $region23: #{patchgan_forward.6} parent=0 // pred_check_branch
    %1372 = sbr.rel (%p1370) target = $region25
  $region24: #{patchgan_forward.6} parent=0 // pred_region
    %v1373 = vld [vmem:[#allocation2] sm:$0xff]
    %v1374 = vld [vmem:[#allocation2 + $0x8] sm:$0xff]
    %v1375 = vld [vmem:[#allocation2 + $0x10] sm:$0xff]
    %v1376 = vld [vmem:[#allocation2 + $0x18] sm:$0xff]
    %v1377 = vld [vmem:[#allocation2 + $0x20] sm:$0xff]
    %v1378 = vld [vmem:[#allocation2 + $0x28] sm:$0xff]
    %v1379 = vld [vmem:[#allocation2 + $0x30] sm:$0xff]
    %v1380 = vld [vmem:[#allocation2 + $0x38] sm:$0xff]
    %v1381 = vld [vmem:[#allocation2 + $0x40] sm:$0xff]
    %v1382 = vld [vmem:[#allocation2 + $0x48] sm:$0xff]
    %v1383 = vld [vmem:[#allocation2 + $0x50] sm:$0xff]
    %v1384 = vld [vmem:[#allocation2 + $0x58] sm:$0xff]
    %v1385 = vld [vmem:[#allocation2 + $0x60] sm:$0xff]
    %v1386 = vld [vmem:[#allocation2 + $0x68] sm:$0xff]
    %v1387 = vld [vmem:[#allocation2 + $0x70] sm:$0xff]
    %v1388 = vld [vmem:[#allocation2 + $0x78] sm:$0xff]
    %v1389 = vld [vmem:[%s2] sm:$0x1]
    %v1391 = vlaneseq
    %v1392 = vshrl.u32 %v1391, 7
    %v1393 = vsub.s32 0, %v1392
    %v1394 = vrot.slane %v1389, %v1393
    %v1396 = vmul.f32 %v1373, %v1394
    %v1397 = vmul.f32 %v1374, %v1394
    %v1398 = vmul.f32 %v1375, %v1394
    %v1399 = vmul.f32 %v1376, %v1394
    %v1400 = vmul.f32 %v1377, %v1394
    %v1401 = vmul.f32 %v1378, %v1394
    %v1402 = vmul.f32 %v1379, %v1394
    %v1403 = vmul.f32 %v1380, %v1394
    %v1404 = vmul.f32 %v1381, %v1394
    %v1405 = vmul.f32 %v1382, %v1394
    %v1406 = vmul.f32 %v1383, %v1394
    %v1407 = vmul.f32 %v1384, %v1394
    %v1408 = vmul.f32 %v1385, %v1394
    %v1409 = vmul.f32 %v1386, %v1394
    %v1410 = vmul.f32 %v1387, %v1394
    %v1411 = vmul.f32 %v1388, %v1394
    %v1412 = vld [vmem:[%s3] sm:$0x1]
    %v1414 = vlaneseq
    %v1415 = vshrl.u32 %v1414, 7
    %v1416 = vsub.s32 0, %v1415
    %v1417 = vrot.slane %v1412, %v1416
    %v1419 = vadd.f32 %v1396, %v1417
    %v1420 = vadd.f32 %v1397, %v1417
    %v1421 = vadd.f32 %v1398, %v1417
    %v1422 = vadd.f32 %v1399, %v1417
    %v1423 = vadd.f32 %v1400, %v1417
    %v1424 = vadd.f32 %v1401, %v1417
    %v1425 = vadd.f32 %v1402, %v1417
    %v1426 = vadd.f32 %v1403, %v1417
    %v1427 = vadd.f32 %v1404, %v1417
    %v1428 = vadd.f32 %v1405, %v1417
    %v1429 = vadd.f32 %v1406, %v1417
    %v1430 = vadd.f32 %v1407, %v1417
    %v1431 = vadd.f32 %v1408, %v1417
    %v1432 = vadd.f32 %v1409, %v1417
    %v1433 = vadd.f32 %v1410, %v1417
    %v1434 = vadd.f32 %v1411, %v1417
    %vm1435 = vcmp.ge.f32.partialorder %v1419, 0.0
    %vm1436 = vcmp.ge.f32.partialorder %v1420, 0.0
    %vm1437 = vcmp.ge.f32.partialorder %v1421, 0.0
    %vm1438 = vcmp.ge.f32.partialorder %v1422, 0.0
    %vm1439 = vcmp.ge.f32.partialorder %v1423, 0.0
    %vm1440 = vcmp.ge.f32.partialorder %v1424, 0.0
    %vm1441 = vcmp.ge.f32.partialorder %v1425, 0.0
    %vm1442 = vcmp.ge.f32.partialorder %v1426, 0.0
    %vm1443 = vcmp.ge.f32.partialorder %v1427, 0.0
    %vm1444 = vcmp.ge.f32.partialorder %v1428, 0.0
    %vm1445 = vcmp.ge.f32.partialorder %v1429, 0.0
    %vm1446 = vcmp.ge.f32.partialorder %v1430, 0.0
    %vm1447 = vcmp.ge.f32.partialorder %v1431, 0.0
    %vm1448 = vcmp.ge.f32.partialorder %v1432, 0.0
    %vm1449 = vcmp.ge.f32.partialorder %v1433, 0.0
    %vm1450 = vcmp.ge.f32.partialorder %v1434, 0.0
    %v1451 = vmul.f32 %v1419, 0.2
    %v1452 = vmul.f32 %v1420, 0.2
    %v1453 = vmul.f32 %v1421, 0.2
    %v1454 = vmul.f32 %v1422, 0.2
    %v1455 = vmul.f32 %v1423, 0.2
    %v1456 = vmul.f32 %v1424, 0.2
    %v1457 = vmul.f32 %v1425, 0.2
    %v1458 = vmul.f32 %v1426, 0.2
    %v1459 = vmul.f32 %v1427, 0.2
    %v1460 = vmul.f32 %v1428, 0.2
    %v1461 = vmul.f32 %v1429, 0.2
    %v1462 = vmul.f32 %v1430, 0.2
    %v1463 = vmul.f32 %v1431, 0.2
    %v1464 = vmul.f32 %v1432, 0.2
    %v1465 = vmul.f32 %v1433, 0.2
    %v1466 = vmul.f32 %v1434, 0.2
    %v1467 = vsel %vm1435, %v1419, %v1451
    %v1468 = vsel %vm1436, %v1420, %v1452
    %v1469 = vsel %vm1437, %v1421, %v1453
    %v1470 = vsel %vm1438, %v1422, %v1454
    %v1471 = vsel %vm1439, %v1423, %v1455
    %v1472 = vsel %vm1440, %v1424, %v1456
    %v1473 = vsel %vm1441, %v1425, %v1457
    %v1474 = vsel %vm1442, %v1426, %v1458
    %v1475 = vsel %vm1443, %v1427, %v1459
    %v1476 = vsel %vm1444, %v1428, %v1460
    %v1477 = vsel %vm1445, %v1429, %v1461
    %v1478 = vsel %vm1446, %v1430, %v1462
    %v1479 = vsel %vm1447, %v1431, %v1463
    %v1480 = vsel %vm1448, %v1432, %v1464
    %v1481 = vsel %vm1449, %v1433, %v1465
    %v1482 = vsel %vm1450, %v1434, %v1466
    %1483 = vst [vmem:[%s4] sm:$0xff] %v1467
    %1484 = vst [vmem:[%s4 + $0x8] sm:$0xff] %v1468
    %1485 = vst [vmem:[%s4 + $0x10] sm:$0xff] %v1469
    %1486 = vst [vmem:[%s4 + $0x18] sm:$0xff] %v1470
    %1487 = vst [vmem:[%s4 + $0x20] sm:$0xff] %v1471
    %1488 = vst [vmem:[%s4 + $0x28] sm:$0xff] %v1472
    %1489 = vst [vmem:[%s4 + $0x30] sm:$0xff] %v1473
    %1490 = vst [vmem:[%s4 + $0x38] sm:$0xff] %v1474
    %1491 = vst [vmem:[%s4 + $0x40] sm:$0xff] %v1475
    %1492 = vst [vmem:[%s4 + $0x48] sm:$0xff] %v1476
    %1493 = vst [vmem:[%s4 + $0x50] sm:$0xff] %v1477
    %1494 = vst [vmem:[%s4 + $0x58] sm:$0xff] %v1478
    %1495 = vst [vmem:[%s4 + $0x60] sm:$0xff] %v1479
    %1496 = vst [vmem:[%s4 + $0x68] sm:$0xff] %v1480
    %1497 = vst [vmem:[%s4 + $0x70] sm:$0xff] %v1481
    %1498 = vst [vmem:[%s4 + $0x78] sm:$0xff] %v1482
  $region25: #{patchgan_forward.6} parent=0 // pred_fallthru
    _
  // Predicated region
  $region26: #{patchgan_forward.6} parent=0 // pred_check
    _
  $region27: #{patchgan_forward.6} parent=0 // pred_check_branch
    %1500 = sbr.rel (0) target = $region29
  $region28: #{patchgan_forward.6} parent=0 // pred_region
    _
  $region29: #{patchgan_forward.6} parent=0 // pred_fallthru
    _
  // Predicated region
  $region30: #{patchgan_forward.6} parent=0 // pred_check
    _
  $region31: #{patchgan_forward.6} parent=0 // pred_check_branch
    %1502 = sbr.rel (0) target = $region33
  $region32: #{patchgan_forward.6} parent=0 // pred_region
    _
  $region33: #{patchgan_forward.6} parent=0 // pred_fallthru
    _

// kernel: patchgan_forward.7
$region0: #{patchgan_forward.7}
  #allocation0 [shape = 'u32[]', space=smem, size = 0x4, offset = 0x4, fixed_abs, tag = 'smem constant byte address 0x4 - core index']
  #allocation1 [shape = 'u32[144,128]{1,0:T(1,128)}', space=vmem, size = 0x12000, scoped, tag = 'internal scratch']
  #allocation2 [shape = 'f32[32,128]{1,0:T(8,128)}', space=vmem, size = 0x4000, scoped, tag = 'scratch operand']
  %s0 = inlined_call_operand.vmem [shape: bf16[32,2048], index: 0, kind: input, shape index: {}]
  %s1 = inlined_call_operand.vmem [shape: bf16[2048,256], index: 1, kind: input, shape index: {}]
  %s2 = inlined_call_operand.vmem [shape: f32[1,256], index: 2, kind: input, shape index: {}]
  %s3 = inlined_call_operand.vmem [shape: f32[1,256], index: 3, kind: input, shape index: {}]
  %s4 = inlined_call_operand.vmem [shape: f32[32,256], index: 4, kind: output, shape index: {}]
  %s5 = sld [smem:[#allocation0]]
  $region155: #{patchgan_forward.7} parent=0
    _
  %s7 = ssub.s32 1, %s5
  %s8 = scalar_select 0, %s7, %s5
  $region1: #{patchgan_forward.7} parent=0
    #allocation3 [shape = 'u8[131072]{0}', space=vmem, size = 0x20000, scoped, tag = 'input window, operand 0']
    #allocation4 [shape = 'u8[524288]{0}', space=vmem, size = 0x80000, scoped, tag = 'input window, operand 1']
    #allocation5 [shape = 'u8[32768]{0}', space=vmem, size = 0x8000, scoped, tag = 'output window, operand 0']
    loop: start=0, step=1, limit=6
    $region2: #{patchgan_forward.7} parent=1 // loop_pre_header
      _
    $region3: #{patchgan_forward.7} parent=1 // loop_header
      %s10 = sphi 0, %s14
      %p11 = scmp.ge.s32.totalorder %s10, 6
      %s17 = sphi 0, %s36
      %s18 = sphi 0, %s32
      %s19 = sphi 0, %s28
      %s20 = sphi 0, %s17
      %s21 = sphi 0, %s18
      %s22 = sphi 0, %s19
      %s23 = sphi 0, %s20
      %s24 = sphi 0, %s21
      %s25 = sphi 0, %s22
      %s41 = sphi 0, %s43
      %s44 = sphi 0, %s41
      %s45 = sphi 0, %s44
      %s61 = sphi 0, %s45
      %s69 = sphi 0, %s71
      %s72 = sphi 0, %s69
      %s73 = sphi 0, %s72
      %s89 = sphi 0, %s73
      %s95 = sphi 0, %s97
      %s98 = sphi 0, %s95
      %s99 = sphi 0, %s98
      %s115 = sphi 0, %s99
      %s121 = sphi 0, %s123
      %s124 = sphi 0, %s121
      %s125 = sphi 0, %s124
      %s141 = sphi 0, %s125
      %s149 = sphi 0, %s151
      %s152 = sphi 0, %s149
      %s153 = sphi 0, %s152
      %s169 = sphi 0, %s153
    $region4: #{patchgan_forward.7} parent=1 // loop_header_branch
      %13 = sbr.rel (%p11) target = $region8
    $region5: #{patchgan_forward.7} parent=1 // loop_body
      %s15 = ssub.s32 %s10, 1
      %s16 = ssub.s32 %s10, 2
      %s26 = sadd.s32 1, %s19
      %p27 = scmp.ge.s32.totalorder %s26, 2
      %s28 = scalar_select %p27, 0, %s26
      %s29 = sadd.s32 1, %s18
      %s30 = scalar_select %p27, %s29, %s18
      %p31 = scmp.ge.s32.totalorder %s30, 2
      %s32 = scalar_select %p31, 0, %s30
      %s33 = sadd.s32 1, %s17
      %s34 = scalar_select %p31, %s33, %s17
      %p35 = scmp.ge.s32.totalorder %s34, 1
      %s36 = scalar_select %p35, 0, %s34
      %s37 = ssub.s32 %s17, %s36
      %s38 = ssub.s32 %s19, %s28
      %s39 = sor.u32 %s37, %s38
      %p40 = scmp.eq.s32.totalorder %s39, 0
      %s42 = sadd.s32 %s41, 1
      %s43 = scalar_select %p40, %s41, %s42
      %p46 = pneg %p40
      %p47 = scmp.eq.s32.totalorder %s10, 3
      %p48 = por %p46, %p47
      %p49 = scmp.ne.s32.totalorder %s41, %s44
      %p50 = scmp.eq.s32.totalorder %s10, 0
      %p51 = por %p49, %p50
      %p52 = scmp.ne.s32.totalorder %s41, %s44
      %p53 = scmp.eq.s32.totalorder %s15, 3
      %p54 = por %p52, %p53
      %p55 = scmp.ne.s32.totalorder %s44, %s45
      %p56 = scmp.eq.s32.totalorder %s15, 0
      %p57 = por %p55, %p56
      %p58 = scmp.ne.s32.totalorder %s44, %s45
      %p59 = scmp.eq.s32.totalorder %s16, 3
      %p60 = por %p58, %p59
      %p62 = scmp.ne.s32.totalorder %s45, %s61
      %p63 = scmp.eq.s32.totalorder %s16, 0
      %p64 = por %p62, %p63
      %s65 = ssub.s32 %s19, %s28
      %s66 = ssub.s32 %s18, %s32
      %s67 = sor.u32 %s65, %s66
      %p68 = scmp.eq.s32.totalorder %s67, 0
      %s70 = sadd.s32 %s69, 1
      %s71 = scalar_select %p68, %s69, %s70
      %p74 = pneg %p68
      %p75 = scmp.eq.s32.totalorder %s10, 3
      %p76 = por %p74, %p75
      %p77 = scmp.ne.s32.totalorder %s69, %s72
      %p78 = scmp.eq.s32.totalorder %s10, 0
      %p79 = por %p77, %p78
      %p80 = scmp.ne.s32.totalorder %s69, %s72
      %p81 = scmp.eq.s32.totalorder %s15, 3
      %p82 = por %p80, %p81
      %p83 = scmp.ne.s32.totalorder %s72, %s73
      %p84 = scmp.eq.s32.totalorder %s15, 0
      %p85 = por %p83, %p84
      %p86 = scmp.ne.s32.totalorder %s72, %s73
      %p87 = scmp.eq.s32.totalorder %s16, 3
      %p88 = por %p86, %p87
      %p90 = scmp.ne.s32.totalorder %s73, %s89
      %p91 = scmp.eq.s32.totalorder %s16, 0
      %p92 = por %p90, %p91
      %s93 = ssub.s32 %s18, %s32
      %p94 = scmp.eq.s32.totalorder %s93, 0
      %s96 = sadd.s32 %s95, 1
      %s97 = scalar_select %p94, %s95, %s96
      %p100 = pneg %p94
      %p101 = scmp.eq.s32.totalorder %s10, 3
      %p102 = por %p100, %p101
      %p103 = scmp.ne.s32.totalorder %s95, %s98
      %p104 = scmp.eq.s32.totalorder %s10, 0
      %p105 = por %p103, %p104
      %p106 = scmp.ne.s32.totalorder %s95, %s98
      %p107 = scmp.eq.s32.totalorder %s15, 3
      %p108 = por %p106, %p107
      %p109 = scmp.ne.s32.totalorder %s98, %s99
      %p110 = scmp.eq.s32.totalorder %s15, 0
      %p111 = por %p109, %p110
      %p112 = scmp.ne.s32.totalorder %s98, %s99
      %p113 = scmp.eq.s32.totalorder %s16, 3
      %p114 = por %p112, %p113
      %p116 = scmp.ne.s32.totalorder %s99, %s115
      %p117 = scmp.eq.s32.totalorder %s16, 0
      %p118 = por %p116, %p117
      %s119 = ssub.s32 %s18, %s32
      %p120 = scmp.eq.s32.totalorder %s119, 0
      %s122 = sadd.s32 %s121, 1
      %s123 = scalar_select %p120, %s121, %s122
      %p126 = pneg %p120
      %p127 = scmp.eq.s32.totalorder %s10, 3
      %p128 = por %p126, %p127
      %p129 = scmp.ne.s32.totalorder %s121, %s124
      %p130 = scmp.eq.s32.totalorder %s10, 0
      %p131 = por %p129, %p130
      %p132 = scmp.ne.s32.totalorder %s121, %s124
      %p133 = scmp.eq.s32.totalorder %s15, 3
      %p134 = por %p132, %p133
      %p135 = scmp.ne.s32.totalorder %s124, %s125
      %p136 = scmp.eq.s32.totalorder %s15, 0
      %p137 = por %p135, %p136
      %p138 = scmp.ne.s32.totalorder %s124, %s125
      %p139 = scmp.eq.s32.totalorder %s16, 3
      %p140 = por %p138, %p139
      %p142 = scmp.ne.s32.totalorder %s125, %s141
      %p143 = scmp.eq.s32.totalorder %s16, 0
      %p144 = por %p142, %p143
      %s145 = ssub.s32 %s17, %s36
      %s146 = ssub.s32 %s18, %s32
      %s147 = sor.u32 %s145, %s146
      %p148 = scmp.eq.s32.totalorder %s147, 0
      %s150 = sadd.s32 %s149, 1
      %s151 = scalar_select %p148, %s149, %s150
      %p154 = pneg %p148
      %p155 = scmp.eq.s32.totalorder %s10, 3
      %p156 = por %p154, %p155
      %p157 = scmp.ne.s32.totalorder %s149, %s152
      %p158 = scmp.eq.s32.totalorder %s10, 0
      %p159 = por %p157, %p158
      %p160 = scmp.ne.s32.totalorder %s149, %s152
      %p161 = scmp.eq.s32.totalorder %s15, 3
      %p162 = por %p160, %p161
      %p163 = scmp.ne.s32.totalorder %s152, %s153
      %p164 = scmp.eq.s32.totalorder %s15, 0
      %p165 = por %p163, %p164
      %p166 = scmp.ne.s32.totalorder %s152, %s153
      %p167 = scmp.eq.s32.totalorder %s16, 3
      %p168 = por %p166, %p167
      %p170 = scmp.ne.s32.totalorder %s153, %s169
      %p171 = scmp.eq.s32.totalorder %s16, 0
      %p172 = por %p170, %p171
      %p173 = scmp.le.s32.totalorder 1, %s10
      %p174 = scmp.lt.s32.totalorder %s10, 5
      %p175 = pnand %p173, %p174
      %p176 = pneg %p175
      // Predicated region
      $region9: #{patchgan_forward.7} parent=5 // pred_check
        _
      $region10: #{patchgan_forward.7} parent=5 // pred_check_branch
        %178 = sbr.rel (%p175) target = $region12
      $region11: #{patchgan_forward.7} parent=5 // pred_region
        %s179 = ssub.s32 %s10, 1
      $region12: #{patchgan_forward.7} parent=5 // pred_fallthru
        _
      %p180 = scmp.lt.s32.totalorder %s10, 4
      // Predicated region
      $region13: #{patchgan_forward.7} parent=5 // pred_check
        %p181 = pneg %p180
      $region14: #{patchgan_forward.7} parent=5 // pred_check_branch
        %183 = sbr.rel (%p181) target = $region16
      $region15: #{patchgan_forward.7} parent=5 // pred_region
        // Predicated region
        $region17: #{patchgan_forward.7} parent=15 // pred_check
          %p184 = pneg %p51
        $region18: #{patchgan_forward.7} parent=15 // pred_check_branch
          %186 = sbr.rel (%p184) target = $region20
        $region19: #{patchgan_forward.7} parent=15 // pred_region
          %s187 = sand.u32 %s41, 1
          %s188 = sand.u32 %s41, 1
          %s189 = smul.addr %s188, 128
          %s190 = scalar_lea.vmem [#allocation3], %s189
          %s191 = smul.u32 4, %s17
          %s192 = smul.u32 8, %s19
          %s193 = smul.addr %s191, 16
          %s194 = sadd.s32 %s192, %s193
          %s195 = smul.addr %s194, 4
          %s196 = scalar_lea.vmem %s0, %s195
          // Predicated region
          $region21: #{patchgan_forward.7} parent=19 // pred_check
            _
          $region22: #{patchgan_forward.7} parent=19 // pred_check_branch
            %198 = sbr.rel (0) target = $region24
          $region23: #{patchgan_forward.7} parent=19 // pred_region
            // Predicated region
            $region25: #{patchgan_forward.7} parent=23 // pred_check
              _
            $region26: #{patchgan_forward.7} parent=23 // pred_check_branch
              %200 = sbr.rel (0) target = $region28
            $region27: #{patchgan_forward.7} parent=23 // pred_region
              loop: start=0, step=1, limit=1
              $region29: #{patchgan_forward.7} parent=27 // loop_pre_header
                _
              $region30: #{patchgan_forward.7} parent=27 // loop_header
                %s202 = sphi 0, %s206
                %p203 = scmp.ge.s32.totalorder %s202, 1
                %s207 = sphi %s196, %s196
                %s208 = sphi %s190, %s190
              $region31: #{patchgan_forward.7} parent=27 // loop_header_branch
                %205 = sbr.rel (%p203) target = $region35
              $region32: #{patchgan_forward.7} parent=27 // loop_body
                %v209 = vld [vmem:[%s207] sm:$0xff]
                %210 = vst [vmem:[%s208] sm:$0xff] %v209
                %v211 = vld [vmem:[%s207 + $0x8] sm:$0xff]
                %212 = vst [vmem:[%s208 + $0x8] sm:$0xff] %v211
                %v213 = vld [vmem:[%s207 + $0x10] sm:$0xff]
                %214 = vst [vmem:[%s208 + $0x10] sm:$0xff] %v213
                %v215 = vld [vmem:[%s207 + $0x18] sm:$0xff]
                %216 = vst [vmem:[%s208 + $0x18] sm:$0xff] %v215
                %v217 = vld [vmem:[%s207 + $0x40] sm:$0xff]
                %218 = vst [vmem:[%s208 + $0x20] sm:$0xff] %v217
                %v219 = vld [vmem:[%s207 + $0x48] sm:$0xff]
                %220 = vst [vmem:[%s208 + $0x28] sm:$0xff] %v219
                %v221 = vld [vmem:[%s207 + $0x50] sm:$0xff]
                %222 = vst [vmem:[%s208 + $0x30] sm:$0xff] %v221
                %v223 = vld [vmem:[%s207 + $0x58] sm:$0xff]
                %224 = vst [vmem:[%s208 + $0x38] sm:$0xff] %v223
                %v225 = vld [vmem:[%s207 + $0x80] sm:$0xff]
                %226 = vst [vmem:[%s208 + $0x40] sm:$0xff] %v225
                %v227 = vld [vmem:[%s207 + $0x88] sm:$0xff]
                %228 = vst [vmem:[%s208 + $0x48] sm:$0xff] %v227
                %v229 = vld [vmem:[%s207 + $0x90] sm:$0xff]
                %230 = vst [vmem:[%s208 + $0x50] sm:$0xff] %v229
                %v231 = vld [vmem:[%s207 + $0x98] sm:$0xff]
                %232 = vst [vmem:[%s208 + $0x58] sm:$0xff] %v231
                %v233 = vld [vmem:[%s207 + $0xc0] sm:$0xff]
                %234 = vst [vmem:[%s208 + $0x60] sm:$0xff] %v233
                %v235 = vld [vmem:[%s207 + $0xc8] sm:$0xff]
                %236 = vst [vmem:[%s208 + $0x68] sm:$0xff] %v235
                %v237 = vld [vmem:[%s207 + $0xd0] sm:$0xff]
                %238 = vst [vmem:[%s208 + $0x70] sm:$0xff] %v237
                %v239 = vld [vmem:[%s207 + $0xd8] sm:$0xff]
                %240 = vst [vmem:[%s208 + $0x78] sm:$0xff] %v239
              $region33: #{patchgan_forward.7} parent=27 // loop_footer
                %s206 = sadd.s32 1, %s202
              $region34: #{patchgan_forward.7} parent=27 // loop_footer_branch
                %201 = sbr.rel target = $region30
              $region35: #{patchgan_forward.7} parent=27 // loop_exit
                _
            $region28: #{patchgan_forward.7} parent=23 // pred_fallthru
              _
            // Predicated region
            $region36: #{patchgan_forward.7} parent=23 // pred_check
              _
            $region37: #{patchgan_forward.7} parent=23 // pred_check_branch
              %242 = sbr.rel target = $region39
            $region38: #{patchgan_forward.7} parent=23 // pred_region
              _
            $region39: #{patchgan_forward.7} parent=23 // pred_fallthru
              _
          $region24: #{patchgan_forward.7} parent=19 // pred_fallthru
            _
          %243 = vnop
        $region20: #{patchgan_forward.7} parent=15 // pred_fallthru
          _
        // Predicated region
        $region40: #{patchgan_forward.7} parent=15 // pred_check
          %p244 = pneg %p79
        $region41: #{patchgan_forward.7} parent=15 // pred_check_branch
          %246 = sbr.rel (%p244) target = $region43
        $region42: #{patchgan_forward.7} parent=15 // pred_region
          %s247 = sand.u32 %s69, 1
          %s248 = sand.u32 %s69, 1
          %s249 = smul.addr %s248, 512
          %s250 = scalar_lea.vmem [#allocation4], %s249
          %s251 = smul.u32 128, %s19
          %s252 = smul.addr %s251, 2
          %s253 = sadd.s32 %s18, %s252
          %s254 = smul.addr %s253, 4
          %s255 = scalar_lea.vmem %s1, %s254
          // Predicated region
          $region44: #{patchgan_forward.7} parent=42 // pred_check
            _
          $region45: #{patchgan_forward.7} parent=42 // pred_check_branch
            %257 = sbr.rel (0) target = $region47
          $region46: #{patchgan_forward.7} parent=42 // pred_region
            // Predicated region
            $region48: #{patchgan_forward.7} parent=46 // pred_check
              _
            $region49: #{patchgan_forward.7} parent=46 // pred_check_branch
              %259 = sbr.rel target = $region51
            $region50: #{patchgan_forward.7} parent=46 // pred_region
              // Predicated region
              $region63: #{patchgan_forward.7} parent=50 // pred_check
                _
              $region64: #{patchgan_forward.7} parent=50 // pred_check_branch
                %528 = sbr.rel (0) target = $region66
              $region65: #{patchgan_forward.7} parent=50 // pred_region
                loop: start=0, step=1, limit=1
                $region67: #{patchgan_forward.7} parent=65 // loop_pre_header
                  _
                $region68: #{patchgan_forward.7} parent=65 // loop_header
                  %s530 = sphi 0, %s534
                  %p531 = scmp.ge.s32.totalorder %s530, 1
                  %s535 = sphi %s255, %s255
                  %s536 = sphi %s250, %s250
                $region69: #{patchgan_forward.7} parent=65 // loop_header_branch
                  %533 = sbr.rel (%p531) target = $region73
                $region70: #{patchgan_forward.7} parent=65 // loop_body
                  _
                $region71: #{patchgan_forward.7} parent=65 // loop_footer
                  %s534 = sadd.s32 1, %s530
                $region72: #{patchgan_forward.7} parent=65 // loop_footer_branch
                  %529 = sbr.rel target = $region68
                $region73: #{patchgan_forward.7} parent=65 // loop_exit
                  _
                loop: start=0, step=1, limit=1
                $region74: #{patchgan_forward.7} parent=65 // loop_pre_header
                  _
                $region75: #{patchgan_forward.7} parent=65 // loop_header
                  %s539 = sphi 0, %s543
                  %p540 = scmp.ge.s32.totalorder %s539, 1
                  %s544 = sphi %s255, %s255
                  %s545 = sphi %s250, %s250
                $region76: #{patchgan_forward.7} parent=65 // loop_header_branch
                  %542 = sbr.rel (%p540) target = $region80
                $region77: #{patchgan_forward.7} parent=65 // loop_body
                  %v546 = vld [vmem:[%s544] sm:$0xf]
                  %547 = vst [vmem:[%s545] sm:$0xf] %v546
                  %v548 = vld [vmem:[%s544 + $0x8] sm:$0xf]
                  %549 = vst [vmem:[%s545 + $0x4] sm:$0xf] %v548
                  %v550 = vld [vmem:[%s544 + $0x10] sm:$0xf]
                  %551 = vst [vmem:[%s545 + $0x8] sm:$0xf] %v550
                  %v552 = vld [vmem:[%s544 + $0x18] sm:$0xf]
                  %553 = vst [vmem:[%s545 + $0xc] sm:$0xf] %v552
                  %v554 = vld [vmem:[%s544 + $0x20] sm:$0xf]
                  %555 = vst [vmem:[%s545 + $0x10] sm:$0xf] %v554
                  %v556 = vld [vmem:[%s544 + $0x28] sm:$0xf]
                  %557 = vst [vmem:[%s545 + $0x14] sm:$0xf] %v556
                  %v558 = vld [vmem:[%s544 + $0x30] sm:$0xf]
                  %559 = vst [vmem:[%s545 + $0x18] sm:$0xf] %v558
                  %v560 = vld [vmem:[%s544 + $0x38] sm:$0xf]
                  %561 = vst [vmem:[%s545 + $0x1c] sm:$0xf] %v560
                  %v562 = vld [vmem:[%s544 + $0x40] sm:$0xf]
                  %563 = vst [vmem:[%s545 + $0x20] sm:$0xf] %v562
                  %v564 = vld [vmem:[%s544 + $0x48] sm:$0xf]
                  %565 = vst [vmem:[%s545 + $0x24] sm:$0xf] %v564
                  %v566 = vld [vmem:[%s544 + $0x50] sm:$0xf]
                  %567 = vst [vmem:[%s545 + $0x28] sm:$0xf] %v566
                  %v568 = vld [vmem:[%s544 + $0x58] sm:$0xf]
                  %569 = vst [vmem:[%s545 + $0x2c] sm:$0xf] %v568
                  %v570 = vld [vmem:[%s544 + $0x60] sm:$0xf]
                  %571 = vst [vmem:[%s545 + $0x30] sm:$0xf] %v570
                  %v572 = vld [vmem:[%s544 + $0x68] sm:$0xf]
                  %573 = vst [vmem:[%s545 + $0x34] sm:$0xf] %v572
                  %v574 = vld [vmem:[%s544 + $0x70] sm:$0xf]
                  %575 = vst [vmem:[%s545 + $0x38] sm:$0xf] %v574
                  %v576 = vld [vmem:[%s544 + $0x78] sm:$0xf]
                  %577 = vst [vmem:[%s545 + $0x3c] sm:$0xf] %v576
                  %v578 = vld [vmem:[%s544 + $0x80] sm:$0xf]
                  %579 = vst [vmem:[%s545 + $0x40] sm:$0xf] %v578
                  %v580 = vld [vmem:[%s544 + $0x88] sm:$0xf]
                  %581 = vst [vmem:[%s545 + $0x44] sm:$0xf] %v580
                  %v582 = vld [vmem:[%s544 + $0x90] sm:$0xf]
                  %583 = vst [vmem:[%s545 + $0x48] sm:$0xf] %v582
                  %v584 = vld [vmem:[%s544 + $0x98] sm:$0xf]
                  %585 = vst [vmem:[%s545 + $0x4c] sm:$0xf] %v584
                  %v586 = vld [vmem:[%s544 + $0xa0] sm:$0xf]
                  %587 = vst [vmem:[%s545 + $0x50] sm:$0xf] %v586
                  %v588 = vld [vmem:[%s544 + $0xa8] sm:$0xf]
                  %589 = vst [vmem:[%s545 + $0x54] sm:$0xf] %v588
                  %v590 = vld [vmem:[%s544 + $0xb0] sm:$0xf]
                  %591 = vst [vmem:[%s545 + $0x58] sm:$0xf] %v590
                  %v592 = vld [vmem:[%s544 + $0xb8] sm:$0xf]
                  %593 = vst [vmem:[%s545 + $0x5c] sm:$0xf] %v592
                  %v594 = vld [vmem:[%s544 + $0xc0] sm:$0xf]
                  %595 = vst [vmem:[%s545 + $0x60] sm:$0xf] %v594
                  %v596 = vld [vmem:[%s544 + $0xc8] sm:$0xf]
                  %597 = vst [vmem:[%s545 + $0x64] sm:$0xf] %v596
                  %v598 = vld [vmem:[%s544 + $0xd0] sm:$0xf]
                  %599 = vst [vmem:[%s545 + $0x68] sm:$0xf] %v598
                  %v600 = vld [vmem:[%s544 + $0xd8] sm:$0xf]
                  %601 = vst [vmem:[%s545 + $0x6c] sm:$0xf] %v600
                  %v602 = vld [vmem:[%s544 + $0xe0] sm:$0xf]
                  %603 = vst [vmem:[%s545 + $0x70] sm:$0xf] %v602
                  %v604 = vld [vmem:[%s544 + $0xe8] sm:$0xf]
                  %605 = vst [vmem:[%s545 + $0x74] sm:$0xf] %v604
                  %v606 = vld [vmem:[%s544 + $0xf0] sm:$0xf]
                  %607 = vst [vmem:[%s545 + $0x78] sm:$0xf] %v606
                  %v608 = vld [vmem:[%s544 + $0xf8] sm:$0xf]
                  %609 = vst [vmem:[%s545 + $0x7c] sm:$0xf] %v608
                  %v610 = vld [vmem:[%s544 + $0x100] sm:$0xf]
                  %611 = vst [vmem:[%s545 + $0x80] sm:$0xf] %v610
                  %v612 = vld [vmem:[%s544 + $0x108] sm:$0xf]
                  %613 = vst [vmem:[%s545 + $0x84] sm:$0xf] %v612
                  %v614 = vld [vmem:[%s544 + $0x110] sm:$0xf]
                  %615 = vst [vmem:[%s545 + $0x88] sm:$0xf] %v614
                  %v616 = vld [vmem:[%s544 + $0x118] sm:$0xf]
                  %617 = vst [vmem:[%s545 + $0x8c] sm:$0xf] %v616
                  %v618 = vld [vmem:[%s544 + $0x120] sm:$0xf]
                  %619 = vst [vmem:[%s545 + $0x90] sm:$0xf] %v618
                  %v620 = vld [vmem:[%s544 + $0x128] sm:$0xf]
                  %621 = vst [vmem:[%s545 + $0x94] sm:$0xf] %v620
                  %v622 = vld [vmem:[%s544 + $0x130] sm:$0xf]
                  %623 = vst [vmem:[%s545 + $0x98] sm:$0xf] %v622
                  %v624 = vld [vmem:[%s544 + $0x138] sm:$0xf]
                  %625 = vst [vmem:[%s545 + $0x9c] sm:$0xf] %v624
                  %v626 = vld [vmem:[%s544 + $0x140] sm:$0xf]
                  %627 = vst [vmem:[%s545 + $0xa0] sm:$0xf] %v626
                  %v628 = vld [vmem:[%s544 + $0x148] sm:$0xf]
                  %629 = vst [vmem:[%s545 + $0xa4] sm:$0xf] %v628
                  %v630 = vld [vmem:[%s544 + $0x150] sm:$0xf]
                  %631 = vst [vmem:[%s545 + $0xa8] sm:$0xf] %v630
                  %v632 = vld [vmem:[%s544 + $0x158] sm:$0xf]
                  %633 = vst [vmem:[%s545 + $0xac] sm:$0xf] %v632
                  %v634 = vld [vmem:[%s544 + $0x160] sm:$0xf]
                  %635 = vst [vmem:[%s545 + $0xb0] sm:$0xf] %v634
                  %v636 = vld [vmem:[%s544 + $0x168] sm:$0xf]
                  %637 = vst [vmem:[%s545 + $0xb4] sm:$0xf] %v636
                  %v638 = vld [vmem:[%s544 + $0x170] sm:$0xf]
                  %639 = vst [vmem:[%s545 + $0xb8] sm:$0xf] %v638
                  %v640 = vld [vmem:[%s544 + $0x178] sm:$0xf]
                  %641 = vst [vmem:[%s545 + $0xbc] sm:$0xf] %v640
                  %v642 = vld [vmem:[%s544 + $0x180] sm:$0xf]
                  %643 = vst [vmem:[%s545 + $0xc0] sm:$0xf] %v642
                  %v644 = vld [vmem:[%s544 + $0x188] sm:$0xf]
                  %645 = vst [vmem:[%s545 + $0xc4] sm:$0xf] %v644
                  %v646 = vld [vmem:[%s544 + $0x190] sm:$0xf]
                  %647 = vst [vmem:[%s545 + $0xc8] sm:$0xf] %v646
                  %v648 = vld [vmem:[%s544 + $0x198] sm:$0xf]
                  %649 = vst [vmem:[%s545 + $0xcc] sm:$0xf] %v648
                  %v650 = vld [vmem:[%s544 + $0x1a0] sm:$0xf]
                  %651 = vst [vmem:[%s545 + $0xd0] sm:$0xf] %v650
                  %v652 = vld [vmem:[%s544 + $0x1a8] sm:$0xf]
                  %653 = vst [vmem:[%s545 + $0xd4] sm:$0xf] %v652
                  %v654 = vld [vmem:[%s544 + $0x1b0] sm:$0xf]
                  %655 = vst [vmem:[%s545 + $0xd8] sm:$0xf] %v654
                  %v656 = vld [vmem:[%s544 + $0x1b8] sm:$0xf]
                  %657 = vst [vmem:[%s545 + $0xdc] sm:$0xf] %v656
                  %v658 = vld [vmem:[%s544 + $0x1c0] sm:$0xf]
                  %659 = vst [vmem:[%s545 + $0xe0] sm:$0xf] %v658
                  %v660 = vld [vmem:[%s544 + $0x1c8] sm:$0xf]
                  %661 = vst [vmem:[%s545 + $0xe4] sm:$0xf] %v660
                  %v662 = vld [vmem:[%s544 + $0x1d0] sm:$0xf]
                  %663 = vst [vmem:[%s545 + $0xe8] sm:$0xf] %v662
                  %v664 = vld [vmem:[%s544 + $0x1d8] sm:$0xf]
                  %665 = vst [vmem:[%s545 + $0xec] sm:$0xf] %v664
                  %v666 = vld [vmem:[%s544 + $0x1e0] sm:$0xf]
                  %667 = vst [vmem:[%s545 + $0xf0] sm:$0xf] %v666
                  %v668 = vld [vmem:[%s544 + $0x1e8] sm:$0xf]
                  %669 = vst [vmem:[%s545 + $0xf4] sm:$0xf] %v668
                  %v670 = vld [vmem:[%s544 + $0x1f0] sm:$0xf]
                  %671 = vst [vmem:[%s545 + $0xf8] sm:$0xf] %v670
                  %v672 = vld [vmem:[%s544 + $0x1f8] sm:$0xf]
                  %673 = vst [vmem:[%s545 + $0xfc] sm:$0xf] %v672
                  %v674 = vld [vmem:[%s544 + $0x200] sm:$0xf]
                  %675 = vst [vmem:[%s545 + $0x100] sm:$0xf] %v674
                  %v676 = vld [vmem:[%s544 + $0x208] sm:$0xf]
                  %677 = vst [vmem:[%s545 + $0x104] sm:$0xf] %v676
                  %v678 = vld [vmem:[%s544 + $0x210] sm:$0xf]
                  %679 = vst [vmem:[%s545 + $0x108] sm:$0xf] %v678
                  %v680 = vld [vmem:[%s544 + $0x218] sm:$0xf]
                  %681 = vst [vmem:[%s545 + $0x10c] sm:$0xf] %v680
                  %v682 = vld [vmem:[%s544 + $0x220] sm:$0xf]
                  %683 = vst [vmem:[%s545 + $0x110] sm:$0xf] %v682
                  %v684 = vld [vmem:[%s544 + $0x228] sm:$0xf]
                  %685 = vst [vmem:[%s545 + $0x114] sm:$0xf] %v684
                  %v686 = vld [vmem:[%s544 + $0x230] sm:$0xf]
                  %687 = vst [vmem:[%s545 + $0x118] sm:$0xf] %v686
                  %v688 = vld [vmem:[%s544 + $0x238] sm:$0xf]
                  %689 = vst [vmem:[%s545 + $0x11c] sm:$0xf] %v688
                  %v690 = vld [vmem:[%s544 + $0x240] sm:$0xf]
                  %691 = vst [vmem:[%s545 + $0x120] sm:$0xf] %v690
                  %v692 = vld [vmem:[%s544 + $0x248] sm:$0xf]
                  %693 = vst [vmem:[%s545 + $0x124] sm:$0xf] %v692
                  %v694 = vld [vmem:[%s544 + $0x250] sm:$0xf]
                  %695 = vst [vmem:[%s545 + $0x128] sm:$0xf] %v694
                  %v696 = vld [vmem:[%s544 + $0x258] sm:$0xf]
                  %697 = vst [vmem:[%s545 + $0x12c] sm:$0xf] %v696
                  %v698 = vld [vmem:[%s544 + $0x260] sm:$0xf]
                  %699 = vst [vmem:[%s545 + $0x130] sm:$0xf] %v698
                  %v700 = vld [vmem:[%s544 + $0x268] sm:$0xf]
                  %701 = vst [vmem:[%s545 + $0x134] sm:$0xf] %v700
                  %v702 = vld [vmem:[%s544 + $0x270] sm:$0xf]
                  %703 = vst [vmem:[%s545 + $0x138] sm:$0xf] %v702
                  %v704 = vld [vmem:[%s544 + $0x278] sm:$0xf]
                  %705 = vst [vmem:[%s545 + $0x13c] sm:$0xf] %v704
                  %v706 = vld [vmem:[%s544 + $0x280] sm:$0xf]
                  %707 = vst [vmem:[%s545 + $0x140] sm:$0xf] %v706
                  %v708 = vld [vmem:[%s544 + $0x288] sm:$0xf]
                  %709 = vst [vmem:[%s545 + $0x144] sm:$0xf] %v708
                  %v710 = vld [vmem:[%s544 + $0x290] sm:$0xf]
                  %711 = vst [vmem:[%s545 + $0x148] sm:$0xf] %v710
                  %v712 = vld [vmem:[%s544 + $0x298] sm:$0xf]
                  %713 = vst [vmem:[%s545 + $0x14c] sm:$0xf] %v712
                  %v714 = vld [vmem:[%s544 + $0x2a0] sm:$0xf]
                  %715 = vst [vmem:[%s545 + $0x150] sm:$0xf] %v714
                  %v716 = vld [vmem:[%s544 + $0x2a8] sm:$0xf]
                  %717 = vst [vmem:[%s545 + $0x154] sm:$0xf] %v716
                  %v718 = vld [vmem:[%s544 + $0x2b0] sm:$0xf]
                  %719 = vst [vmem:[%s545 + $0x158] sm:$0xf] %v718
                  %v720 = vld [vmem:[%s544 + $0x2b8] sm:$0xf]
                  %721 = vst [vmem:[%s545 + $0x15c] sm:$0xf] %v720
                  %v722 = vld [vmem:[%s544 + $0x2c0] sm:$0xf]
                  %723 = vst [vmem:[%s545 + $0x160] sm:$0xf] %v722
                  %v724 = vld [vmem:[%s544 + $0x2c8] sm:$0xf]
                  %725 = vst [vmem:[%s545 + $0x164] sm:$0xf] %v724
                  %v726 = vld [vmem:[%s544 + $0x2d0] sm:$0xf]
                  %727 = vst [vmem:[%s545 + $0x168] sm:$0xf] %v726
                  %v728 = vld [vmem:[%s544 + $0x2d8] sm:$0xf]
                  %729 = vst [vmem:[%s545 + $0x16c] sm:$0xf] %v728
                  %v730 = vld [vmem:[%s544 + $0x2e0] sm:$0xf]
                  %731 = vst [vmem:[%s545 + $0x170] sm:$0xf] %v730
                  %v732 = vld [vmem:[%s544 + $0x2e8] sm:$0xf]
                  %733 = vst [vmem:[%s545 + $0x174] sm:$0xf] %v732
                  %v734 = vld [vmem:[%s544 + $0x2f0] sm:$0xf]
                  %735 = vst [vmem:[%s545 + $0x178] sm:$0xf] %v734
                  %v736 = vld [vmem:[%s544 + $0x2f8] sm:$0xf]
                  %737 = vst [vmem:[%s545 + $0x17c] sm:$0xf] %v736
                  %v738 = vld [vmem:[%s544 + $0x300] sm:$0xf]
                  %739 = vst [vmem:[%s545 + $0x180] sm:$0xf] %v738
                  %v740 = vld [vmem:[%s544 + $0x308] sm:$0xf]
                  %741 = vst [vmem:[%s545 + $0x184] sm:$0xf] %v740
                  %v742 = vld [vmem:[%s544 + $0x310] sm:$0xf]
                  %743 = vst [vmem:[%s545 + $0x188] sm:$0xf] %v742
                  %v744 = vld [vmem:[%s544 + $0x318] sm:$0xf]
                  %745 = vst [vmem:[%s545 + $0x18c] sm:$0xf] %v744
                  %v746 = vld [vmem:[%s544 + $0x320] sm:$0xf]
                  %747 = vst [vmem:[%s545 + $0x190] sm:$0xf] %v746
                  %v748 = vld [vmem:[%s544 + $0x328] sm:$0xf]
                  %749 = vst [vmem:[%s545 + $0x194] sm:$0xf] %v748
                  %v750 = vld [vmem:[%s544 + $0x330] sm:$0xf]
                  %751 = vst [vmem:[%s545 + $0x198] sm:$0xf] %v750
                  %v752 = vld [vmem:[%s544 + $0x338] sm:$0xf]
                  %753 = vst [vmem:[%s545 + $0x19c] sm:$0xf] %v752
                  %v754 = vld [vmem:[%s544 + $0x340] sm:$0xf]
                  %755 = vst [vmem:[%s545 + $0x1a0] sm:$0xf] %v754
                  %v756 = vld [vmem:[%s544 + $0x348] sm:$0xf]
                  %757 = vst [vmem:[%s545 + $0x1a4] sm:$0xf] %v756
                  %v758 = vld [vmem:[%s544 + $0x350] sm:$0xf]
                  %759 = vst [vmem:[%s545 + $0x1a8] sm:$0xf] %v758
                  %v760 = vld [vmem:[%s544 + $0x358] sm:$0xf]
                  %761 = vst [vmem:[%s545 + $0x1ac] sm:$0xf] %v760
                  %v762 = vld [vmem:[%s544 + $0x360] sm:$0xf]
                  %763 = vst [vmem:[%s545 + $0x1b0] sm:$0xf] %v762
                  %v764 = vld [vmem:[%s544 + $0x368] sm:$0xf]
                  %765 = vst [vmem:[%s545 + $0x1b4] sm:$0xf] %v764
                  %v766 = vld [vmem:[%s544 + $0x370] sm:$0xf]
                  %767 = vst [vmem:[%s545 + $0x1b8] sm:$0xf] %v766
                  %v768 = vld [vmem:[%s544 + $0x378] sm:$0xf]
                  %769 = vst [vmem:[%s545 + $0x1bc] sm:$0xf] %v768
                  %v770 = vld [vmem:[%s544 + $0x380] sm:$0xf]
                  %771 = vst [vmem:[%s545 + $0x1c0] sm:$0xf] %v770
                  %v772 = vld [vmem:[%s544 + $0x388] sm:$0xf]
                  %773 = vst [vmem:[%s545 + $0x1c4] sm:$0xf] %v772
                  %v774 = vld [vmem:[%s544 + $0x390] sm:$0xf]
                  %775 = vst [vmem:[%s545 + $0x1c8] sm:$0xf] %v774
                  %v776 = vld [vmem:[%s544 + $0x398] sm:$0xf]
                  %777 = vst [vmem:[%s545 + $0x1cc] sm:$0xf] %v776
                  %v778 = vld [vmem:[%s544 + $0x3a0] sm:$0xf]
                  %779 = vst [vmem:[%s545 + $0x1d0] sm:$0xf] %v778
                  %v780 = vld [vmem:[%s544 + $0x3a8] sm:$0xf]
                  %781 = vst [vmem:[%s545 + $0x1d4] sm:$0xf] %v780
                  %v782 = vld [vmem:[%s544 + $0x3b0] sm:$0xf]
                  %783 = vst [vmem:[%s545 + $0x1d8] sm:$0xf] %v782
                  %v784 = vld [vmem:[%s544 + $0x3b8] sm:$0xf]
                  %785 = vst [vmem:[%s545 + $0x1dc] sm:$0xf] %v784
                  %v786 = vld [vmem:[%s544 + $0x3c0] sm:$0xf]
                  %787 = vst [vmem:[%s545 + $0x1e0] sm:$0xf] %v786
                  %v788 = vld [vmem:[%s544 + $0x3c8] sm:$0xf]
                  %789 = vst [vmem:[%s545 + $0x1e4] sm:$0xf] %v788
                  %v790 = vld [vmem:[%s544 + $0x3d0] sm:$0xf]
                  %791 = vst [vmem:[%s545 + $0x1e8] sm:$0xf] %v790
                  %v792 = vld [vmem:[%s544 + $0x3d8] sm:$0xf]
                  %793 = vst [vmem:[%s545 + $0x1ec] sm:$0xf] %v792
                  %v794 = vld [vmem:[%s544 + $0x3e0] sm:$0xf]
                  %795 = vst [vmem:[%s545 + $0x1f0] sm:$0xf] %v794
                  %v796 = vld [vmem:[%s544 + $0x3e8] sm:$0xf]
                  %797 = vst [vmem:[%s545 + $0x1f4] sm:$0xf] %v796
                  %v798 = vld [vmem:[%s544 + $0x3f0] sm:$0xf]
                  %799 = vst [vmem:[%s545 + $0x1f8] sm:$0xf] %v798
                  %v800 = vld [vmem:[%s544 + $0x3f8] sm:$0xf]
                  %801 = vst [vmem:[%s545 + $0x1fc] sm:$0xf] %v800
                $region78: #{patchgan_forward.7} parent=65 // loop_footer
                  %s543 = sadd.s32 1, %s539
                $region79: #{patchgan_forward.7} parent=65 // loop_footer_branch
                  %538 = sbr.rel target = $region75
                $region80: #{patchgan_forward.7} parent=65 // loop_exit
                  _
              $region66: #{patchgan_forward.7} parent=50 // pred_fallthru
                _
            $region51: #{patchgan_forward.7} parent=46 // pred_fallthru
              _
            // Predicated region
            $region52: #{patchgan_forward.7} parent=46 // pred_check
              _
            $region53: #{patchgan_forward.7} parent=46 // pred_check_branch
              %261 = sbr.rel (0) target = $region55
            $region54: #{patchgan_forward.7} parent=46 // pred_region
              loop: start=0, step=1, limit=1
              $region56: #{patchgan_forward.7} parent=54 // loop_pre_header
                _
              $region57: #{patchgan_forward.7} parent=54 // loop_header
                %s264 = sphi 0, %s268
                %p265 = scmp.ge.s32.totalorder %s264, 1
                %s269 = sphi %s255, %s255
                %s270 = sphi %s250, %s250
              $region58: #{patchgan_forward.7} parent=54 // loop_header_branch
                %267 = sbr.rel (%p265) target = $region62
              $region59: #{patchgan_forward.7} parent=54 // loop_body
                %v271 = vld [vmem:[%s269] sm:$0xf]
                %272 = vst [vmem:[%s270] sm:$0xf] %v271
                %v273 = vld [vmem:[%s269 + $0x8] sm:$0xf]
                %274 = vst [vmem:[%s270 + $0x4] sm:$0xf] %v273
                %v275 = vld [vmem:[%s269 + $0x10] sm:$0xf]
                %276 = vst [vmem:[%s270 + $0x8] sm:$0xf] %v275
                %v277 = vld [vmem:[%s269 + $0x18] sm:$0xf]
                %278 = vst [vmem:[%s270 + $0xc] sm:$0xf] %v277
                %v279 = vld [vmem:[%s269 + $0x20] sm:$0xf]
                %280 = vst [vmem:[%s270 + $0x10] sm:$0xf] %v279
                %v281 = vld [vmem:[%s269 + $0x28] sm:$0xf]
                %282 = vst [vmem:[%s270 + $0x14] sm:$0xf] %v281
                %v283 = vld [vmem:[%s269 + $0x30] sm:$0xf]
                %284 = vst [vmem:[%s270 + $0x18] sm:$0xf] %v283
                %v285 = vld [vmem:[%s269 + $0x38] sm:$0xf]
                %286 = vst [vmem:[%s270 + $0x1c] sm:$0xf] %v285
                %v287 = vld [vmem:[%s269 + $0x40] sm:$0xf]
                %288 = vst [vmem:[%s270 + $0x20] sm:$0xf] %v287
                %v289 = vld [vmem:[%s269 + $0x48] sm:$0xf]
                %290 = vst [vmem:[%s270 + $0x24] sm:$0xf] %v289
                %v291 = vld [vmem:[%s269 + $0x50] sm:$0xf]
                %292 = vst [vmem:[%s270 + $0x28] sm:$0xf] %v291
                %v293 = vld [vmem:[%s269 + $0x58] sm:$0xf]
                %294 = vst [vmem:[%s270 + $0x2c] sm:$0xf] %v293
                %v295 = vld [vmem:[%s269 + $0x60] sm:$0xf]
                %296 = vst [vmem:[%s270 + $0x30] sm:$0xf] %v295
                %v297 = vld [vmem:[%s269 + $0x68] sm:$0xf]
                %298 = vst [vmem:[%s270 + $0x34] sm:$0xf] %v297
                %v299 = vld [vmem:[%s269 + $0x70] sm:$0xf]
                %300 = vst [vmem:[%s270 + $0x38] sm:$0xf] %v299
                %v301 = vld [vmem:[%s269 + $0x78] sm:$0xf]
                %302 = vst [vmem:[%s270 + $0x3c] sm:$0xf] %v301
                %v303 = vld [vmem:[%s269 + $0x80] sm:$0xf]
                %304 = vst [vmem:[%s270 + $0x40] sm:$0xf] %v303
                %v305 = vld [vmem:[%s269 + $0x88] sm:$0xf]
                %306 = vst [vmem:[%s270 + $0x44] sm:$0xf] %v305
                %v307 = vld [vmem:[%s269 + $0x90] sm:$0xf]
                %308 = vst [vmem:[%s270 + $0x48] sm:$0xf] %v307
                %v309 = vld [vmem:[%s269 + $0x98] sm:$0xf]
                %310 = vst [vmem:[%s270 + $0x4c] sm:$0xf] %v309
                %v311 = vld [vmem:[%s269 + $0xa0] sm:$0xf]
                %312 = vst [vmem:[%s270 + $0x50] sm:$0xf] %v311
                %v313 = vld [vmem:[%s269 + $0xa8] sm:$0xf]
                %314 = vst [vmem:[%s270 + $0x54] sm:$0xf] %v313
                %v315 = vld [vmem:[%s269 + $0xb0] sm:$0xf]
                %316 = vst [vmem:[%s270 + $0x58] sm:$0xf] %v315
                %v317 = vld [vmem:[%s269 + $0xb8] sm:$0xf]
                %318 = vst [vmem:[%s270 + $0x5c] sm:$0xf] %v317
                %v319 = vld [vmem:[%s269 + $0xc0] sm:$0xf]
                %320 = vst [vmem:[%s270 + $0x60] sm:$0xf] %v319
                %v321 = vld [vmem:[%s269 + $0xc8] sm:$0xf]
                %322 = vst [vmem:[%s270 + $0x64] sm:$0xf] %v321
                %v323 = vld [vmem:[%s269 + $0xd0] sm:$0xf]
                %324 = vst [vmem:[%s270 + $0x68] sm:$0xf] %v323
                %v325 = vld [vmem:[%s269 + $0xd8] sm:$0xf]
                %326 = vst [vmem:[%s270 + $0x6c] sm:$0xf] %v325
                %v327 = vld [vmem:[%s269 + $0xe0] sm:$0xf]
                %328 = vst [vmem:[%s270 + $0x70] sm:$0xf] %v327
                %v329 = vld [vmem:[%s269 + $0xe8] sm:$0xf]
                %330 = vst [vmem:[%s270 + $0x74] sm:$0xf] %v329
                %v331 = vld [vmem:[%s269 + $0xf0] sm:$0xf]
                %332 = vst [vmem:[%s270 + $0x78] sm:$0xf] %v331
                %v333 = vld [vmem:[%s269 + $0xf8] sm:$0xf]
                %334 = vst [vmem:[%s270 + $0x7c] sm:$0xf] %v333
                %v335 = vld [vmem:[%s269 + $0x100] sm:$0xf]
                %336 = vst [vmem:[%s270 + $0x80] sm:$0xf] %v335
                %v337 = vld [vmem:[%s269 + $0x108] sm:$0xf]
                %338 = vst [vmem:[%s270 + $0x84] sm:$0xf] %v337
                %v339 = vld [vmem:[%s269 + $0x110] sm:$0xf]
                %340 = vst [vmem:[%s270 + $0x88] sm:$0xf] %v339
                %v341 = vld [vmem:[%s269 + $0x118] sm:$0xf]
                %342 = vst [vmem:[%s270 + $0x8c] sm:$0xf] %v341
                %v343 = vld [vmem:[%s269 + $0x120] sm:$0xf]
                %344 = vst [vmem:[%s270 + $0x90] sm:$0xf] %v343
                %v345 = vld [vmem:[%s269 + $0x128] sm:$0xf]
                %346 = vst [vmem:[%s270 + $0x94] sm:$0xf] %v345
                %v347 = vld [vmem:[%s269 + $0x130] sm:$0xf]
                %348 = vst [vmem:[%s270 + $0x98] sm:$0xf] %v347
                %v349 = vld [vmem:[%s269 + $0x138] sm:$0xf]
                %350 = vst [vmem:[%s270 + $0x9c] sm:$0xf] %v349
                %v351 = vld [vmem:[%s269 + $0x140] sm:$0xf]
                %352 = vst [vmem:[%s270 + $0xa0] sm:$0xf] %v351
                %v353 = vld [vmem:[%s269 + $0x148] sm:$0xf]
                %354 = vst [vmem:[%s270 + $0xa4] sm:$0xf] %v353
                %v355 = vld [vmem:[%s269 + $0x150] sm:$0xf]
                %356 = vst [vmem:[%s270 + $0xa8] sm:$0xf] %v355
                %v357 = vld [vmem:[%s269 + $0x158] sm:$0xf]
                %358 = vst [vmem:[%s270 + $0xac] sm:$0xf] %v357
                %v359 = vld [vmem:[%s269 + $0x160] sm:$0xf]
                %360 = vst [vmem:[%s270 + $0xb0] sm:$0xf] %v359
                %v361 = vld [vmem:[%s269 + $0x168] sm:$0xf]
                %362 = vst [vmem:[%s270 + $0xb4] sm:$0xf] %v361
                %v363 = vld [vmem:[%s269 + $0x170] sm:$0xf]
                %364 = vst [vmem:[%s270 + $0xb8] sm:$0xf] %v363
                %v365 = vld [vmem:[%s269 + $0x178] sm:$0xf]
                %366 = vst [vmem:[%s270 + $0xbc] sm:$0xf] %v365
                %v367 = vld [vmem:[%s269 + $0x180] sm:$0xf]
                %368 = vst [vmem:[%s270 + $0xc0] sm:$0xf] %v367
                %v369 = vld [vmem:[%s269 + $0x188] sm:$0xf]
                %370 = vst [vmem:[%s270 + $0xc4] sm:$0xf] %v369
                %v371 = vld [vmem:[%s269 + $0x190] sm:$0xf]
                %372 = vst [vmem:[%s270 + $0xc8] sm:$0xf] %v371
                %v373 = vld [vmem:[%s269 + $0x198] sm:$0xf]
                %374 = vst [vmem:[%s270 + $0xcc] sm:$0xf] %v373
                %v375 = vld [vmem:[%s269 + $0x1a0] sm:$0xf]
                %376 = vst [vmem:[%s270 + $0xd0] sm:$0xf] %v375
                %v377 = vld [vmem:[%s269 + $0x1a8] sm:$0xf]
                %378 = vst [vmem:[%s270 + $0xd4] sm:$0xf] %v377
                %v379 = vld [vmem:[%s269 + $0x1b0] sm:$0xf]
                %380 = vst [vmem:[%s270 + $0xd8] sm:$0xf] %v379
                %v381 = vld [vmem:[%s269 + $0x1b8] sm:$0xf]
                %382 = vst [vmem:[%s270 + $0xdc] sm:$0xf] %v381
                %v383 = vld [vmem:[%s269 + $0x1c0] sm:$0xf]
                %384 = vst [vmem:[%s270 + $0xe0] sm:$0xf] %v383
                %v385 = vld [vmem:[%s269 + $0x1c8] sm:$0xf]
                %386 = vst [vmem:[%s270 + $0xe4] sm:$0xf] %v385
                %v387 = vld [vmem:[%s269 + $0x1d0] sm:$0xf]
                %388 = vst [vmem:[%s270 + $0xe8] sm:$0xf] %v387
                %v389 = vld [vmem:[%s269 + $0x1d8] sm:$0xf]
                %390 = vst [vmem:[%s270 + $0xec] sm:$0xf] %v389
                %v391 = vld [vmem:[%s269 + $0x1e0] sm:$0xf]
                %392 = vst [vmem:[%s270 + $0xf0] sm:$0xf] %v391
                %v393 = vld [vmem:[%s269 + $0x1e8] sm:$0xf]
                %394 = vst [vmem:[%s270 + $0xf4] sm:$0xf] %v393
                %v395 = vld [vmem:[%s269 + $0x1f0] sm:$0xf]
                %396 = vst [vmem:[%s270 + $0xf8] sm:$0xf] %v395
                %v397 = vld [vmem:[%s269 + $0x1f8] sm:$0xf]
                %398 = vst [vmem:[%s270 + $0xfc] sm:$0xf] %v397
                %v399 = vld [vmem:[%s269 + $0x200] sm:$0xf]
                %400 = vst [vmem:[%s270 + $0x100] sm:$0xf] %v399
                %v401 = vld [vmem:[%s269 + $0x208] sm:$0xf]
                %402 = vst [vmem:[%s270 + $0x104] sm:$0xf] %v401
                %v403 = vld [vmem:[%s269 + $0x210] sm:$0xf]
                %404 = vst [vmem:[%s270 + $0x108] sm:$0xf] %v403
                %v405 = vld [vmem:[%s269 + $0x218] sm:$0xf]
                %406 = vst [vmem:[%s270 + $0x10c] sm:$0xf] %v405
                %v407 = vld [vmem:[%s269 + $0x220] sm:$0xf]
                %408 = vst [vmem:[%s270 + $0x110] sm:$0xf] %v407
                %v409 = vld [vmem:[%s269 + $0x228] sm:$0xf]
                %410 = vst [vmem:[%s270 + $0x114] sm:$0xf] %v409
                %v411 = vld [vmem:[%s269 + $0x230] sm:$0xf]
                %412 = vst [vmem:[%s270 + $0x118] sm:$0xf] %v411
                %v413 = vld [vmem:[%s269 + $0x238] sm:$0xf]
                %414 = vst [vmem:[%s270 + $0x11c] sm:$0xf] %v413
                %v415 = vld [vmem:[%s269 + $0x240] sm:$0xf]
                %416 = vst [vmem:[%s270 + $0x120] sm:$0xf] %v415
                %v417 = vld [vmem:[%s269 + $0x248] sm:$0xf]
                %418 = vst [vmem:[%s270 + $0x124] sm:$0xf] %v417
                %v419 = vld [vmem:[%s269 + $0x250] sm:$0xf]
                %420 = vst [vmem:[%s270 + $0x128] sm:$0xf] %v419
                %v421 = vld [vmem:[%s269 + $0x258] sm:$0xf]
                %422 = vst [vmem:[%s270 + $0x12c] sm:$0xf] %v421
                %v423 = vld [vmem:[%s269 + $0x260] sm:$0xf]
                %424 = vst [vmem:[%s270 + $0x130] sm:$0xf] %v423
                %v425 = vld [vmem:[%s269 + $0x268] sm:$0xf]
                %426 = vst [vmem:[%s270 + $0x134] sm:$0xf] %v425
                %v427 = vld [vmem:[%s269 + $0x270] sm:$0xf]
                %428 = vst [vmem:[%s270 + $0x138] sm:$0xf] %v427
                %v429 = vld [vmem:[%s269 + $0x278] sm:$0xf]
                %430 = vst [vmem:[%s270 + $0x13c] sm:$0xf] %v429
                %v431 = vld [vmem:[%s269 + $0x280] sm:$0xf]
                %432 = vst [vmem:[%s270 + $0x140] sm:$0xf] %v431
                %v433 = vld [vmem:[%s269 + $0x288] sm:$0xf]
                %434 = vst [vmem:[%s270 + $0x144] sm:$0xf] %v433
                %v435 = vld [vmem:[%s269 + $0x290] sm:$0xf]
                %436 = vst [vmem:[%s270 + $0x148] sm:$0xf] %v435
                %v437 = vld [vmem:[%s269 + $0x298] sm:$0xf]
                %438 = vst [vmem:[%s270 + $0x14c] sm:$0xf] %v437
                %v439 = vld [vmem:[%s269 + $0x2a0] sm:$0xf]
                %440 = vst [vmem:[%s270 + $0x150] sm:$0xf] %v439
                %v441 = vld [vmem:[%s269 + $0x2a8] sm:$0xf]
                %442 = vst [vmem:[%s270 + $0x154] sm:$0xf] %v441
                %v443 = vld [vmem:[%s269 + $0x2b0] sm:$0xf]
                %444 = vst [vmem:[%s270 + $0x158] sm:$0xf] %v443
                %v445 = vld [vmem:[%s269 + $0x2b8] sm:$0xf]
                %446 = vst [vmem:[%s270 + $0x15c] sm:$0xf] %v445
                %v447 = vld [vmem:[%s269 + $0x2c0] sm:$0xf]
                %448 = vst [vmem:[%s270 + $0x160] sm:$0xf] %v447
                %v449 = vld [vmem:[%s269 + $0x2c8] sm:$0xf]
                %450 = vst [vmem:[%s270 + $0x164] sm:$0xf] %v449
                %v451 = vld [vmem:[%s269 + $0x2d0] sm:$0xf]
                %452 = vst [vmem:[%s270 + $0x168] sm:$0xf] %v451
                %v453 = vld [vmem:[%s269 + $0x2d8] sm:$0xf]
                %454 = vst [vmem:[%s270 + $0x16c] sm:$0xf] %v453
                %v455 = vld [vmem:[%s269 + $0x2e0] sm:$0xf]
                %456 = vst [vmem:[%s270 + $0x170] sm:$0xf] %v455
                %v457 = vld [vmem:[%s269 + $0x2e8] sm:$0xf]
                %458 = vst [vmem:[%s270 + $0x174] sm:$0xf] %v457
                %v459 = vld [vmem:[%s269 + $0x2f0] sm:$0xf]
                %460 = vst [vmem:[%s270 + $0x178] sm:$0xf] %v459
                %v461 = vld [vmem:[%s269 + $0x2f8] sm:$0xf]
                %462 = vst [vmem:[%s270 + $0x17c] sm:$0xf] %v461
                %v463 = vld [vmem:[%s269 + $0x300] sm:$0xf]
                %464 = vst [vmem:[%s270 + $0x180] sm:$0xf] %v463
                %v465 = vld [vmem:[%s269 + $0x308] sm:$0xf]
                %466 = vst [vmem:[%s270 + $0x184] sm:$0xf] %v465
                %v467 = vld [vmem:[%s269 + $0x310] sm:$0xf]
                %468 = vst [vmem:[%s270 + $0x188] sm:$0xf] %v467
                %v469 = vld [vmem:[%s269 + $0x318] sm:$0xf]
                %470 = vst [vmem:[%s270 + $0x18c] sm:$0xf] %v469
                %v471 = vld [vmem:[%s269 + $0x320] sm:$0xf]
                %472 = vst [vmem:[%s270 + $0x190] sm:$0xf] %v471
                %v473 = vld [vmem:[%s269 + $0x328] sm:$0xf]
                %474 = vst [vmem:[%s270 + $0x194] sm:$0xf] %v473
                %v475 = vld [vmem:[%s269 + $0x330] sm:$0xf]
                %476 = vst [vmem:[%s270 + $0x198] sm:$0xf] %v475
                %v477 = vld [vmem:[%s269 + $0x338] sm:$0xf]
                %478 = vst [vmem:[%s270 + $0x19c] sm:$0xf] %v477
                %v479 = vld [vmem:[%s269 + $0x340] sm:$0xf]
                %480 = vst [vmem:[%s270 + $0x1a0] sm:$0xf] %v479
                %v481 = vld [vmem:[%s269 + $0x348] sm:$0xf]
                %482 = vst [vmem:[%s270 + $0x1a4] sm:$0xf] %v481
                %v483 = vld [vmem:[%s269 + $0x350] sm:$0xf]
                %484 = vst [vmem:[%s270 + $0x1a8] sm:$0xf] %v483
                %v485 = vld [vmem:[%s269 + $0x358] sm:$0xf]
                %486 = vst [vmem:[%s270 + $0x1ac] sm:$0xf] %v485
                %v487 = vld [vmem:[%s269 + $0x360] sm:$0xf]
                %488 = vst [vmem:[%s270 + $0x1b0] sm:$0xf] %v487
                %v489 = vld [vmem:[%s269 + $0x368] sm:$0xf]
                %490 = vst [vmem:[%s270 + $0x1b4] sm:$0xf] %v489
                %v491 = vld [vmem:[%s269 + $0x370] sm:$0xf]
                %492 = vst [vmem:[%s270 + $0x1b8] sm:$0xf] %v491
                %v493 = vld [vmem:[%s269 + $0x378] sm:$0xf]
                %494 = vst [vmem:[%s270 + $0x1bc] sm:$0xf] %v493
                %v495 = vld [vmem:[%s269 + $0x380] sm:$0xf]
                %496 = vst [vmem:[%s270 + $0x1c0] sm:$0xf] %v495
                %v497 = vld [vmem:[%s269 + $0x388] sm:$0xf]
                %498 = vst [vmem:[%s270 + $0x1c4] sm:$0xf] %v497
                %v499 = vld [vmem:[%s269 + $0x390] sm:$0xf]
                %500 = vst [vmem:[%s270 + $0x1c8] sm:$0xf] %v499
                %v501 = vld [vmem:[%s269 + $0x398] sm:$0xf]
                %502 = vst [vmem:[%s270 + $0x1cc] sm:$0xf] %v501
                %v503 = vld [vmem:[%s269 + $0x3a0] sm:$0xf]
                %504 = vst [vmem:[%s270 + $0x1d0] sm:$0xf] %v503
                %v505 = vld [vmem:[%s269 + $0x3a8] sm:$0xf]
                %506 = vst [vmem:[%s270 + $0x1d4] sm:$0xf] %v505
                %v507 = vld [vmem:[%s269 + $0x3b0] sm:$0xf]
                %508 = vst [vmem:[%s270 + $0x1d8] sm:$0xf] %v507
                %v509 = vld [vmem:[%s269 + $0x3b8] sm:$0xf]
                %510 = vst [vmem:[%s270 + $0x1dc] sm:$0xf] %v509
                %v511 = vld [vmem:[%s269 + $0x3c0] sm:$0xf]
                %512 = vst [vmem:[%s270 + $0x1e0] sm:$0xf] %v511
                %v513 = vld [vmem:[%s269 + $0x3c8] sm:$0xf]
                %514 = vst [vmem:[%s270 + $0x1e4] sm:$0xf] %v513
                %v515 = vld [vmem:[%s269 + $0x3d0] sm:$0xf]
                %516 = vst [vmem:[%s270 + $0x1e8] sm:$0xf] %v515
                %v517 = vld [vmem:[%s269 + $0x3d8] sm:$0xf]
                %518 = vst [vmem:[%s270 + $0x1ec] sm:$0xf] %v517
                %v519 = vld [vmem:[%s269 + $0x3e0] sm:$0xf]
                %520 = vst [vmem:[%s270 + $0x1f0] sm:$0xf] %v519
                %v521 = vld [vmem:[%s269 + $0x3e8] sm:$0xf]
                %522 = vst [vmem:[%s270 + $0x1f4] sm:$0xf] %v521
                %v523 = vld [vmem:[%s269 + $0x3f0] sm:$0xf]
                %524 = vst [vmem:[%s270 + $0x1f8] sm:$0xf] %v523
                %v525 = vld [vmem:[%s269 + $0x3f8] sm:$0xf]
                %526 = vst [vmem:[%s270 + $0x1fc] sm:$0xf] %v525
              $region60: #{patchgan_forward.7} parent=54 // loop_footer
                %s268 = sadd.s32 1, %s264
              $region61: #{patchgan_forward.7} parent=54 // loop_footer_branch
                %263 = sbr.rel target = $region57
              $region62: #{patchgan_forward.7} parent=54 // loop_exit
                _
            $region55: #{patchgan_forward.7} parent=46 // pred_fallthru
              _
          $region47: #{patchgan_forward.7} parent=42 // pred_fallthru
            _
          %802 = vnop
        $region43: #{patchgan_forward.7} parent=15 // pred_fallthru
          _
        // Predicated region
        $region81: #{patchgan_forward.7} parent=15 // pred_check
          %p803 = pneg %p105
        $region82: #{patchgan_forward.7} parent=15 // pred_check_branch
          %805 = sbr.rel (%p803) target = $region84
        $region83: #{patchgan_forward.7} parent=15 // pred_region
          %p806 = scmp.lt.s32.totalorder %s18, 1
          %s807 = scalar_select %p806, %s18, 1
          %s808 = scalar_lea.vmem %s2, %s807
        $region84: #{patchgan_forward.7} parent=15 // pred_fallthru
          _
        // Predicated region
        $region85: #{patchgan_forward.7} parent=15 // pred_check
          %p809 = pneg %p131
        $region86: #{patchgan_forward.7} parent=15 // pred_check_branch
          %811 = sbr.rel (%p809) target = $region88
        $region87: #{patchgan_forward.7} parent=15 // pred_region
          %p812 = scmp.lt.s32.totalorder %s18, 1
          %s813 = scalar_select %p812, %s18, 1
          %s814 = scalar_lea.vmem %s3, %s813
        $region88: #{patchgan_forward.7} parent=15 // pred_fallthru
          _
      $region16: #{patchgan_forward.7} parent=5 // pred_fallthru
        _
      %p815 = scmp.le.s32.totalorder 1, %s10
      %p816 = scmp.lt.s32.totalorder %s10, 5
      %p817 = pnand %p815, %p816
      %p818 = pneg %p817
      // Predicated region
      $region89: #{patchgan_forward.7} parent=5 // pred_check
        _
      $region90: #{patchgan_forward.7} parent=5 // pred_check_branch
        %820 = sbr.rel (%p817) target = $region92
      $region91: #{patchgan_forward.7} parent=5 // pred_region
        %s821 = ssub.s32 %s10, 1
        %s822 = sand.u32 %s44, 1
        %s823 = sand.u32 %s44, 1
        %s824 = smul.addr %s823, 128
        %s825 = scalar_lea.vmem [#allocation3], %s824
        // Predicated region
        $region93: #{patchgan_forward.7} parent=91 // pred_check
          %p826 = pneg %p57
        $region94: #{patchgan_forward.7} parent=91 // pred_check_branch
          %828 = sbr.rel (%p826) target = $region96
        $region95: #{patchgan_forward.7} parent=91 // pred_region
          _
        $region96: #{patchgan_forward.7} parent=91 // pred_fallthru
          _
        %s829 = sand.u32 %s72, 1
        %s830 = sand.u32 %s72, 1
        %s831 = smul.addr %s830, 512
        %s832 = scalar_lea.vmem [#allocation4], %s831
        // Predicated region
        $region97: #{patchgan_forward.7} parent=91 // pred_check
          %p833 = pneg %p85
        $region98: #{patchgan_forward.7} parent=91 // pred_check_branch
          %835 = sbr.rel (%p833) target = $region100
        $region99: #{patchgan_forward.7} parent=91 // pred_region
          _
        $region100: #{patchgan_forward.7} parent=91 // pred_fallthru
          _
        %s836 = sand.u32 %s44, 1
        %s837 = sand.u32 %s44, 1
        %s838 = smul.addr %s837, 128
        %s839 = scalar_lea.vmem [#allocation3], %s838
        %p840 = pneg %p57
        %p841 = pneg %p54
        %s842 = sand.u32 %s72, 1
        %s843 = sand.u32 %s72, 1
        %s844 = smul.addr %s843, 512
        %s845 = scalar_lea.vmem [#allocation4], %s844
        %p846 = pneg %p85
        %p847 = pneg %p82
        %p848 = scmp.lt.s32.totalorder %s21, 1
        %s849 = scalar_select %p848, %s21, 1
        %s850 = scalar_lea.vmem %s2, %s849
        %p851 = pneg %p111
        %p852 = pneg %p108
        %p853 = scmp.lt.s32.totalorder %s21, 1
        %s854 = scalar_select %p853, %s21, 1
        %s855 = scalar_lea.vmem %s3, %s854
        %p856 = pneg %p137
        %p857 = pneg %p134
        %p858 = pneg %p165
        %p859 = pneg %p162
        %s860 = sand.u32 %s152, 1
        %s861 = sand.u32 %s152, 1
        %s862 = smul.addr %s861, 32
        %s863 = scalar_lea.vmem [#allocation5], %s862
        %s864 = smul.u32 4, %s20
        %s865 = smul.u32 8, %s22
        %s866 = smul.u32 128, %s22
        %p867 = scmp.lt.s32.totalorder %s21, 1
        %s868 = scalar_select %p867, %s21, 1
        %s869 = scalar_lea.vmem %s2, %s868
        %p870 = scmp.lt.s32.totalorder %s21, 1
        %s871 = scalar_select %p870, %s21, 1
        %s872 = scalar_lea.vmem %s3, %s871
        %s873 = smul.u32 4, %s20
        %p875 = scmp.eq.s32.totalorder %s22, 0
        // Predicated region
        $region101: #{patchgan_forward.7} parent=91 // pred_check
          %p876 = pneg %p875
        $region102: #{patchgan_forward.7} parent=91 // pred_check_branch
          %878 = sbr.rel (%p876) target = $region104
        $region103: #{patchgan_forward.7} parent=91 // pred_region
          %879 = vst [vmem:[#allocation2] sm:$0xff] 0.0
          %880 = vst [vmem:[#allocation2 + $0x8] sm:$0xff] 0.0
          %881 = vst [vmem:[#allocation2 + $0x10] sm:$0xff] 0.0
          %882 = vst [vmem:[#allocation2 + $0x18] sm:$0xff] 0.0
        $region104: #{patchgan_forward.7} parent=91 // pred_fallthru
          _
        %v883 = vld [vmem:[#allocation2] sm:$0xff]
        %v884 = vld [vmem:[#allocation2 + $0x8] sm:$0xff]
        %v885 = vld [vmem:[#allocation2 + $0x10] sm:$0xff]
        %v886 = vld [vmem:[#allocation2 + $0x18] sm:$0xff]
        %v887 = vld [vmem:[%s825] sm:$0xff]
        %v888 = vld [vmem:[%s825 + $0x8] sm:$0xff]
        %v889 = vld [vmem:[%s825 + $0x10] sm:$0xff]
        %v890 = vld [vmem:[%s825 + $0x18] sm:$0xff]
        %v891 = vld [vmem:[%s825 + $0x20] sm:$0xff]
        %v892 = vld [vmem:[%s825 + $0x28] sm:$0xff]
        %v893 = vld [vmem:[%s825 + $0x30] sm:$0xff]
        %v894 = vld [vmem:[%s825 + $0x38] sm:$0xff]
        %v895 = vld [vmem:[%s825 + $0x40] sm:$0xff]
        %v896 = vld [vmem:[%s825 + $0x48] sm:$0xff]
        %v897 = vld [vmem:[%s825 + $0x50] sm:$0xff]
        %v898 = vld [vmem:[%s825 + $0x58] sm:$0xff]
        %v899 = vld [vmem:[%s825 + $0x60] sm:$0xff]
        %v900 = vld [vmem:[%s825 + $0x68] sm:$0xff]
        %v901 = vld [vmem:[%s825 + $0x70] sm:$0xff]
        %v902 = vld [vmem:[%s825 + $0x78] sm:$0xff]
        %v903 = vld [vmem:[%s832] sm:$0xf]
        %v904 = vld [vmem:[%s832 + $0x4] sm:$0xf]
        %v905 = vld [vmem:[%s832 + $0x8] sm:$0xf]
        %v906 = vld [vmem:[%s832 + $0xc] sm:$0xf]
        %v907 = vld [vmem:[%s832 + $0x10] sm:$0xf]
        %v908 = vld [vmem:[%s832 + $0x14] sm:$0xf]
        %v909 = vld [vmem:[%s832 + $0x18] sm:$0xf]
        %v910 = vld [vmem:[%s832 + $0x1c] sm:$0xf]
        %v911 = vld [vmem:[%s832 + $0x20] sm:$0xf]
        %v912 = vld [vmem:[%s832 + $0x24] sm:$0xf]
        %v913 = vld [vmem:[%s832 + $0x28] sm:$0xf]
        %v914 = vld [vmem:[%s832 + $0x2c] sm:$0xf]
        %v915 = vld [vmem:[%s832 + $0x30] sm:$0xf]
        %v916 = vld [vmem:[%s832 + $0x34] sm:$0xf]
        %v917 = vld [vmem:[%s832 + $0x38] sm:$0xf]
        %v918 = vld [vmem:[%s832 + $0x3c] sm:$0xf]
        %v919 = vld [vmem:[%s832 + $0x40] sm:$0xf]
        %v920 = vld [vmem:[%s832 + $0x44] sm:$0xf]
        %v921 = vld [vmem:[%s832 + $0x48] sm:$0xf]
        %v922 = vld [vmem:[%s832 + $0x4c] sm:$0xf]
        %v923 = vld [vmem:[%s832 + $0x50] sm:$0xf]
        %v924 = vld [vmem:[%s832 + $0x54] sm:$0xf]
        %v925 = vld [vmem:[%s832 + $0x58] sm:$0xf]
        %v926 = vld [vmem:[%s832 + $0x5c] sm:$0xf]
        %v927 = vld [vmem:[%s832 + $0x60] sm:$0xf]
        %v928 = vld [vmem:[%s832 + $0x64] sm:$0xf]
        %v929 = vld [vmem:[%s832 + $0x68] sm:$0xf]
        %v930 = vld [vmem:[%s832 + $0x6c] sm:$0xf]
        %v931 = vld [vmem:[%s832 + $0x70] sm:$0xf]
        %v932 = vld [vmem:[%s832 + $0x74] sm:$0xf]
        %v933 = vld [vmem:[%s832 + $0x78] sm:$0xf]
        %v934 = vld [vmem:[%s832 + $0x7c] sm:$0xf]
        %v935 = vld [vmem:[%s832 + $0x80] sm:$0xf]
        %v936 = vld [vmem:[%s832 + $0x84] sm:$0xf]
        %v937 = vld [vmem:[%s832 + $0x88] sm:$0xf]
        %v938 = vld [vmem:[%s832 + $0x8c] sm:$0xf]
        %v939 = vld [vmem:[%s832 + $0x90] sm:$0xf]
        %v940 = vld [vmem:[%s832 + $0x94] sm:$0xf]
        %v941 = vld [vmem:[%s832 + $0x98] sm:$0xf]
        %v942 = vld [vmem:[%s832 + $0x9c] sm:$0xf]
        %v943 = vld [vmem:[%s832 + $0xa0] sm:$0xf]
        %v944 = vld [vmem:[%s832 + $0xa4] sm:$0xf]
        %v945 = vld [vmem:[%s832 + $0xa8] sm:$0xf]
        %v946 = vld [vmem:[%s832 + $0xac] sm:$0xf]
        %v947 = vld [vmem:[%s832 + $0xb0] sm:$0xf]
        %v948 = vld [vmem:[%s832 + $0xb4] sm:$0xf]
        %v949 = vld [vmem:[%s832 + $0xb8] sm:$0xf]
        %v950 = vld [vmem:[%s832 + $0xbc] sm:$0xf]
        %v951 = vld [vmem:[%s832 + $0xc0] sm:$0xf]
        %v952 = vld [vmem:[%s832 + $0xc4] sm:$0xf]
        %v953 = vld [vmem:[%s832 + $0xc8] sm:$0xf]
        %v954 = vld [vmem:[%s832 + $0xcc] sm:$0xf]
        %v955 = vld [vmem:[%s832 + $0xd0] sm:$0xf]
        %v956 = vld [vmem:[%s832 + $0xd4] sm:$0xf]
        %v957 = vld [vmem:[%s832 + $0xd8] sm:$0xf]
        %v958 = vld [vmem:[%s832 + $0xdc] sm:$0xf]
        %v959 = vld [vmem:[%s832 + $0xe0] sm:$0xf]
        %v960 = vld [vmem:[%s832 + $0xe4] sm:$0xf]
        %v961 = vld [vmem:[%s832 + $0xe8] sm:$0xf]
        %v962 = vld [vmem:[%s832 + $0xec] sm:$0xf]
        %v963 = vld [vmem:[%s832 + $0xf0] sm:$0xf]
        %v964 = vld [vmem:[%s832 + $0xf4] sm:$0xf]
        %v965 = vld [vmem:[%s832 + $0xf8] sm:$0xf]
        %v966 = vld [vmem:[%s832 + $0xfc] sm:$0xf]
        %v967 = vld [vmem:[%s832 + $0x100] sm:$0xf]
        %v968 = vld [vmem:[%s832 + $0x104] sm:$0xf]
        %v969 = vld [vmem:[%s832 + $0x108] sm:$0xf]
        %v970 = vld [vmem:[%s832 + $0x10c] sm:$0xf]
        %v971 = vld [vmem:[%s832 + $0x110] sm:$0xf]
        %v972 = vld [vmem:[%s832 + $0x114] sm:$0xf]
        %v973 = vld [vmem:[%s832 + $0x118] sm:$0xf]
        %v974 = vld [vmem:[%s832 + $0x11c] sm:$0xf]
        %v975 = vld [vmem:[%s832 + $0x120] sm:$0xf]
        %v976 = vld [vmem:[%s832 + $0x124] sm:$0xf]
        %v977 = vld [vmem:[%s832 + $0x128] sm:$0xf]
        %v978 = vld [vmem:[%s832 + $0x12c] sm:$0xf]
        %v979 = vld [vmem:[%s832 + $0x130] sm:$0xf]
        %v980 = vld [vmem:[%s832 + $0x134] sm:$0xf]
        %v981 = vld [vmem:[%s832 + $0x138] sm:$0xf]
        %v982 = vld [vmem:[%s832 + $0x13c] sm:$0xf]
        %v983 = vld [vmem:[%s832 + $0x140] sm:$0xf]
        %v984 = vld [vmem:[%s832 + $0x144] sm:$0xf]
        %v985 = vld [vmem:[%s832 + $0x148] sm:$0xf]
        %v986 = vld [vmem:[%s832 + $0x14c] sm:$0xf]
        %v987 = vld [vmem:[%s832 + $0x150] sm:$0xf]
        %v988 = vld [vmem:[%s832 + $0x154] sm:$0xf]
        %v989 = vld [vmem:[%s832 + $0x158] sm:$0xf]
        %v990 = vld [vmem:[%s832 + $0x15c] sm:$0xf]
        %v991 = vld [vmem:[%s832 + $0x160] sm:$0xf]
        %v992 = vld [vmem:[%s832 + $0x164] sm:$0xf]
        %v993 = vld [vmem:[%s832 + $0x168] sm:$0xf]
        %v994 = vld [vmem:[%s832 + $0x16c] sm:$0xf]
        %v995 = vld [vmem:[%s832 + $0x170] sm:$0xf]
        %v996 = vld [vmem:[%s832 + $0x174] sm:$0xf]
        %v997 = vld [vmem:[%s832 + $0x178] sm:$0xf]
        %v998 = vld [vmem:[%s832 + $0x17c] sm:$0xf]
        %v999 = vld [vmem:[%s832 + $0x180] sm:$0xf]
        %v1000 = vld [vmem:[%s832 + $0x184] sm:$0xf]
        %v1001 = vld [vmem:[%s832 + $0x188] sm:$0xf]
        %v1002 = vld [vmem:[%s832 + $0x18c] sm:$0xf]
        %v1003 = vld [vmem:[%s832 + $0x190] sm:$0xf]
        %v1004 = vld [vmem:[%s832 + $0x194] sm:$0xf]
        %v1005 = vld [vmem:[%s832 + $0x198] sm:$0xf]
        %v1006 = vld [vmem:[%s832 + $0x19c] sm:$0xf]
        %v1007 = vld [vmem:[%s832 + $0x1a0] sm:$0xf]
        %v1008 = vld [vmem:[%s832 + $0x1a4] sm:$0xf]
        %v1009 = vld [vmem:[%s832 + $0x1a8] sm:$0xf]
        %v1010 = vld [vmem:[%s832 + $0x1ac] sm:$0xf]
        %v1011 = vld [vmem:[%s832 + $0x1b0] sm:$0xf]
        %v1012 = vld [vmem:[%s832 + $0x1b4] sm:$0xf]
        %v1013 = vld [vmem:[%s832 + $0x1b8] sm:$0xf]
        %v1014 = vld [vmem:[%s832 + $0x1bc] sm:$0xf]
        %v1015 = vld [vmem:[%s832 + $0x1c0] sm:$0xf]
        %v1016 = vld [vmem:[%s832 + $0x1c4] sm:$0xf]
        %v1017 = vld [vmem:[%s832 + $0x1c8] sm:$0xf]
        %v1018 = vld [vmem:[%s832 + $0x1cc] sm:$0xf]
        %v1019 = vld [vmem:[%s832 + $0x1d0] sm:$0xf]
        %v1020 = vld [vmem:[%s832 + $0x1d4] sm:$0xf]
        %v1021 = vld [vmem:[%s832 + $0x1d8] sm:$0xf]
        %v1022 = vld [vmem:[%s832 + $0x1dc] sm:$0xf]
        %v1023 = vld [vmem:[%s832 + $0x1e0] sm:$0xf]
        %v1024 = vld [vmem:[%s832 + $0x1e4] sm:$0xf]
        %v1025 = vld [vmem:[%s832 + $0x1e8] sm:$0xf]
        %v1026 = vld [vmem:[%s832 + $0x1ec] sm:$0xf]
        %v1027 = vld [vmem:[%s832 + $0x1f0] sm:$0xf]
        %v1028 = vld [vmem:[%s832 + $0x1f4] sm:$0xf]
        %v1029 = vld [vmem:[%s832 + $0x1f8] sm:$0xf]
        %v1030 = vld [vmem:[%s832 + $0x1fc] sm:$0xf]
        %v1047 = vunpack.c.l.b16 %v887
        %v1048 = vunpack.c.h.b16 %v887
        %v1049 = vunpack.c.l.b16 %v888
        %v1050 = vunpack.c.h.b16 %v888
        %v1051 = vunpack.c.l.b16 %v889
        %v1052 = vunpack.c.h.b16 %v889
        %v1053 = vunpack.c.l.b16 %v890
        %v1054 = vunpack.c.h.b16 %v890
        %v1055 = vunpack.c.l.b16 %v891
        %v1056 = vunpack.c.h.b16 %v891
        %v1057 = vunpack.c.l.b16 %v892
        %v1058 = vunpack.c.h.b16 %v892
        %v1059 = vunpack.c.l.b16 %v893
        %v1060 = vunpack.c.h.b16 %v893
        %v1061 = vunpack.c.l.b16 %v894
        %v1062 = vunpack.c.h.b16 %v894
        %v1063 = vunpack.c.l.b16 %v895
        %v1064 = vunpack.c.h.b16 %v895
        %v1065 = vunpack.c.l.b16 %v896
        %v1066 = vunpack.c.h.b16 %v896
        %v1067 = vunpack.c.l.b16 %v897
        %v1068 = vunpack.c.h.b16 %v897
        %v1069 = vunpack.c.l.b16 %v898
        %v1070 = vunpack.c.h.b16 %v898
        %v1071 = vunpack.c.l.b16 %v899
        %v1072 = vunpack.c.h.b16 %v899
        %v1073 = vunpack.c.l.b16 %v900
        %v1074 = vunpack.c.h.b16 %v900
        %v1075 = vunpack.c.l.b16 %v901
        %v1076 = vunpack.c.h.b16 %v901
        %v1077 = vunpack.c.l.b16 %v902
        %v1078 = vunpack.c.h.b16 %v902
        %v1079 = vpack.c.b16 %v1055, %v1047
        %v1080 = vpack.c.b16 %v1056, %v1048
        %v1081 = vpack.c.b16 %v1057, %v1049
        %v1082 = vpack.c.b16 %v1058, %v1050
        %v1083 = vpack.c.b16 %v1059, %v1051
        %v1084 = vpack.c.b16 %v1060, %v1052
        %v1085 = vpack.c.b16 %v1061, %v1053
        %v1086 = vpack.c.b16 %v1062, %v1054
        %v1087 = vpack.c.b16 %v1071, %v1063
        %v1088 = vpack.c.b16 %v1072, %v1064
        %v1089 = vpack.c.b16 %v1073, %v1065
        %v1090 = vpack.c.b16 %v1074, %v1066
        %v1091 = vpack.c.b16 %v1075, %v1067
        %v1092 = vpack.c.b16 %v1076, %v1068
        %v1093 = vpack.c.b16 %v1077, %v1069
        %v1094 = vpack.c.b16 %v1078, %v1070
        %v1239 = vunpack.c.l.b16 %v903
        %v1240 = vunpack.c.l.b16 %v904
        %v1241 = vunpack.c.l.b16 %v905
        %v1242 = vunpack.c.l.b16 %v906
        %v1243 = vunpack.c.l.b16 %v907
        %v1244 = vunpack.c.l.b16 %v908
        %v1245 = vunpack.c.l.b16 %v909
        %v1246 = vunpack.c.l.b16 %v910
        %v1247 = vunpack.c.l.b16 %v911
        %v1248 = vunpack.c.l.b16 %v912
        %v1249 = vunpack.c.l.b16 %v913
        %v1250 = vunpack.c.l.b16 %v914
        %v1251 = vunpack.c.l.b16 %v915
        %v1252 = vunpack.c.l.b16 %v916
        %v1253 = vunpack.c.l.b16 %v917
        %v1254 = vunpack.c.l.b16 %v918
        %v1255 = vunpack.c.l.b16 %v919
        %v1256 = vunpack.c.l.b16 %v920
        %v1257 = vunpack.c.l.b16 %v921
        %v1258 = vunpack.c.l.b16 %v922
        %v1259 = vunpack.c.l.b16 %v923
        %v1260 = vunpack.c.l.b16 %v924
        %v1261 = vunpack.c.l.b16 %v925
        %v1262 = vunpack.c.l.b16 %v926
        %v1263 = vunpack.c.l.b16 %v927
        %v1264 = vunpack.c.l.b16 %v928
        %v1265 = vunpack.c.l.b16 %v929
        %v1266 = vunpack.c.l.b16 %v930
        %v1267 = vunpack.c.l.b16 %v931
        %v1268 = vunpack.c.l.b16 %v932
        %v1269 = vunpack.c.l.b16 %v933
        %v1270 = vunpack.c.l.b16 %v934
        %v1271 = vunpack.c.l.b16 %v935
        %v1272 = vunpack.c.l.b16 %v936
        %v1273 = vunpack.c.l.b16 %v937
        %v1274 = vunpack.c.l.b16 %v938
        %v1275 = vunpack.c.l.b16 %v939
        %v1276 = vunpack.c.l.b16 %v940
        %v1277 = vunpack.c.l.b16 %v941
        %v1278 = vunpack.c.l.b16 %v942
        %v1279 = vunpack.c.l.b16 %v943
        %v1280 = vunpack.c.l.b16 %v944
        %v1281 = vunpack.c.l.b16 %v945
        %v1282 = vunpack.c.l.b16 %v946
        %v1283 = vunpack.c.l.b16 %v947
        %v1284 = vunpack.c.l.b16 %v948
        %v1285 = vunpack.c.l.b16 %v949
        %v1286 = vunpack.c.l.b16 %v950
        %v1287 = vunpack.c.l.b16 %v951
        %v1288 = vunpack.c.l.b16 %v952
        %v1289 = vunpack.c.l.b16 %v953
        %v1290 = vunpack.c.l.b16 %v954
        %v1291 = vunpack.c.l.b16 %v955
        %v1292 = vunpack.c.l.b16 %v956
        %v1293 = vunpack.c.l.b16 %v957
        %v1294 = vunpack.c.l.b16 %v958
        %v1295 = vunpack.c.l.b16 %v959
        %v1296 = vunpack.c.l.b16 %v960
        %v1297 = vunpack.c.l.b16 %v961
        %v1298 = vunpack.c.l.b16 %v962
        %v1299 = vunpack.c.l.b16 %v963
        %v1300 = vunpack.c.l.b16 %v964
        %v1301 = vunpack.c.l.b16 %v965
        %v1302 = vunpack.c.l.b16 %v966
        %v1303 = vunpack.c.l.b16 %v967
        %v1304 = vunpack.c.l.b16 %v968
        %v1305 = vunpack.c.l.b16 %v969
        %v1306 = vunpack.c.l.b16 %v970
        %v1307 = vunpack.c.l.b16 %v971
        %v1308 = vunpack.c.l.b16 %v972
        %v1309 = vunpack.c.l.b16 %v973
        %v1310 = vunpack.c.l.b16 %v974
        %v1311 = vunpack.c.l.b16 %v975
        %v1312 = vunpack.c.l.b16 %v976
        %v1313 = vunpack.c.l.b16 %v977
        %v1314 = vunpack.c.l.b16 %v978
        %v1315 = vunpack.c.l.b16 %v979
        %v1316 = vunpack.c.l.b16 %v980
        %v1317 = vunpack.c.l.b16 %v981
        %v1318 = vunpack.c.l.b16 %v982
        %v1319 = vunpack.c.l.b16 %v983
        %v1320 = vunpack.c.l.b16 %v984
        %v1321 = vunpack.c.l.b16 %v985
        %v1322 = vunpack.c.l.b16 %v986
        %v1323 = vunpack.c.l.b16 %v987
        %v1324 = vunpack.c.l.b16 %v988
        %v1325 = vunpack.c.l.b16 %v989
        %v1326 = vunpack.c.l.b16 %v990
        %v1327 = vunpack.c.l.b16 %v991
        %v1328 = vunpack.c.l.b16 %v992
        %v1329 = vunpack.c.l.b16 %v993
        %v1330 = vunpack.c.l.b16 %v994
        %v1331 = vunpack.c.l.b16 %v995
        %v1332 = vunpack.c.l.b16 %v996
        %v1333 = vunpack.c.l.b16 %v997
        %v1334 = vunpack.c.l.b16 %v998
        %v1335 = vunpack.c.l.b16 %v999
        %v1336 = vunpack.c.l.b16 %v1000
        %v1337 = vunpack.c.l.b16 %v1001
        %v1338 = vunpack.c.l.b16 %v1002
        %v1339 = vunpack.c.l.b16 %v1003
        %v1340 = vunpack.c.l.b16 %v1004
        %v1341 = vunpack.c.l.b16 %v1005
        %v1342 = vunpack.c.l.b16 %v1006
        %v1343 = vunpack.c.l.b16 %v1007
        %v1344 = vunpack.c.l.b16 %v1008
        %v1345 = vunpack.c.l.b16 %v1009
        %v1346 = vunpack.c.l.b16 %v1010
        %v1347 = vunpack.c.l.b16 %v1011
        %v1348 = vunpack.c.l.b16 %v1012
        %v1349 = vunpack.c.l.b16 %v1013
        %v1350 = vunpack.c.l.b16 %v1014
        %v1351 = vunpack.c.l.b16 %v1015
        %v1352 = vunpack.c.l.b16 %v1016
        %v1353 = vunpack.c.l.b16 %v1017
        %v1354 = vunpack.c.l.b16 %v1018
        %v1355 = vunpack.c.l.b16 %v1019
        %v1356 = vunpack.c.l.b16 %v1020
        %v1357 = vunpack.c.l.b16 %v1021
        %v1358 = vunpack.c.l.b16 %v1022
        %v1359 = vunpack.c.l.b16 %v1023
        %v1360 = vunpack.c.l.b16 %v1024
        %v1361 = vunpack.c.l.b16 %v1025
        %v1362 = vunpack.c.l.b16 %v1026
        %v1363 = vunpack.c.l.b16 %v1027
        %v1364 = vunpack.c.l.b16 %v1028
        %v1365 = vunpack.c.l.b16 %v1029
        %v1366 = vunpack.c.l.b16 %v1030
        %v1367 = vpack.c.b16 %v1240, %v1239
        %v1368 = vpack.c.b16 %v1242, %v1241
        %v1369 = vpack.c.b16 %v1244, %v1243
        %v1370 = vpack.c.b16 %v1246, %v1245
        %v1371 = vpack.c.b16 %v1248, %v1247
        %v1372 = vpack.c.b16 %v1250, %v1249
        %v1373 = vpack.c.b16 %v1252, %v1251
        %v1374 = vpack.c.b16 %v1254, %v1253
        %v1375 = vpack.c.b16 %v1256, %v1255
        %v1376 = vpack.c.b16 %v1258, %v1257
        %v1377 = vpack.c.b16 %v1260, %v1259
        %v1378 = vpack.c.b16 %v1262, %v1261
        %v1379 = vpack.c.b16 %v1264, %v1263
        %v1380 = vpack.c.b16 %v1266, %v1265
        %v1381 = vpack.c.b16 %v1268, %v1267
        %v1382 = vpack.c.b16 %v1270, %v1269
        %v1383 = vpack.c.b16 %v1272, %v1271
        %v1384 = vpack.c.b16 %v1274, %v1273
        %v1385 = vpack.c.b16 %v1276, %v1275
        %v1386 = vpack.c.b16 %v1278, %v1277
        %v1387 = vpack.c.b16 %v1280, %v1279
        %v1388 = vpack.c.b16 %v1282, %v1281
        %v1389 = vpack.c.b16 %v1284, %v1283
        %v1390 = vpack.c.b16 %v1286, %v1285
        %v1391 = vpack.c.b16 %v1288, %v1287
        %v1392 = vpack.c.b16 %v1290, %v1289
        %v1393 = vpack.c.b16 %v1292, %v1291
        %v1394 = vpack.c.b16 %v1294, %v1293
        %v1395 = vpack.c.b16 %v1296, %v1295
        %v1396 = vpack.c.b16 %v1298, %v1297
        %v1397 = vpack.c.b16 %v1300, %v1299
        %v1398 = vpack.c.b16 %v1302, %v1301
        %v1399 = vpack.c.b16 %v1304, %v1303
        %v1400 = vpack.c.b16 %v1306, %v1305
        %v1401 = vpack.c.b16 %v1308, %v1307
        %v1402 = vpack.c.b16 %v1310, %v1309
        %v1403 = vpack.c.b16 %v1312, %v1311
        %v1404 = vpack.c.b16 %v1314, %v1313
        %v1405 = vpack.c.b16 %v1316, %v1315
        %v1406 = vpack.c.b16 %v1318, %v1317
        %v1407 = vpack.c.b16 %v1320, %v1319
        %v1408 = vpack.c.b16 %v1322, %v1321
        %v1409 = vpack.c.b16 %v1324, %v1323
        %v1410 = vpack.c.b16 %v1326, %v1325
        %v1411 = vpack.c.b16 %v1328, %v1327
        %v1412 = vpack.c.b16 %v1330, %v1329
        %v1413 = vpack.c.b16 %v1332, %v1331
        %v1414 = vpack.c.b16 %v1334, %v1333
        %v1415 = vpack.c.b16 %v1336, %v1335
        %v1416 = vpack.c.b16 %v1338, %v1337
        %v1417 = vpack.c.b16 %v1340, %v1339
        %v1418 = vpack.c.b16 %v1342, %v1341
        %v1419 = vpack.c.b16 %v1344, %v1343
        %v1420 = vpack.c.b16 %v1346, %v1345
        %v1421 = vpack.c.b16 %v1348, %v1347
        %v1422 = vpack.c.b16 %v1350, %v1349
        %v1423 = vpack.c.b16 %v1352, %v1351
        %v1424 = vpack.c.b16 %v1354, %v1353
        %v1425 = vpack.c.b16 %v1356, %v1355
        %v1426 = vpack.c.b16 %v1358, %v1357
        %v1427 = vpack.c.b16 %v1360, %v1359
        %v1428 = vpack.c.b16 %v1362, %v1361
        %v1429 = vpack.c.b16 %v1364, %v1363
        %v1430 = vpack.c.b16 %v1366, %v1365
        %1495 = vmatprep.subr.bf16.mxu0 0
        %1496 = vmatpush1.bf16.msra.mxu0 %v1367
        %1497 = vmatprep.subr.bf16.mxu0 0
        %1498 = vmatpush1.bf16.msra.mxu0 %v1368
        %1499 = vmatprep.subr.bf16.mxu0 0
        %1500 = vmatpush1.bf16.msra.mxu0 %v1369
        %1501 = vmatprep.subr.bf16.mxu0 0
        %1502 = vmatpush1.bf16.msra.mxu0 %v1370
        %1503 = vmatprep.subr.bf16.mxu0 0
        %1504 = vmatpush1.bf16.msra.mxu0 %v1371
        %1505 = vmatprep.subr.bf16.mxu0 0
        %1506 = vmatpush1.bf16.msra.mxu0 %v1372
        %1507 = vmatprep.subr.bf16.mxu0 0
        %1508 = vmatpush1.bf16.msra.mxu0 %v1373
        %1509 = vmatprep.subr.bf16.mxu0 0
        %1510 = vmatpush1.bf16.msra.mxu0 %v1374
        %1511 = vmatprep.subr.bf16.mxu0 0
        %1512 = vmatpush1.bf16.msra.mxu0 %v1375
        %1513 = vmatprep.subr.bf16.mxu0 0
        %1514 = vmatpush1.bf16.msra.mxu0 %v1376
        %1515 = vmatprep.subr.bf16.mxu0 0
        %1516 = vmatpush1.bf16.msra.mxu0 %v1377
        %1517 = vmatprep.subr.bf16.mxu0 0
        %1518 = vmatpush1.bf16.msra.mxu0 %v1378
        %1519 = vmatprep.subr.bf16.mxu0 0
        %1520 = vmatpush1.bf16.msra.mxu0 %v1379
        %1521 = vmatprep.subr.bf16.mxu0 0
        %1522 = vmatpush1.bf16.msra.mxu0 %v1380
        %1523 = vmatprep.subr.bf16.mxu0 0
        %1524 = vmatpush1.bf16.msra.mxu0 %v1381
        %1525 = vmatprep.subr.bf16.mxu0 0
        %1526 = vmatpush1.bf16.msra.mxu0 %v1382
        %1527 = vmatprep.mubr.bf16.mxu0 %v1080
        %1528 = vmatmul.mubr.bf16.gmra.mrb[0].mxu0 %v1079
        %v1529 = vpop.f32.mrb[0].mxu0
        %v1530 = vadd.f32 0.0, %v1529
        %v1531 = vpop.f32.mrb[0].mxu0
        %v1532 = vpop.f32.mrb[0].mxu0
        %v1533 = vadd.f32 0.0, %v1532
        %v1534 = vpop.f32.mrb[0].mxu0
        %1535 = vmatprep.mubr.bf16.mxu0 %v1088
        %1536 = vmatmul.mubr.bf16.gmra.mrb[0].mxu0 %v1087
        %v1537 = vpop.f32.mrb[0].mxu0
        %v1538 = vadd.f32 0.0, %v1537
        %v1539 = vpop.f32.mrb[0].mxu0
        %v1540 = vpop.f32.mrb[0].mxu0
        %v1541 = vadd.f32 0.0, %v1540
        %v1542 = vpop.f32.mrb[0].mxu0
        %1543 = vdwg.mxu0
        %1544 = vmatprep.subr.bf16.mxu0 0
        %1545 = vmatpush1.bf16.msra.mxu0 %v1383
        %1546 = vmatprep.subr.bf16.mxu0 0
        %1547 = vmatpush1.bf16.msra.mxu0 %v1384
        %1548 = vmatprep.subr.bf16.mxu0 0
        %1549 = vmatpush1.bf16.msra.mxu0 %v1385
        %1550 = vmatprep.subr.bf16.mxu0 0
        %1551 = vmatpush1.bf16.msra.mxu0 %v1386
        %1552 = vmatprep.subr.bf16.mxu0 0
        %1553 = vmatpush1.bf16.msra.mxu0 %v1387
        %1554 = vmatprep.subr.bf16.mxu0 0
        %1555 = vmatpush1.bf16.msra.mxu0 %v1388
        %1556 = vmatprep.subr.bf16.mxu0 0
        %1557 = vmatpush1.bf16.msra.mxu0 %v1389
        %1558 = vmatprep.subr.bf16.mxu0 0
        %1559 = vmatpush1.bf16.msra.mxu0 %v1390
        %1560 = vmatprep.subr.bf16.mxu0 0
        %1561 = vmatpush1.bf16.msra.mxu0 %v1391
        %1562 = vmatprep.subr.bf16.mxu0 0
        %1563 = vmatpush1.bf16.msra.mxu0 %v1392
        %1564 = vmatprep.subr.bf16.mxu0 0
        %1565 = vmatpush1.bf16.msra.mxu0 %v1393
        %1566 = vmatprep.subr.bf16.mxu0 0
        %1567 = vmatpush1.bf16.msra.mxu0 %v1394
        %1568 = vmatprep.subr.bf16.mxu0 0
        %1569 = vmatpush1.bf16.msra.mxu0 %v1395
        %1570 = vmatprep.subr.bf16.mxu0 0
        %1571 = vmatpush1.bf16.msra.mxu0 %v1396
        %1572 = vmatprep.subr.bf16.mxu0 0
        %1573 = vmatpush1.bf16.msra.mxu0 %v1397
        %1574 = vmatprep.subr.bf16.mxu0 0
        %1575 = vmatpush1.bf16.msra.mxu0 %v1398
        %1576 = vmatprep.mubr.bf16.mxu0 %v1082
        %1577 = vmatmul.mubr.bf16.gmra.mrb[0].mxu0 %v1081
        %v1578 = vpop.f32.mrb[0].mxu0
        %v1579 = vadd.f32 %v1530, %v1578
        %v1580 = vpop.f32.mrb[0].mxu0
        %v1581 = vpop.f32.mrb[0].mxu0
        %v1582 = vadd.f32 %v1533, %v1581
        %v1583 = vpop.f32.mrb[0].mxu0
        %1584 = vmatprep.mubr.bf16.mxu0 %v1090
        %1585 = vmatmul.mubr.bf16.gmra.mrb[0].mxu0 %v1089
        %v1586 = vpop.f32.mrb[0].mxu0
        %v1587 = vadd.f32 %v1538, %v1586
        %v1588 = vpop.f32.mrb[0].mxu0
        %v1589 = vpop.f32.mrb[0].mxu0
        %v1590 = vadd.f32 %v1541, %v1589
        %v1591 = vpop.f32.mrb[0].mxu0
        %1592 = vdwg.mxu0
        %1593 = vmatprep.subr.bf16.mxu0 0
        %1594 = vmatpush1.bf16.msra.mxu0 %v1399
        %1595 = vmatprep.subr.bf16.mxu0 0
        %1596 = vmatpush1.bf16.msra.mxu0 %v1400
        %1597 = vmatprep.subr.bf16.mxu0 0
        %1598 = vmatpush1.bf16.msra.mxu0 %v1401
        %1599 = vmatprep.subr.bf16.mxu0 0
        %1600 = vmatpush1.bf16.msra.mxu0 %v1402
        %1601 = vmatprep.subr.bf16.mxu0 0
        %1602 = vmatpush1.bf16.msra.mxu0 %v1403
        %1603 = vmatprep.subr.bf16.mxu0 0
        %1604 = vmatpush1.bf16.msra.mxu0 %v1404
        %1605 = vmatprep.subr.bf16.mxu0 0
        %1606 = vmatpush1.bf16.msra.mxu0 %v1405
        %1607 = vmatprep.subr.bf16.mxu0 0
        %1608 = vmatpush1.bf16.msra.mxu0 %v1406
        %1609 = vmatprep.subr.bf16.mxu0 0
        %1610 = vmatpush1.bf16.msra.mxu0 %v1407
        %1611 = vmatprep.subr.bf16.mxu0 0
        %1612 = vmatpush1.bf16.msra.mxu0 %v1408
        %1613 = vmatprep.subr.bf16.mxu0 0
        %1614 = vmatpush1.bf16.msra.mxu0 %v1409
        %1615 = vmatprep.subr.bf16.mxu0 0
        %1616 = vmatpush1.bf16.msra.mxu0 %v1410
        %1617 = vmatprep.subr.bf16.mxu0 0
        %1618 = vmatpush1.bf16.msra.mxu0 %v1411
        %1619 = vmatprep.subr.bf16.mxu0 0
        %1620 = vmatpush1.bf16.msra.mxu0 %v1412
        %1621 = vmatprep.subr.bf16.mxu0 0
        %1622 = vmatpush1.bf16.msra.mxu0 %v1413
        %1623 = vmatprep.subr.bf16.mxu0 0
        %1624 = vmatpush1.bf16.msra.mxu0 %v1414
        %1625 = vmatprep.mubr.bf16.mxu0 %v1084
        %1626 = vmatmul.mubr.bf16.gmra.mrb[0].mxu0 %v1083
        %v1627 = vpop.f32.mrb[0].mxu0
        %v1628 = vadd.f32 %v1579, %v1627
        %v1629 = vpop.f32.mrb[0].mxu0
        %v1630 = vpop.f32.mrb[0].mxu0
        %v1631 = vadd.f32 %v1582, %v1630
        %v1632 = vpop.f32.mrb[0].mxu0
        %1633 = vmatprep.mubr.bf16.mxu0 %v1092
        %1634 = vmatmul.mubr.bf16.gmra.mrb[0].mxu0 %v1091
        %v1635 = vpop.f32.mrb[0].mxu0
        %v1636 = vadd.f32 %v1587, %v1635
        %v1637 = vpop.f32.mrb[0].mxu0
        %v1638 = vpop.f32.mrb[0].mxu0
        %v1639 = vadd.f32 %v1590, %v1638
        %v1640 = vpop.f32.mrb[0].mxu0
        %1641 = vdwg.mxu0
        %1642 = vmatprep.subr.bf16.mxu0 0
        %1643 = vmatpush1.bf16.msra.mxu0 %v1415
        %1644 = vmatprep.subr.bf16.mxu0 0
        %1645 = vmatpush1.bf16.msra.mxu0 %v1416
        %1646 = vmatprep.subr.bf16.mxu0 0
        %1647 = vmatpush1.bf16.msra.mxu0 %v1417
        %1648 = vmatprep.subr.bf16.mxu0 0
        %1649 = vmatpush1.bf16.msra.mxu0 %v1418
        %1650 = vmatprep.subr.bf16.mxu0 0
        %1651 = vmatpush1.bf16.msra.mxu0 %v1419
        %1652 = vmatprep.subr.bf16.mxu0 0
        %1653 = vmatpush1.bf16.msra.mxu0 %v1420
        %1654 = vmatprep.subr.bf16.mxu0 0
        %1655 = vmatpush1.bf16.msra.mxu0 %v1421
        %1656 = vmatprep.subr.bf16.mxu0 0
        %1657 = vmatpush1.bf16.msra.mxu0 %v1422
        %1658 = vmatprep.subr.bf16.mxu0 0
        %1659 = vmatpush1.bf16.msra.mxu0 %v1423
        %1660 = vmatprep.subr.bf16.mxu0 0
        %1661 = vmatpush1.bf16.msra.mxu0 %v1424
        %1662 = vmatprep.subr.bf16.mxu0 0
        %1663 = vmatpush1.bf16.msra.mxu0 %v1425
        %1664 = vmatprep.subr.bf16.mxu0 0
        %1665 = vmatpush1.bf16.msra.mxu0 %v1426
        %1666 = vmatprep.subr.bf16.mxu0 0
        %1667 = vmatpush1.bf16.msra.mxu0 %v1427
        %1668 = vmatprep.subr.bf16.mxu0 0
        %1669 = vmatpush1.bf16.msra.mxu0 %v1428
        %1670 = vmatprep.subr.bf16.mxu0 0
        %1671 = vmatpush1.bf16.msra.mxu0 %v1429
        %1672 = vmatprep.subr.bf16.mxu0 0
        %1673 = vmatpush1.bf16.msra.mxu0 %v1430
        %1674 = vmatprep.mubr.bf16.mxu0 %v1086
        %1675 = vmatmul.mubr.bf16.gmra.mrb[0].mxu0 %v1085
        %v1676 = vpop.f32.mrb[0].mxu0
        %v1677 = vadd.f32 %v1628, %v1676
        %v1678 = vpop.f32.mrb[0].mxu0
        %v1679 = vpop.f32.mrb[0].mxu0
        %v1680 = vadd.f32 %v1631, %v1679
        %v1681 = vpop.f32.mrb[0].mxu0
        %1682 = vmatprep.mubr.bf16.mxu0 %v1094
        %1683 = vmatmul.mubr.bf16.gmra.mrb[0].mxu0 %v1093
        %v1684 = vpop.f32.mrb[0].mxu0
        %v1685 = vadd.f32 %v1636, %v1684
        %v1686 = vpop.f32.mrb[0].mxu0
        %v1687 = vpop.f32.mrb[0].mxu0
        %v1688 = vadd.f32 %v1639, %v1687
        %v1689 = vpop.f32.mrb[0].mxu0
        %1690 = vdwg.mxu0
        %v1691 = vadd.f32 %v883, %v1677
        %v1692 = vadd.f32 %v884, %v1680
        %v1693 = vadd.f32 %v885, %v1685
        %v1694 = vadd.f32 %v886, %v1688
        %1695 = vst [vmem:[#allocation2] sm:$0xff] %v1691
        %1696 = vst [vmem:[#allocation2 + $0x8] sm:$0xff] %v1692
        %1697 = vst [vmem:[#allocation2 + $0x10] sm:$0xff] %v1693
        %1698 = vst [vmem:[#allocation2 + $0x18] sm:$0xff] %v1694
        %p1699 = scmp.eq.s32.totalorder %s22, 1
        // Predicated region
        $region105: #{patchgan_forward.7} parent=91 // pred_check
          %p1700 = pneg %p1699
        $region106: #{patchgan_forward.7} parent=91 // pred_check_branch
          %1702 = sbr.rel (%p1700) target = $region108
        $region107: #{patchgan_forward.7} parent=91 // pred_region
          %v1703 = vld [vmem:[#allocation2] sm:$0xff]
          %v1704 = vld [vmem:[#allocation2 + $0x8] sm:$0xff]
          %v1705 = vld [vmem:[#allocation2 + $0x10] sm:$0xff]
          %v1706 = vld [vmem:[#allocation2 + $0x18] sm:$0xff]
          %v1707 = vld [vmem:[%s869] sm:$0x1]
          %v1709 = vlaneseq
          %v1710 = vshrl.u32 %v1709, 7
          %v1711 = vsub.s32 0, %v1710
          %v1712 = vrot.slane %v1707, %v1711
          %v1714 = vmul.f32 %v1703, %v1712
          %v1715 = vmul.f32 %v1704, %v1712
          %v1716 = vmul.f32 %v1705, %v1712
          %v1717 = vmul.f32 %v1706, %v1712
          %v1718 = vld [vmem:[%s872] sm:$0x1]
          %v1720 = vlaneseq
          %v1721 = vshrl.u32 %v1720, 7
          %v1722 = vsub.s32 0, %v1721
          %v1723 = vrot.slane %v1718, %v1722
          %v1725 = vadd.f32 %v1714, %v1723
          %v1726 = vadd.f32 %v1715, %v1723
          %v1727 = vadd.f32 %v1716, %v1723
          %v1728 = vadd.f32 %v1717, %v1723
          %vm1729 = vcmp.ge.f32.partialorder %v1725, 0.0
          %vm1730 = vcmp.ge.f32.partialorder %v1726, 0.0
          %vm1731 = vcmp.ge.f32.partialorder %v1727, 0.0
          %vm1732 = vcmp.ge.f32.partialorder %v1728, 0.0
          %v1733 = vmul.f32 %v1725, 0.2
          %v1734 = vmul.f32 %v1726, 0.2
          %v1735 = vmul.f32 %v1727, 0.2
          %v1736 = vmul.f32 %v1728, 0.2
          %v1737 = vsel %vm1729, %v1725, %v1733
          %v1738 = vsel %vm1730, %v1726, %v1734
          %v1739 = vsel %vm1731, %v1727, %v1735
          %v1740 = vsel %vm1732, %v1728, %v1736
          %1741 = vst [vmem:[%s863] sm:$0xff] %v1737
          %1742 = vst [vmem:[%s863 + $0x8] sm:$0xff] %v1738
          %1743 = vst [vmem:[%s863 + $0x10] sm:$0xff] %v1739
          %1744 = vst [vmem:[%s863 + $0x18] sm:$0xff] %v1740
        $region108: #{patchgan_forward.7} parent=91 // pred_fallthru
          _
        %s1745 = sand.u32 %s152, 1
        %s1746 = sand.u32 %s152, 1
        %s1747 = smul.addr %s1746, 32
        %s1748 = scalar_lea.vmem [#allocation5], %s1747
        // Predicated region
        $region109: #{patchgan_forward.7} parent=91 // pred_check
          %p1749 = pneg %p162
        $region110: #{patchgan_forward.7} parent=91 // pred_check_branch
          %1751 = sbr.rel (%p1749) target = $region112
        $region111: #{patchgan_forward.7} parent=91 // pred_region
          %s1752 = smul.u32 4, %s20
          %s1753 = smul.addr %s1752, 2
          %s1754 = sadd.s32 %s21, %s1753
          %s1755 = smul.addr %s1754, 8
          %s1756 = scalar_lea.vmem %s4, %s1755
          // Predicated region
          $region113: #{patchgan_forward.7} parent=111 // pred_check
            _
          $region114: #{patchgan_forward.7} parent=111 // pred_check_branch
            %1758 = sbr.rel (0) target = $region116
          $region115: #{patchgan_forward.7} parent=111 // pred_region
            // Predicated region
            $region117: #{patchgan_forward.7} parent=115 // pred_check
              _
            $region118: #{patchgan_forward.7} parent=115 // pred_check_branch
              %1760 = sbr.rel (0) target = $region120
            $region119: #{patchgan_forward.7} parent=115 // pred_region
              // Predicated region
              $region132: #{patchgan_forward.7} parent=119 // pred_check
                _
              $region133: #{patchgan_forward.7} parent=119 // pred_check_branch
                %1781 = sbr.rel (0) target = $region135
              $region134: #{patchgan_forward.7} parent=119 // pred_region
                loop: start=0, step=1, limit=1
                $region136: #{patchgan_forward.7} parent=134 // loop_pre_header
                  _
                $region137: #{patchgan_forward.7} parent=134 // loop_header
                  %s1783 = sphi 0, %s1787
                  %p1784 = scmp.ge.s32.totalorder %s1783, 1
                  %s1788 = sphi %s1748, %s1748
                  %s1789 = sphi %s1756, %s1756
                $region138: #{patchgan_forward.7} parent=134 // loop_header_branch
                  %1786 = sbr.rel (%p1784) target = $region142
                $region139: #{patchgan_forward.7} parent=134 // loop_body
                  %v1790 = vld [vmem:[%s1788] sm:$0xff]
                  %1791 = vst [vmem:[%s1789] sm:$0xff] %v1790
                  %v1792 = vld [vmem:[%s1788 + $0x8] sm:$0xff]
                  %1793 = vst [vmem:[%s1789 + $0x10] sm:$0xff] %v1792
                  %v1794 = vld [vmem:[%s1788 + $0x10] sm:$0xff]
                  %1795 = vst [vmem:[%s1789 + $0x20] sm:$0xff] %v1794
                  %v1796 = vld [vmem:[%s1788 + $0x18] sm:$0xff]
                  %1797 = vst [vmem:[%s1789 + $0x30] sm:$0xff] %v1796
                $region140: #{patchgan_forward.7} parent=134 // loop_footer
                  %s1787 = sadd.s32 1, %s1783
                $region141: #{patchgan_forward.7} parent=134 // loop_footer_branch
                  %1782 = sbr.rel target = $region137
                $region142: #{patchgan_forward.7} parent=134 // loop_exit
                  _
              $region135: #{patchgan_forward.7} parent=119 // pred_fallthru
                _
              // Predicated region
              $region143: #{patchgan_forward.7} parent=119 // pred_check
                _
              $region144: #{patchgan_forward.7} parent=119 // pred_check_branch
                %1799 = sbr.rel target = $region146
              $region145: #{patchgan_forward.7} parent=119 // pred_region
                _
              $region146: #{patchgan_forward.7} parent=119 // pred_fallthru
                _
            $region120: #{patchgan_forward.7} parent=115 // pred_fallthru
              _
            // Predicated region
            $region121: #{patchgan_forward.7} parent=115 // pred_check
              _
            $region122: #{patchgan_forward.7} parent=115 // pred_check_branch
              %1762 = sbr.rel target = $region124
            $region123: #{patchgan_forward.7} parent=115 // pred_region
              loop: start=0, step=1, limit=1
              $region125: #{patchgan_forward.7} parent=123 // loop_pre_header
                _
              $region126: #{patchgan_forward.7} parent=123 // loop_header
                %s1765 = sphi 0, %s1769
                %p1766 = scmp.ge.s32.totalorder %s1765, 1
                %s1770 = sphi %s1748, %s1748
                %s1771 = sphi %s1756, %s1756
              $region127: #{patchgan_forward.7} parent=123 // loop_header_branch
                %1768 = sbr.rel (%p1766) target = $region131
              $region128: #{patchgan_forward.7} parent=123 // loop_body
                %v1772 = vld [vmem:[%s1770] sm:$0xff]
                %1773 = vst [vmem:[%s1771] sm:$0xff] %v1772
                %v1774 = vld [vmem:[%s1770 + $0x8] sm:$0xff]
                %1775 = vst [vmem:[%s1771 + $0x10] sm:$0xff] %v1774
                %v1776 = vld [vmem:[%s1770 + $0x10] sm:$0xff]
                %1777 = vst [vmem:[%s1771 + $0x20] sm:$0xff] %v1776
                %v1778 = vld [vmem:[%s1770 + $0x18] sm:$0xff]
                %1779 = vst [vmem:[%s1771 + $0x30] sm:$0xff] %v1778
              $region129: #{patchgan_forward.7} parent=123 // loop_footer
                %s1769 = sadd.s32 1, %s1765
              $region130: #{patchgan_forward.7} parent=123 // loop_footer_branch
                %1764 = sbr.rel target = $region126
              $region131: #{patchgan_forward.7} parent=123 // loop_exit
                _
            $region124: #{patchgan_forward.7} parent=115 // pred_fallthru
              _
          $region116: #{patchgan_forward.7} parent=111 // pred_fallthru
            _
          %1800 = vnop
        $region112: #{patchgan_forward.7} parent=91 // pred_fallthru
          _
      $region92: #{patchgan_forward.7} parent=5 // pred_fallthru
        _
      %p1801 = scmp.le.s32.totalorder 2, %s10
      // Predicated region
      $region147: #{patchgan_forward.7} parent=5 // pred_check
        %p1802 = pneg %p1801
      $region148: #{patchgan_forward.7} parent=5 // pred_check_branch
        %1804 = sbr.rel (%p1802) target = $region150
      $region149: #{patchgan_forward.7} parent=5 // pred_region
        %s1805 = ssub.s32 %s10, 2
        // Predicated region
        $region151: #{patchgan_forward.7} parent=149 // pred_check
          %p1806 = pneg %p168
        $region152: #{patchgan_forward.7} parent=149 // pred_check_branch
          %1808 = sbr.rel (%p1806) target = $region154
        $region153: #{patchgan_forward.7} parent=149 // pred_region
          %s1809 = sand.u32 %s153, 1
          %s1810 = sand.u32 %s153, 1
          %s1811 = smul.addr %s1810, 32
          %s1812 = scalar_lea.vmem [#allocation5], %s1811
        $region154: #{patchgan_forward.7} parent=149 // pred_fallthru
          _
      $region150: #{patchgan_forward.7} parent=5 // pred_fallthru
        _
    $region6: #{patchgan_forward.7} parent=1 // loop_footer
      %s14 = sadd.s32 1, %s10
    $region7: #{patchgan_forward.7} parent=1 // loop_footer_branch
      %9 = sbr.rel target = $region3
    $region8: #{patchgan_forward.7} parent=1 // loop_exit
      _

// kernel: patchgan_forward.8
$region0: #{patchgan_forward.8}
  #allocation0 [shape = 'u32[]', space=smem, size = 0x4, offset = 0x4, fixed_abs, tag = 'smem constant byte address 0x4 - core index']
  #allocation1 [shape = 'u32[144,128]{1,0:T(1,128)}', space=vmem, size = 0x12000, scoped, tag = 'internal scratch']
  #allocation2 [shape = 'f32[32,128]{1,0:T(8,128)}', space=vmem, size = 0x4000, scoped, tag = 'scratch operand']
  %s0 = inlined_call_operand.vmem [shape: bf16[18,4096], index: 0, kind: input, shape index: {}]
  %s1 = inlined_call_operand.vmem [shape: bf16[4096,512], index: 1, kind: input, shape index: {}]
  %s2 = inlined_call_operand.vmem [shape: f32[1,512], index: 2, kind: input, shape index: {}]
  %s3 = inlined_call_operand.vmem [shape: f32[1,512], index: 3, kind: input, shape index: {}]
  %s4 = inlined_call_operand.vmem [shape: f32[18,512], index: 4, kind: output, shape index: {}]
  %s5 = sld [smem:[#allocation0]]
  $region176: #{patchgan_forward.8} parent=0
    _
  %s7 = ssub.s32 1, %s5
  %s8 = scalar_select 0, %s7, %s5
  $region1: #{patchgan_forward.8} parent=0
    #allocation3 [shape = 'u8[131072]{0}', space=vmem, size = 0x20000, scoped, tag = 'input window, operand 0']
    #allocation4 [shape = 'u8[524288]{0}', space=vmem, size = 0x80000, scoped, tag = 'input window, operand 1']
    #allocation5 [shape = 'u8[32768]{0}', space=vmem, size = 0x8000, scoped, tag = 'output window, operand 0']
    loop: start=0, step=1, limit=18
    $region2: #{patchgan_forward.8} parent=1 // loop_pre_header
      _
    $region3: #{patchgan_forward.8} parent=1 // loop_header
      %s10 = sphi 0, %s14
      %p11 = scmp.ge.s32.totalorder %s10, 18
      %s17 = sphi 0, %s36
      %s18 = sphi 0, %s32
      %s19 = sphi 0, %s28
      %s20 = sphi 0, %s17
      %s21 = sphi 0, %s18
      %s22 = sphi 0, %s19
      %s23 = sphi 0, %s20
      %s24 = sphi 0, %s21
      %s25 = sphi 0, %s22
      %s41 = sphi 0, %s43
      %s44 = sphi 0, %s41
      %s45 = sphi 0, %s44
      %s61 = sphi 0, %s45
      %s69 = sphi 0, %s71
      %s72 = sphi 0, %s69
      %s73 = sphi 0, %s72
      %s89 = sphi 0, %s73
      %s95 = sphi 0, %s97
      %s98 = sphi 0, %s95
      %s99 = sphi 0, %s98
      %s115 = sphi 0, %s99
      %s121 = sphi 0, %s123
      %s124 = sphi 0, %s121
      %s125 = sphi 0, %s124
      %s141 = sphi 0, %s125
      %s149 = sphi 0, %s151
      %s152 = sphi 0, %s149
      %s153 = sphi 0, %s152
      %s169 = sphi 0, %s153
    $region4: #{patchgan_forward.8} parent=1 // loop_header_branch
      %13 = sbr.rel (%p11) target = $region8
    $region5: #{patchgan_forward.8} parent=1 // loop_body
      %s15 = ssub.s32 %s10, 1
      %s16 = ssub.s32 %s10, 2
      %s26 = sadd.s32 1, %s19
      %p27 = scmp.ge.s32.totalorder %s26, 4
      %s28 = scalar_select %p27, 0, %s26
      %s29 = sadd.s32 1, %s18
      %s30 = scalar_select %p27, %s29, %s18
      %p31 = scmp.ge.s32.totalorder %s30, 4
      %s32 = scalar_select %p31, 0, %s30
      %s33 = sadd.s32 1, %s17
      %s34 = scalar_select %p31, %s33, %s17
      %p35 = scmp.ge.s32.totalorder %s34, 1
      %s36 = scalar_select %p35, 0, %s34
      %s37 = ssub.s32 %s17, %s36
      %s38 = ssub.s32 %s19, %s28
      %s39 = sor.u32 %s37, %s38
      %p40 = scmp.eq.s32.totalorder %s39, 0
      %s42 = sadd.s32 %s41, 1
      %s43 = scalar_select %p40, %s41, %s42
      %p46 = pneg %p40
      %p47 = scmp.eq.s32.totalorder %s10, 15
      %p48 = por %p46, %p47
      %p49 = scmp.ne.s32.totalorder %s41, %s44
      %p50 = scmp.eq.s32.totalorder %s10, 0
      %p51 = por %p49, %p50
      %p52 = scmp.ne.s32.totalorder %s41, %s44
      %p53 = scmp.eq.s32.totalorder %s15, 15
      %p54 = por %p52, %p53
      %p55 = scmp.ne.s32.totalorder %s44, %s45
      %p56 = scmp.eq.s32.totalorder %s15, 0
      %p57 = por %p55, %p56
      %p58 = scmp.ne.s32.totalorder %s44, %s45
      %p59 = scmp.eq.s32.totalorder %s16, 15
      %p60 = por %p58, %p59
      %p62 = scmp.ne.s32.totalorder %s45, %s61
      %p63 = scmp.eq.s32.totalorder %s16, 0
      %p64 = por %p62, %p63
      %s65 = ssub.s32 %s19, %s28
      %s66 = ssub.s32 %s18, %s32
      %s67 = sor.u32 %s65, %s66
      %p68 = scmp.eq.s32.totalorder %s67, 0
      %s70 = sadd.s32 %s69, 1
      %s71 = scalar_select %p68, %s69, %s70
      %p74 = pneg %p68
      %p75 = scmp.eq.s32.totalorder %s10, 15
      %p76 = por %p74, %p75
      %p77 = scmp.ne.s32.totalorder %s69, %s72
      %p78 = scmp.eq.s32.totalorder %s10, 0
      %p79 = por %p77, %p78
      %p80 = scmp.ne.s32.totalorder %s69, %s72
      %p81 = scmp.eq.s32.totalorder %s15, 15
      %p82 = por %p80, %p81
      %p83 = scmp.ne.s32.totalorder %s72, %s73
      %p84 = scmp.eq.s32.totalorder %s15, 0
      %p85 = por %p83, %p84
      %p86 = scmp.ne.s32.totalorder %s72, %s73
      %p87 = scmp.eq.s32.totalorder %s16, 15
      %p88 = por %p86, %p87
      %p90 = scmp.ne.s32.totalorder %s73, %s89
      %p91 = scmp.eq.s32.totalorder %s16, 0
      %p92 = por %p90, %p91
      %s93 = ssub.s32 %s18, %s32
      %p94 = scmp.eq.s32.totalorder %s93, 0
      %s96 = sadd.s32 %s95, 1
      %s97 = scalar_select %p94, %s95, %s96
      %p100 = pneg %p94
      %p101 = scmp.eq.s32.totalorder %s10, 15
      %p102 = por %p100, %p101
      %p103 = scmp.ne.s32.totalorder %s95, %s98
      %p104 = scmp.eq.s32.totalorder %s10, 0
      %p105 = por %p103, %p104
      %p106 = scmp.ne.s32.totalorder %s95, %s98
      %p107 = scmp.eq.s32.totalorder %s15, 15
      %p108 = por %p106, %p107
      %p109 = scmp.ne.s32.totalorder %s98, %s99
      %p110 = scmp.eq.s32.totalorder %s15, 0
      %p111 = por %p109, %p110
      %p112 = scmp.ne.s32.totalorder %s98, %s99
      %p113 = scmp.eq.s32.totalorder %s16, 15
      %p114 = por %p112, %p113
      %p116 = scmp.ne.s32.totalorder %s99, %s115
      %p117 = scmp.eq.s32.totalorder %s16, 0
      %p118 = por %p116, %p117
      %s119 = ssub.s32 %s18, %s32
      %p120 = scmp.eq.s32.totalorder %s119, 0
      %s122 = sadd.s32 %s121, 1
      %s123 = scalar_select %p120, %s121, %s122
      %p126 = pneg %p120
      %p127 = scmp.eq.s32.totalorder %s10, 15
      %p128 = por %p126, %p127
      %p129 = scmp.ne.s32.totalorder %s121, %s124
      %p130 = scmp.eq.s32.totalorder %s10, 0
      %p131 = por %p129, %p130
      %p132 = scmp.ne.s32.totalorder %s121, %s124
      %p133 = scmp.eq.s32.totalorder %s15, 15
      %p134 = por %p132, %p133
      %p135 = scmp.ne.s32.totalorder %s124, %s125
      %p136 = scmp.eq.s32.totalorder %s15, 0
      %p137 = por %p135, %p136
      %p138 = scmp.ne.s32.totalorder %s124, %s125
      %p139 = scmp.eq.s32.totalorder %s16, 15
      %p140 = por %p138, %p139
      %p142 = scmp.ne.s32.totalorder %s125, %s141
      %p143 = scmp.eq.s32.totalorder %s16, 0
      %p144 = por %p142, %p143
      %s145 = ssub.s32 %s17, %s36
      %s146 = ssub.s32 %s18, %s32
      %s147 = sor.u32 %s145, %s146
      %p148 = scmp.eq.s32.totalorder %s147, 0
      %s150 = sadd.s32 %s149, 1
      %s151 = scalar_select %p148, %s149, %s150
      %p154 = pneg %p148
      %p155 = scmp.eq.s32.totalorder %s10, 15
      %p156 = por %p154, %p155
      %p157 = scmp.ne.s32.totalorder %s149, %s152
      %p158 = scmp.eq.s32.totalorder %s10, 0
      %p159 = por %p157, %p158
      %p160 = scmp.ne.s32.totalorder %s149, %s152
      %p161 = scmp.eq.s32.totalorder %s15, 15
      %p162 = por %p160, %p161
      %p163 = scmp.ne.s32.totalorder %s152, %s153
      %p164 = scmp.eq.s32.totalorder %s15, 0
      %p165 = por %p163, %p164
      %p166 = scmp.ne.s32.totalorder %s152, %s153
      %p167 = scmp.eq.s32.totalorder %s16, 15
      %p168 = por %p166, %p167
      %p170 = scmp.ne.s32.totalorder %s153, %s169
      %p171 = scmp.eq.s32.totalorder %s16, 0
      %p172 = por %p170, %p171
      %p173 = scmp.le.s32.totalorder 1, %s10
      %p174 = scmp.lt.s32.totalorder %s10, 17
      %p175 = pnand %p173, %p174
      %p176 = pneg %p175
      // Predicated region
      $region9: #{patchgan_forward.8} parent=5 // pred_check
        _
      $region10: #{patchgan_forward.8} parent=5 // pred_check_branch
        %178 = sbr.rel (%p175) target = $region12
      $region11: #{patchgan_forward.8} parent=5 // pred_region
        %s179 = ssub.s32 %s10, 1
      $region12: #{patchgan_forward.8} parent=5 // pred_fallthru
        _
      %p180 = scmp.lt.s32.totalorder %s10, 16
      // Predicated region
      $region13: #{patchgan_forward.8} parent=5 // pred_check
        %p181 = pneg %p180
      $region14: #{patchgan_forward.8} parent=5 // pred_check_branch
        %183 = sbr.rel (%p181) target = $region16
      $region15: #{patchgan_forward.8} parent=5 // pred_region
        // Predicated region
        $region17: #{patchgan_forward.8} parent=15 // pred_check
          %p184 = pneg %p51
        $region18: #{patchgan_forward.8} parent=15 // pred_check_branch
          %186 = sbr.rel (%p184) target = $region20
        $region19: #{patchgan_forward.8} parent=15 // pred_region
          %s187 = sand.u32 %s41, 1
          %s188 = sand.u32 %s41, 1
          %s189 = smul.addr %s188, 128
          %s190 = scalar_lea.vmem [#allocation3], %s189
          %s191 = smul.u32 4, %s17
          %s192 = smul.u32 8, %s19
          %s193 = ssub.s32 3, %s191
          %s194 = smul.u32 64, %s193
          %s195 = smul.u32 %s194, 8
          %p196 = scmp.ne.s32.totalorder 0, %s195
          %s197 = smul.addr %s191, 32
          %s198 = sadd.s32 %s192, %s197
          %s199 = smul.addr %s198, 4
          %s200 = scalar_lea.vmem %s0, %s199
          // Predicated region
          $region21: #{patchgan_forward.8} parent=19 // pred_check
            %p201 = pneg %p196
          $region22: #{patchgan_forward.8} parent=19 // pred_check_branch
            %203 = sbr.rel (%p201) target = $region24
          $region23: #{patchgan_forward.8} parent=19 // pred_region
            // Predicated region
            $region25: #{patchgan_forward.8} parent=23 // pred_check
              _
            $region26: #{patchgan_forward.8} parent=23 // pred_check_branch
              %205 = sbr.rel (0) target = $region28
            $region27: #{patchgan_forward.8} parent=23 // pred_region
              %s206 = sdiv.u32.pop %s193, 3
              %s207 = srem.u32.pop %s193, 3
              // While loop
              $region29: #{patchgan_forward.8} parent=27 // loop_pre_header
                _
              $region30: #{patchgan_forward.8} parent=27 // loop_header
                %s209 = sphi 0, %s211
                %p210 = scmp.ge.s32.totalorder %s209, %s206
                %s214 = sphi 0, %s243
                %s215 = sphi %s200, %s246
                %s216 = sphi %s190, %s247
              $region31: #{patchgan_forward.8} parent=27 // loop_header_branch
                %213 = sbr.rel (%p210) target = $region35
              $region32: #{patchgan_forward.8} parent=27 // loop_body
                %v217 = vld [vmem:[%s215] sm:$0xff]
                %218 = vst [vmem:[%s216] sm:$0xff] %v217
                %v219 = vld [vmem:[%s215 + $0x80] sm:$0xff]
                %220 = vst [vmem:[%s216 + $0x20] sm:$0xff] %v219
                %v221 = vld [vmem:[%s215 + $0x100] sm:$0xff]
                %222 = vst [vmem:[%s216 + $0x40] sm:$0xff] %v221
                %v223 = vld [vmem:[%s215 + $0x8] sm:$0xff]
                %224 = vst [vmem:[%s216 + $0x8] sm:$0xff] %v223
                %v225 = vld [vmem:[%s215 + $0x88] sm:$0xff]
                %226 = vst [vmem:[%s216 + $0x28] sm:$0xff] %v225
                %v227 = vld [vmem:[%s215 + $0x108] sm:$0xff]
                %228 = vst [vmem:[%s216 + $0x48] sm:$0xff] %v227
                %v229 = vld [vmem:[%s215 + $0x10] sm:$0xff]
                %230 = vst [vmem:[%s216 + $0x10] sm:$0xff] %v229
                %v231 = vld [vmem:[%s215 + $0x90] sm:$0xff]
                %232 = vst [vmem:[%s216 + $0x30] sm:$0xff] %v231
                %v233 = vld [vmem:[%s215 + $0x110] sm:$0xff]
                %234 = vst [vmem:[%s216 + $0x50] sm:$0xff] %v233
                %v235 = vld [vmem:[%s215 + $0x18] sm:$0xff]
                %236 = vst [vmem:[%s216 + $0x18] sm:$0xff] %v235
                %v237 = vld [vmem:[%s215 + $0x98] sm:$0xff]
                %238 = vst [vmem:[%s216 + $0x38] sm:$0xff] %v237
                %v239 = vld [vmem:[%s215 + $0x118] sm:$0xff]
                %240 = vst [vmem:[%s216 + $0x58] sm:$0xff] %v239
                %s241 = sadd.s32 1, %s214
                %p242 = scmp.ge.s32.totalorder %s241, %s206
                %s243 = scalar_select %p242, 0, %s241
                %s244 = smul.u32 %s243, 384
                %s245 = smul.u32 %s243, 96
                %s246 = scalar_lea.vmem %s200, %s244
                %s247 = scalar_lea.vmem %s190, %s245 [#allocation3]
              $region33: #{patchgan_forward.8} parent=27 // loop_footer
                %s211 = sadd.s32 %s209, 1
              $region34: #{patchgan_forward.8} parent=27 // loop_footer_branch
                %208 = sbr.rel target = $region30
              $region35: #{patchgan_forward.8} parent=27 // loop_exit
                _
              %s248 = sdiv.u32.pop %s193, 3
              %s249 = srem.u32.pop %s193, 3
              %s250 = smul.u32 %s248, 3
              %s251 = smul.u32 128, %s250
              %s252 = scalar_lea.vmem %s200, %s251
              %s253 = smul.u32 32, %s250
              %s254 = scalar_lea.vmem %s190, %s253 [#allocation3]
              // While loop
              $region36: #{patchgan_forward.8} parent=27 // loop_pre_header
                _
              $region37: #{patchgan_forward.8} parent=27 // loop_header
                %s256 = sphi 0, %s258
                %p257 = scmp.ge.s32.totalorder %s256, %s249
                %s261 = sphi 0, %s274
                %s262 = sphi %s252, %s277
                %s263 = sphi %s254, %s278
              $region38: #{patchgan_forward.8} parent=27 // loop_header_branch
                %260 = sbr.rel (%p257) target = $region42
              $region39: #{patchgan_forward.8} parent=27 // loop_body
                %v264 = vld [vmem:[%s262] sm:$0xff]
                %265 = vst [vmem:[%s263] sm:$0xff] %v264
                %v266 = vld [vmem:[%s262 + $0x8] sm:$0xff]
                %267 = vst [vmem:[%s263 + $0x8] sm:$0xff] %v266
                %v268 = vld [vmem:[%s262 + $0x10] sm:$0xff]
                %269 = vst [vmem:[%s263 + $0x10] sm:$0xff] %v268
                %v270 = vld [vmem:[%s262 + $0x18] sm:$0xff]
                %271 = vst [vmem:[%s263 + $0x18] sm:$0xff] %v270
                %s272 = sadd.s32 1, %s261
                %p273 = scmp.ge.s32.totalorder %s272, %s249
                %s274 = scalar_select %p273, 0, %s272
                %s275 = smul.u32 %s274, 128
                %s276 = smul.u32 %s274, 32
                %s277 = scalar_lea.vmem %s252, %s275
                %s278 = scalar_lea.vmem %s254, %s276 [#allocation3]
              $region40: #{patchgan_forward.8} parent=27 // loop_footer
                %s258 = sadd.s32 %s256, 1
              $region41: #{patchgan_forward.8} parent=27 // loop_footer_branch
                %255 = sbr.rel target = $region37
              $region42: #{patchgan_forward.8} parent=27 // loop_exit
                _
            $region28: #{patchgan_forward.8} parent=23 // pred_fallthru
              _
            // Predicated region
            $region43: #{patchgan_forward.8} parent=23 // pred_check
              _
            $region44: #{patchgan_forward.8} parent=23 // pred_check_branch
              %280 = sbr.rel target = $region46
            $region45: #{patchgan_forward.8} parent=23 // pred_region
              _
            $region46: #{patchgan_forward.8} parent=23 // pred_fallthru
              _
          $region24: #{patchgan_forward.8} parent=19 // pred_fallthru
            _
          %281 = vnop
        $region20: #{patchgan_forward.8} parent=15 // pred_fallthru
          _
        // Predicated region
        $region47: #{patchgan_forward.8} parent=15 // pred_check
          %p282 = pneg %p79
        $region48: #{patchgan_forward.8} parent=15 // pred_check_branch
          %284 = sbr.rel (%p282) target = $region50
        $region49: #{patchgan_forward.8} parent=15 // pred_region
          %s285 = sand.u32 %s69, 1
          %s286 = sand.u32 %s69, 1
          %s287 = smul.addr %s286, 512
          %s288 = scalar_lea.vmem [#allocation4], %s287
          %s289 = smul.u32 128, %s19
          %s290 = smul.addr %s289, 4
          %s291 = sadd.s32 %s18, %s290
          %s292 = smul.addr %s291, 4
          %s293 = scalar_lea.vmem %s1, %s292
          // Predicated region
          $region51: #{patchgan_forward.8} parent=49 // pred_check
            _
          $region52: #{patchgan_forward.8} parent=49 // pred_check_branch
            %295 = sbr.rel (0) target = $region54
          $region53: #{patchgan_forward.8} parent=49 // pred_region
            // Predicated region
            $region55: #{patchgan_forward.8} parent=53 // pred_check
              _
            $region56: #{patchgan_forward.8} parent=53 // pred_check_branch
              %297 = sbr.rel target = $region58
            $region57: #{patchgan_forward.8} parent=53 // pred_region
              // Predicated region
              $region70: #{patchgan_forward.8} parent=57 // pred_check
                _
              $region71: #{patchgan_forward.8} parent=57 // pred_check_branch
                %566 = sbr.rel (0) target = $region73
              $region72: #{patchgan_forward.8} parent=57 // pred_region
                loop: start=0, step=1, limit=1
                $region74: #{patchgan_forward.8} parent=72 // loop_pre_header
                  _
                $region75: #{patchgan_forward.8} parent=72 // loop_header
                  %s568 = sphi 0, %s572
                  %p569 = scmp.ge.s32.totalorder %s568, 1
                  %s573 = sphi %s293, %s293
                  %s574 = sphi %s288, %s288
                $region76: #{patchgan_forward.8} parent=72 // loop_header_branch
                  %571 = sbr.rel (%p569) target = $region80
                $region77: #{patchgan_forward.8} parent=72 // loop_body
                  _
                $region78: #{patchgan_forward.8} parent=72 // loop_footer
                  %s572 = sadd.s32 1, %s568
                $region79: #{patchgan_forward.8} parent=72 // loop_footer_branch
                  %567 = sbr.rel target = $region75
                $region80: #{patchgan_forward.8} parent=72 // loop_exit
                  _
                loop: start=0, step=1, limit=1
                $region81: #{patchgan_forward.8} parent=72 // loop_pre_header
                  _
                $region82: #{patchgan_forward.8} parent=72 // loop_header
                  %s577 = sphi 0, %s581
                  %p578 = scmp.ge.s32.totalorder %s577, 1
                  %s582 = sphi %s293, %s293
                  %s583 = sphi %s288, %s288
                $region83: #{patchgan_forward.8} parent=72 // loop_header_branch
                  %580 = sbr.rel (%p578) target = $region87
                $region84: #{patchgan_forward.8} parent=72 // loop_body
                  %v584 = vld [vmem:[%s582] sm:$0xf]
                  %585 = vst [vmem:[%s583] sm:$0xf] %v584
                  %v586 = vld [vmem:[%s582 + $0x10] sm:$0xf]
                  %587 = vst [vmem:[%s583 + $0x4] sm:$0xf] %v586
                  %v588 = vld [vmem:[%s582 + $0x20] sm:$0xf]
                  %589 = vst [vmem:[%s583 + $0x8] sm:$0xf] %v588
                  %v590 = vld [vmem:[%s582 + $0x30] sm:$0xf]
                  %591 = vst [vmem:[%s583 + $0xc] sm:$0xf] %v590
                  %v592 = vld [vmem:[%s582 + $0x40] sm:$0xf]
                  %593 = vst [vmem:[%s583 + $0x10] sm:$0xf] %v592
                  %v594 = vld [vmem:[%s582 + $0x50] sm:$0xf]
                  %595 = vst [vmem:[%s583 + $0x14] sm:$0xf] %v594
                  %v596 = vld [vmem:[%s582 + $0x60] sm:$0xf]
                  %597 = vst [vmem:[%s583 + $0x18] sm:$0xf] %v596
                  %v598 = vld [vmem:[%s582 + $0x70] sm:$0xf]
                  %599 = vst [vmem:[%s583 + $0x1c] sm:$0xf] %v598
                  %v600 = vld [vmem:[%s582 + $0x80] sm:$0xf]
                  %601 = vst [vmem:[%s583 + $0x20] sm:$0xf] %v600
                  %v602 = vld [vmem:[%s582 + $0x90] sm:$0xf]
                  %603 = vst [vmem:[%s583 + $0x24] sm:$0xf] %v602
                  %v604 = vld [vmem:[%s582 + $0xa0] sm:$0xf]
                  %605 = vst [vmem:[%s583 + $0x28] sm:$0xf] %v604
                  %v606 = vld [vmem:[%s582 + $0xb0] sm:$0xf]
                  %607 = vst [vmem:[%s583 + $0x2c] sm:$0xf] %v606
                  %v608 = vld [vmem:[%s582 + $0xc0] sm:$0xf]
                  %609 = vst [vmem:[%s583 + $0x30] sm:$0xf] %v608
                  %v610 = vld [vmem:[%s582 + $0xd0] sm:$0xf]
                  %611 = vst [vmem:[%s583 + $0x34] sm:$0xf] %v610
                  %v612 = vld [vmem:[%s582 + $0xe0] sm:$0xf]
                  %613 = vst [vmem:[%s583 + $0x38] sm:$0xf] %v612
                  %v614 = vld [vmem:[%s582 + $0xf0] sm:$0xf]
                  %615 = vst [vmem:[%s583 + $0x3c] sm:$0xf] %v614
                  %v616 = vld [vmem:[%s582 + $0x100] sm:$0xf]
                  %617 = vst [vmem:[%s583 + $0x40] sm:$0xf] %v616
                  %v618 = vld [vmem:[%s582 + $0x110] sm:$0xf]
                  %619 = vst [vmem:[%s583 + $0x44] sm:$0xf] %v618
                  %v620 = vld [vmem:[%s582 + $0x120] sm:$0xf]
                  %621 = vst [vmem:[%s583 + $0x48] sm:$0xf] %v620
                  %v622 = vld [vmem:[%s582 + $0x130] sm:$0xf]
                  %623 = vst [vmem:[%s583 + $0x4c] sm:$0xf] %v622
                  %v624 = vld [vmem:[%s582 + $0x140] sm:$0xf]
                  %625 = vst [vmem:[%s583 + $0x50] sm:$0xf] %v624
                  %v626 = vld [vmem:[%s582 + $0x150] sm:$0xf]
                  %627 = vst [vmem:[%s583 + $0x54] sm:$0xf] %v626
                  %v628 = vld [vmem:[%s582 + $0x160] sm:$0xf]
                  %629 = vst [vmem:[%s583 + $0x58] sm:$0xf] %v628
                  %v630 = vld [vmem:[%s582 + $0x170] sm:$0xf]
                  %631 = vst [vmem:[%s583 + $0x5c] sm:$0xf] %v630
                  %v632 = vld [vmem:[%s582 + $0x180] sm:$0xf]
                  %633 = vst [vmem:[%s583 + $0x60] sm:$0xf] %v632
                  %v634 = vld [vmem:[%s582 + $0x190] sm:$0xf]
                  %635 = vst [vmem:[%s583 + $0x64] sm:$0xf] %v634
                  %v636 = vld [vmem:[%s582 + $0x1a0] sm:$0xf]
                  %637 = vst [vmem:[%s583 + $0x68] sm:$0xf] %v636
                  %v638 = vld [vmem:[%s582 + $0x1b0] sm:$0xf]
                  %639 = vst [vmem:[%s583 + $0x6c] sm:$0xf] %v638
                  %v640 = vld [vmem:[%s582 + $0x1c0] sm:$0xf]
                  %641 = vst [vmem:[%s583 + $0x70] sm:$0xf] %v640
                  %v642 = vld [vmem:[%s582 + $0x1d0] sm:$0xf]
                  %643 = vst [vmem:[%s583 + $0x74] sm:$0xf] %v642
                  %v644 = vld [vmem:[%s582 + $0x1e0] sm:$0xf]
                  %645 = vst [vmem:[%s583 + $0x78] sm:$0xf] %v644
                  %v646 = vld [vmem:[%s582 + $0x1f0] sm:$0xf]
                  %647 = vst [vmem:[%s583 + $0x7c] sm:$0xf] %v646
                  %v648 = vld [vmem:[%s582 + $0x200] sm:$0xf]
                  %649 = vst [vmem:[%s583 + $0x80] sm:$0xf] %v648
                  %v650 = vld [vmem:[%s582 + $0x210] sm:$0xf]
                  %651 = vst [vmem:[%s583 + $0x84] sm:$0xf] %v650
                  %v652 = vld [vmem:[%s582 + $0x220] sm:$0xf]
                  %653 = vst [vmem:[%s583 + $0x88] sm:$0xf] %v652
                  %v654 = vld [vmem:[%s582 + $0x230] sm:$0xf]
                  %655 = vst [vmem:[%s583 + $0x8c] sm:$0xf] %v654
                  %v656 = vld [vmem:[%s582 + $0x240] sm:$0xf]
                  %657 = vst [vmem:[%s583 + $0x90] sm:$0xf] %v656
                  %v658 = vld [vmem:[%s582 + $0x250] sm:$0xf]
                  %659 = vst [vmem:[%s583 + $0x94] sm:$0xf] %v658
                  %v660 = vld [vmem:[%s582 + $0x260] sm:$0xf]
                  %661 = vst [vmem:[%s583 + $0x98] sm:$0xf] %v660
                  %v662 = vld [vmem:[%s582 + $0x270] sm:$0xf]
                  %663 = vst [vmem:[%s583 + $0x9c] sm:$0xf] %v662
                  %v664 = vld [vmem:[%s582 + $0x280] sm:$0xf]
                  %665 = vst [vmem:[%s583 + $0xa0] sm:$0xf] %v664
                  %v666 = vld [vmem:[%s582 + $0x290] sm:$0xf]
                  %667 = vst [vmem:[%s583 + $0xa4] sm:$0xf] %v666
                  %v668 = vld [vmem:[%s582 + $0x2a0] sm:$0xf]
                  %669 = vst [vmem:[%s583 + $0xa8] sm:$0xf] %v668
                  %v670 = vld [vmem:[%s582 + $0x2b0] sm:$0xf]
                  %671 = vst [vmem:[%s583 + $0xac] sm:$0xf] %v670
                  %v672 = vld [vmem:[%s582 + $0x2c0] sm:$0xf]
                  %673 = vst [vmem:[%s583 + $0xb0] sm:$0xf] %v672
                  %v674 = vld [vmem:[%s582 + $0x2d0] sm:$0xf]
                  %675 = vst [vmem:[%s583 + $0xb4] sm:$0xf] %v674
                  %v676 = vld [vmem:[%s582 + $0x2e0] sm:$0xf]
                  %677 = vst [vmem:[%s583 + $0xb8] sm:$0xf] %v676
                  %v678 = vld [vmem:[%s582 + $0x2f0] sm:$0xf]
                  %679 = vst [vmem:[%s583 + $0xbc] sm:$0xf] %v678
                  %v680 = vld [vmem:[%s582 + $0x300] sm:$0xf]
                  %681 = vst [vmem:[%s583 + $0xc0] sm:$0xf] %v680
                  %v682 = vld [vmem:[%s582 + $0x310] sm:$0xf]
                  %683 = vst [vmem:[%s583 + $0xc4] sm:$0xf] %v682
                  %v684 = vld [vmem:[%s582 + $0x320] sm:$0xf]
                  %685 = vst [vmem:[%s583 + $0xc8] sm:$0xf] %v684
                  %v686 = vld [vmem:[%s582 + $0x330] sm:$0xf]
                  %687 = vst [vmem:[%s583 + $0xcc] sm:$0xf] %v686
                  %v688 = vld [vmem:[%s582 + $0x340] sm:$0xf]
                  %689 = vst [vmem:[%s583 + $0xd0] sm:$0xf] %v688
                  %v690 = vld [vmem:[%s582 + $0x350] sm:$0xf]
                  %691 = vst [vmem:[%s583 + $0xd4] sm:$0xf] %v690
                  %v692 = vld [vmem:[%s582 + $0x360] sm:$0xf]
                  %693 = vst [vmem:[%s583 + $0xd8] sm:$0xf] %v692
                  %v694 = vld [vmem:[%s582 + $0x370] sm:$0xf]
                  %695 = vst [vmem:[%s583 + $0xdc] sm:$0xf] %v694
                  %v696 = vld [vmem:[%s582 + $0x380] sm:$0xf]
                  %697 = vst [vmem:[%s583 + $0xe0] sm:$0xf] %v696
                  %v698 = vld [vmem:[%s582 + $0x390] sm:$0xf]
                  %699 = vst [vmem:[%s583 + $0xe4] sm:$0xf] %v698
                  %v700 = vld [vmem:[%s582 + $0x3a0] sm:$0xf]
                  %701 = vst [vmem:[%s583 + $0xe8] sm:$0xf] %v700
                  %v702 = vld [vmem:[%s582 + $0x3b0] sm:$0xf]
                  %703 = vst [vmem:[%s583 + $0xec] sm:$0xf] %v702
                  %v704 = vld [vmem:[%s582 + $0x3c0] sm:$0xf]
                  %705 = vst [vmem:[%s583 + $0xf0] sm:$0xf] %v704
                  %v706 = vld [vmem:[%s582 + $0x3d0] sm:$0xf]
                  %707 = vst [vmem:[%s583 + $0xf4] sm:$0xf] %v706
                  %v708 = vld [vmem:[%s582 + $0x3e0] sm:$0xf]
                  %709 = vst [vmem:[%s583 + $0xf8] sm:$0xf] %v708
                  %v710 = vld [vmem:[%s582 + $0x3f0] sm:$0xf]
                  %711 = vst [vmem:[%s583 + $0xfc] sm:$0xf] %v710
                  %v712 = vld [vmem:[%s582 + $0x400] sm:$0xf]
                  %713 = vst [vmem:[%s583 + $0x100] sm:$0xf] %v712
                  %v714 = vld [vmem:[%s582 + $0x410] sm:$0xf]
                  %715 = vst [vmem:[%s583 + $0x104] sm:$0xf] %v714
                  %v716 = vld [vmem:[%s582 + $0x420] sm:$0xf]
                  %717 = vst [vmem:[%s583 + $0x108] sm:$0xf] %v716
                  %v718 = vld [vmem:[%s582 + $0x430] sm:$0xf]
                  %719 = vst [vmem:[%s583 + $0x10c] sm:$0xf] %v718
                  %v720 = vld [vmem:[%s582 + $0x440] sm:$0xf]
                  %721 = vst [vmem:[%s583 + $0x110] sm:$0xf] %v720
                  %v722 = vld [vmem:[%s582 + $0x450] sm:$0xf]
                  %723 = vst [vmem:[%s583 + $0x114] sm:$0xf] %v722
                  %v724 = vld [vmem:[%s582 + $0x460] sm:$0xf]
                  %725 = vst [vmem:[%s583 + $0x118] sm:$0xf] %v724
                  %v726 = vld [vmem:[%s582 + $0x470] sm:$0xf]
                  %727 = vst [vmem:[%s583 + $0x11c] sm:$0xf] %v726
                  %v728 = vld [vmem:[%s582 + $0x480] sm:$0xf]
                  %729 = vst [vmem:[%s583 + $0x120] sm:$0xf] %v728
                  %v730 = vld [vmem:[%s582 + $0x490] sm:$0xf]
                  %731 = vst [vmem:[%s583 + $0x124] sm:$0xf] %v730
                  %v732 = vld [vmem:[%s582 + $0x4a0] sm:$0xf]
                  %733 = vst [vmem:[%s583 + $0x128] sm:$0xf] %v732
                  %v734 = vld [vmem:[%s582 + $0x4b0] sm:$0xf]
                  %735 = vst [vmem:[%s583 + $0x12c] sm:$0xf] %v734
                  %v736 = vld [vmem:[%s582 + $0x4c0] sm:$0xf]
                  %737 = vst [vmem:[%s583 + $0x130] sm:$0xf] %v736
                  %v738 = vld [vmem:[%s582 + $0x4d0] sm:$0xf]
                  %739 = vst [vmem:[%s583 + $0x134] sm:$0xf] %v738
                  %v740 = vld [vmem:[%s582 + $0x4e0] sm:$0xf]
                  %741 = vst [vmem:[%s583 + $0x138] sm:$0xf] %v740
                  %v742 = vld [vmem:[%s582 + $0x4f0] sm:$0xf]
                  %743 = vst [vmem:[%s583 + $0x13c] sm:$0xf] %v742
                  %v744 = vld [vmem:[%s582 + $0x500] sm:$0xf]
                  %745 = vst [vmem:[%s583 + $0x140] sm:$0xf] %v744
                  %v746 = vld [vmem:[%s582 + $0x510] sm:$0xf]
                  %747 = vst [vmem:[%s583 + $0x144] sm:$0xf] %v746
                  %v748 = vld [vmem:[%s582 + $0x520] sm:$0xf]
                  %749 = vst [vmem:[%s583 + $0x148] sm:$0xf] %v748
                  %v750 = vld [vmem:[%s582 + $0x530] sm:$0xf]
                  %751 = vst [vmem:[%s583 + $0x14c] sm:$0xf] %v750
                  %v752 = vld [vmem:[%s582 + $0x540] sm:$0xf]
                  %753 = vst [vmem:[%s583 + $0x150] sm:$0xf] %v752
                  %v754 = vld [vmem:[%s582 + $0x550] sm:$0xf]
                  %755 = vst [vmem:[%s583 + $0x154] sm:$0xf] %v754
                  %v756 = vld [vmem:[%s582 + $0x560] sm:$0xf]
                  %757 = vst [vmem:[%s583 + $0x158] sm:$0xf] %v756
                  %v758 = vld [vmem:[%s582 + $0x570] sm:$0xf]
                  %759 = vst [vmem:[%s583 + $0x15c] sm:$0xf] %v758
                  %v760 = vld [vmem:[%s582 + $0x580] sm:$0xf]
                  %761 = vst [vmem:[%s583 + $0x160] sm:$0xf] %v760
                  %v762 = vld [vmem:[%s582 + $0x590] sm:$0xf]
                  %763 = vst [vmem:[%s583 + $0x164] sm:$0xf] %v762
                  %v764 = vld [vmem:[%s582 + $0x5a0] sm:$0xf]
                  %765 = vst [vmem:[%s583 + $0x168] sm:$0xf] %v764
                  %v766 = vld [vmem:[%s582 + $0x5b0] sm:$0xf]
                  %767 = vst [vmem:[%s583 + $0x16c] sm:$0xf] %v766
                  %v768 = vld [vmem:[%s582 + $0x5c0] sm:$0xf]
                  %769 = vst [vmem:[%s583 + $0x170] sm:$0xf] %v768
                  %v770 = vld [vmem:[%s582 + $0x5d0] sm:$0xf]
                  %771 = vst [vmem:[%s583 + $0x174] sm:$0xf] %v770
                  %v772 = vld [vmem:[%s582 + $0x5e0] sm:$0xf]
                  %773 = vst [vmem:[%s583 + $0x178] sm:$0xf] %v772
                  %v774 = vld [vmem:[%s582 + $0x5f0] sm:$0xf]
                  %775 = vst [vmem:[%s583 + $0x17c] sm:$0xf] %v774
                  %v776 = vld [vmem:[%s582 + $0x600] sm:$0xf]
                  %777 = vst [vmem:[%s583 + $0x180] sm:$0xf] %v776
                  %v778 = vld [vmem:[%s582 + $0x610] sm:$0xf]
                  %779 = vst [vmem:[%s583 + $0x184] sm:$0xf] %v778
                  %v780 = vld [vmem:[%s582 + $0x620] sm:$0xf]
                  %781 = vst [vmem:[%s583 + $0x188] sm:$0xf] %v780
                  %v782 = vld [vmem:[%s582 + $0x630] sm:$0xf]
                  %783 = vst [vmem:[%s583 + $0x18c] sm:$0xf] %v782
                  %v784 = vld [vmem:[%s582 + $0x640] sm:$0xf]
                  %785 = vst [vmem:[%s583 + $0x190] sm:$0xf] %v784
                  %v786 = vld [vmem:[%s582 + $0x650] sm:$0xf]
                  %787 = vst [vmem:[%s583 + $0x194] sm:$0xf] %v786
                  %v788 = vld [vmem:[%s582 + $0x660] sm:$0xf]
                  %789 = vst [vmem:[%s583 + $0x198] sm:$0xf] %v788
                  %v790 = vld [vmem:[%s582 + $0x670] sm:$0xf]
                  %791 = vst [vmem:[%s583 + $0x19c] sm:$0xf] %v790
                  %v792 = vld [vmem:[%s582 + $0x680] sm:$0xf]
                  %793 = vst [vmem:[%s583 + $0x1a0] sm:$0xf] %v792
                  %v794 = vld [vmem:[%s582 + $0x690] sm:$0xf]
                  %795 = vst [vmem:[%s583 + $0x1a4] sm:$0xf] %v794
                  %v796 = vld [vmem:[%s582 + $0x6a0] sm:$0xf]
                  %797 = vst [vmem:[%s583 + $0x1a8] sm:$0xf] %v796
                  %v798 = vld [vmem:[%s582 + $0x6b0] sm:$0xf]
                  %799 = vst [vmem:[%s583 + $0x1ac] sm:$0xf] %v798
                  %v800 = vld [vmem:[%s582 + $0x6c0] sm:$0xf]
                  %801 = vst [vmem:[%s583 + $0x1b0] sm:$0xf] %v800
                  %v802 = vld [vmem:[%s582 + $0x6d0] sm:$0xf]
                  %803 = vst [vmem:[%s583 + $0x1b4] sm:$0xf] %v802
                  %v804 = vld [vmem:[%s582 + $0x6e0] sm:$0xf]
                  %805 = vst [vmem:[%s583 + $0x1b8] sm:$0xf] %v804
                  %v806 = vld [vmem:[%s582 + $0x6f0] sm:$0xf]
                  %807 = vst [vmem:[%s583 + $0x1bc] sm:$0xf] %v806
                  %v808 = vld [vmem:[%s582 + $0x700] sm:$0xf]
                  %809 = vst [vmem:[%s583 + $0x1c0] sm:$0xf] %v808
                  %v810 = vld [vmem:[%s582 + $0x710] sm:$0xf]
                  %811 = vst [vmem:[%s583 + $0x1c4] sm:$0xf] %v810
                  %v812 = vld [vmem:[%s582 + $0x720] sm:$0xf]
                  %813 = vst [vmem:[%s583 + $0x1c8] sm:$0xf] %v812
                  %v814 = vld [vmem:[%s582 + $0x730] sm:$0xf]
                  %815 = vst [vmem:[%s583 + $0x1cc] sm:$0xf] %v814
                  %v816 = vld [vmem:[%s582 + $0x740] sm:$0xf]
                  %817 = vst [vmem:[%s583 + $0x1d0] sm:$0xf] %v816
                  %v818 = vld [vmem:[%s582 + $0x750] sm:$0xf]
                  %819 = vst [vmem:[%s583 + $0x1d4] sm:$0xf] %v818
                  %v820 = vld [vmem:[%s582 + $0x760] sm:$0xf]
                  %821 = vst [vmem:[%s583 + $0x1d8] sm:$0xf] %v820
                  %v822 = vld [vmem:[%s582 + $0x770] sm:$0xf]
                  %823 = vst [vmem:[%s583 + $0x1dc] sm:$0xf] %v822
                  %v824 = vld [vmem:[%s582 + $0x780] sm:$0xf]
                  %825 = vst [vmem:[%s583 + $0x1e0] sm:$0xf] %v824
                  %v826 = vld [vmem:[%s582 + $0x790] sm:$0xf]
                  %827 = vst [vmem:[%s583 + $0x1e4] sm:$0xf] %v826
                  %v828 = vld [vmem:[%s582 + $0x7a0] sm:$0xf]
                  %829 = vst [vmem:[%s583 + $0x1e8] sm:$0xf] %v828
                  %v830 = vld [vmem:[%s582 + $0x7b0] sm:$0xf]
                  %831 = vst [vmem:[%s583 + $0x1ec] sm:$0xf] %v830
                  %v832 = vld [vmem:[%s582 + $0x7c0] sm:$0xf]
                  %833 = vst [vmem:[%s583 + $0x1f0] sm:$0xf] %v832
                  %v834 = vld [vmem:[%s582 + $0x7d0] sm:$0xf]
                  %835 = vst [vmem:[%s583 + $0x1f4] sm:$0xf] %v834
                  %v836 = vld [vmem:[%s582 + $0x7e0] sm:$0xf]
                  %837 = vst [vmem:[%s583 + $0x1f8] sm:$0xf] %v836
                  %v838 = vld [vmem:[%s582 + $0x7f0] sm:$0xf]
                  %839 = vst [vmem:[%s583 + $0x1fc] sm:$0xf] %v838
                $region85: #{patchgan_forward.8} parent=72 // loop_footer
                  %s581 = sadd.s32 1, %s577
                $region86: #{patchgan_forward.8} parent=72 // loop_footer_branch
                  %576 = sbr.rel target = $region82
                $region87: #{patchgan_forward.8} parent=72 // loop_exit
                  _
              $region73: #{patchgan_forward.8} parent=57 // pred_fallthru
                _
            $region58: #{patchgan_forward.8} parent=53 // pred_fallthru
              _
            // Predicated region
            $region59: #{patchgan_forward.8} parent=53 // pred_check
              _
            $region60: #{patchgan_forward.8} parent=53 // pred_check_branch
              %299 = sbr.rel (0) target = $region62
            $region61: #{patchgan_forward.8} parent=53 // pred_region
              loop: start=0, step=1, limit=1
              $region63: #{patchgan_forward.8} parent=61 // loop_pre_header
                _
              $region64: #{patchgan_forward.8} parent=61 // loop_header
                %s302 = sphi 0, %s306
                %p303 = scmp.ge.s32.totalorder %s302, 1
                %s307 = sphi %s293, %s293
                %s308 = sphi %s288, %s288
              $region65: #{patchgan_forward.8} parent=61 // loop_header_branch
                %305 = sbr.rel (%p303) target = $region69
              $region66: #{patchgan_forward.8} parent=61 // loop_body
                %v309 = vld [vmem:[%s307] sm:$0xf]
                %310 = vst [vmem:[%s308] sm:$0xf] %v309
                %v311 = vld [vmem:[%s307 + $0x10] sm:$0xf]
                %312 = vst [vmem:[%s308 + $0x4] sm:$0xf] %v311
                %v313 = vld [vmem:[%s307 + $0x20] sm:$0xf]
                %314 = vst [vmem:[%s308 + $0x8] sm:$0xf] %v313
                %v315 = vld [vmem:[%s307 + $0x30] sm:$0xf]
                %316 = vst [vmem:[%s308 + $0xc] sm:$0xf] %v315
                %v317 = vld [vmem:[%s307 + $0x40] sm:$0xf]
                %318 = vst [vmem:[%s308 + $0x10] sm:$0xf] %v317
                %v319 = vld [vmem:[%s307 + $0x50] sm:$0xf]
                %320 = vst [vmem:[%s308 + $0x14] sm:$0xf] %v319
                %v321 = vld [vmem:[%s307 + $0x60] sm:$0xf]
                %322 = vst [vmem:[%s308 + $0x18] sm:$0xf] %v321
                %v323 = vld [vmem:[%s307 + $0x70] sm:$0xf]
                %324 = vst [vmem:[%s308 + $0x1c] sm:$0xf] %v323
                %v325 = vld [vmem:[%s307 + $0x80] sm:$0xf]
                %326 = vst [vmem:[%s308 + $0x20] sm:$0xf] %v325
                %v327 = vld [vmem:[%s307 + $0x90] sm:$0xf]
                %328 = vst [vmem:[%s308 + $0x24] sm:$0xf] %v327
                %v329 = vld [vmem:[%s307 + $0xa0] sm:$0xf]
                %330 = vst [vmem:[%s308 + $0x28] sm:$0xf] %v329
                %v331 = vld [vmem:[%s307 + $0xb0] sm:$0xf]
                %332 = vst [vmem:[%s308 + $0x2c] sm:$0xf] %v331
                %v333 = vld [vmem:[%s307 + $0xc0] sm:$0xf]
                %334 = vst [vmem:[%s308 + $0x30] sm:$0xf] %v333
                %v335 = vld [vmem:[%s307 + $0xd0] sm:$0xf]
                %336 = vst [vmem:[%s308 + $0x34] sm:$0xf] %v335
                %v337 = vld [vmem:[%s307 + $0xe0] sm:$0xf]
                %338 = vst [vmem:[%s308 + $0x38] sm:$0xf] %v337
                %v339 = vld [vmem:[%s307 + $0xf0] sm:$0xf]
                %340 = vst [vmem:[%s308 + $0x3c] sm:$0xf] %v339
                %v341 = vld [vmem:[%s307 + $0x100] sm:$0xf]
                %342 = vst [vmem:[%s308 + $0x40] sm:$0xf] %v341
                %v343 = vld [vmem:[%s307 + $0x110] sm:$0xf]
                %344 = vst [vmem:[%s308 + $0x44] sm:$0xf] %v343
                %v345 = vld [vmem:[%s307 + $0x120] sm:$0xf]
                %346 = vst [vmem:[%s308 + $0x48] sm:$0xf] %v345
                %v347 = vld [vmem:[%s307 + $0x130] sm:$0xf]
                %348 = vst [vmem:[%s308 + $0x4c] sm:$0xf] %v347
                %v349 = vld [vmem:[%s307 + $0x140] sm:$0xf]
                %350 = vst [vmem:[%s308 + $0x50] sm:$0xf] %v349
                %v351 = vld [vmem:[%s307 + $0x150] sm:$0xf]
                %352 = vst [vmem:[%s308 + $0x54] sm:$0xf] %v351
                %v353 = vld [vmem:[%s307 + $0x160] sm:$0xf]
                %354 = vst [vmem:[%s308 + $0x58] sm:$0xf] %v353
                %v355 = vld [vmem:[%s307 + $0x170] sm:$0xf]
                %356 = vst [vmem:[%s308 + $0x5c] sm:$0xf] %v355
                %v357 = vld [vmem:[%s307 + $0x180] sm:$0xf]
                %358 = vst [vmem:[%s308 + $0x60] sm:$0xf] %v357
                %v359 = vld [vmem:[%s307 + $0x190] sm:$0xf]
                %360 = vst [vmem:[%s308 + $0x64] sm:$0xf] %v359
                %v361 = vld [vmem:[%s307 + $0x1a0] sm:$0xf]
                %362 = vst [vmem:[%s308 + $0x68] sm:$0xf] %v361
                %v363 = vld [vmem:[%s307 + $0x1b0] sm:$0xf]
                %364 = vst [vmem:[%s308 + $0x6c] sm:$0xf] %v363
                %v365 = vld [vmem:[%s307 + $0x1c0] sm:$0xf]
                %366 = vst [vmem:[%s308 + $0x70] sm:$0xf] %v365
                %v367 = vld [vmem:[%s307 + $0x1d0] sm:$0xf]
                %368 = vst [vmem:[%s308 + $0x74] sm:$0xf] %v367
                %v369 = vld [vmem:[%s307 + $0x1e0] sm:$0xf]
                %370 = vst [vmem:[%s308 + $0x78] sm:$0xf] %v369
                %v371 = vld [vmem:[%s307 + $0x1f0] sm:$0xf]
                %372 = vst [vmem:[%s308 + $0x7c] sm:$0xf] %v371
                %v373 = vld [vmem:[%s307 + $0x200] sm:$0xf]
                %374 = vst [vmem:[%s308 + $0x80] sm:$0xf] %v373
                %v375 = vld [vmem:[%s307 + $0x210] sm:$0xf]
                %376 = vst [vmem:[%s308 + $0x84] sm:$0xf] %v375
                %v377 = vld [vmem:[%s307 + $0x220] sm:$0xf]
                %378 = vst [vmem:[%s308 + $0x88] sm:$0xf] %v377
                %v379 = vld [vmem:[%s307 + $0x230] sm:$0xf]
                %380 = vst [vmem:[%s308 + $0x8c] sm:$0xf] %v379
                %v381 = vld [vmem:[%s307 + $0x240] sm:$0xf]
                %382 = vst [vmem:[%s308 + $0x90] sm:$0xf] %v381
                %v383 = vld [vmem:[%s307 + $0x250] sm:$0xf]
                %384 = vst [vmem:[%s308 + $0x94] sm:$0xf] %v383
                %v385 = vld [vmem:[%s307 + $0x260] sm:$0xf]
                %386 = vst [vmem:[%s308 + $0x98] sm:$0xf] %v385
                %v387 = vld [vmem:[%s307 + $0x270] sm:$0xf]
                %388 = vst [vmem:[%s308 + $0x9c] sm:$0xf] %v387
                %v389 = vld [vmem:[%s307 + $0x280] sm:$0xf]
                %390 = vst [vmem:[%s308 + $0xa0] sm:$0xf] %v389
                %v391 = vld [vmem:[%s307 + $0x290] sm:$0xf]
                %392 = vst [vmem:[%s308 + $0xa4] sm:$0xf] %v391
                %v393 = vld [vmem:[%s307 + $0x2a0] sm:$0xf]
                %394 = vst [vmem:[%s308 + $0xa8] sm:$0xf] %v393
                %v395 = vld [vmem:[%s307 + $0x2b0] sm:$0xf]
                %396 = vst [vmem:[%s308 + $0xac] sm:$0xf] %v395
                %v397 = vld [vmem:[%s307 + $0x2c0] sm:$0xf]
                %398 = vst [vmem:[%s308 + $0xb0] sm:$0xf] %v397
                %v399 = vld [vmem:[%s307 + $0x2d0] sm:$0xf]
                %400 = vst [vmem:[%s308 + $0xb4] sm:$0xf] %v399
                %v401 = vld [vmem:[%s307 + $0x2e0] sm:$0xf]
                %402 = vst [vmem:[%s308 + $0xb8] sm:$0xf] %v401
                %v403 = vld [vmem:[%s307 + $0x2f0] sm:$0xf]
                %404 = vst [vmem:[%s308 + $0xbc] sm:$0xf] %v403
                %v405 = vld [vmem:[%s307 + $0x300] sm:$0xf]
                %406 = vst [vmem:[%s308 + $0xc0] sm:$0xf] %v405
                %v407 = vld [vmem:[%s307 + $0x310] sm:$0xf]
                %408 = vst [vmem:[%s308 + $0xc4] sm:$0xf] %v407
                %v409 = vld [vmem:[%s307 + $0x320] sm:$0xf]
                %410 = vst [vmem:[%s308 + $0xc8] sm:$0xf] %v409
                %v411 = vld [vmem:[%s307 + $0x330] sm:$0xf]
                %412 = vst [vmem:[%s308 + $0xcc] sm:$0xf] %v411
                %v413 = vld [vmem:[%s307 + $0x340] sm:$0xf]
                %414 = vst [vmem:[%s308 + $0xd0] sm:$0xf] %v413
                %v415 = vld [vmem:[%s307 + $0x350] sm:$0xf]
                %416 = vst [vmem:[%s308 + $0xd4] sm:$0xf] %v415
                %v417 = vld [vmem:[%s307 + $0x360] sm:$0xf]
                %418 = vst [vmem:[%s308 + $0xd8] sm:$0xf] %v417
                %v419 = vld [vmem:[%s307 + $0x370] sm:$0xf]
                %420 = vst [vmem:[%s308 + $0xdc] sm:$0xf] %v419
                %v421 = vld [vmem:[%s307 + $0x380] sm:$0xf]
                %422 = vst [vmem:[%s308 + $0xe0] sm:$0xf] %v421
                %v423 = vld [vmem:[%s307 + $0x390] sm:$0xf]
                %424 = vst [vmem:[%s308 + $0xe4] sm:$0xf] %v423
                %v425 = vld [vmem:[%s307 + $0x3a0] sm:$0xf]
                %426 = vst [vmem:[%s308 + $0xe8] sm:$0xf] %v425
                %v427 = vld [vmem:[%s307 + $0x3b0] sm:$0xf]
                %428 = vst [vmem:[%s308 + $0xec] sm:$0xf] %v427
                %v429 = vld [vmem:[%s307 + $0x3c0] sm:$0xf]
                %430 = vst [vmem:[%s308 + $0xf0] sm:$0xf] %v429
                %v431 = vld [vmem:[%s307 + $0x3d0] sm:$0xf]
                %432 = vst [vmem:[%s308 + $0xf4] sm:$0xf] %v431
                %v433 = vld [vmem:[%s307 + $0x3e0] sm:$0xf]
                %434 = vst [vmem:[%s308 + $0xf8] sm:$0xf] %v433
                %v435 = vld [vmem:[%s307 + $0x3f0] sm:$0xf]
                %436 = vst [vmem:[%s308 + $0xfc] sm:$0xf] %v435
                %v437 = vld [vmem:[%s307 + $0x400] sm:$0xf]
                %438 = vst [vmem:[%s308 + $0x100] sm:$0xf] %v437
                %v439 = vld [vmem:[%s307 + $0x410] sm:$0xf]
                %440 = vst [vmem:[%s308 + $0x104] sm:$0xf] %v439
                %v441 = vld [vmem:[%s307 + $0x420] sm:$0xf]
                %442 = vst [vmem:[%s308 + $0x108] sm:$0xf] %v441
                %v443 = vld [vmem:[%s307 + $0x430] sm:$0xf]
                %444 = vst [vmem:[%s308 + $0x10c] sm:$0xf] %v443
                %v445 = vld [vmem:[%s307 + $0x440] sm:$0xf]
                %446 = vst [vmem:[%s308 + $0x110] sm:$0xf] %v445
                %v447 = vld [vmem:[%s307 + $0x450] sm:$0xf]
                %448 = vst [vmem:[%s308 + $0x114] sm:$0xf] %v447
                %v449 = vld [vmem:[%s307 + $0x460] sm:$0xf]
                %450 = vst [vmem:[%s308 + $0x118] sm:$0xf] %v449
                %v451 = vld [vmem:[%s307 + $0x470] sm:$0xf]
                %452 = vst [vmem:[%s308 + $0x11c] sm:$0xf] %v451
                %v453 = vld [vmem:[%s307 + $0x480] sm:$0xf]
                %454 = vst [vmem:[%s308 + $0x120] sm:$0xf] %v453
                %v455 = vld [vmem:[%s307 + $0x490] sm:$0xf]
                %456 = vst [vmem:[%s308 + $0x124] sm:$0xf] %v455
                %v457 = vld [vmem:[%s307 + $0x4a0] sm:$0xf]
                %458 = vst [vmem:[%s308 + $0x128] sm:$0xf] %v457
                %v459 = vld [vmem:[%s307 + $0x4b0] sm:$0xf]
                %460 = vst [vmem:[%s308 + $0x12c] sm:$0xf] %v459
                %v461 = vld [vmem:[%s307 + $0x4c0] sm:$0xf]
                %462 = vst [vmem:[%s308 + $0x130] sm:$0xf] %v461
                %v463 = vld [vmem:[%s307 + $0x4d0] sm:$0xf]
                %464 = vst [vmem:[%s308 + $0x134] sm:$0xf] %v463
                %v465 = vld [vmem:[%s307 + $0x4e0] sm:$0xf]
                %466 = vst [vmem:[%s308 + $0x138] sm:$0xf] %v465
                %v467 = vld [vmem:[%s307 + $0x4f0] sm:$0xf]
                %468 = vst [vmem:[%s308 + $0x13c] sm:$0xf] %v467
                %v469 = vld [vmem:[%s307 + $0x500] sm:$0xf]
                %470 = vst [vmem:[%s308 + $0x140] sm:$0xf] %v469
                %v471 = vld [vmem:[%s307 + $0x510] sm:$0xf]
                %472 = vst [vmem:[%s308 + $0x144] sm:$0xf] %v471
                %v473 = vld [vmem:[%s307 + $0x520] sm:$0xf]
                %474 = vst [vmem:[%s308 + $0x148] sm:$0xf] %v473
                %v475 = vld [vmem:[%s307 + $0x530] sm:$0xf]
                %476 = vst [vmem:[%s308 + $0x14c] sm:$0xf] %v475
                %v477 = vld [vmem:[%s307 + $0x540] sm:$0xf]
                %478 = vst [vmem:[%s308 + $0x150] sm:$0xf] %v477
                %v479 = vld [vmem:[%s307 + $0x550] sm:$0xf]
                %480 = vst [vmem:[%s308 + $0x154] sm:$0xf] %v479
                %v481 = vld [vmem:[%s307 + $0x560] sm:$0xf]
                %482 = vst [vmem:[%s308 + $0x158] sm:$0xf] %v481
                %v483 = vld [vmem:[%s307 + $0x570] sm:$0xf]
                %484 = vst [vmem:[%s308 + $0x15c] sm:$0xf] %v483
                %v485 = vld [vmem:[%s307 + $0x580] sm:$0xf]
                %486 = vst [vmem:[%s308 + $0x160] sm:$0xf] %v485
                %v487 = vld [vmem:[%s307 + $0x590] sm:$0xf]
                %488 = vst [vmem:[%s308 + $0x164] sm:$0xf] %v487
                %v489 = vld [vmem:[%s307 + $0x5a0] sm:$0xf]
                %490 = vst [vmem:[%s308 + $0x168] sm:$0xf] %v489
                %v491 = vld [vmem:[%s307 + $0x5b0] sm:$0xf]
                %492 = vst [vmem:[%s308 + $0x16c] sm:$0xf] %v491
                %v493 = vld [vmem:[%s307 + $0x5c0] sm:$0xf]
                %494 = vst [vmem:[%s308 + $0x170] sm:$0xf] %v493
                %v495 = vld [vmem:[%s307 + $0x5d0] sm:$0xf]
                %496 = vst [vmem:[%s308 + $0x174] sm:$0xf] %v495
                %v497 = vld [vmem:[%s307 + $0x5e0] sm:$0xf]
                %498 = vst [vmem:[%s308 + $0x178] sm:$0xf] %v497
                %v499 = vld [vmem:[%s307 + $0x5f0] sm:$0xf]
                %500 = vst [vmem:[%s308 + $0x17c] sm:$0xf] %v499
                %v501 = vld [vmem:[%s307 + $0x600] sm:$0xf]
                %502 = vst [vmem:[%s308 + $0x180] sm:$0xf] %v501
                %v503 = vld [vmem:[%s307 + $0x610] sm:$0xf]
                %504 = vst [vmem:[%s308 + $0x184] sm:$0xf] %v503
                %v505 = vld [vmem:[%s307 + $0x620] sm:$0xf]
                %506 = vst [vmem:[%s308 + $0x188] sm:$0xf] %v505
                %v507 = vld [vmem:[%s307 + $0x630] sm:$0xf]
                %508 = vst [vmem:[%s308 + $0x18c] sm:$0xf] %v507
                %v509 = vld [vmem:[%s307 + $0x640] sm:$0xf]
                %510 = vst [vmem:[%s308 + $0x190] sm:$0xf] %v509
                %v511 = vld [vmem:[%s307 + $0x650] sm:$0xf]
                %512 = vst [vmem:[%s308 + $0x194] sm:$0xf] %v511
                %v513 = vld [vmem:[%s307 + $0x660] sm:$0xf]
                %514 = vst [vmem:[%s308 + $0x198] sm:$0xf] %v513
                %v515 = vld [vmem:[%s307 + $0x670] sm:$0xf]
                %516 = vst [vmem:[%s308 + $0x19c] sm:$0xf] %v515
                %v517 = vld [vmem:[%s307 + $0x680] sm:$0xf]
                %518 = vst [vmem:[%s308 + $0x1a0] sm:$0xf] %v517
                %v519 = vld [vmem:[%s307 + $0x690] sm:$0xf]
                %520 = vst [vmem:[%s308 + $0x1a4] sm:$0xf] %v519
                %v521 = vld [vmem:[%s307 + $0x6a0] sm:$0xf]
                %522 = vst [vmem:[%s308 + $0x1a8] sm:$0xf] %v521
                %v523 = vld [vmem:[%s307 + $0x6b0] sm:$0xf]
                %524 = vst [vmem:[%s308 + $0x1ac] sm:$0xf] %v523
                %v525 = vld [vmem:[%s307 + $0x6c0] sm:$0xf]
                %526 = vst [vmem:[%s308 + $0x1b0] sm:$0xf] %v525
                %v527 = vld [vmem:[%s307 + $0x6d0] sm:$0xf]
                %528 = vst [vmem:[%s308 + $0x1b4] sm:$0xf] %v527
                %v529 = vld [vmem:[%s307 + $0x6e0] sm:$0xf]
                %530 = vst [vmem:[%s308 + $0x1b8] sm:$0xf] %v529
                %v531 = vld [vmem:[%s307 + $0x6f0] sm:$0xf]
                %532 = vst [vmem:[%s308 + $0x1bc] sm:$0xf] %v531
                %v533 = vld [vmem:[%s307 + $0x700] sm:$0xf]
                %534 = vst [vmem:[%s308 + $0x1c0] sm:$0xf] %v533
                %v535 = vld [vmem:[%s307 + $0x710] sm:$0xf]
                %536 = vst [vmem:[%s308 + $0x1c4] sm:$0xf] %v535
                %v537 = vld [vmem:[%s307 + $0x720] sm:$0xf]
                %538 = vst [vmem:[%s308 + $0x1c8] sm:$0xf] %v537
                %v539 = vld [vmem:[%s307 + $0x730] sm:$0xf]
                %540 = vst [vmem:[%s308 + $0x1cc] sm:$0xf] %v539
                %v541 = vld [vmem:[%s307 + $0x740] sm:$0xf]
                %542 = vst [vmem:[%s308 + $0x1d0] sm:$0xf] %v541
                %v543 = vld [vmem:[%s307 + $0x750] sm:$0xf]
                %544 = vst [vmem:[%s308 + $0x1d4] sm:$0xf] %v543
                %v545 = vld [vmem:[%s307 + $0x760] sm:$0xf]
                %546 = vst [vmem:[%s308 + $0x1d8] sm:$0xf] %v545
                %v547 = vld [vmem:[%s307 + $0x770] sm:$0xf]
                %548 = vst [vmem:[%s308 + $0x1dc] sm:$0xf] %v547
                %v549 = vld [vmem:[%s307 + $0x780] sm:$0xf]
                %550 = vst [vmem:[%s308 + $0x1e0] sm:$0xf] %v549
                %v551 = vld [vmem:[%s307 + $0x790] sm:$0xf]
                %552 = vst [vmem:[%s308 + $0x1e4] sm:$0xf] %v551
                %v553 = vld [vmem:[%s307 + $0x7a0] sm:$0xf]
                %554 = vst [vmem:[%s308 + $0x1e8] sm:$0xf] %v553
                %v555 = vld [vmem:[%s307 + $0x7b0] sm:$0xf]
                %556 = vst [vmem:[%s308 + $0x1ec] sm:$0xf] %v555
                %v557 = vld [vmem:[%s307 + $0x7c0] sm:$0xf]
                %558 = vst [vmem:[%s308 + $0x1f0] sm:$0xf] %v557
                %v559 = vld [vmem:[%s307 + $0x7d0] sm:$0xf]
                %560 = vst [vmem:[%s308 + $0x1f4] sm:$0xf] %v559
                %v561 = vld [vmem:[%s307 + $0x7e0] sm:$0xf]
                %562 = vst [vmem:[%s308 + $0x1f8] sm:$0xf] %v561
                %v563 = vld [vmem:[%s307 + $0x7f0] sm:$0xf]
                %564 = vst [vmem:[%s308 + $0x1fc] sm:$0xf] %v563
              $region67: #{patchgan_forward.8} parent=61 // loop_footer
                %s306 = sadd.s32 1, %s302
              $region68: #{patchgan_forward.8} parent=61 // loop_footer_branch
                %301 = sbr.rel target = $region64
              $region69: #{patchgan_forward.8} parent=61 // loop_exit
                _
            $region62: #{patchgan_forward.8} parent=53 // pred_fallthru
              _
          $region54: #{patchgan_forward.8} parent=49 // pred_fallthru
            _
          %840 = vnop
        $region50: #{patchgan_forward.8} parent=15 // pred_fallthru
          _
        // Predicated region
        $region88: #{patchgan_forward.8} parent=15 // pred_check
          %p841 = pneg %p105
        $region89: #{patchgan_forward.8} parent=15 // pred_check_branch
          %843 = sbr.rel (%p841) target = $region91
        $region90: #{patchgan_forward.8} parent=15 // pred_region
          %p844 = scmp.lt.s32.totalorder %s18, 3
          %s845 = scalar_select %p844, %s18, 3
          %s846 = scalar_lea.vmem %s2, %s845
        $region91: #{patchgan_forward.8} parent=15 // pred_fallthru
          _
        // Predicated region
        $region92: #{patchgan_forward.8} parent=15 // pred_check
          %p847 = pneg %p131
        $region93: #{patchgan_forward.8} parent=15 // pred_check_branch
          %849 = sbr.rel (%p847) target = $region95
        $region94: #{patchgan_forward.8} parent=15 // pred_region
          %p850 = scmp.lt.s32.totalorder %s18, 3
          %s851 = scalar_select %p850, %s18, 3
          %s852 = scalar_lea.vmem %s3, %s851
        $region95: #{patchgan_forward.8} parent=15 // pred_fallthru
          _
      $region16: #{patchgan_forward.8} parent=5 // pred_fallthru
        _
      %p853 = scmp.le.s32.totalorder 1, %s10
      %p854 = scmp.lt.s32.totalorder %s10, 17
      %p855 = pnand %p853, %p854
      %p856 = pneg %p855
      // Predicated region
      $region96: #{patchgan_forward.8} parent=5 // pred_check
        _
      $region97: #{patchgan_forward.8} parent=5 // pred_check_branch
        %858 = sbr.rel (%p855) target = $region99
      $region98: #{patchgan_forward.8} parent=5 // pred_region
        %s859 = ssub.s32 %s10, 1
        %s860 = sand.u32 %s44, 1
        %s861 = sand.u32 %s44, 1
        %s862 = smul.addr %s861, 128
        %s863 = scalar_lea.vmem [#allocation3], %s862
        // Predicated region
        $region100: #{patchgan_forward.8} parent=98 // pred_check
          %p864 = pneg %p57
        $region101: #{patchgan_forward.8} parent=98 // pred_check_branch
          %866 = sbr.rel (%p864) target = $region103
        $region102: #{patchgan_forward.8} parent=98 // pred_region
          _
        $region103: #{patchgan_forward.8} parent=98 // pred_fallthru
          _
        %s867 = sand.u32 %s72, 1
        %s868 = sand.u32 %s72, 1
        %s869 = smul.addr %s868, 512
        %s870 = scalar_lea.vmem [#allocation4], %s869
        // Predicated region
        $region104: #{patchgan_forward.8} parent=98 // pred_check
          %p871 = pneg %p85
        $region105: #{patchgan_forward.8} parent=98 // pred_check_branch
          %873 = sbr.rel (%p871) target = $region107
        $region106: #{patchgan_forward.8} parent=98 // pred_region
          _
        $region107: #{patchgan_forward.8} parent=98 // pred_fallthru
          _
        %s874 = sand.u32 %s44, 1
        %s875 = sand.u32 %s44, 1
        %s876 = smul.addr %s875, 128
        %s877 = scalar_lea.vmem [#allocation3], %s876
        %p878 = pneg %p57
        %p879 = pneg %p54
        %s880 = sand.u32 %s72, 1
        %s881 = sand.u32 %s72, 1
        %s882 = smul.addr %s881, 512
        %s883 = scalar_lea.vmem [#allocation4], %s882
        %p884 = pneg %p85
        %p885 = pneg %p82
        %p886 = scmp.lt.s32.totalorder %s21, 3
        %s887 = scalar_select %p886, %s21, 3
        %s888 = scalar_lea.vmem %s2, %s887
        %p889 = pneg %p111
        %p890 = pneg %p108
        %p891 = scmp.lt.s32.totalorder %s21, 3
        %s892 = scalar_select %p891, %s21, 3
        %s893 = scalar_lea.vmem %s3, %s892
        %p894 = pneg %p137
        %p895 = pneg %p134
        %p896 = pneg %p165
        %p897 = pneg %p162
        %s898 = sand.u32 %s152, 1
        %s899 = sand.u32 %s152, 1
        %s900 = smul.addr %s899, 32
        %s901 = scalar_lea.vmem [#allocation5], %s900
        %s902 = smul.u32 4, %s20
        %s903 = smul.u32 8, %s22
        %s904 = ssub.s32 3, %s902
        %s905 = smul.u32 64, %s904
        %s906 = smul.u32 %s905, 8
        %s907 = smul.u32 128, %s22
        %p908 = scmp.lt.s32.totalorder %s21, 3
        %s909 = scalar_select %p908, %s21, 3
        %s910 = scalar_lea.vmem %s2, %s909
        %p911 = scmp.lt.s32.totalorder %s21, 3
        %s912 = scalar_select %p911, %s21, 3
        %s913 = scalar_lea.vmem %s3, %s912
        %s914 = smul.u32 4, %s20
        %s915 = ssub.s32 3, %s914
        %s916 = smul.u32 128, %s915
        %p918 = scmp.eq.s32.totalorder %s22, 0
        // Predicated region
        $region108: #{patchgan_forward.8} parent=98 // pred_check
          %p919 = pneg %p918
        $region109: #{patchgan_forward.8} parent=98 // pred_check_branch
          %921 = sbr.rel (%p919) target = $region111
        $region110: #{patchgan_forward.8} parent=98 // pred_region
          %922 = vst [vmem:[#allocation2] sm:$0xff] 0.0
          %923 = vst [vmem:[#allocation2 + $0x8] sm:$0xff] 0.0
          %924 = vst [vmem:[#allocation2 + $0x10] sm:$0xff] 0.0
          %925 = vst [vmem:[#allocation2 + $0x18] sm:$0xff] 0.0
        $region111: #{patchgan_forward.8} parent=98 // pred_fallthru
          _
        %v926 = vld [vmem:[#allocation2] sm:$0xff]
        %v927 = vld [vmem:[#allocation2 + $0x8] sm:$0xff]
        %v928 = vld [vmem:[#allocation2 + $0x10] sm:$0xff]
        %v929 = vld [vmem:[#allocation2 + $0x18] sm:$0xff]
        %v930 = vld [vmem:[%s863] sm:$0xff]
        %v931 = vld [vmem:[%s863 + $0x8] sm:$0xff]
        %v932 = vld [vmem:[%s863 + $0x10] sm:$0xff]
        %v933 = vld [vmem:[%s863 + $0x18] sm:$0xff]
        %v934 = vld [vmem:[%s863 + $0x20] sm:$0xff]
        %v935 = vld [vmem:[%s863 + $0x28] sm:$0xff]
        %v936 = vld [vmem:[%s863 + $0x30] sm:$0xff]
        %v937 = vld [vmem:[%s863 + $0x38] sm:$0xff]
        %v938 = vld [vmem:[%s863 + $0x40] sm:$0xff]
        %v939 = vld [vmem:[%s863 + $0x48] sm:$0xff]
        %v940 = vld [vmem:[%s863 + $0x50] sm:$0xff]
        %v941 = vld [vmem:[%s863 + $0x58] sm:$0xff]
        %v942 = vld [vmem:[%s863 + $0x60] sm:$0xff]
        %v943 = vld [vmem:[%s863 + $0x68] sm:$0xff]
        %v944 = vld [vmem:[%s863 + $0x70] sm:$0xff]
        %v945 = vld [vmem:[%s863 + $0x78] sm:$0xff]
        %v946 = vld [vmem:[%s870] sm:$0xf]
        %v947 = vld [vmem:[%s870 + $0x4] sm:$0xf]
        %v948 = vld [vmem:[%s870 + $0x8] sm:$0xf]
        %v949 = vld [vmem:[%s870 + $0xc] sm:$0xf]
        %v950 = vld [vmem:[%s870 + $0x10] sm:$0xf]
        %v951 = vld [vmem:[%s870 + $0x14] sm:$0xf]
        %v952 = vld [vmem:[%s870 + $0x18] sm:$0xf]
        %v953 = vld [vmem:[%s870 + $0x1c] sm:$0xf]
        %v954 = vld [vmem:[%s870 + $0x20] sm:$0xf]
        %v955 = vld [vmem:[%s870 + $0x24] sm:$0xf]
        %v956 = vld [vmem:[%s870 + $0x28] sm:$0xf]
        %v957 = vld [vmem:[%s870 + $0x2c] sm:$0xf]
        %v958 = vld [vmem:[%s870 + $0x30] sm:$0xf]
        %v959 = vld [vmem:[%s870 + $0x34] sm:$0xf]
        %v960 = vld [vmem:[%s870 + $0x38] sm:$0xf]
        %v961 = vld [vmem:[%s870 + $0x3c] sm:$0xf]
        %v962 = vld [vmem:[%s870 + $0x40] sm:$0xf]
        %v963 = vld [vmem:[%s870 + $0x44] sm:$0xf]
        %v964 = vld [vmem:[%s870 + $0x48] sm:$0xf]
        %v965 = vld [vmem:[%s870 + $0x4c] sm:$0xf]
        %v966 = vld [vmem:[%s870 + $0x50] sm:$0xf]
        %v967 = vld [vmem:[%s870 + $0x54] sm:$0xf]
        %v968 = vld [vmem:[%s870 + $0x58] sm:$0xf]
        %v969 = vld [vmem:[%s870 + $0x5c] sm:$0xf]
        %v970 = vld [vmem:[%s870 + $0x60] sm:$0xf]
        %v971 = vld [vmem:[%s870 + $0x64] sm:$0xf]
        %v972 = vld [vmem:[%s870 + $0x68] sm:$0xf]
        %v973 = vld [vmem:[%s870 + $0x6c] sm:$0xf]
        %v974 = vld [vmem:[%s870 + $0x70] sm:$0xf]
        %v975 = vld [vmem:[%s870 + $0x74] sm:$0xf]
        %v976 = vld [vmem:[%s870 + $0x78] sm:$0xf]
        %v977 = vld [vmem:[%s870 + $0x7c] sm:$0xf]
        %v978 = vld [vmem:[%s870 + $0x80] sm:$0xf]
        %v979 = vld [vmem:[%s870 + $0x84] sm:$0xf]
        %v980 = vld [vmem:[%s870 + $0x88] sm:$0xf]
        %v981 = vld [vmem:[%s870 + $0x8c] sm:$0xf]
        %v982 = vld [vmem:[%s870 + $0x90] sm:$0xf]
        %v983 = vld [vmem:[%s870 + $0x94] sm:$0xf]
        %v984 = vld [vmem:[%s870 + $0x98] sm:$0xf]
        %v985 = vld [vmem:[%s870 + $0x9c] sm:$0xf]
        %v986 = vld [vmem:[%s870 + $0xa0] sm:$0xf]
        %v987 = vld [vmem:[%s870 + $0xa4] sm:$0xf]
        %v988 = vld [vmem:[%s870 + $0xa8] sm:$0xf]
        %v989 = vld [vmem:[%s870 + $0xac] sm:$0xf]
        %v990 = vld [vmem:[%s870 + $0xb0] sm:$0xf]
        %v991 = vld [vmem:[%s870 + $0xb4] sm:$0xf]
        %v992 = vld [vmem:[%s870 + $0xb8] sm:$0xf]
        %v993 = vld [vmem:[%s870 + $0xbc] sm:$0xf]
        %v994 = vld [vmem:[%s870 + $0xc0] sm:$0xf]
        %v995 = vld [vmem:[%s870 + $0xc4] sm:$0xf]
        %v996 = vld [vmem:[%s870 + $0xc8] sm:$0xf]
        %v997 = vld [vmem:[%s870 + $0xcc] sm:$0xf]
        %v998 = vld [vmem:[%s870 + $0xd0] sm:$0xf]
        %v999 = vld [vmem:[%s870 + $0xd4] sm:$0xf]
        %v1000 = vld [vmem:[%s870 + $0xd8] sm:$0xf]
        %v1001 = vld [vmem:[%s870 + $0xdc] sm:$0xf]
        %v1002 = vld [vmem:[%s870 + $0xe0] sm:$0xf]
        %v1003 = vld [vmem:[%s870 + $0xe4] sm:$0xf]
        %v1004 = vld [vmem:[%s870 + $0xe8] sm:$0xf]
        %v1005 = vld [vmem:[%s870 + $0xec] sm:$0xf]
        %v1006 = vld [vmem:[%s870 + $0xf0] sm:$0xf]
        %v1007 = vld [vmem:[%s870 + $0xf4] sm:$0xf]
        %v1008 = vld [vmem:[%s870 + $0xf8] sm:$0xf]
        %v1009 = vld [vmem:[%s870 + $0xfc] sm:$0xf]
        %v1010 = vld [vmem:[%s870 + $0x100] sm:$0xf]
        %v1011 = vld [vmem:[%s870 + $0x104] sm:$0xf]
        %v1012 = vld [vmem:[%s870 + $0x108] sm:$0xf]
        %v1013 = vld [vmem:[%s870 + $0x10c] sm:$0xf]
        %v1014 = vld [vmem:[%s870 + $0x110] sm:$0xf]
        %v1015 = vld [vmem:[%s870 + $0x114] sm:$0xf]
        %v1016 = vld [vmem:[%s870 + $0x118] sm:$0xf]
        %v1017 = vld [vmem:[%s870 + $0x11c] sm:$0xf]
        %v1018 = vld [vmem:[%s870 + $0x120] sm:$0xf]
        %v1019 = vld [vmem:[%s870 + $0x124] sm:$0xf]
        %v1020 = vld [vmem:[%s870 + $0x128] sm:$0xf]
        %v1021 = vld [vmem:[%s870 + $0x12c] sm:$0xf]
        %v1022 = vld [vmem:[%s870 + $0x130] sm:$0xf]
        %v1023 = vld [vmem:[%s870 + $0x134] sm:$0xf]
        %v1024 = vld [vmem:[%s870 + $0x138] sm:$0xf]
        %v1025 = vld [vmem:[%s870 + $0x13c] sm:$0xf]
        %v1026 = vld [vmem:[%s870 + $0x140] sm:$0xf]
        %v1027 = vld [vmem:[%s870 + $0x144] sm:$0xf]
        %v1028 = vld [vmem:[%s870 + $0x148] sm:$0xf]
        %v1029 = vld [vmem:[%s870 + $0x14c] sm:$0xf]
        %v1030 = vld [vmem:[%s870 + $0x150] sm:$0xf]
        %v1031 = vld [vmem:[%s870 + $0x154] sm:$0xf]
        %v1032 = vld [vmem:[%s870 + $0x158] sm:$0xf]
        %v1033 = vld [vmem:[%s870 + $0x15c] sm:$0xf]
        %v1034 = vld [vmem:[%s870 + $0x160] sm:$0xf]
        %v1035 = vld [vmem:[%s870 + $0x164] sm:$0xf]
        %v1036 = vld [vmem:[%s870 + $0x168] sm:$0xf]
        %v1037 = vld [vmem:[%s870 + $0x16c] sm:$0xf]
        %v1038 = vld [vmem:[%s870 + $0x170] sm:$0xf]
        %v1039 = vld [vmem:[%s870 + $0x174] sm:$0xf]
        %v1040 = vld [vmem:[%s870 + $0x178] sm:$0xf]
        %v1041 = vld [vmem:[%s870 + $0x17c] sm:$0xf]
        %v1042 = vld [vmem:[%s870 + $0x180] sm:$0xf]
        %v1043 = vld [vmem:[%s870 + $0x184] sm:$0xf]
        %v1044 = vld [vmem:[%s870 + $0x188] sm:$0xf]
        %v1045 = vld [vmem:[%s870 + $0x18c] sm:$0xf]
        %v1046 = vld [vmem:[%s870 + $0x190] sm:$0xf]
        %v1047 = vld [vmem:[%s870 + $0x194] sm:$0xf]
        %v1048 = vld [vmem:[%s870 + $0x198] sm:$0xf]
        %v1049 = vld [vmem:[%s870 + $0x19c] sm:$0xf]
        %v1050 = vld [vmem:[%s870 + $0x1a0] sm:$0xf]
        %v1051 = vld [vmem:[%s870 + $0x1a4] sm:$0xf]
        %v1052 = vld [vmem:[%s870 + $0x1a8] sm:$0xf]
        %v1053 = vld [vmem:[%s870 + $0x1ac] sm:$0xf]
        %v1054 = vld [vmem:[%s870 + $0x1b0] sm:$0xf]
        %v1055 = vld [vmem:[%s870 + $0x1b4] sm:$0xf]
        %v1056 = vld [vmem:[%s870 + $0x1b8] sm:$0xf]
        %v1057 = vld [vmem:[%s870 + $0x1bc] sm:$0xf]
        %v1058 = vld [vmem:[%s870 + $0x1c0] sm:$0xf]
        %v1059 = vld [vmem:[%s870 + $0x1c4] sm:$0xf]
        %v1060 = vld [vmem:[%s870 + $0x1c8] sm:$0xf]
        %v1061 = vld [vmem:[%s870 + $0x1cc] sm:$0xf]
        %v1062 = vld [vmem:[%s870 + $0x1d0] sm:$0xf]
        %v1063 = vld [vmem:[%s870 + $0x1d4] sm:$0xf]
        %v1064 = vld [vmem:[%s870 + $0x1d8] sm:$0xf]
        %v1065 = vld [vmem:[%s870 + $0x1dc] sm:$0xf]
        %v1066 = vld [vmem:[%s870 + $0x1e0] sm:$0xf]
        %v1067 = vld [vmem:[%s870 + $0x1e4] sm:$0xf]
        %v1068 = vld [vmem:[%s870 + $0x1e8] sm:$0xf]
        %v1069 = vld [vmem:[%s870 + $0x1ec] sm:$0xf]
        %v1070 = vld [vmem:[%s870 + $0x1f0] sm:$0xf]
        %v1071 = vld [vmem:[%s870 + $0x1f4] sm:$0xf]
        %v1072 = vld [vmem:[%s870 + $0x1f8] sm:$0xf]
        %v1073 = vld [vmem:[%s870 + $0x1fc] sm:$0xf]
        %v1090 = vunpack.c.l.b16 %v930
        %v1091 = vunpack.c.h.b16 %v930
        %v1092 = vunpack.c.l.b16 %v931
        %v1093 = vunpack.c.h.b16 %v931
        %v1094 = vunpack.c.l.b16 %v932
        %v1095 = vunpack.c.h.b16 %v932
        %v1096 = vunpack.c.l.b16 %v933
        %v1097 = vunpack.c.h.b16 %v933
        %v1098 = vunpack.c.l.b16 %v934
        %v1099 = vunpack.c.h.b16 %v934
        %v1100 = vunpack.c.l.b16 %v935
        %v1101 = vunpack.c.h.b16 %v935
        %v1102 = vunpack.c.l.b16 %v936
        %v1103 = vunpack.c.h.b16 %v936
        %v1104 = vunpack.c.l.b16 %v937
        %v1105 = vunpack.c.h.b16 %v937
        %v1106 = vunpack.c.l.b16 %v938
        %v1107 = vunpack.c.h.b16 %v938
        %v1108 = vunpack.c.l.b16 %v939
        %v1109 = vunpack.c.h.b16 %v939
        %v1110 = vunpack.c.l.b16 %v940
        %v1111 = vunpack.c.h.b16 %v940
        %v1112 = vunpack.c.l.b16 %v941
        %v1113 = vunpack.c.h.b16 %v941
        %v1114 = vunpack.c.l.b16 %v942
        %v1115 = vunpack.c.h.b16 %v942
        %v1116 = vunpack.c.l.b16 %v943
        %v1117 = vunpack.c.h.b16 %v943
        %v1118 = vunpack.c.l.b16 %v944
        %v1119 = vunpack.c.h.b16 %v944
        %v1120 = vunpack.c.l.b16 %v945
        %v1121 = vunpack.c.h.b16 %v945
        %v1122 = vpack.c.b16 %v1098, %v1090
        %v1123 = vpack.c.b16 %v1099, %v1091
        %v1124 = vpack.c.b16 %v1100, %v1092
        %v1125 = vpack.c.b16 %v1101, %v1093
        %v1126 = vpack.c.b16 %v1102, %v1094
        %v1127 = vpack.c.b16 %v1103, %v1095
        %v1128 = vpack.c.b16 %v1104, %v1096
        %v1129 = vpack.c.b16 %v1105, %v1097
        %v1130 = vpack.c.b16 %v1114, %v1106
        %v1131 = vpack.c.b16 %v1115, %v1107
        %v1132 = vpack.c.b16 %v1116, %v1108
        %v1133 = vpack.c.b16 %v1117, %v1109
        %v1134 = vpack.c.b16 %v1118, %v1110
        %v1135 = vpack.c.b16 %v1119, %v1111
        %v1136 = vpack.c.b16 %v1120, %v1112
        %v1137 = vpack.c.b16 %v1121, %v1113
        %v1282 = vunpack.c.l.b16 %v946
        %v1283 = vunpack.c.l.b16 %v947
        %v1284 = vunpack.c.l.b16 %v948
        %v1285 = vunpack.c.l.b16 %v949
        %v1286 = vunpack.c.l.b16 %v950
        %v1287 = vunpack.c.l.b16 %v951
        %v1288 = vunpack.c.l.b16 %v952
        %v1289 = vunpack.c.l.b16 %v953
        %v1290 = vunpack.c.l.b16 %v954
        %v1291 = vunpack.c.l.b16 %v955
        %v1292 = vunpack.c.l.b16 %v956
        %v1293 = vunpack.c.l.b16 %v957
        %v1294 = vunpack.c.l.b16 %v958
        %v1295 = vunpack.c.l.b16 %v959
        %v1296 = vunpack.c.l.b16 %v960
        %v1297 = vunpack.c.l.b16 %v961
        %v1298 = vunpack.c.l.b16 %v962
        %v1299 = vunpack.c.l.b16 %v963
        %v1300 = vunpack.c.l.b16 %v964
        %v1301 = vunpack.c.l.b16 %v965
        %v1302 = vunpack.c.l.b16 %v966
        %v1303 = vunpack.c.l.b16 %v967
        %v1304 = vunpack.c.l.b16 %v968
        %v1305 = vunpack.c.l.b16 %v969
        %v1306 = vunpack.c.l.b16 %v970
        %v1307 = vunpack.c.l.b16 %v971
        %v1308 = vunpack.c.l.b16 %v972
        %v1309 = vunpack.c.l.b16 %v973
        %v1310 = vunpack.c.l.b16 %v974
        %v1311 = vunpack.c.l.b16 %v975
        %v1312 = vunpack.c.l.b16 %v976
        %v1313 = vunpack.c.l.b16 %v977
        %v1314 = vunpack.c.l.b16 %v978
        %v1315 = vunpack.c.l.b16 %v979
        %v1316 = vunpack.c.l.b16 %v980
        %v1317 = vunpack.c.l.b16 %v981
        %v1318 = vunpack.c.l.b16 %v982
        %v1319 = vunpack.c.l.b16 %v983
        %v1320 = vunpack.c.l.b16 %v984
        %v1321 = vunpack.c.l.b16 %v985
        %v1322 = vunpack.c.l.b16 %v986
        %v1323 = vunpack.c.l.b16 %v987
        %v1324 = vunpack.c.l.b16 %v988
        %v1325 = vunpack.c.l.b16 %v989
        %v1326 = vunpack.c.l.b16 %v990
        %v1327 = vunpack.c.l.b16 %v991
        %v1328 = vunpack.c.l.b16 %v992
        %v1329 = vunpack.c.l.b16 %v993
        %v1330 = vunpack.c.l.b16 %v994
        %v1331 = vunpack.c.l.b16 %v995
        %v1332 = vunpack.c.l.b16 %v996
        %v1333 = vunpack.c.l.b16 %v997
        %v1334 = vunpack.c.l.b16 %v998
        %v1335 = vunpack.c.l.b16 %v999
        %v1336 = vunpack.c.l.b16 %v1000
        %v1337 = vunpack.c.l.b16 %v1001
        %v1338 = vunpack.c.l.b16 %v1002
        %v1339 = vunpack.c.l.b16 %v1003
        %v1340 = vunpack.c.l.b16 %v1004
        %v1341 = vunpack.c.l.b16 %v1005
        %v1342 = vunpack.c.l.b16 %v1006
        %v1343 = vunpack.c.l.b16 %v1007
        %v1344 = vunpack.c.l.b16 %v1008
        %v1345 = vunpack.c.l.b16 %v1009
        %v1346 = vunpack.c.l.b16 %v1010
        %v1347 = vunpack.c.l.b16 %v1011
        %v1348 = vunpack.c.l.b16 %v1012
        %v1349 = vunpack.c.l.b16 %v1013
        %v1350 = vunpack.c.l.b16 %v1014
        %v1351 = vunpack.c.l.b16 %v1015
        %v1352 = vunpack.c.l.b16 %v1016
        %v1353 = vunpack.c.l.b16 %v1017
        %v1354 = vunpack.c.l.b16 %v1018
        %v1355 = vunpack.c.l.b16 %v1019
        %v1356 = vunpack.c.l.b16 %v1020
        %v1357 = vunpack.c.l.b16 %v1021
        %v1358 = vunpack.c.l.b16 %v1022
        %v1359 = vunpack.c.l.b16 %v1023
        %v1360 = vunpack.c.l.b16 %v1024
        %v1361 = vunpack.c.l.b16 %v1025
        %v1362 = vunpack.c.l.b16 %v1026
        %v1363 = vunpack.c.l.b16 %v1027
        %v1364 = vunpack.c.l.b16 %v1028
        %v1365 = vunpack.c.l.b16 %v1029
        %v1366 = vunpack.c.l.b16 %v1030
        %v1367 = vunpack.c.l.b16 %v1031
        %v1368 = vunpack.c.l.b16 %v1032
        %v1369 = vunpack.c.l.b16 %v1033
        %v1370 = vunpack.c.l.b16 %v1034
        %v1371 = vunpack.c.l.b16 %v1035
        %v1372 = vunpack.c.l.b16 %v1036
        %v1373 = vunpack.c.l.b16 %v1037
        %v1374 = vunpack.c.l.b16 %v1038
        %v1375 = vunpack.c.l.b16 %v1039
        %v1376 = vunpack.c.l.b16 %v1040
        %v1377 = vunpack.c.l.b16 %v1041
        %v1378 = vunpack.c.l.b16 %v1042
        %v1379 = vunpack.c.l.b16 %v1043
        %v1380 = vunpack.c.l.b16 %v1044
        %v1381 = vunpack.c.l.b16 %v1045
        %v1382 = vunpack.c.l.b16 %v1046
        %v1383 = vunpack.c.l.b16 %v1047
        %v1384 = vunpack.c.l.b16 %v1048
        %v1385 = vunpack.c.l.b16 %v1049
        %v1386 = vunpack.c.l.b16 %v1050
        %v1387 = vunpack.c.l.b16 %v1051
        %v1388 = vunpack.c.l.b16 %v1052
        %v1389 = vunpack.c.l.b16 %v1053
        %v1390 = vunpack.c.l.b16 %v1054
        %v1391 = vunpack.c.l.b16 %v1055
        %v1392 = vunpack.c.l.b16 %v1056
        %v1393 = vunpack.c.l.b16 %v1057
        %v1394 = vunpack.c.l.b16 %v1058
        %v1395 = vunpack.c.l.b16 %v1059
        %v1396 = vunpack.c.l.b16 %v1060
        %v1397 = vunpack.c.l.b16 %v1061
        %v1398 = vunpack.c.l.b16 %v1062
        %v1399 = vunpack.c.l.b16 %v1063
        %v1400 = vunpack.c.l.b16 %v1064
        %v1401 = vunpack.c.l.b16 %v1065
        %v1402 = vunpack.c.l.b16 %v1066
        %v1403 = vunpack.c.l.b16 %v1067
        %v1404 = vunpack.c.l.b16 %v1068
        %v1405 = vunpack.c.l.b16 %v1069
        %v1406 = vunpack.c.l.b16 %v1070
        %v1407 = vunpack.c.l.b16 %v1071
        %v1408 = vunpack.c.l.b16 %v1072
        %v1409 = vunpack.c.l.b16 %v1073
        %v1410 = vpack.c.b16 %v1283, %v1282
        %v1411 = vpack.c.b16 %v1285, %v1284
        %v1412 = vpack.c.b16 %v1287, %v1286
        %v1413 = vpack.c.b16 %v1289, %v1288
        %v1414 = vpack.c.b16 %v1291, %v1290
        %v1415 = vpack.c.b16 %v1293, %v1292
        %v1416 = vpack.c.b16 %v1295, %v1294
        %v1417 = vpack.c.b16 %v1297, %v1296
        %v1418 = vpack.c.b16 %v1299, %v1298
        %v1419 = vpack.c.b16 %v1301, %v1300
        %v1420 = vpack.c.b16 %v1303, %v1302
        %v1421 = vpack.c.b16 %v1305, %v1304
        %v1422 = vpack.c.b16 %v1307, %v1306
        %v1423 = vpack.c.b16 %v1309, %v1308
        %v1424 = vpack.c.b16 %v1311, %v1310
        %v1425 = vpack.c.b16 %v1313, %v1312
        %v1426 = vpack.c.b16 %v1315, %v1314
        %v1427 = vpack.c.b16 %v1317, %v1316
        %v1428 = vpack.c.b16 %v1319, %v1318
        %v1429 = vpack.c.b16 %v1321, %v1320
        %v1430 = vpack.c.b16 %v1323, %v1322
        %v1431 = vpack.c.b16 %v1325, %v1324
        %v1432 = vpack.c.b16 %v1327, %v1326
        %v1433 = vpack.c.b16 %v1329, %v1328
        %v1434 = vpack.c.b16 %v1331, %v1330
        %v1435 = vpack.c.b16 %v1333, %v1332
        %v1436 = vpack.c.b16 %v1335, %v1334
        %v1437 = vpack.c.b16 %v1337, %v1336
        %v1438 = vpack.c.b16 %v1339, %v1338
        %v1439 = vpack.c.b16 %v1341, %v1340
        %v1440 = vpack.c.b16 %v1343, %v1342
        %v1441 = vpack.c.b16 %v1345, %v1344
        %v1442 = vpack.c.b16 %v1347, %v1346
        %v1443 = vpack.c.b16 %v1349, %v1348
        %v1444 = vpack.c.b16 %v1351, %v1350
        %v1445 = vpack.c.b16 %v1353, %v1352
        %v1446 = vpack.c.b16 %v1355, %v1354
        %v1447 = vpack.c.b16 %v1357, %v1356
        %v1448 = vpack.c.b16 %v1359, %v1358
        %v1449 = vpack.c.b16 %v1361, %v1360
        %v1450 = vpack.c.b16 %v1363, %v1362
        %v1451 = vpack.c.b16 %v1365, %v1364
        %v1452 = vpack.c.b16 %v1367, %v1366
        %v1453 = vpack.c.b16 %v1369, %v1368
        %v1454 = vpack.c.b16 %v1371, %v1370
        %v1455 = vpack.c.b16 %v1373, %v1372
        %v1456 = vpack.c.b16 %v1375, %v1374
        %v1457 = vpack.c.b16 %v1377, %v1376
        %v1458 = vpack.c.b16 %v1379, %v1378
        %v1459 = vpack.c.b16 %v1381, %v1380
        %v1460 = vpack.c.b16 %v1383, %v1382
        %v1461 = vpack.c.b16 %v1385, %v1384
        %v1462 = vpack.c.b16 %v1387, %v1386
        %v1463 = vpack.c.b16 %v1389, %v1388
        %v1464 = vpack.c.b16 %v1391, %v1390
        %v1465 = vpack.c.b16 %v1393, %v1392
        %v1466 = vpack.c.b16 %v1395, %v1394
        %v1467 = vpack.c.b16 %v1397, %v1396
        %v1468 = vpack.c.b16 %v1399, %v1398
        %v1469 = vpack.c.b16 %v1401, %v1400
        %v1470 = vpack.c.b16 %v1403, %v1402
        %v1471 = vpack.c.b16 %v1405, %v1404
        %v1472 = vpack.c.b16 %v1407, %v1406
        %v1473 = vpack.c.b16 %v1409, %v1408
        %1538 = vmatprep.subr.bf16.mxu0 0
        %1539 = vmatpush1.bf16.msra.mxu0 %v1410
        %1540 = vmatprep.subr.bf16.mxu0 0
        %1541 = vmatpush1.bf16.msra.mxu0 %v1411
        %1542 = vmatprep.subr.bf16.mxu0 0
        %1543 = vmatpush1.bf16.msra.mxu0 %v1412
        %1544 = vmatprep.subr.bf16.mxu0 0
        %1545 = vmatpush1.bf16.msra.mxu0 %v1413
        %1546 = vmatprep.subr.bf16.mxu0 0
        %1547 = vmatpush1.bf16.msra.mxu0 %v1414
        %1548 = vmatprep.subr.bf16.mxu0 0
        %1549 = vmatpush1.bf16.msra.mxu0 %v1415
        %1550 = vmatprep.subr.bf16.mxu0 0
        %1551 = vmatpush1.bf16.msra.mxu0 %v1416
        %1552 = vmatprep.subr.bf16.mxu0 0
        %1553 = vmatpush1.bf16.msra.mxu0 %v1417
        %1554 = vmatprep.subr.bf16.mxu0 0
        %1555 = vmatpush1.bf16.msra.mxu0 %v1418
        %1556 = vmatprep.subr.bf16.mxu0 0
        %1557 = vmatpush1.bf16.msra.mxu0 %v1419
        %1558 = vmatprep.subr.bf16.mxu0 0
        %1559 = vmatpush1.bf16.msra.mxu0 %v1420
        %1560 = vmatprep.subr.bf16.mxu0 0
        %1561 = vmatpush1.bf16.msra.mxu0 %v1421
        %1562 = vmatprep.subr.bf16.mxu0 0
        %1563 = vmatpush1.bf16.msra.mxu0 %v1422
        %1564 = vmatprep.subr.bf16.mxu0 0
        %1565 = vmatpush1.bf16.msra.mxu0 %v1423
        %1566 = vmatprep.subr.bf16.mxu0 0
        %1567 = vmatpush1.bf16.msra.mxu0 %v1424
        %1568 = vmatprep.subr.bf16.mxu0 0
        %1569 = vmatpush1.bf16.msra.mxu0 %v1425
        %1570 = vmatprep.mubr.bf16.mxu0 %v1123
        %1571 = vmatmul.mubr.bf16.gmra.mrb[0].mxu0 %v1122
        %v1572 = vpop.f32.mrb[0].mxu0
        %v1573 = vadd.f32 0.0, %v1572
        %v1574 = vpop.f32.mrb[0].mxu0
        %v1575 = vpop.f32.mrb[0].mxu0
        %v1576 = vadd.f32 0.0, %v1575
        %v1577 = vpop.f32.mrb[0].mxu0
        %1578 = vmatprep.mubr.bf16.mxu0 %v1131
        %1579 = vmatmul.mubr.bf16.gmra.mrb[0].mxu0 %v1130
        %v1580 = vpop.f32.mrb[0].mxu0
        %v1581 = vadd.f32 0.0, %v1580
        %v1582 = vpop.f32.mrb[0].mxu0
        %v1583 = vpop.f32.mrb[0].mxu0
        %v1584 = vadd.f32 0.0, %v1583
        %v1585 = vpop.f32.mrb[0].mxu0
        %1586 = vdwg.mxu0
        %1587 = vmatprep.subr.bf16.mxu0 0
        %1588 = vmatpush1.bf16.msra.mxu0 %v1426
        %1589 = vmatprep.subr.bf16.mxu0 0
        %1590 = vmatpush1.bf16.msra.mxu0 %v1427
        %1591 = vmatprep.subr.bf16.mxu0 0
        %1592 = vmatpush1.bf16.msra.mxu0 %v1428
        %1593 = vmatprep.subr.bf16.mxu0 0
        %1594 = vmatpush1.bf16.msra.mxu0 %v1429
        %1595 = vmatprep.subr.bf16.mxu0 0
        %1596 = vmatpush1.bf16.msra.mxu0 %v1430
        %1597 = vmatprep.subr.bf16.mxu0 0
        %1598 = vmatpush1.bf16.msra.mxu0 %v1431
        %1599 = vmatprep.subr.bf16.mxu0 0
        %1600 = vmatpush1.bf16.msra.mxu0 %v1432
        %1601 = vmatprep.subr.bf16.mxu0 0
        %1602 = vmatpush1.bf16.msra.mxu0 %v1433
        %1603 = vmatprep.subr.bf16.mxu0 0
        %1604 = vmatpush1.bf16.msra.mxu0 %v1434
        %1605 = vmatprep.subr.bf16.mxu0 0
        %1606 = vmatpush1.bf16.msra.mxu0 %v1435
        %1607 = vmatprep.subr.bf16.mxu0 0
        %1608 = vmatpush1.bf16.msra.mxu0 %v1436
        %1609 = vmatprep.subr.bf16.mxu0 0
        %1610 = vmatpush1.bf16.msra.mxu0 %v1437
        %1611 = vmatprep.subr.bf16.mxu0 0
        %1612 = vmatpush1.bf16.msra.mxu0 %v1438
        %1613 = vmatprep.subr.bf16.mxu0 0
        %1614 = vmatpush1.bf16.msra.mxu0 %v1439
        %1615 = vmatprep.subr.bf16.mxu0 0
        %1616 = vmatpush1.bf16.msra.mxu0 %v1440
        %1617 = vmatprep.subr.bf16.mxu0 0
        %1618 = vmatpush1.bf16.msra.mxu0 %v1441
        %1619 = vmatprep.mubr.bf16.mxu0 %v1125
        %1620 = vmatmul.mubr.bf16.gmra.mrb[0].mxu0 %v1124
        %v1621 = vpop.f32.mrb[0].mxu0
        %v1622 = vadd.f32 %v1573, %v1621
        %v1623 = vpop.f32.mrb[0].mxu0
        %v1624 = vpop.f32.mrb[0].mxu0
        %v1625 = vadd.f32 %v1576, %v1624
        %v1626 = vpop.f32.mrb[0].mxu0
        %1627 = vmatprep.mubr.bf16.mxu0 %v1133
        %1628 = vmatmul.mubr.bf16.gmra.mrb[0].mxu0 %v1132
        %v1629 = vpop.f32.mrb[0].mxu0
        %v1630 = vadd.f32 %v1581, %v1629
        %v1631 = vpop.f32.mrb[0].mxu0
        %v1632 = vpop.f32.mrb[0].mxu0
        %v1633 = vadd.f32 %v1584, %v1632
        %v1634 = vpop.f32.mrb[0].mxu0
        %1635 = vdwg.mxu0
        %1636 = vmatprep.subr.bf16.mxu0 0
        %1637 = vmatpush1.bf16.msra.mxu0 %v1442
        %1638 = vmatprep.subr.bf16.mxu0 0
        %1639 = vmatpush1.bf16.msra.mxu0 %v1443
        %1640 = vmatprep.subr.bf16.mxu0 0
        %1641 = vmatpush1.bf16.msra.mxu0 %v1444
        %1642 = vmatprep.subr.bf16.mxu0 0
        %1643 = vmatpush1.bf16.msra.mxu0 %v1445
        %1644 = vmatprep.subr.bf16.mxu0 0
        %1645 = vmatpush1.bf16.msra.mxu0 %v1446
        %1646 = vmatprep.subr.bf16.mxu0 0
        %1647 = vmatpush1.bf16.msra.mxu0 %v1447
        %1648 = vmatprep.subr.bf16.mxu0 0
        %1649 = vmatpush1.bf16.msra.mxu0 %v1448
        %1650 = vmatprep.subr.bf16.mxu0 0
        %1651 = vmatpush1.bf16.msra.mxu0 %v1449
        %1652 = vmatprep.subr.bf16.mxu0 0
        %1653 = vmatpush1.bf16.msra.mxu0 %v1450
        %1654 = vmatprep.subr.bf16.mxu0 0
        %1655 = vmatpush1.bf16.msra.mxu0 %v1451
        %1656 = vmatprep.subr.bf16.mxu0 0
        %1657 = vmatpush1.bf16.msra.mxu0 %v1452
        %1658 = vmatprep.subr.bf16.mxu0 0
        %1659 = vmatpush1.bf16.msra.mxu0 %v1453
        %1660 = vmatprep.subr.bf16.mxu0 0
        %1661 = vmatpush1.bf16.msra.mxu0 %v1454
        %1662 = vmatprep.subr.bf16.mxu0 0
        %1663 = vmatpush1.bf16.msra.mxu0 %v1455
        %1664 = vmatprep.subr.bf16.mxu0 0
        %1665 = vmatpush1.bf16.msra.mxu0 %v1456
        %1666 = vmatprep.subr.bf16.mxu0 0
        %1667 = vmatpush1.bf16.msra.mxu0 %v1457
        %1668 = vmatprep.mubr.bf16.mxu0 %v1127
        %1669 = vmatmul.mubr.bf16.gmra.mrb[0].mxu0 %v1126
        %v1670 = vpop.f32.mrb[0].mxu0
        %v1671 = vadd.f32 %v1622, %v1670
        %v1672 = vpop.f32.mrb[0].mxu0
        %v1673 = vpop.f32.mrb[0].mxu0
        %v1674 = vadd.f32 %v1625, %v1673
        %v1675 = vpop.f32.mrb[0].mxu0
        %1676 = vmatprep.mubr.bf16.mxu0 %v1135
        %1677 = vmatmul.mubr.bf16.gmra.mrb[0].mxu0 %v1134
        %v1678 = vpop.f32.mrb[0].mxu0
        %v1679 = vadd.f32 %v1630, %v1678
        %v1680 = vpop.f32.mrb[0].mxu0
        %v1681 = vpop.f32.mrb[0].mxu0
        %v1682 = vadd.f32 %v1633, %v1681
        %v1683 = vpop.f32.mrb[0].mxu0
        %1684 = vdwg.mxu0
        %1685 = vmatprep.subr.bf16.mxu0 0
        %1686 = vmatpush1.bf16.msra.mxu0 %v1458
        %1687 = vmatprep.subr.bf16.mxu0 0
        %1688 = vmatpush1.bf16.msra.mxu0 %v1459
        %1689 = vmatprep.subr.bf16.mxu0 0
        %1690 = vmatpush1.bf16.msra.mxu0 %v1460
        %1691 = vmatprep.subr.bf16.mxu0 0
        %1692 = vmatpush1.bf16.msra.mxu0 %v1461
        %1693 = vmatprep.subr.bf16.mxu0 0
        %1694 = vmatpush1.bf16.msra.mxu0 %v1462
        %1695 = vmatprep.subr.bf16.mxu0 0
        %1696 = vmatpush1.bf16.msra.mxu0 %v1463
        %1697 = vmatprep.subr.bf16.mxu0 0
        %1698 = vmatpush1.bf16.msra.mxu0 %v1464
        %1699 = vmatprep.subr.bf16.mxu0 0
        %1700 = vmatpush1.bf16.msra.mxu0 %v1465
        %1701 = vmatprep.subr.bf16.mxu0 0
        %1702 = vmatpush1.bf16.msra.mxu0 %v1466
        %1703 = vmatprep.subr.bf16.mxu0 0
        %1704 = vmatpush1.bf16.msra.mxu0 %v1467
        %1705 = vmatprep.subr.bf16.mxu0 0
        %1706 = vmatpush1.bf16.msra.mxu0 %v1468
        %1707 = vmatprep.subr.bf16.mxu0 0
        %1708 = vmatpush1.bf16.msra.mxu0 %v1469
        %1709 = vmatprep.subr.bf16.mxu0 0
        %1710 = vmatpush1.bf16.msra.mxu0 %v1470
        %1711 = vmatprep.subr.bf16.mxu0 0
        %1712 = vmatpush1.bf16.msra.mxu0 %v1471
        %1713 = vmatprep.subr.bf16.mxu0 0
        %1714 = vmatpush1.bf16.msra.mxu0 %v1472
        %1715 = vmatprep.subr.bf16.mxu0 0
        %1716 = vmatpush1.bf16.msra.mxu0 %v1473
        %1717 = vmatprep.mubr.bf16.mxu0 %v1129
        %1718 = vmatmul.mubr.bf16.gmra.mrb[0].mxu0 %v1128
        %v1719 = vpop.f32.mrb[0].mxu0
        %v1720 = vadd.f32 %v1671, %v1719
        %v1721 = vpop.f32.mrb[0].mxu0
        %v1722 = vpop.f32.mrb[0].mxu0
        %v1723 = vadd.f32 %v1674, %v1722
        %v1724 = vpop.f32.mrb[0].mxu0
        %1725 = vmatprep.mubr.bf16.mxu0 %v1137
        %1726 = vmatmul.mubr.bf16.gmra.mrb[0].mxu0 %v1136
        %v1727 = vpop.f32.mrb[0].mxu0
        %v1728 = vadd.f32 %v1679, %v1727
        %v1729 = vpop.f32.mrb[0].mxu0
        %v1730 = vpop.f32.mrb[0].mxu0
        %v1731 = vadd.f32 %v1682, %v1730
        %v1732 = vpop.f32.mrb[0].mxu0
        %1733 = vdwg.mxu0
        %v1734 = vadd.f32 %v926, %v1720
        %v1735 = vadd.f32 %v927, %v1723
        %v1736 = vadd.f32 %v928, %v1728
        %v1737 = vadd.f32 %v929, %v1731
        %1738 = vst [vmem:[#allocation2] sm:$0xff] %v1734
        %1739 = vst [vmem:[#allocation2 + $0x8] sm:$0xff] %v1735
        %1740 = vst [vmem:[#allocation2 + $0x10] sm:$0xff] %v1736
        %1741 = vst [vmem:[#allocation2 + $0x18] sm:$0xff] %v1737
        %p1742 = scmp.eq.s32.totalorder %s22, 3
        // Predicated region
        $region112: #{patchgan_forward.8} parent=98 // pred_check
          %p1743 = pneg %p1742
        $region113: #{patchgan_forward.8} parent=98 // pred_check_branch
          %1745 = sbr.rel (%p1743) target = $region115
        $region114: #{patchgan_forward.8} parent=98 // pred_region
          %v1746 = vld [vmem:[#allocation2] sm:$0xff]
          %v1747 = vld [vmem:[#allocation2 + $0x8] sm:$0xff]
          %v1748 = vld [vmem:[#allocation2 + $0x10] sm:$0xff]
          %v1749 = vld [vmem:[#allocation2 + $0x18] sm:$0xff]
          %v1750 = vld [vmem:[%s910] sm:$0x1]
          %v1752 = vlaneseq
          %v1753 = vshrl.u32 %v1752, 7
          %v1754 = vsub.s32 0, %v1753
          %v1755 = vrot.slane %v1750, %v1754
          %v1757 = vmul.f32 %v1746, %v1755
          %v1758 = vmul.f32 %v1747, %v1755
          %v1759 = vmul.f32 %v1748, %v1755
          %v1760 = vmul.f32 %v1749, %v1755
          %v1761 = vld [vmem:[%s913] sm:$0x1]
          %v1763 = vlaneseq
          %v1764 = vshrl.u32 %v1763, 7
          %v1765 = vsub.s32 0, %v1764
          %v1766 = vrot.slane %v1761, %v1765
          %v1768 = vadd.f32 %v1757, %v1766
          %v1769 = vadd.f32 %v1758, %v1766
          %v1770 = vadd.f32 %v1759, %v1766
          %v1771 = vadd.f32 %v1760, %v1766
          %vm1772 = vcmp.ge.f32.partialorder %v1768, 0.0
          %vm1773 = vcmp.ge.f32.partialorder %v1769, 0.0
          %vm1774 = vcmp.ge.f32.partialorder %v1770, 0.0
          %vm1775 = vcmp.ge.f32.partialorder %v1771, 0.0
          %v1776 = vmul.f32 %v1768, 0.2
          %v1777 = vmul.f32 %v1769, 0.2
          %v1778 = vmul.f32 %v1770, 0.2
          %v1779 = vmul.f32 %v1771, 0.2
          %v1780 = vsel %vm1772, %v1768, %v1776
          %v1781 = vsel %vm1773, %v1769, %v1777
          %v1782 = vsel %vm1774, %v1770, %v1778
          %v1783 = vsel %vm1775, %v1771, %v1779
          %1784 = vst [vmem:[%s901] sm:$0xff] %v1780
          %1785 = vst [vmem:[%s901 + $0x8] sm:$0xff] %v1781
          %1786 = vst [vmem:[%s901 + $0x10] sm:$0xff] %v1782
          %1787 = vst [vmem:[%s901 + $0x18] sm:$0xff] %v1783
        $region115: #{patchgan_forward.8} parent=98 // pred_fallthru
          _
        %s1788 = sand.u32 %s152, 1
        %s1789 = sand.u32 %s152, 1
        %s1790 = smul.addr %s1789, 32
        %s1791 = scalar_lea.vmem [#allocation5], %s1790
        // Predicated region
        $region116: #{patchgan_forward.8} parent=98 // pred_check
          %p1792 = pneg %p162
        $region117: #{patchgan_forward.8} parent=98 // pred_check_branch
          %1794 = sbr.rel (%p1792) target = $region119
        $region118: #{patchgan_forward.8} parent=98 // pred_region
          %s1795 = smul.u32 4, %s20
          %s1796 = ssub.s32 3, %s1795
          %s1797 = smul.u32 128, %s1796
          %p1798 = scmp.ne.s32.totalorder 0, %s1797
          %s1799 = smul.addr %s1795, 4
          %s1800 = sadd.s32 %s21, %s1799
          %s1801 = smul.addr %s1800, 8
          %s1802 = scalar_lea.vmem %s4, %s1801
          // Predicated region
          $region120: #{patchgan_forward.8} parent=118 // pred_check
            %p1803 = pneg %p1798
          $region121: #{patchgan_forward.8} parent=118 // pred_check_branch
            %1805 = sbr.rel (%p1803) target = $region123
          $region122: #{patchgan_forward.8} parent=118 // pred_region
            // Predicated region
            $region124: #{patchgan_forward.8} parent=122 // pred_check
              _
            $region125: #{patchgan_forward.8} parent=122 // pred_check_branch
              %1807 = sbr.rel (0) target = $region127
            $region126: #{patchgan_forward.8} parent=122 // pred_region
              // Predicated region
              $region146: #{patchgan_forward.8} parent=126 // pred_check
                _
              $region147: #{patchgan_forward.8} parent=126 // pred_check_branch
                %1861 = sbr.rel (0) target = $region149
              $region148: #{patchgan_forward.8} parent=126 // pred_region
                %s1862 = sdiv.u32.pop %s1796, 3
                %s1863 = srem.u32.pop %s1796, 3
                // While loop
                $region150: #{patchgan_forward.8} parent=148 // loop_pre_header
                  _
                $region151: #{patchgan_forward.8} parent=148 // loop_header
                  %s1865 = sphi 0, %s1867
                  %p1866 = scmp.ge.s32.totalorder %s1865, %s1862
                  %s1870 = sphi 0, %s1881
                  %s1871 = sphi %s1791, %s1884
                  %s1872 = sphi %s1802, %s1885
                $region152: #{patchgan_forward.8} parent=148 // loop_header_branch
                  %1869 = sbr.rel (%p1866) target = $region156
                $region153: #{patchgan_forward.8} parent=148 // loop_body
                  %v1873 = vld [vmem:[%s1871] sm:$0xff]
                  %1874 = vst [vmem:[%s1872] sm:$0xff] %v1873
                  %v1875 = vld [vmem:[%s1871 + $0x8] sm:$0xff]
                  %1876 = vst [vmem:[%s1872 + $0x20] sm:$0xff] %v1875
                  %v1877 = vld [vmem:[%s1871 + $0x10] sm:$0xff]
                  %1878 = vst [vmem:[%s1872 + $0x40] sm:$0xff] %v1877
                  %s1879 = sadd.s32 1, %s1870
                  %p1880 = scmp.ge.s32.totalorder %s1879, %s1862
                  %s1881 = scalar_select %p1880, 0, %s1879
                  %s1882 = smul.u32 %s1881, 24
                  %s1883 = smul.u32 %s1881, 96
                  %s1884 = scalar_lea.vmem %s1791, %s1882 [#allocation5]
                  %s1885 = scalar_lea.vmem %s1802, %s1883
                $region154: #{patchgan_forward.8} parent=148 // loop_footer
                  %s1867 = sadd.s32 %s1865, 1
                $region155: #{patchgan_forward.8} parent=148 // loop_footer_branch
                  %1864 = sbr.rel target = $region151
                $region156: #{patchgan_forward.8} parent=148 // loop_exit
                  _
                %s1886 = sdiv.u32.pop %s1796, 3
                %s1887 = srem.u32.pop %s1796, 3
                %s1888 = smul.u32 %s1886, 3
                %s1889 = smul.u32 8, %s1888
                %s1890 = scalar_lea.vmem %s1791, %s1889 [#allocation5]
                %s1891 = smul.u32 32, %s1888
                %s1892 = scalar_lea.vmem %s1802, %s1891
                // While loop
                $region157: #{patchgan_forward.8} parent=148 // loop_pre_header
                  _
                $region158: #{patchgan_forward.8} parent=148 // loop_header
                  %s1894 = sphi 0, %s1896
                  %p1895 = scmp.ge.s32.totalorder %s1894, %s1887
                  %s1899 = sphi 0, %s1906
                  %s1900 = sphi %s1890, %s1909
                  %s1901 = sphi %s1892, %s1910
                $region159: #{patchgan_forward.8} parent=148 // loop_header_branch
                  %1898 = sbr.rel (%p1895) target = $region163
                $region160: #{patchgan_forward.8} parent=148 // loop_body
                  %v1902 = vld [vmem:[%s1900] sm:$0xff]
                  %1903 = vst [vmem:[%s1901] sm:$0xff] %v1902
                  %s1904 = sadd.s32 1, %s1899
                  %p1905 = scmp.ge.s32.totalorder %s1904, %s1887
                  %s1906 = scalar_select %p1905, 0, %s1904
                  %s1907 = smul.u32 %s1906, 8
                  %s1908 = smul.u32 %s1906, 32
                  %s1909 = scalar_lea.vmem %s1890, %s1907 [#allocation5]
                  %s1910 = scalar_lea.vmem %s1892, %s1908
                $region161: #{patchgan_forward.8} parent=148 // loop_footer
                  %s1896 = sadd.s32 %s1894, 1
                $region162: #{patchgan_forward.8} parent=148 // loop_footer_branch
                  %1893 = sbr.rel target = $region158
                $region163: #{patchgan_forward.8} parent=148 // loop_exit
                  _
              $region149: #{patchgan_forward.8} parent=126 // pred_fallthru
                _
              // Predicated region
              $region164: #{patchgan_forward.8} parent=126 // pred_check
                _
              $region165: #{patchgan_forward.8} parent=126 // pred_check_branch
                %1912 = sbr.rel target = $region167
              $region166: #{patchgan_forward.8} parent=126 // pred_region
                _
              $region167: #{patchgan_forward.8} parent=126 // pred_fallthru
                _
            $region127: #{patchgan_forward.8} parent=122 // pred_fallthru
              _
            // Predicated region
            $region128: #{patchgan_forward.8} parent=122 // pred_check
              _
            $region129: #{patchgan_forward.8} parent=122 // pred_check_branch
              %1809 = sbr.rel target = $region131
            $region130: #{patchgan_forward.8} parent=122 // pred_region
              %s1811 = sdiv.u32.pop %s1796, 3
              %s1812 = srem.u32.pop %s1796, 3
              // While loop
              $region132: #{patchgan_forward.8} parent=130 // loop_pre_header
                _
              $region133: #{patchgan_forward.8} parent=130 // loop_header
                %s1814 = sphi 0, %s1816
                %p1815 = scmp.ge.s32.totalorder %s1814, %s1811
                %s1819 = sphi 0, %s1830
                %s1820 = sphi %s1791, %s1833
                %s1821 = sphi %s1802, %s1834
              $region134: #{patchgan_forward.8} parent=130 // loop_header_branch
                %1818 = sbr.rel (%p1815) target = $region138
              $region135: #{patchgan_forward.8} parent=130 // loop_body
                %v1822 = vld [vmem:[%s1820] sm:$0xff]
                %1823 = vst [vmem:[%s1821] sm:$0xff] %v1822
                %v1824 = vld [vmem:[%s1820 + $0x8] sm:$0xff]
                %1825 = vst [vmem:[%s1821 + $0x20] sm:$0xff] %v1824
                %v1826 = vld [vmem:[%s1820 + $0x10] sm:$0xff]
                %1827 = vst [vmem:[%s1821 + $0x40] sm:$0xff] %v1826
                %s1828 = sadd.s32 1, %s1819
                %p1829 = scmp.ge.s32.totalorder %s1828, %s1811
                %s1830 = scalar_select %p1829, 0, %s1828
                %s1831 = smul.u32 %s1830, 24
                %s1832 = smul.u32 %s1830, 96
                %s1833 = scalar_lea.vmem %s1791, %s1831 [#allocation5]
                %s1834 = scalar_lea.vmem %s1802, %s1832
              $region136: #{patchgan_forward.8} parent=130 // loop_footer
                %s1816 = sadd.s32 %s1814, 1
              $region137: #{patchgan_forward.8} parent=130 // loop_footer_branch
                %1813 = sbr.rel target = $region133
              $region138: #{patchgan_forward.8} parent=130 // loop_exit
                _
              %s1835 = sdiv.u32.pop %s1796, 3
              %s1836 = srem.u32.pop %s1796, 3
              %s1837 = smul.u32 %s1835, 3
              %s1838 = smul.u32 8, %s1837
              %s1839 = scalar_lea.vmem %s1791, %s1838 [#allocation5]
              %s1840 = smul.u32 32, %s1837
              %s1841 = scalar_lea.vmem %s1802, %s1840
              // While loop
              $region139: #{patchgan_forward.8} parent=130 // loop_pre_header
                _
              $region140: #{patchgan_forward.8} parent=130 // loop_header
                %s1843 = sphi 0, %s1845
                %p1844 = scmp.ge.s32.totalorder %s1843, %s1836
                %s1848 = sphi 0, %s1855
                %s1849 = sphi %s1839, %s1858
                %s1850 = sphi %s1841, %s1859
              $region141: #{patchgan_forward.8} parent=130 // loop_header_branch
                %1847 = sbr.rel (%p1844) target = $region145
              $region142: #{patchgan_forward.8} parent=130 // loop_body
                %v1851 = vld [vmem:[%s1849] sm:$0xff]
                %1852 = vst [vmem:[%s1850] sm:$0xff] %v1851
                %s1853 = sadd.s32 1, %s1848
                %p1854 = scmp.ge.s32.totalorder %s1853, %s1836
                %s1855 = scalar_select %p1854, 0, %s1853
                %s1856 = smul.u32 %s1855, 8
                %s1857 = smul.u32 %s1855, 32
                %s1858 = scalar_lea.vmem %s1839, %s1856 [#allocation5]
                %s1859 = scalar_lea.vmem %s1841, %s1857
              $region143: #{patchgan_forward.8} parent=130 // loop_footer
                %s1845 = sadd.s32 %s1843, 1
              $region144: #{patchgan_forward.8} parent=130 // loop_footer_branch
                %1842 = sbr.rel target = $region140
              $region145: #{patchgan_forward.8} parent=130 // loop_exit
                _
            $region131: #{patchgan_forward.8} parent=122 // pred_fallthru
              _
          $region123: #{patchgan_forward.8} parent=118 // pred_fallthru
            _
          %1913 = vnop
        $region119: #{patchgan_forward.8} parent=98 // pred_fallthru
          _
      $region99: #{patchgan_forward.8} parent=5 // pred_fallthru
        _
      %p1914 = scmp.le.s32.totalorder 2, %s10
      // Predicated region
      $region168: #{patchgan_forward.8} parent=5 // pred_check
        %p1915 = pneg %p1914
      $region169: #{patchgan_forward.8} parent=5 // pred_check_branch
        %1917 = sbr.rel (%p1915) target = $region171
      $region170: #{patchgan_forward.8} parent=5 // pred_region
        %s1918 = ssub.s32 %s10, 2
        // Predicated region
        $region172: #{patchgan_forward.8} parent=170 // pred_check
          %p1919 = pneg %p168
        $region173: #{patchgan_forward.8} parent=170 // pred_check_branch
          %1921 = sbr.rel (%p1919) target = $region175
        $region174: #{patchgan_forward.8} parent=170 // pred_region
          %s1922 = sand.u32 %s153, 1
          %s1923 = sand.u32 %s153, 1
          %s1924 = smul.addr %s1923, 32
          %s1925 = scalar_lea.vmem [#allocation5], %s1924
        $region175: #{patchgan_forward.8} parent=170 // pred_fallthru
          _
      $region171: #{patchgan_forward.8} parent=5 // pred_fallthru
        _
    $region6: #{patchgan_forward.8} parent=1 // loop_footer
      %s14 = sadd.s32 1, %s10
    $region7: #{patchgan_forward.8} parent=1 // loop_footer_branch
      %9 = sbr.rel target = $region3
    $region8: #{patchgan_forward.8} parent=1 // loop_exit
      _

// kernel: patchgan_forward.9
$region0: #{patchgan_forward.9}
  #allocation0 [shape = 'u32[]', space=smem, size = 0x4, offset = 0x4, fixed_abs, tag = 'smem constant byte address 0x4 - core index']
  #allocation1 [shape = 'u32[144,128]{1,0:T(1,128)}', space=vmem, size = 0x12000, scoped, tag = 'internal scratch']
  #allocation2 [shape = 'f32[16,128]{1,0:T(8,128)}', space=vmem, size = 0x2000, scoped, tag = 'scratch operand']
  %s0 = inlined_call_operand.vmem [shape: bf16[8,8192], index: 0, kind: input, shape index: {}]
  %s1 = inlined_call_operand.vmem [shape: bf16[8192,128], index: 1, kind: input, shape index: {}]
  %s2 = inlined_call_operand.vmem [shape: f32[1,128], index: 2, kind: input, shape index: {}]
  %s3 = inlined_call_operand.vmem [shape: f32[1,128], index: 3, kind: input, shape index: {}]
  %s4 = inlined_call_operand.vmem [shape: f32[8,128], index: 4, kind: output, shape index: {}]
  %s5 = sld [smem:[#allocation0]]
  $region114: #{patchgan_forward.9} parent=0
    _
  %s7 = ssub.s32 1, %s5
  %s8 = scalar_select 0, %s7, %s5
  $region1: #{patchgan_forward.9} parent=0
    #allocation3 [shape = 'u8[65536]{0}', space=vmem, size = 0x10000, scoped, tag = 'input window, operand 0']
    #allocation4 [shape = 'u8[8192]{0}', space=vmem, size = 0x2000, scoped, tag = 'output window, operand 0, single buffered']
    loop: start=0, step=1, limit=10
    $region2: #{patchgan_forward.9} parent=1 // loop_pre_header
      _
    $region3: #{patchgan_forward.9} parent=1 // loop_header
      %s10 = sphi 0, %s14
      %p11 = scmp.ge.s32.totalorder %s10, 10
      %s17 = sphi 0, %s36
      %s18 = sphi 0, %s32
      %s19 = sphi 0, %s28
      %s20 = sphi 0, %s17
      %s21 = sphi 0, %s18
      %s22 = sphi 0, %s19
      %s23 = sphi 0, %s20
      %s24 = sphi 0, %s21
      %s25 = sphi 0, %s22
      %s41 = sphi 0, %s43
      %s44 = sphi 0, %s41
      %s45 = sphi 0, %s44
      %s61 = sphi 0, %s45
      %s69 = sphi 0, %s71
      %s72 = sphi 0, %s69
      %s73 = sphi 0, %s72
      %s89 = sphi 0, %s73
      %s95 = sphi 0, %s97
      %s98 = sphi 0, %s95
      %s99 = sphi 0, %s98
      %s115 = sphi 0, %s99
      %s121 = sphi 0, %s123
      %s124 = sphi 0, %s121
      %s125 = sphi 0, %s124
      %s141 = sphi 0, %s125
      %s149 = sphi 0, %s151
      %s152 = sphi 0, %s149
      %s153 = sphi 0, %s152
      %s169 = sphi 0, %s153
    $region4: #{patchgan_forward.9} parent=1 // loop_header_branch
      %13 = sbr.rel (%p11) target = $region8
    $region5: #{patchgan_forward.9} parent=1 // loop_body
      %s15 = ssub.s32 %s10, 1
      %s16 = ssub.s32 %s10, 2
      %s26 = sadd.s32 1, %s19
      %p27 = scmp.ge.s32.totalorder %s26, 8
      %s28 = scalar_select %p27, 0, %s26
      %s29 = sadd.s32 1, %s18
      %s30 = scalar_select %p27, %s29, %s18
      %p31 = scmp.ge.s32.totalorder %s30, 1
      %s32 = scalar_select %p31, 0, %s30
      %s33 = sadd.s32 1, %s17
      %s34 = scalar_select %p31, %s33, %s17
      %p35 = scmp.ge.s32.totalorder %s34, 1
      %s36 = scalar_select %p35, 0, %s34
      %s37 = ssub.s32 %s17, %s36
      %s38 = ssub.s32 %s19, %s28
      %s39 = sor.u32 %s37, %s38
      %p40 = scmp.eq.s32.totalorder %s39, 0
      %s42 = sadd.s32 %s41, 1
      %s43 = scalar_select %p40, %s41, %s42
      %p46 = pneg %p40
      %p47 = scmp.eq.s32.totalorder %s10, 7
      %p48 = por %p46, %p47
      %p49 = scmp.ne.s32.totalorder %s41, %s44
      %p50 = scmp.eq.s32.totalorder %s10, 0
      %p51 = por %p49, %p50
      %p52 = scmp.ne.s32.totalorder %s41, %s44
      %p53 = scmp.eq.s32.totalorder %s15, 7
      %p54 = por %p52, %p53
      %p55 = scmp.ne.s32.totalorder %s44, %s45
      %p56 = scmp.eq.s32.totalorder %s15, 0
      %p57 = por %p55, %p56
      %p58 = scmp.ne.s32.totalorder %s44, %s45
      %p59 = scmp.eq.s32.totalorder %s16, 7
      %p60 = por %p58, %p59
      %p62 = scmp.ne.s32.totalorder %s45, %s61
      %p63 = scmp.eq.s32.totalorder %s16, 0
      %p64 = por %p62, %p63
      %s65 = ssub.s32 %s19, %s28
      %s66 = ssub.s32 %s18, %s32
      %s67 = sor.u32 %s65, %s66
      %p68 = scmp.eq.s32.totalorder %s67, 0
      %s70 = sadd.s32 %s69, 1
      %s71 = scalar_select %p68, %s69, %s70
      %p74 = pneg %p68
      %p75 = scmp.eq.s32.totalorder %s10, 7
      %p76 = por %p74, %p75
      %p77 = scmp.ne.s32.totalorder %s69, %s72
      %p78 = scmp.eq.s32.totalorder %s10, 0
      %p79 = por %p77, %p78
      %p80 = scmp.ne.s32.totalorder %s69, %s72
      %p81 = scmp.eq.s32.totalorder %s15, 7
      %p82 = por %p80, %p81
      %p83 = scmp.ne.s32.totalorder %s72, %s73
      %p84 = scmp.eq.s32.totalorder %s15, 0
      %p85 = por %p83, %p84
      %p86 = scmp.ne.s32.totalorder %s72, %s73
      %p87 = scmp.eq.s32.totalorder %s16, 7
      %p88 = por %p86, %p87
      %p90 = scmp.ne.s32.totalorder %s73, %s89
      %p91 = scmp.eq.s32.totalorder %s16, 0
      %p92 = por %p90, %p91
      %s93 = ssub.s32 %s18, %s32
      %p94 = scmp.eq.s32.totalorder %s93, 0
      %s96 = sadd.s32 %s95, 1
      %s97 = scalar_select %p94, %s95, %s96
      %p100 = pneg %p94
      %p101 = scmp.eq.s32.totalorder %s10, 7
      %p102 = por %p100, %p101
      %p103 = scmp.ne.s32.totalorder %s95, %s98
      %p104 = scmp.eq.s32.totalorder %s10, 0
      %p105 = por %p103, %p104
      %p106 = scmp.ne.s32.totalorder %s95, %s98
      %p107 = scmp.eq.s32.totalorder %s15, 7
      %p108 = por %p106, %p107
      %p109 = scmp.ne.s32.totalorder %s98, %s99
      %p110 = scmp.eq.s32.totalorder %s15, 0
      %p111 = por %p109, %p110
      %p112 = scmp.ne.s32.totalorder %s98, %s99
      %p113 = scmp.eq.s32.totalorder %s16, 7
      %p114 = por %p112, %p113
      %p116 = scmp.ne.s32.totalorder %s99, %s115
      %p117 = scmp.eq.s32.totalorder %s16, 0
      %p118 = por %p116, %p117
      %s119 = ssub.s32 %s18, %s32
      %p120 = scmp.eq.s32.totalorder %s119, 0
      %s122 = sadd.s32 %s121, 1
      %s123 = scalar_select %p120, %s121, %s122
      %p126 = pneg %p120
      %p127 = scmp.eq.s32.totalorder %s10, 7
      %p128 = por %p126, %p127
      %p129 = scmp.ne.s32.totalorder %s121, %s124
      %p130 = scmp.eq.s32.totalorder %s10, 0
      %p131 = por %p129, %p130
      %p132 = scmp.ne.s32.totalorder %s121, %s124
      %p133 = scmp.eq.s32.totalorder %s15, 7
      %p134 = por %p132, %p133
      %p135 = scmp.ne.s32.totalorder %s124, %s125
      %p136 = scmp.eq.s32.totalorder %s15, 0
      %p137 = por %p135, %p136
      %p138 = scmp.ne.s32.totalorder %s124, %s125
      %p139 = scmp.eq.s32.totalorder %s16, 7
      %p140 = por %p138, %p139
      %p142 = scmp.ne.s32.totalorder %s125, %s141
      %p143 = scmp.eq.s32.totalorder %s16, 0
      %p144 = por %p142, %p143
      %s145 = ssub.s32 %s17, %s36
      %s146 = ssub.s32 %s18, %s32
      %s147 = sor.u32 %s145, %s146
      %p148 = scmp.eq.s32.totalorder %s147, 0
      %s150 = sadd.s32 %s149, 1
      %s151 = scalar_select %p148, %s149, %s150
      %p154 = pneg %p148
      %p155 = scmp.eq.s32.totalorder %s10, 7
      %p156 = por %p154, %p155
      %p157 = scmp.ne.s32.totalorder %s149, %s152
      %p158 = scmp.eq.s32.totalorder %s10, 0
      %p159 = por %p157, %p158
      %p160 = scmp.ne.s32.totalorder %s149, %s152
      %p161 = scmp.eq.s32.totalorder %s15, 7
      %p162 = por %p160, %p161
      %p163 = scmp.ne.s32.totalorder %s152, %s153
      %p164 = scmp.eq.s32.totalorder %s15, 0
      %p165 = por %p163, %p164
      %p166 = scmp.ne.s32.totalorder %s152, %s153
      %p167 = scmp.eq.s32.totalorder %s16, 7
      %p168 = por %p166, %p167
      %p170 = scmp.ne.s32.totalorder %s153, %s169
      %p171 = scmp.eq.s32.totalorder %s16, 0
      %p172 = por %p170, %p171
      %p173 = scmp.le.s32.totalorder 1, %s10
      %p174 = scmp.lt.s32.totalorder %s10, 9
      %p175 = pnand %p173, %p174
      %p176 = pneg %p175
      // Predicated region
      $region9: #{patchgan_forward.9} parent=5 // pred_check
        _
      $region10: #{patchgan_forward.9} parent=5 // pred_check_branch
        %178 = sbr.rel (%p175) target = $region12
      $region11: #{patchgan_forward.9} parent=5 // pred_region
        %s179 = ssub.s32 %s10, 1
        // Predicated region
        $region13: #{patchgan_forward.9} parent=11 // pred_check
          %p180 = pneg %p111
        $region14: #{patchgan_forward.9} parent=11 // pred_check_branch
          %182 = sbr.rel (%p180) target = $region16
        $region15: #{patchgan_forward.9} parent=11 // pred_region
          %p183 = scmp.lt.s32.totalorder %s21, 0
          %s184 = scalar_select %p183, %s21, 0
          %s185 = scalar_lea.vmem %s2, %s184
        $region16: #{patchgan_forward.9} parent=11 // pred_fallthru
          _
        // Predicated region
        $region17: #{patchgan_forward.9} parent=11 // pred_check
          %p186 = pneg %p137
        $region18: #{patchgan_forward.9} parent=11 // pred_check_branch
          %188 = sbr.rel (%p186) target = $region20
        $region19: #{patchgan_forward.9} parent=11 // pred_region
          %p189 = scmp.lt.s32.totalorder %s21, 0
          %s190 = scalar_select %p189, %s21, 0
          %s191 = scalar_lea.vmem %s3, %s190
        $region20: #{patchgan_forward.9} parent=11 // pred_fallthru
          _
      $region12: #{patchgan_forward.9} parent=5 // pred_fallthru
        _
      %p192 = scmp.lt.s32.totalorder %s10, 8
      // Predicated region
      $region21: #{patchgan_forward.9} parent=5 // pred_check
        %p193 = pneg %p192
      $region22: #{patchgan_forward.9} parent=5 // pred_check_branch
        %195 = sbr.rel (%p193) target = $region24
      $region23: #{patchgan_forward.9} parent=5 // pred_region
        // Predicated region
        $region25: #{patchgan_forward.9} parent=23 // pred_check
          %p196 = pneg %p51
        $region26: #{patchgan_forward.9} parent=23 // pred_check_branch
          %198 = sbr.rel (%p196) target = $region28
        $region27: #{patchgan_forward.9} parent=23 // pred_region
          %s199 = sand.u32 %s41, 1
          %s200 = sand.u32 %s41, 1
          %s201 = smul.addr %s200, 64
          %s202 = scalar_lea.vmem [#allocation3], %s201
          %s203 = smul.u32 2, %s17
          %s204 = smul.u32 8, %s19
          %s205 = ssub.s32 1, %s203
          %s206 = smul.u32 64, %s205
          %s207 = smul.u32 %s206, 8
          %p208 = scmp.ne.s32.totalorder 0, %s207
          %s209 = smul.addr %s203, 64
          %s210 = sadd.s32 %s204, %s209
          %s211 = smul.addr %s210, 4
          %s212 = scalar_lea.vmem %s0, %s211
          // Predicated region
          $region29: #{patchgan_forward.9} parent=27 // pred_check
            %p213 = pneg %p208
          $region30: #{patchgan_forward.9} parent=27 // pred_check_branch
            %215 = sbr.rel (%p213) target = $region32
          $region31: #{patchgan_forward.9} parent=27 // pred_region
            // Predicated region
            $region33: #{patchgan_forward.9} parent=31 // pred_check
              _
            $region34: #{patchgan_forward.9} parent=31 // pred_check_branch
              %217 = sbr.rel (0) target = $region36
            $region35: #{patchgan_forward.9} parent=31 // pred_region
              // While loop
              $region37: #{patchgan_forward.9} parent=35 // loop_pre_header
                _
              $region38: #{patchgan_forward.9} parent=35 // loop_header
                %s219 = sphi 0, %s221
                %p220 = scmp.ge.s32.totalorder %s219, %s205
                %s224 = sphi 0, %s237
                %s225 = sphi %s212, %s240
                %s226 = sphi %s202, %s241
              $region39: #{patchgan_forward.9} parent=35 // loop_header_branch
                %223 = sbr.rel (%p220) target = $region43
              $region40: #{patchgan_forward.9} parent=35 // loop_body
                %v227 = vld [vmem:[%s225] sm:$0xff]
                %228 = vst [vmem:[%s226] sm:$0xff] %v227
                %v229 = vld [vmem:[%s225 + $0x8] sm:$0xff]
                %230 = vst [vmem:[%s226 + $0x8] sm:$0xff] %v229
                %v231 = vld [vmem:[%s225 + $0x10] sm:$0xff]
                %232 = vst [vmem:[%s226 + $0x10] sm:$0xff] %v231
                %v233 = vld [vmem:[%s225 + $0x18] sm:$0xff]
                %234 = vst [vmem:[%s226 + $0x18] sm:$0xff] %v233
                %s235 = sadd.s32 1, %s224
                %p236 = scmp.ge.s32.totalorder %s235, %s205
                %s237 = scalar_select %p236, 0, %s235
                %s238 = smul.u32 %s237, 256
                %s239 = smul.u32 %s237, 32
                %s240 = scalar_lea.vmem %s212, %s238
                %s241 = scalar_lea.vmem %s202, %s239 [#allocation3]
              $region41: #{patchgan_forward.9} parent=35 // loop_footer
                %s221 = sadd.s32 %s219, 1
              $region42: #{patchgan_forward.9} parent=35 // loop_footer_branch
                %218 = sbr.rel target = $region38
              $region43: #{patchgan_forward.9} parent=35 // loop_exit
                _
            $region36: #{patchgan_forward.9} parent=31 // pred_fallthru
              _
            // Predicated region
            $region44: #{patchgan_forward.9} parent=31 // pred_check
              _
            $region45: #{patchgan_forward.9} parent=31 // pred_check_branch
              %243 = sbr.rel target = $region47
            $region46: #{patchgan_forward.9} parent=31 // pred_region
              _
            $region47: #{patchgan_forward.9} parent=31 // pred_fallthru
              _
          $region32: #{patchgan_forward.9} parent=27 // pred_fallthru
            _
          %244 = vnop
        $region28: #{patchgan_forward.9} parent=23 // pred_fallthru
          _
        // Predicated region
        $region48: #{patchgan_forward.9} parent=23 // pred_check
          %p245 = pneg %p79
        $region49: #{patchgan_forward.9} parent=23 // pred_check_branch
          %247 = sbr.rel (%p245) target = $region51
        $region50: #{patchgan_forward.9} parent=23 // pred_region
          %s248 = smul.u32 128, %s19
          %p249 = scmp.lt.s32.totalorder %s248, 1023
          %s250 = scalar_select %p249, %s248, 1023
          %p251 = scmp.lt.s32.totalorder %s18, 0
          %s252 = scalar_select %p251, %s18, 0
          %s253 = sadd.s32 %s252, %s250
          %s254 = smul.addr %s253, 4
          %s255 = scalar_lea.vmem %s1, %s254
          %s256 = smul.u32 128, %s19
        $region51: #{patchgan_forward.9} parent=23 // pred_fallthru
          _
      $region24: #{patchgan_forward.9} parent=5 // pred_fallthru
        _
      %p257 = scmp.le.s32.totalorder 1, %s10
      %p258 = scmp.lt.s32.totalorder %s10, 9
      %p259 = pnand %p257, %p258
      %p260 = pneg %p259
      // Predicated region
      $region52: #{patchgan_forward.9} parent=5 // pred_check
        _
      $region53: #{patchgan_forward.9} parent=5 // pred_check_branch
        %262 = sbr.rel (%p259) target = $region55
      $region54: #{patchgan_forward.9} parent=5 // pred_region
        %s263 = ssub.s32 %s10, 1
        %s264 = sand.u32 %s44, 1
        %s265 = sand.u32 %s44, 1
        %s266 = smul.addr %s265, 64
        %s267 = scalar_lea.vmem [#allocation3], %s266
        // Predicated region
        $region56: #{patchgan_forward.9} parent=54 // pred_check
          %p268 = pneg %p57
        $region57: #{patchgan_forward.9} parent=54 // pred_check_branch
          %270 = sbr.rel (%p268) target = $region59
        $region58: #{patchgan_forward.9} parent=54 // pred_region
          _
        $region59: #{patchgan_forward.9} parent=54 // pred_fallthru
          _
        %s271 = sand.u32 %s44, 1
        %s272 = sand.u32 %s44, 1
        %s273 = smul.addr %s272, 64
        %s274 = scalar_lea.vmem [#allocation3], %s273
        %p275 = pneg %p57
        %p276 = pneg %p54
        %s277 = smul.u32 128, %s22
        %p278 = scmp.lt.s32.totalorder %s277, 1023
        %s279 = scalar_select %p278, %s277, 1023
        %p280 = scmp.lt.s32.totalorder %s21, 0
        %s281 = scalar_select %p280, %s21, 0
        %s282 = sadd.s32 %s281, %s279
        %s283 = smul.addr %s282, 4
        %s284 = scalar_lea.vmem %s1, %s283
        %p285 = pneg %p85
        %p286 = pneg %p82
        %p287 = scmp.lt.s32.totalorder %s21, 0
        %s288 = scalar_select %p287, %s21, 0
        %s289 = scalar_lea.vmem %s2, %s288
        %p290 = pneg %p111
        %p291 = pneg %p108
        %p292 = scmp.lt.s32.totalorder %s21, 0
        %s293 = scalar_select %p292, %s21, 0
        %s294 = scalar_lea.vmem %s3, %s293
        %p295 = pneg %p137
        %p296 = pneg %p134
        %p297 = pneg %p165
        %p298 = pneg %p162
        %s299 = smul.u32 2, %s20
        %s300 = smul.u32 8, %s22
        %s301 = ssub.s32 1, %s299
        %s302 = smul.u32 64, %s301
        %s303 = smul.u32 %s302, 8
        %s304 = smul.u32 128, %s22
        %p305 = scmp.lt.s32.totalorder %s304, 1023
        %s306 = scalar_select %p305, %s304, 1023
        %p307 = scmp.lt.s32.totalorder %s21, 0
        %s308 = scalar_select %p307, %s21, 0
        %s309 = sadd.s32 %s308, %s306
        %s310 = smul.addr %s309, 4
        %s311 = scalar_lea.vmem %s1, %s310
        %s312 = smul.u32 128, %s22
        %p313 = scmp.lt.s32.totalorder %s21, 0
        %s314 = scalar_select %p313, %s21, 0
        %s315 = scalar_lea.vmem %s2, %s314
        %p316 = scmp.lt.s32.totalorder %s21, 0
        %s317 = scalar_select %p316, %s21, 0
        %s318 = scalar_lea.vmem %s3, %s317
        %s319 = smul.u32 2, %s20
        %s320 = ssub.s32 1, %s319
        %s321 = smul.u32 128, %s320
        %p323 = scmp.eq.s32.totalorder %s22, 0
        // Predicated region
        $region60: #{patchgan_forward.9} parent=54 // pred_check
          %p324 = pneg %p323
        $region61: #{patchgan_forward.9} parent=54 // pred_check_branch
          %326 = sbr.rel (%p324) target = $region63
        $region62: #{patchgan_forward.9} parent=54 // pred_region
          %327 = vst [vmem:[#allocation2] sm:$0xff] 0.0
          %328 = vst [vmem:[#allocation2 + $0x8] sm:$0xff] 0.0
        $region63: #{patchgan_forward.9} parent=54 // pred_fallthru
          _
        %v329 = vld [vmem:[#allocation2] sm:$0xff]
        %v330 = vld [vmem:[#allocation2 + $0x8] sm:$0xff]
        %v331 = vld [vmem:[%s267] sm:$0xff]
        %v332 = vld [vmem:[%s267 + $0x8] sm:$0xff]
        %v333 = vld [vmem:[%s267 + $0x10] sm:$0xff]
        %v334 = vld [vmem:[%s267 + $0x18] sm:$0xff]
        %v335 = vld [vmem:[%s267 + $0x20] sm:$0xff]
        %v336 = vld [vmem:[%s267 + $0x28] sm:$0xff]
        %v337 = vld [vmem:[%s267 + $0x30] sm:$0xff]
        %v338 = vld [vmem:[%s267 + $0x38] sm:$0xff]
        %v339 = vld [vmem:[%s311] sm:$0xf]
        %v340 = vld [vmem:[%s311 + $0x4] sm:$0xf]
        %v341 = vld [vmem:[%s311 + $0x8] sm:$0xf]
        %v342 = vld [vmem:[%s311 + $0xc] sm:$0xf]
        %v343 = vld [vmem:[%s311 + $0x10] sm:$0xf]
        %v344 = vld [vmem:[%s311 + $0x14] sm:$0xf]
        %v345 = vld [vmem:[%s311 + $0x18] sm:$0xf]
        %v346 = vld [vmem:[%s311 + $0x1c] sm:$0xf]
        %v347 = vld [vmem:[%s311 + $0x20] sm:$0xf]
        %v348 = vld [vmem:[%s311 + $0x24] sm:$0xf]
        %v349 = vld [vmem:[%s311 + $0x28] sm:$0xf]
        %v350 = vld [vmem:[%s311 + $0x2c] sm:$0xf]
        %v351 = vld [vmem:[%s311 + $0x30] sm:$0xf]
        %v352 = vld [vmem:[%s311 + $0x34] sm:$0xf]
        %v353 = vld [vmem:[%s311 + $0x38] sm:$0xf]
        %v354 = vld [vmem:[%s311 + $0x3c] sm:$0xf]
        %v355 = vld [vmem:[%s311 + $0x40] sm:$0xf]
        %v356 = vld [vmem:[%s311 + $0x44] sm:$0xf]
        %v357 = vld [vmem:[%s311 + $0x48] sm:$0xf]
        %v358 = vld [vmem:[%s311 + $0x4c] sm:$0xf]
        %v359 = vld [vmem:[%s311 + $0x50] sm:$0xf]
        %v360 = vld [vmem:[%s311 + $0x54] sm:$0xf]
        %v361 = vld [vmem:[%s311 + $0x58] sm:$0xf]
        %v362 = vld [vmem:[%s311 + $0x5c] sm:$0xf]
        %v363 = vld [vmem:[%s311 + $0x60] sm:$0xf]
        %v364 = vld [vmem:[%s311 + $0x64] sm:$0xf]
        %v365 = vld [vmem:[%s311 + $0x68] sm:$0xf]
        %v366 = vld [vmem:[%s311 + $0x6c] sm:$0xf]
        %v367 = vld [vmem:[%s311 + $0x70] sm:$0xf]
        %v368 = vld [vmem:[%s311 + $0x74] sm:$0xf]
        %v369 = vld [vmem:[%s311 + $0x78] sm:$0xf]
        %v370 = vld [vmem:[%s311 + $0x7c] sm:$0xf]
        %v371 = vld [vmem:[%s311 + $0x80] sm:$0xf]
        %v372 = vld [vmem:[%s311 + $0x84] sm:$0xf]
        %v373 = vld [vmem:[%s311 + $0x88] sm:$0xf]
        %v374 = vld [vmem:[%s311 + $0x8c] sm:$0xf]
        %v375 = vld [vmem:[%s311 + $0x90] sm:$0xf]
        %v376 = vld [vmem:[%s311 + $0x94] sm:$0xf]
        %v377 = vld [vmem:[%s311 + $0x98] sm:$0xf]
        %v378 = vld [vmem:[%s311 + $0x9c] sm:$0xf]
        %v379 = vld [vmem:[%s311 + $0xa0] sm:$0xf]
        %v380 = vld [vmem:[%s311 + $0xa4] sm:$0xf]
        %v381 = vld [vmem:[%s311 + $0xa8] sm:$0xf]
        %v382 = vld [vmem:[%s311 + $0xac] sm:$0xf]
        %v383 = vld [vmem:[%s311 + $0xb0] sm:$0xf]
        %v384 = vld [vmem:[%s311 + $0xb4] sm:$0xf]
        %v385 = vld [vmem:[%s311 + $0xb8] sm:$0xf]
        %v386 = vld [vmem:[%s311 + $0xbc] sm:$0xf]
        %v387 = vld [vmem:[%s311 + $0xc0] sm:$0xf]
        %v388 = vld [vmem:[%s311 + $0xc4] sm:$0xf]
        %v389 = vld [vmem:[%s311 + $0xc8] sm:$0xf]
        %v390 = vld [vmem:[%s311 + $0xcc] sm:$0xf]
        %v391 = vld [vmem:[%s311 + $0xd0] sm:$0xf]
        %v392 = vld [vmem:[%s311 + $0xd4] sm:$0xf]
        %v393 = vld [vmem:[%s311 + $0xd8] sm:$0xf]
        %v394 = vld [vmem:[%s311 + $0xdc] sm:$0xf]
        %v395 = vld [vmem:[%s311 + $0xe0] sm:$0xf]
        %v396 = vld [vmem:[%s311 + $0xe4] sm:$0xf]
        %v397 = vld [vmem:[%s311 + $0xe8] sm:$0xf]
        %v398 = vld [vmem:[%s311 + $0xec] sm:$0xf]
        %v399 = vld [vmem:[%s311 + $0xf0] sm:$0xf]
        %v400 = vld [vmem:[%s311 + $0xf4] sm:$0xf]
        %v401 = vld [vmem:[%s311 + $0xf8] sm:$0xf]
        %v402 = vld [vmem:[%s311 + $0xfc] sm:$0xf]
        %v403 = vld [vmem:[%s311 + $0x100] sm:$0xf]
        %v404 = vld [vmem:[%s311 + $0x104] sm:$0xf]
        %v405 = vld [vmem:[%s311 + $0x108] sm:$0xf]
        %v406 = vld [vmem:[%s311 + $0x10c] sm:$0xf]
        %v407 = vld [vmem:[%s311 + $0x110] sm:$0xf]
        %v408 = vld [vmem:[%s311 + $0x114] sm:$0xf]
        %v409 = vld [vmem:[%s311 + $0x118] sm:$0xf]
        %v410 = vld [vmem:[%s311 + $0x11c] sm:$0xf]
        %v411 = vld [vmem:[%s311 + $0x120] sm:$0xf]
        %v412 = vld [vmem:[%s311 + $0x124] sm:$0xf]
        %v413 = vld [vmem:[%s311 + $0x128] sm:$0xf]
        %v414 = vld [vmem:[%s311 + $0x12c] sm:$0xf]
        %v415 = vld [vmem:[%s311 + $0x130] sm:$0xf]
        %v416 = vld [vmem:[%s311 + $0x134] sm:$0xf]
        %v417 = vld [vmem:[%s311 + $0x138] sm:$0xf]
        %v418 = vld [vmem:[%s311 + $0x13c] sm:$0xf]
        %v419 = vld [vmem:[%s311 + $0x140] sm:$0xf]
        %v420 = vld [vmem:[%s311 + $0x144] sm:$0xf]
        %v421 = vld [vmem:[%s311 + $0x148] sm:$0xf]
        %v422 = vld [vmem:[%s311 + $0x14c] sm:$0xf]
        %v423 = vld [vmem:[%s311 + $0x150] sm:$0xf]
        %v424 = vld [vmem:[%s311 + $0x154] sm:$0xf]
        %v425 = vld [vmem:[%s311 + $0x158] sm:$0xf]
        %v426 = vld [vmem:[%s311 + $0x15c] sm:$0xf]
        %v427 = vld [vmem:[%s311 + $0x160] sm:$0xf]
        %v428 = vld [vmem:[%s311 + $0x164] sm:$0xf]
        %v429 = vld [vmem:[%s311 + $0x168] sm:$0xf]
        %v430 = vld [vmem:[%s311 + $0x16c] sm:$0xf]
        %v431 = vld [vmem:[%s311 + $0x170] sm:$0xf]
        %v432 = vld [vmem:[%s311 + $0x174] sm:$0xf]
        %v433 = vld [vmem:[%s311 + $0x178] sm:$0xf]
        %v434 = vld [vmem:[%s311 + $0x17c] sm:$0xf]
        %v435 = vld [vmem:[%s311 + $0x180] sm:$0xf]
        %v436 = vld [vmem:[%s311 + $0x184] sm:$0xf]
        %v437 = vld [vmem:[%s311 + $0x188] sm:$0xf]
        %v438 = vld [vmem:[%s311 + $0x18c] sm:$0xf]
        %v439 = vld [vmem:[%s311 + $0x190] sm:$0xf]
        %v440 = vld [vmem:[%s311 + $0x194] sm:$0xf]
        %v441 = vld [vmem:[%s311 + $0x198] sm:$0xf]
        %v442 = vld [vmem:[%s311 + $0x19c] sm:$0xf]
        %v443 = vld [vmem:[%s311 + $0x1a0] sm:$0xf]
        %v444 = vld [vmem:[%s311 + $0x1a4] sm:$0xf]
        %v445 = vld [vmem:[%s311 + $0x1a8] sm:$0xf]
        %v446 = vld [vmem:[%s311 + $0x1ac] sm:$0xf]
        %v447 = vld [vmem:[%s311 + $0x1b0] sm:$0xf]
        %v448 = vld [vmem:[%s311 + $0x1b4] sm:$0xf]
        %v449 = vld [vmem:[%s311 + $0x1b8] sm:$0xf]
        %v450 = vld [vmem:[%s311 + $0x1bc] sm:$0xf]
        %v451 = vld [vmem:[%s311 + $0x1c0] sm:$0xf]
        %v452 = vld [vmem:[%s311 + $0x1c4] sm:$0xf]
        %v453 = vld [vmem:[%s311 + $0x1c8] sm:$0xf]
        %v454 = vld [vmem:[%s311 + $0x1cc] sm:$0xf]
        %v455 = vld [vmem:[%s311 + $0x1d0] sm:$0xf]
        %v456 = vld [vmem:[%s311 + $0x1d4] sm:$0xf]
        %v457 = vld [vmem:[%s311 + $0x1d8] sm:$0xf]
        %v458 = vld [vmem:[%s311 + $0x1dc] sm:$0xf]
        %v459 = vld [vmem:[%s311 + $0x1e0] sm:$0xf]
        %v460 = vld [vmem:[%s311 + $0x1e4] sm:$0xf]
        %v461 = vld [vmem:[%s311 + $0x1e8] sm:$0xf]
        %v462 = vld [vmem:[%s311 + $0x1ec] sm:$0xf]
        %v463 = vld [vmem:[%s311 + $0x1f0] sm:$0xf]
        %v464 = vld [vmem:[%s311 + $0x1f4] sm:$0xf]
        %v465 = vld [vmem:[%s311 + $0x1f8] sm:$0xf]
        %v466 = vld [vmem:[%s311 + $0x1fc] sm:$0xf]
        %v475 = vunpack.c.l.b16 %v331
        %v476 = vunpack.c.h.b16 %v331
        %v477 = vunpack.c.l.b16 %v332
        %v478 = vunpack.c.h.b16 %v332
        %v479 = vunpack.c.l.b16 %v333
        %v480 = vunpack.c.h.b16 %v333
        %v481 = vunpack.c.l.b16 %v334
        %v482 = vunpack.c.h.b16 %v334
        %v483 = vunpack.c.l.b16 %v335
        %v484 = vunpack.c.h.b16 %v335
        %v485 = vunpack.c.l.b16 %v336
        %v486 = vunpack.c.h.b16 %v336
        %v487 = vunpack.c.l.b16 %v337
        %v488 = vunpack.c.h.b16 %v337
        %v489 = vunpack.c.l.b16 %v338
        %v490 = vunpack.c.h.b16 %v338
        %v491 = vpack.c.b16 %v483, %v475
        %v492 = vpack.c.b16 %v484, %v476
        %v493 = vpack.c.b16 %v485, %v477
        %v494 = vpack.c.b16 %v486, %v478
        %v495 = vpack.c.b16 %v487, %v479
        %v496 = vpack.c.b16 %v488, %v480
        %v497 = vpack.c.b16 %v489, %v481
        %v498 = vpack.c.b16 %v490, %v482
        %v635 = vunpack.c.l.b16 %v339
        %v636 = vunpack.c.l.b16 %v340
        %v637 = vunpack.c.l.b16 %v341
        %v638 = vunpack.c.l.b16 %v342
        %v639 = vunpack.c.l.b16 %v343
        %v640 = vunpack.c.l.b16 %v344
        %v641 = vunpack.c.l.b16 %v345
        %v642 = vunpack.c.l.b16 %v346
        %v643 = vunpack.c.l.b16 %v347
        %v644 = vunpack.c.l.b16 %v348
        %v645 = vunpack.c.l.b16 %v349
        %v646 = vunpack.c.l.b16 %v350
        %v647 = vunpack.c.l.b16 %v351
        %v648 = vunpack.c.l.b16 %v352
        %v649 = vunpack.c.l.b16 %v353
        %v650 = vunpack.c.l.b16 %v354
        %v651 = vunpack.c.l.b16 %v355
        %v652 = vunpack.c.l.b16 %v356
        %v653 = vunpack.c.l.b16 %v357
        %v654 = vunpack.c.l.b16 %v358
        %v655 = vunpack.c.l.b16 %v359
        %v656 = vunpack.c.l.b16 %v360
        %v657 = vunpack.c.l.b16 %v361
        %v658 = vunpack.c.l.b16 %v362
        %v659 = vunpack.c.l.b16 %v363
        %v660 = vunpack.c.l.b16 %v364
        %v661 = vunpack.c.l.b16 %v365
        %v662 = vunpack.c.l.b16 %v366
        %v663 = vunpack.c.l.b16 %v367
        %v664 = vunpack.c.l.b16 %v368
        %v665 = vunpack.c.l.b16 %v369
        %v666 = vunpack.c.l.b16 %v370
        %v667 = vunpack.c.l.b16 %v371
        %v668 = vunpack.c.l.b16 %v372
        %v669 = vunpack.c.l.b16 %v373
        %v670 = vunpack.c.l.b16 %v374
        %v671 = vunpack.c.l.b16 %v375
        %v672 = vunpack.c.l.b16 %v376
        %v673 = vunpack.c.l.b16 %v377
        %v674 = vunpack.c.l.b16 %v378
        %v675 = vunpack.c.l.b16 %v379
        %v676 = vunpack.c.l.b16 %v380
        %v677 = vunpack.c.l.b16 %v381
        %v678 = vunpack.c.l.b16 %v382
        %v679 = vunpack.c.l.b16 %v383
        %v680 = vunpack.c.l.b16 %v384
        %v681 = vunpack.c.l.b16 %v385
        %v682 = vunpack.c.l.b16 %v386
        %v683 = vunpack.c.l.b16 %v387
        %v684 = vunpack.c.l.b16 %v388
        %v685 = vunpack.c.l.b16 %v389
        %v686 = vunpack.c.l.b16 %v390
        %v687 = vunpack.c.l.b16 %v391
        %v688 = vunpack.c.l.b16 %v392
        %v689 = vunpack.c.l.b16 %v393
        %v690 = vunpack.c.l.b16 %v394
        %v691 = vunpack.c.l.b16 %v395
        %v692 = vunpack.c.l.b16 %v396
        %v693 = vunpack.c.l.b16 %v397
        %v694 = vunpack.c.l.b16 %v398
        %v695 = vunpack.c.l.b16 %v399
        %v696 = vunpack.c.l.b16 %v400
        %v697 = vunpack.c.l.b16 %v401
        %v698 = vunpack.c.l.b16 %v402
        %v699 = vunpack.c.l.b16 %v403
        %v700 = vunpack.c.l.b16 %v404
        %v701 = vunpack.c.l.b16 %v405
        %v702 = vunpack.c.l.b16 %v406
        %v703 = vunpack.c.l.b16 %v407
        %v704 = vunpack.c.l.b16 %v408
        %v705 = vunpack.c.l.b16 %v409
        %v706 = vunpack.c.l.b16 %v410
        %v707 = vunpack.c.l.b16 %v411
        %v708 = vunpack.c.l.b16 %v412
        %v709 = vunpack.c.l.b16 %v413
        %v710 = vunpack.c.l.b16 %v414
        %v711 = vunpack.c.l.b16 %v415
        %v712 = vunpack.c.l.b16 %v416
        %v713 = vunpack.c.l.b16 %v417
        %v714 = vunpack.c.l.b16 %v418
        %v715 = vunpack.c.l.b16 %v419
        %v716 = vunpack.c.l.b16 %v420
        %v717 = vunpack.c.l.b16 %v421
        %v718 = vunpack.c.l.b16 %v422
        %v719 = vunpack.c.l.b16 %v423
        %v720 = vunpack.c.l.b16 %v424
        %v721 = vunpack.c.l.b16 %v425
        %v722 = vunpack.c.l.b16 %v426
        %v723 = vunpack.c.l.b16 %v427
        %v724 = vunpack.c.l.b16 %v428
        %v725 = vunpack.c.l.b16 %v429
        %v726 = vunpack.c.l.b16 %v430
        %v727 = vunpack.c.l.b16 %v431
        %v728 = vunpack.c.l.b16 %v432
        %v729 = vunpack.c.l.b16 %v433
        %v730 = vunpack.c.l.b16 %v434
        %v731 = vunpack.c.l.b16 %v435
        %v732 = vunpack.c.l.b16 %v436
        %v733 = vunpack.c.l.b16 %v437
        %v734 = vunpack.c.l.b16 %v438
        %v735 = vunpack.c.l.b16 %v439
        %v736 = vunpack.c.l.b16 %v440
        %v737 = vunpack.c.l.b16 %v441
        %v738 = vunpack.c.l.b16 %v442
        %v739 = vunpack.c.l.b16 %v443
        %v740 = vunpack.c.l.b16 %v444
        %v741 = vunpack.c.l.b16 %v445
        %v742 = vunpack.c.l.b16 %v446
        %v743 = vunpack.c.l.b16 %v447
        %v744 = vunpack.c.l.b16 %v448
        %v745 = vunpack.c.l.b16 %v449
        %v746 = vunpack.c.l.b16 %v450
        %v747 = vunpack.c.l.b16 %v451
        %v748 = vunpack.c.l.b16 %v452
        %v749 = vunpack.c.l.b16 %v453
        %v750 = vunpack.c.l.b16 %v454
        %v751 = vunpack.c.l.b16 %v455
        %v752 = vunpack.c.l.b16 %v456
        %v753 = vunpack.c.l.b16 %v457
        %v754 = vunpack.c.l.b16 %v458
        %v755 = vunpack.c.l.b16 %v459
        %v756 = vunpack.c.l.b16 %v460
        %v757 = vunpack.c.l.b16 %v461
        %v758 = vunpack.c.l.b16 %v462
        %v759 = vunpack.c.l.b16 %v463
        %v760 = vunpack.c.l.b16 %v464
        %v761 = vunpack.c.l.b16 %v465
        %v762 = vunpack.c.l.b16 %v466
        %v763 = vpack.c.b16 %v636, %v635
        %v764 = vpack.c.b16 %v638, %v637
        %v765 = vpack.c.b16 %v640, %v639
        %v766 = vpack.c.b16 %v642, %v641
        %v767 = vpack.c.b16 %v644, %v643
        %v768 = vpack.c.b16 %v646, %v645
        %v769 = vpack.c.b16 %v648, %v647
        %v770 = vpack.c.b16 %v650, %v649
        %v771 = vpack.c.b16 %v652, %v651
        %v772 = vpack.c.b16 %v654, %v653
        %v773 = vpack.c.b16 %v656, %v655
        %v774 = vpack.c.b16 %v658, %v657
        %v775 = vpack.c.b16 %v660, %v659
        %v776 = vpack.c.b16 %v662, %v661
        %v777 = vpack.c.b16 %v664, %v663
        %v778 = vpack.c.b16 %v666, %v665
        %v779 = vpack.c.b16 %v668, %v667
        %v780 = vpack.c.b16 %v670, %v669
        %v781 = vpack.c.b16 %v672, %v671
        %v782 = vpack.c.b16 %v674, %v673
        %v783 = vpack.c.b16 %v676, %v675
        %v784 = vpack.c.b16 %v678, %v677
        %v785 = vpack.c.b16 %v680, %v679
        %v786 = vpack.c.b16 %v682, %v681
        %v787 = vpack.c.b16 %v684, %v683
        %v788 = vpack.c.b16 %v686, %v685
        %v789 = vpack.c.b16 %v688, %v687
        %v790 = vpack.c.b16 %v690, %v689
        %v791 = vpack.c.b16 %v692, %v691
        %v792 = vpack.c.b16 %v694, %v693
        %v793 = vpack.c.b16 %v696, %v695
        %v794 = vpack.c.b16 %v698, %v697
        %v795 = vpack.c.b16 %v700, %v699
        %v796 = vpack.c.b16 %v702, %v701
        %v797 = vpack.c.b16 %v704, %v703
        %v798 = vpack.c.b16 %v706, %v705
        %v799 = vpack.c.b16 %v708, %v707
        %v800 = vpack.c.b16 %v710, %v709
        %v801 = vpack.c.b16 %v712, %v711
        %v802 = vpack.c.b16 %v714, %v713
        %v803 = vpack.c.b16 %v716, %v715
        %v804 = vpack.c.b16 %v718, %v717
        %v805 = vpack.c.b16 %v720, %v719
        %v806 = vpack.c.b16 %v722, %v721
        %v807 = vpack.c.b16 %v724, %v723
        %v808 = vpack.c.b16 %v726, %v725
        %v809 = vpack.c.b16 %v728, %v727
        %v810 = vpack.c.b16 %v730, %v729
        %v811 = vpack.c.b16 %v732, %v731
        %v812 = vpack.c.b16 %v734, %v733
        %v813 = vpack.c.b16 %v736, %v735
        %v814 = vpack.c.b16 %v738, %v737
        %v815 = vpack.c.b16 %v740, %v739
        %v816 = vpack.c.b16 %v742, %v741
        %v817 = vpack.c.b16 %v744, %v743
        %v818 = vpack.c.b16 %v746, %v745
        %v819 = vpack.c.b16 %v748, %v747
        %v820 = vpack.c.b16 %v750, %v749
        %v821 = vpack.c.b16 %v752, %v751
        %v822 = vpack.c.b16 %v754, %v753
        %v823 = vpack.c.b16 %v756, %v755
        %v824 = vpack.c.b16 %v758, %v757
        %v825 = vpack.c.b16 %v760, %v759
        %v826 = vpack.c.b16 %v762, %v761
        %891 = vmatprep.subr.bf16.mxu0 0
        %892 = vmatpush1.bf16.msra.mxu0 %v763
        %893 = vmatprep.subr.bf16.mxu0 0
        %894 = vmatpush1.bf16.msra.mxu0 %v764
        %895 = vmatprep.subr.bf16.mxu0 0
        %896 = vmatpush1.bf16.msra.mxu0 %v765
        %897 = vmatprep.subr.bf16.mxu0 0
        %898 = vmatpush1.bf16.msra.mxu0 %v766
        %899 = vmatprep.subr.bf16.mxu0 0
        %900 = vmatpush1.bf16.msra.mxu0 %v767
        %901 = vmatprep.subr.bf16.mxu0 0
        %902 = vmatpush1.bf16.msra.mxu0 %v768
        %903 = vmatprep.subr.bf16.mxu0 0
        %904 = vmatpush1.bf16.msra.mxu0 %v769
        %905 = vmatprep.subr.bf16.mxu0 0
        %906 = vmatpush1.bf16.msra.mxu0 %v770
        %907 = vmatprep.subr.bf16.mxu0 0
        %908 = vmatpush1.bf16.msra.mxu0 %v771
        %909 = vmatprep.subr.bf16.mxu0 0
        %910 = vmatpush1.bf16.msra.mxu0 %v772
        %911 = vmatprep.subr.bf16.mxu0 0
        %912 = vmatpush1.bf16.msra.mxu0 %v773
        %913 = vmatprep.subr.bf16.mxu0 0
        %914 = vmatpush1.bf16.msra.mxu0 %v774
        %915 = vmatprep.subr.bf16.mxu0 0
        %916 = vmatpush1.bf16.msra.mxu0 %v775
        %917 = vmatprep.subr.bf16.mxu0 0
        %918 = vmatpush1.bf16.msra.mxu0 %v776
        %919 = vmatprep.subr.bf16.mxu0 0
        %920 = vmatpush1.bf16.msra.mxu0 %v777
        %921 = vmatprep.subr.bf16.mxu0 0
        %922 = vmatpush1.bf16.msra.mxu0 %v778
        %923 = vmatprep.mubr.bf16.mxu0 %v492
        %924 = vmatmul.mubr.bf16.gmra.mrb[0].mxu0 %v491
        %v925 = vpop.f32.mrb[0].mxu0
        %v926 = vadd.f32 0.0, %v925
        %v927 = vpop.f32.mrb[0].mxu0
        %v928 = vpop.f32.mrb[0].mxu0
        %v929 = vadd.f32 0.0, %v928
        %v930 = vpop.f32.mrb[0].mxu0
        %931 = vdwg.mxu0
        %932 = vmatprep.subr.bf16.mxu0 0
        %933 = vmatpush1.bf16.msra.mxu0 %v779
        %934 = vmatprep.subr.bf16.mxu0 0
        %935 = vmatpush1.bf16.msra.mxu0 %v780
        %936 = vmatprep.subr.bf16.mxu0 0
        %937 = vmatpush1.bf16.msra.mxu0 %v781
        %938 = vmatprep.subr.bf16.mxu0 0
        %939 = vmatpush1.bf16.msra.mxu0 %v782
        %940 = vmatprep.subr.bf16.mxu0 0
        %941 = vmatpush1.bf16.msra.mxu0 %v783
        %942 = vmatprep.subr.bf16.mxu0 0
        %943 = vmatpush1.bf16.msra.mxu0 %v784
        %944 = vmatprep.subr.bf16.mxu0 0
        %945 = vmatpush1.bf16.msra.mxu0 %v785
        %946 = vmatprep.subr.bf16.mxu0 0
        %947 = vmatpush1.bf16.msra.mxu0 %v786
        %948 = vmatprep.subr.bf16.mxu0 0
        %949 = vmatpush1.bf16.msra.mxu0 %v787
        %950 = vmatprep.subr.bf16.mxu0 0
        %951 = vmatpush1.bf16.msra.mxu0 %v788
        %952 = vmatprep.subr.bf16.mxu0 0
        %953 = vmatpush1.bf16.msra.mxu0 %v789
        %954 = vmatprep.subr.bf16.mxu0 0
        %955 = vmatpush1.bf16.msra.mxu0 %v790
        %956 = vmatprep.subr.bf16.mxu0 0
        %957 = vmatpush1.bf16.msra.mxu0 %v791
        %958 = vmatprep.subr.bf16.mxu0 0
        %959 = vmatpush1.bf16.msra.mxu0 %v792
        %960 = vmatprep.subr.bf16.mxu0 0
        %961 = vmatpush1.bf16.msra.mxu0 %v793
        %962 = vmatprep.subr.bf16.mxu0 0
        %963 = vmatpush1.bf16.msra.mxu0 %v794
        %964 = vmatprep.mubr.bf16.mxu0 %v494
        %965 = vmatmul.mubr.bf16.gmra.mrb[0].mxu0 %v493
        %v966 = vpop.f32.mrb[0].mxu0
        %v967 = vadd.f32 %v926, %v966
        %v968 = vpop.f32.mrb[0].mxu0
        %v969 = vpop.f32.mrb[0].mxu0
        %v970 = vadd.f32 %v929, %v969
        %v971 = vpop.f32.mrb[0].mxu0
        %972 = vdwg.mxu0
        %973 = vmatprep.subr.bf16.mxu0 0
        %974 = vmatpush1.bf16.msra.mxu0 %v795
        %975 = vmatprep.subr.bf16.mxu0 0
        %976 = vmatpush1.bf16.msra.mxu0 %v796
        %977 = vmatprep.subr.bf16.mxu0 0
        %978 = vmatpush1.bf16.msra.mxu0 %v797
        %979 = vmatprep.subr.bf16.mxu0 0
        %980 = vmatpush1.bf16.msra.mxu0 %v798
        %981 = vmatprep.subr.bf16.mxu0 0
        %982 = vmatpush1.bf16.msra.mxu0 %v799
        %983 = vmatprep.subr.bf16.mxu0 0
        %984 = vmatpush1.bf16.msra.mxu0 %v800
        %985 = vmatprep.subr.bf16.mxu0 0
        %986 = vmatpush1.bf16.msra.mxu0 %v801
        %987 = vmatprep.subr.bf16.mxu0 0
        %988 = vmatpush1.bf16.msra.mxu0 %v802
        %989 = vmatprep.subr.bf16.mxu0 0
        %990 = vmatpush1.bf16.msra.mxu0 %v803
        %991 = vmatprep.subr.bf16.mxu0 0
        %992 = vmatpush1.bf16.msra.mxu0 %v804
        %993 = vmatprep.subr.bf16.mxu0 0
        %994 = vmatpush1.bf16.msra.mxu0 %v805
        %995 = vmatprep.subr.bf16.mxu0 0
        %996 = vmatpush1.bf16.msra.mxu0 %v806
        %997 = vmatprep.subr.bf16.mxu0 0
        %998 = vmatpush1.bf16.msra.mxu0 %v807
        %999 = vmatprep.subr.bf16.mxu0 0
        %1000 = vmatpush1.bf16.msra.mxu0 %v808
        %1001 = vmatprep.subr.bf16.mxu0 0
        %1002 = vmatpush1.bf16.msra.mxu0 %v809
        %1003 = vmatprep.subr.bf16.mxu0 0
        %1004 = vmatpush1.bf16.msra.mxu0 %v810
        %1005 = vmatprep.mubr.bf16.mxu0 %v496
        %1006 = vmatmul.mubr.bf16.gmra.mrb[0].mxu0 %v495
        %v1007 = vpop.f32.mrb[0].mxu0
        %v1008 = vadd.f32 %v967, %v1007
        %v1009 = vpop.f32.mrb[0].mxu0
        %v1010 = vpop.f32.mrb[0].mxu0
        %v1011 = vadd.f32 %v970, %v1010
        %v1012 = vpop.f32.mrb[0].mxu0
        %1013 = vdwg.mxu0
        %1014 = vmatprep.subr.bf16.mxu0 0
        %1015 = vmatpush1.bf16.msra.mxu0 %v811
        %1016 = vmatprep.subr.bf16.mxu0 0
        %1017 = vmatpush1.bf16.msra.mxu0 %v812
        %1018 = vmatprep.subr.bf16.mxu0 0
        %1019 = vmatpush1.bf16.msra.mxu0 %v813
        %1020 = vmatprep.subr.bf16.mxu0 0
        %1021 = vmatpush1.bf16.msra.mxu0 %v814
        %1022 = vmatprep.subr.bf16.mxu0 0
        %1023 = vmatpush1.bf16.msra.mxu0 %v815
        %1024 = vmatprep.subr.bf16.mxu0 0
        %1025 = vmatpush1.bf16.msra.mxu0 %v816
        %1026 = vmatprep.subr.bf16.mxu0 0
        %1027 = vmatpush1.bf16.msra.mxu0 %v817
        %1028 = vmatprep.subr.bf16.mxu0 0
        %1029 = vmatpush1.bf16.msra.mxu0 %v818
        %1030 = vmatprep.subr.bf16.mxu0 0
        %1031 = vmatpush1.bf16.msra.mxu0 %v819
        %1032 = vmatprep.subr.bf16.mxu0 0
        %1033 = vmatpush1.bf16.msra.mxu0 %v820
        %1034 = vmatprep.subr.bf16.mxu0 0
        %1035 = vmatpush1.bf16.msra.mxu0 %v821
        %1036 = vmatprep.subr.bf16.mxu0 0
        %1037 = vmatpush1.bf16.msra.mxu0 %v822
        %1038 = vmatprep.subr.bf16.mxu0 0
        %1039 = vmatpush1.bf16.msra.mxu0 %v823
        %1040 = vmatprep.subr.bf16.mxu0 0
        %1041 = vmatpush1.bf16.msra.mxu0 %v824
        %1042 = vmatprep.subr.bf16.mxu0 0
        %1043 = vmatpush1.bf16.msra.mxu0 %v825
        %1044 = vmatprep.subr.bf16.mxu0 0
        %1045 = vmatpush1.bf16.msra.mxu0 %v826
        %1046 = vmatprep.mubr.bf16.mxu0 %v498
        %1047 = vmatmul.mubr.bf16.gmra.mrb[0].mxu0 %v497
        %v1048 = vpop.f32.mrb[0].mxu0
        %v1049 = vadd.f32 %v1008, %v1048
        %v1050 = vpop.f32.mrb[0].mxu0
        %v1051 = vpop.f32.mrb[0].mxu0
        %v1052 = vadd.f32 %v1011, %v1051
        %v1053 = vpop.f32.mrb[0].mxu0
        %1054 = vdwg.mxu0
        %v1055 = vadd.f32 %v329, %v1049
        %v1056 = vadd.f32 %v330, %v1052
        %1057 = vst [vmem:[#allocation2] sm:$0xff] %v1055
        %1058 = vst [vmem:[#allocation2 + $0x8] sm:$0xff] %v1056
        %p1059 = scmp.eq.s32.totalorder %s22, 7
        // Predicated region
        $region64: #{patchgan_forward.9} parent=54 // pred_check
          %p1060 = pneg %p1059
        $region65: #{patchgan_forward.9} parent=54 // pred_check_branch
          %1062 = sbr.rel (%p1060) target = $region67
        $region66: #{patchgan_forward.9} parent=54 // pred_region
          %v1063 = vld [vmem:[#allocation2] sm:$0xff]
          %v1064 = vld [vmem:[#allocation2 + $0x8] sm:$0xff]
          %v1065 = vld [vmem:[%s315] sm:$0x1]
          %v1067 = vlaneseq
          %v1068 = vshrl.u32 %v1067, 7
          %v1069 = vsub.s32 0, %v1068
          %v1070 = vrot.slane %v1065, %v1069
          %v1072 = vmul.f32 %v1063, %v1070
          %v1073 = vmul.f32 %v1064, %v1070
          %v1074 = vld [vmem:[%s318] sm:$0x1]
          %v1076 = vlaneseq
          %v1077 = vshrl.u32 %v1076, 7
          %v1078 = vsub.s32 0, %v1077
          %v1079 = vrot.slane %v1074, %v1078
          %v1081 = vadd.f32 %v1072, %v1079
          %v1082 = vadd.f32 %v1073, %v1079
          %1083 = vst [vmem:[#allocation4] sm:$0xff] %v1081
          %1084 = vst [vmem:[#allocation4 + $0x8] sm:$0xff] %v1082
        $region67: #{patchgan_forward.9} parent=54 // pred_fallthru
          _
        // Predicated region
        $region68: #{patchgan_forward.9} parent=54 // pred_check
          %p1085 = pneg %p162
        $region69: #{patchgan_forward.9} parent=54 // pred_check_branch
          %1087 = sbr.rel (%p1085) target = $region71
        $region70: #{patchgan_forward.9} parent=54 // pred_region
          %s1088 = smul.u32 2, %s20
          %s1089 = ssub.s32 1, %s1088
          %s1090 = smul.u32 128, %s1089
          %p1091 = scmp.ne.s32.totalorder 0, %s1090
          %s1092 = sadd.s32 %s21, %s1088
          %s1093 = smul.addr %s1092, 8
          %s1094 = scalar_lea.vmem %s4, %s1093
          // Predicated region
          $region72: #{patchgan_forward.9} parent=70 // pred_check
            %p1095 = pneg %p1091
          $region73: #{patchgan_forward.9} parent=70 // pred_check_branch
            %1097 = sbr.rel (%p1095) target = $region75
          $region74: #{patchgan_forward.9} parent=70 // pred_region
            // Predicated region
            $region76: #{patchgan_forward.9} parent=74 // pred_check
              _
            $region77: #{patchgan_forward.9} parent=74 // pred_check_branch
              %1099 = sbr.rel (0) target = $region79
            $region78: #{patchgan_forward.9} parent=74 // pred_region
              // Predicated region
              $region91: #{patchgan_forward.9} parent=78 // pred_check
                _
              $region92: #{patchgan_forward.9} parent=78 // pred_check_branch
                %1122 = sbr.rel (0) target = $region94
              $region93: #{patchgan_forward.9} parent=78 // pred_region
                // While loop
                $region95: #{patchgan_forward.9} parent=93 // loop_pre_header
                  _
                $region96: #{patchgan_forward.9} parent=93 // loop_header
                  %s1124 = sphi 0, %s1126
                  %p1125 = scmp.ge.s32.totalorder %s1124, %s1089
                  %s1129 = sphi 0, %s1136
                  %s1130 = sphi [#allocation4], %s1139
                  %s1131 = sphi %s1094, %s1140
                $region97: #{patchgan_forward.9} parent=93 // loop_header_branch
                  %1128 = sbr.rel (%p1125) target = $region101
                $region98: #{patchgan_forward.9} parent=93 // loop_body
                  %v1132 = vld [vmem:[%s1130] sm:$0xff]
                  %1133 = vst [vmem:[%s1131] sm:$0xff] %v1132
                  %s1134 = sadd.s32 1, %s1129
                  %p1135 = scmp.ge.s32.totalorder %s1134, %s1089
                  %s1136 = scalar_select %p1135, 0, %s1134
                  %s1137 = smul.u32 %s1136, 8
                  %s1138 = smul.u32 %s1136, 8
                  %s1139 = scalar_lea.vmem [#allocation4], %s1137
                  %s1140 = scalar_lea.vmem %s1094, %s1138
                $region99: #{patchgan_forward.9} parent=93 // loop_footer
                  %s1126 = sadd.s32 %s1124, 1
                $region100: #{patchgan_forward.9} parent=93 // loop_footer_branch
                  %1123 = sbr.rel target = $region96
                $region101: #{patchgan_forward.9} parent=93 // loop_exit
                  _
              $region94: #{patchgan_forward.9} parent=78 // pred_fallthru
                _
              // Predicated region
              $region102: #{patchgan_forward.9} parent=78 // pred_check
                _
              $region103: #{patchgan_forward.9} parent=78 // pred_check_branch
                %1142 = sbr.rel target = $region105
              $region104: #{patchgan_forward.9} parent=78 // pred_region
                _
              $region105: #{patchgan_forward.9} parent=78 // pred_fallthru
                _
            $region79: #{patchgan_forward.9} parent=74 // pred_fallthru
              _
            // Predicated region
            $region80: #{patchgan_forward.9} parent=74 // pred_check
              _
            $region81: #{patchgan_forward.9} parent=74 // pred_check_branch
              %1101 = sbr.rel target = $region83
            $region82: #{patchgan_forward.9} parent=74 // pred_region
              // While loop
              $region84: #{patchgan_forward.9} parent=82 // loop_pre_header
                _
              $region85: #{patchgan_forward.9} parent=82 // loop_header
                %s1104 = sphi 0, %s1106
                %p1105 = scmp.ge.s32.totalorder %s1104, %s1089
                %s1109 = sphi 0, %s1116
                %s1110 = sphi [#allocation4], %s1119
                %s1111 = sphi %s1094, %s1120
              $region86: #{patchgan_forward.9} parent=82 // loop_header_branch
                %1108 = sbr.rel (%p1105) target = $region90
              $region87: #{patchgan_forward.9} parent=82 // loop_body
                %v1112 = vld [vmem:[%s1110] sm:$0xff]
                %1113 = vst [vmem:[%s1111] sm:$0xff] %v1112
                %s1114 = sadd.s32 1, %s1109
                %p1115 = scmp.ge.s32.totalorder %s1114, %s1089
                %s1116 = scalar_select %p1115, 0, %s1114
                %s1117 = smul.u32 %s1116, 8
                %s1118 = smul.u32 %s1116, 8
                %s1119 = scalar_lea.vmem [#allocation4], %s1117
                %s1120 = scalar_lea.vmem %s1094, %s1118
              $region88: #{patchgan_forward.9} parent=82 // loop_footer
                %s1106 = sadd.s32 %s1104, 1
              $region89: #{patchgan_forward.9} parent=82 // loop_footer_branch
                %1103 = sbr.rel target = $region85
              $region90: #{patchgan_forward.9} parent=82 // loop_exit
                _
            $region83: #{patchgan_forward.9} parent=74 // pred_fallthru
              _
          $region75: #{patchgan_forward.9} parent=70 // pred_fallthru
            _
          %1143 = vnop
        $region71: #{patchgan_forward.9} parent=54 // pred_fallthru
          _
        // Predicated region
        $region106: #{patchgan_forward.9} parent=54 // pred_check
          %p1144 = pneg %p162
        $region107: #{patchgan_forward.9} parent=54 // pred_check_branch
          %1146 = sbr.rel (%p1144) target = $region109
        $region108: #{patchgan_forward.9} parent=54 // pred_region
          _
        $region109: #{patchgan_forward.9} parent=54 // pred_fallthru
          _
      $region55: #{patchgan_forward.9} parent=5 // pred_fallthru
        _
      %p1147 = scmp.le.s32.totalorder 2, %s10
      // Predicated region
      $region110: #{patchgan_forward.9} parent=5 // pred_check
        %p1148 = pneg %p1147
      $region111: #{patchgan_forward.9} parent=5 // pred_check_branch
        %1150 = sbr.rel (%p1148) target = $region113
      $region112: #{patchgan_forward.9} parent=5 // pred_region
        %s1151 = ssub.s32 %s10, 2
      $region113: #{patchgan_forward.9} parent=5 // pred_fallthru
        _
    $region6: #{patchgan_forward.9} parent=1 // loop_footer
      %s14 = sadd.s32 1, %s10
    $region7: #{patchgan_forward.9} parent=1 // loop_footer_branch
      %9 = sbr.rel target = $region3
    $region8: #{patchgan_forward.9} parent=1 // loop_exit
      _

</llo_original>
